<compile_context>
chip_gen: v7x
topology: tpu7x:2x2x1
jax: 0.10.0
libtpu: 0.0.40
codegen_flags: <defaults>
</compile_context>

<pallas_src>
import functools

import jax
import jax.numpy as jnp
from jax.experimental import pallas as pl
from jax.experimental.pallas import tpu as pltpu


def _round_up(x, m):
    return (x + m - 1) // m * m


def _choose_th(H, C, W, s, itemsize, vmem_budget=8 << 20):
    """Largest H-tile that divides H, is sublane-friendly, and fits the VMEM budget."""
    Co = C // (s * s)
    in_row = C * _round_up(W, 128) * itemsize             # lane-padded input row
    out_row = Co * s * _round_up(W * s, 128) * itemsize   # lane-padded output row
    per_row = 2 * (in_row + out_row)                      # double-buffered in + out
    cands = [d for d in range(1, H + 1) if H % d == 0 and (d % 8 == 0 or d == H)]
    fitting = [d for d in cands if d * per_row <= vmem_budget]
    return max(fitting) if fitting else min(cands)


def _expand_kernel(x_ref, o_ref, *, s):
    # x_ref block: (1, C, th, W) ; o_ref block: (1, Co, th, s, W*s)
    _, C, th, W = x_ref.shape
    Co = C // (s * s)
    x = x_ref[0]                                          # (C, th, W)
    for a in range(s):                                    # static python loop; s is tiny
        cols = [x[(a * s + b) * Co:(a * s + b + 1) * Co, :, :] for b in range(s)]
        # interleave along W: (Co, th, W, s) -> (Co, th, W*s)
        row_a = jnp.stack(cols, axis=-1).reshape(Co, th, W * s)
        # H-interleave is handled by the 5-D output layout: write row `a` directly.
        o_ref[0, :, :, a, :] = row_a.astype(o_ref.dtype)


def expand(x, gain=2):
    """Pallas implementation of Expand.forward (pure data rearrangement)."""
    s = gain
    N, C, H, W = x.shape
    assert C % (s * s) == 0, "channels must be divisible by gain**2"
    Co = C // (s * s)

    th = _choose_th(H, C, W, s, jnp.dtype(x.dtype).itemsize)

    kernel = functools.partial(_expand_kernel, s=s)
    out5 = pl.pallas_call(
        kernel,
        out_shape=jax.ShapeDtypeStruct((N, Co, H, s, W * s), x.dtype),
        grid_spec=pl.GridSpec(
            grid=(N, H // th),
            in_specs=[pl.BlockSpec((1, C, th, W), lambda n, hi: (n, 0, hi, 0))],
            out_specs=pl.BlockSpec((1, Co, th, s, W * s),
                                   lambda n, hi: (n, 0, hi, 0, 0)),
        ),
        compiler_params=pltpu.CompilerParams(
            dimension_semantics=("parallel", "parallel")),
    )(x)
    # Free contiguous reshape: (N, Co, H, s, W*s) -> (N, Co, H*s, W*s)
    return out5.reshape(N, Co, H * s, W * s)


def expand_ref(x, gain=2):
    # Pure-JAX reference mirroring the PyTorch code exactly (for validation).
    s = gain
    N, C, H, W = x.shape
    x6 = x.reshape(N, s, s, C // (s * s), H, W)
    x6 = jnp.transpose(x6, (0, 3, 4, 1, 5, 2))
    return x6.reshape(N, C // (s * s), H * s, W * s)


if __name__ == "__main__":
    # Expand has no learnable parameters; gain=2 as in the module default.
    key = jax.random.PRNGKey(0)
    N, C, H, W = 2, 8, 16, 16
    x = jax.random.normal(key, (N, C, H, W), dtype=jnp.float32)

    y = expand(x, gain=2)
    y = jax.block_until_ready(y)

    y_ref = expand_ref(x, gain=2)
    assert y.shape == (N, C // 4, H * 2, W * 2)
    assert jnp.allclose(y, y_ref), "Pallas output mismatch vs reference"

    print("KERNEL_OK")
</pallas_src>

<mosaic_0001>
module attributes {stable_mosaic.version = 11 : i64} {
  func.func @_expand_kernel(%arg0: i32, %arg1: i32, %arg2: memref<1x8x16x16xf32, #tpu.memory_space<vmem>>, %arg3: memref<1x2x16x2x32xf32, #tpu.memory_space<vmem>>) attributes {dimension_semantics = [#tpu.dimension_semantics<parallel>, #tpu.dimension_semantics<parallel>], iteration_bounds = array<i64: 2, 1>, scalar_prefetch = 0 : i64, scratch_operands = 0 : i64, tpu.core_type = #tpu.core_type<tc>, window_params = [{transform_indices = @transform_0, window_bounds = array<i64: 1, 8, 16, 16>}, {transform_indices = @transform_1, window_bounds = array<i64: 1, 2, 16, 2, 32>}]} {
    %c0 = arith.constant 0 : index
    %c0_0 = arith.constant 0 : index
    %c0_1 = arith.constant 0 : index
    %c0_2 = arith.constant 0 : index
    %0 = vector.load %arg2[%c0, %c0_0, %c0_1, %c0_2] : memref<1x8x16x16xf32, #tpu.memory_space<vmem>>, vector<1x8x16x16xf32>
    %1 = vector.shape_cast %0 : vector<1x8x16x16xf32> to vector<8x16x16xf32>
    %2 = vector.extract_strided_slice %1 {offsets = [0, 0, 0], sizes = [2, 16, 16], strides = [1, 1, 1]} : vector<8x16x16xf32> to vector<2x16x16xf32>
    %3 = vector.extract_strided_slice %1 {offsets = [2, 0, 0], sizes = [2, 16, 16], strides = [1, 1, 1]} : vector<8x16x16xf32> to vector<2x16x16xf32>
    %4 = vector.shape_cast %2 : vector<2x16x16xf32> to vector<2x16x16x1xf32>
    %5 = vector.shape_cast %3 : vector<2x16x16xf32> to vector<2x16x16x1xf32>
    %6 = tpu.concatenate %4, %5 in 3 : vector<2x16x16x1xf32>, vector<2x16x16x1xf32> -> vector<2x16x16x2xf32>
    %7 = vector.shape_cast %6 : vector<2x16x16x2xf32> to vector<2x16x32xf32>
    %c0_3 = arith.constant 0 : index
    %c0_4 = arith.constant 0 : index
    %c0_5 = arith.constant 0 : index
    %c0_6 = arith.constant 0 : index
    %c0_7 = arith.constant 0 : index
    %8 = vector.load %arg3[%c0_3, %c0_4, %c0_5, %c0_6, %c0_7] : memref<1x2x16x2x32xf32, #tpu.memory_space<vmem>>, vector<1x2x16x1x32xf32>
    %9 = vector.shape_cast %8 : vector<1x2x16x1x32xf32> to vector<2x16x32xf32>
    %10 = vector.shape_cast %7 : vector<2x16x32xf32> to vector<1x2x16x1x32xf32>
    tpu.vector_store %arg3[%c0_3, %c0_4, %c0_5, %c0_6, %c0_7], %10 {strides = array<i32>} : memref<1x2x16x2x32xf32, #tpu.memory_space<vmem>>, vector<1x2x16x1x32xf32>,
    %11 = vector.extract_strided_slice %1 {offsets = [4, 0, 0], sizes = [2, 16, 16], strides = [1, 1, 1]} : vector<8x16x16xf32> to vector<2x16x16xf32>
    %12 = vector.extract_strided_slice %1 {offsets = [6, 0, 0], sizes = [2, 16, 16], strides = [1, 1, 1]} : vector<8x16x16xf32> to vector<2x16x16xf32>
    %13 = vector.shape_cast %11 : vector<2x16x16xf32> to vector<2x16x16x1xf32>
    %14 = vector.shape_cast %12 : vector<2x16x16xf32> to vector<2x16x16x1xf32>
    %15 = tpu.concatenate %13, %14 in 3 : vector<2x16x16x1xf32>, vector<2x16x16x1xf32> -> vector<2x16x16x2xf32>
    %16 = vector.shape_cast %15 : vector<2x16x16x2xf32> to vector<2x16x32xf32>
    %c0_8 = arith.constant 0 : index
    %c0_9 = arith.constant 0 : index
    %c0_10 = arith.constant 0 : index
    %c1 = arith.constant 1 : index
    %c0_11 = arith.constant 0 : index
    %17 = vector.load %arg3[%c0_8, %c0_9, %c0_10, %c1, %c0_11] : memref<1x2x16x2x32xf32, #tpu.memory_space<vmem>>, vector<1x2x16x1x32xf32>
    %18 = vector.shape_cast %17 : vector<1x2x16x1x32xf32> to vector<2x16x32xf32>
    %19 = vector.shape_cast %16 : vector<2x16x32xf32> to vector<1x2x16x1x32xf32>
    tpu.vector_store %arg3[%c0_8, %c0_9, %c0_10, %c1, %c0_11], %19 {strides = array<i32>} : memref<1x2x16x2x32xf32, #tpu.memory_space<vmem>>, vector<1x2x16x1x32xf32>,
    return
  }
  func.func @transform_0(%arg0: i32, %arg1: i32) -> (i32, i32, i32, i32) {
    %c0_i32 = arith.constant 0 : i32
    %c0_i32_0 = arith.constant 0 : i32
    %c0_i32_1 = arith.constant 0 : i32
    return %arg0, %c0_i32, %arg1, %c0_i32_0 : i32, i32, i32, i32
  }
  func.func @transform_1(%arg0: i32, %arg1: i32) -> (i32, i32, i32, i32, i32) {
    %c0_i32 = arith.constant 0 : i32
    %c0_i32_0 = arith.constant 0 : i32
    %c0_i32_1 = arith.constant 0 : i32
    %c0_i32_2 = arith.constant 0 : i32
    return %arg0, %c0_i32, %arg1, %c0_i32_0, %c0_i32_1 : i32, i32, i32, i32, i32
  }
}

</mosaic_0001>

<llo_original>
// kernel: tpu_custom_call.1
$region0: #{tpu_custom_call.1}
  #allocation0 [shape = 'u32[]', space=smem, size = 0x4, offset = 0x4, fixed_abs, tag = 'smem constant byte address 0x4 - core index']
  #allocation1 [shape = 'u32[144,128]{1,0:T(1,128)}', space=vmem, size = 0x12000, scoped, tag = 'internal scratch']
  %s0 = inlined_call_operand.hbm [shape: f32[2,8,16,16], index: 0, kind: input, shape index: {}]
  %s1 = inlined_call_operand.hbm [shape: f32[2,2,16,2,32], index: 1, kind: output, shape index: {}]
  %s2 = sld [smem:[#allocation0]]
  $region41: #{tpu_custom_call.1} parent=0
    _
  %s4 = ssub.s32 1, %s2
  %s5 = scalar_select 0, %s4, %s2
  $region1: #{tpu_custom_call.1} parent=0
    #allocation2 [shape = 'u8[131072]{0}', space=vmem, size = 0x20000, scoped, tag = 'input window, operand 0']
    #allocation3 [shape = 's32[2]{0}', space=sflag, size = 0x8, scoped, tag = 'scoped memory for tpu_custom_call.1']
    #allocation4 [shape = 's32[2]{0}', space=sflag, size = 0x8, scoped, tag = 'scoped memory for tpu_custom_call.1']
    #allocation5 [shape = 'u8[65536]{0}', space=vmem, size = 0x10000, scoped, tag = 'output window, operand 0']
    %6 = vsyncpa [#allocation3], 0
    %s7 = scalar_lea.sflag [#allocation3], 1
    %8 = vsyncpa %s7, 0
    %9 = vsyncpa [#allocation4], 0
    %s10 = scalar_lea.sflag [#allocation4], 1
    %11 = vsyncpa %s10, 0
    loop: start=0, step=1, limit=4
    $region2: #{tpu_custom_call.1} parent=1 // loop_pre_header
      _
    $region3: #{tpu_custom_call.1} parent=1 // loop_header
      %s13 = sphi 0, %s17
      %p14 = scmp.ge.s32.totalorder %s13, 4
      %s20 = sphi 0, %s32
      %s21 = sphi 0, %s28
      %s22 = sphi 0, %s20
      %s23 = sphi 0, %s21
      %s24 = sphi 0, %s22
      %s25 = sphi 0, %s23
      %s37 = sphi 0, %s39
      %s40 = sphi 0, %s37
      %s41 = sphi 0, %s40
      %s57 = sphi 0, %s41
      %s65 = sphi 0, %s67
      %s68 = sphi 0, %s65
      %s69 = sphi 0, %s68
      %s85 = sphi 0, %s69
    $region4: #{tpu_custom_call.1} parent=1 // loop_header_branch
      %16 = sbr.rel (%p14) target = $region8
    $region5: #{tpu_custom_call.1} parent=1 // loop_body
      %s18 = ssub.s32 %s13, 1
      %s19 = ssub.s32 %s13, 2
      %s26 = sadd.s32 1, %s21
      %p27 = scmp.ge.s32.totalorder %s26, 1
      %s28 = scalar_select %p27, 0, %s26
      %s29 = sadd.s32 1, %s20
      %s30 = scalar_select %p27, %s29, %s20
      %p31 = scmp.ge.s32.totalorder %s30, 2
      %s32 = scalar_select %p31, 0, %s30
      %s33 = ssub.s32 %s20, %s32
      %s34 = ssub.s32 %s21, %s28
      %s35 = sor.u32 %s33, %s34
      %p36 = scmp.eq.s32.totalorder %s35, 0
      %s38 = sadd.s32 %s37, 1
      %s39 = scalar_select %p36, %s37, %s38
      %p42 = pneg %p36
      %p43 = scmp.eq.s32.totalorder %s13, 1
      %p44 = por %p42, %p43
      %p45 = scmp.ne.s32.totalorder %s37, %s40
      %p46 = scmp.eq.s32.totalorder %s13, 0
      %p47 = por %p45, %p46
      %p48 = scmp.ne.s32.totalorder %s37, %s40
      %p49 = scmp.eq.s32.totalorder %s18, 1
      %p50 = por %p48, %p49
      %p51 = scmp.ne.s32.totalorder %s40, %s41
      %p52 = scmp.eq.s32.totalorder %s18, 0
      %p53 = por %p51, %p52
      %p54 = scmp.ne.s32.totalorder %s40, %s41
      %p55 = scmp.eq.s32.totalorder %s19, 1
      %p56 = por %p54, %p55
      %p58 = scmp.ne.s32.totalorder %s41, %s57
      %p59 = scmp.eq.s32.totalorder %s19, 0
      %p60 = por %p58, %p59
      %s61 = ssub.s32 %s20, %s32
      %s62 = ssub.s32 %s21, %s28
      %s63 = sor.u32 %s61, %s62
      %p64 = scmp.eq.s32.totalorder %s63, 0
      %s66 = sadd.s32 %s65, 1
      %s67 = scalar_select %p64, %s65, %s66
      %p70 = pneg %p64
      %p71 = scmp.eq.s32.totalorder %s13, 1
      %p72 = por %p70, %p71
      %p73 = scmp.ne.s32.totalorder %s65, %s68
      %p74 = scmp.eq.s32.totalorder %s13, 0
      %p75 = por %p73, %p74
      %p76 = scmp.ne.s32.totalorder %s65, %s68
      %p77 = scmp.eq.s32.totalorder %s18, 1
      %p78 = por %p76, %p77
      %p79 = scmp.ne.s32.totalorder %s68, %s69
      %p80 = scmp.eq.s32.totalorder %s18, 0
      %p81 = por %p79, %p80
      %p82 = scmp.ne.s32.totalorder %s68, %s69
      %p83 = scmp.eq.s32.totalorder %s19, 1
      %p84 = por %p82, %p83
      %p86 = scmp.ne.s32.totalorder %s69, %s85
      %p87 = scmp.eq.s32.totalorder %s19, 0
      %p88 = por %p86, %p87
      %p89 = scmp.le.s32.totalorder 1, %s13
      %p90 = scmp.lt.s32.totalorder %s13, 3
      %p91 = pnand %p89, %p90
      %p92 = pneg %p91
      // Predicated region
      $region9: #{tpu_custom_call.1} parent=5 // pred_check
        _
      $region10: #{tpu_custom_call.1} parent=5 // pred_check_branch
        %94 = sbr.rel (%p91) target = $region12
      $region11: #{tpu_custom_call.1} parent=5 // pred_region
        %s95 = ssub.s32 %s13, 1
      $region12: #{tpu_custom_call.1} parent=5 // pred_fallthru
        _
      %p96 = scmp.lt.s32.totalorder %s13, 2
      // Predicated region
      $region13: #{tpu_custom_call.1} parent=5 // pred_check
        %p97 = pneg %p96
      $region14: #{tpu_custom_call.1} parent=5 // pred_check_branch
        %99 = sbr.rel (%p97) target = $region16
      $region15: #{tpu_custom_call.1} parent=5 // pred_region
        // Predicated region
        $region17: #{tpu_custom_call.1} parent=15 // pred_check
          %p100 = pneg %p47
        $region18: #{tpu_custom_call.1} parent=15 // pred_check_branch
          %102 = sbr.rel (%p100) target = $region20
        $region19: #{tpu_custom_call.1} parent=15 // pred_region
          %s103 = sand.u32 %s37, 1
          %s104 = scalar_lea.sflag [#allocation3], %s103
          %s105 = sand.u32 %s37, 1
          %s106 = smul.addr %s105, 128
          %s107 = scalar_lea.vmem [#allocation2], %s106
          %s108 = smul.u32 2, %s21
          %s110 = ssub.s32 2048, 2048
          %111 = vsyncadd %s104, %s110
          %s112 = smul.addr %s20, 16
          %s113 = sadd.s32 %s108, %s112
          %s114 = smul.addr %s113, 128
          %s115 = scalar_lea.hbm %s0, %s114
          %s116 = sshll.u32 %s107, 4
          %s117 = int_to_ptr.vmem [resolvable:$true] %s116
          %122 = dma.hbm_to_vmem [thread:$0]  %s115, 2048, %s117, %s104, 128, 128, 8
        $region20: #{tpu_custom_call.1} parent=15 // pred_fallthru
          _
      $region16: #{tpu_custom_call.1} parent=5 // pred_fallthru
        _
      %p123 = scmp.le.s32.totalorder 1, %s13
      %p124 = scmp.lt.s32.totalorder %s13, 3
      %p125 = pnand %p123, %p124
      %p126 = pneg %p125
      // Predicated region
      $region21: #{tpu_custom_call.1} parent=5 // pred_check
        _
      $region22: #{tpu_custom_call.1} parent=5 // pred_check_branch
        %128 = sbr.rel (%p125) target = $region24
      $region23: #{tpu_custom_call.1} parent=5 // pred_region
        %s129 = ssub.s32 %s13, 1
        %s130 = sand.u32 %s40, 1
        %s131 = scalar_lea.sflag [#allocation3], %s130
        %s132 = sand.u32 %s40, 1
        %s133 = smul.addr %s132, 128
        %s134 = scalar_lea.vmem [#allocation2], %s133
        // Predicated region
        $region25: #{tpu_custom_call.1} parent=23 // pred_check
          %p135 = pneg %p53
        $region26: #{tpu_custom_call.1} parent=23 // pred_check_branch
          %137 = sbr.rel (%p135) target = $region28
        $region27: #{tpu_custom_call.1} parent=23 // pred_region
          %138 = dma.done %s131, 2048
        $region28: #{tpu_custom_call.1} parent=23 // pred_fallthru
          _
        %s139 = sand.u32 %s40, 1
        %s140 = scalar_lea.sflag [#allocation3], %s139
        %s141 = sand.u32 %s40, 1
        %s142 = smul.addr %s141, 128
        %s143 = scalar_lea.vmem [#allocation2], %s142
        %p144 = pneg %p53
        %p145 = pneg %p50
        %p146 = pneg %p81
        %p147 = pneg %p78
        %s148 = sand.u32 %s68, 1
        %s149 = scalar_lea.sflag [#allocation4], %s148
        %s150 = sand.u32 %s68, 1
        %s151 = smul.addr %s150, 64
        %s152 = scalar_lea.vmem [#allocation5], %s151
        %s153 = smul.u32 2, %s23
        %s154 = smul.u32 16, %s23
        %v155 = vld [vmem:[%s134] sm:$0xff]
        %v156 = vld [vmem:[%s134 + $0x8] sm:$0xff]
        %v157 = vld [vmem:[%s134 + $0x10] sm:$0xff]
        %v158 = vld [vmem:[%s134 + $0x18] sm:$0xff]
        %v159 = vld [vmem:[%s134 + $0x20] sm:$0xff]
        %v160 = vld [vmem:[%s134 + $0x28] sm:$0xff]
        %v161 = vld [vmem:[%s134 + $0x30] sm:$0xff]
        %v162 = vld [vmem:[%s134 + $0x38] sm:$0xff]
        %v163 = vld [vmem:[%s134 + $0x40] sm:$0xff]
        %v164 = vld [vmem:[%s134 + $0x48] sm:$0xff]
        %v165 = vld [vmem:[%s134 + $0x50] sm:$0xff]
        %v166 = vld [vmem:[%s134 + $0x58] sm:$0xff]
        %v167 = vld [vmem:[%s134 + $0x60] sm:$0xff]
        %v168 = vld [vmem:[%s134 + $0x68] sm:$0xff]
        %v169 = vld [vmem:[%s134 + $0x70] sm:$0xff]
        %v170 = vld [vmem:[%s134 + $0x78] sm:$0xff]
        %v171 = vlaneseq
        %v172 = vshrl.u32 %v171, 7
        %v173 = vsub.s32 0, %v172
        %v174 = vrot.slane %v155, %v173
        %176 = vbcast.lane.b32.xlu0 %v174, 256
        %v177 = vpop.permute.xlu0 %176
        %s179 = sor.u32 256, 8
        %180 = vbcast.lane.b32.xlu0 %v174, %s179
        %v181 = vpop.permute.xlu0 %180
        %v182 = vlaneseq
        %v183 = vshrl.u32 %v182, 7
        %v184 = vsub.s32 1, %v183
        %v185 = vrot.slane %v155, %v184
        %187 = vbcast.lane.b32.xlu0 %v185, 256
        %v188 = vpop.permute.xlu0 %187
        %s190 = sor.u32 256, 8
        %191 = vbcast.lane.b32.xlu0 %v185, %s190
        %v192 = vpop.permute.xlu0 %191
        %v193 = vlaneseq
        %v194 = vshrl.u32 %v193, 7
        %v195 = vsub.s32 2, %v194
        %v196 = vrot.slane %v155, %v195
        %198 = vbcast.lane.b32.xlu0 %v196, 256
        %v199 = vpop.permute.xlu0 %198
        %s201 = sor.u32 256, 8
        %202 = vbcast.lane.b32.xlu0 %v196, %s201
        %v203 = vpop.permute.xlu0 %202
        %v204 = vlaneseq
        %v205 = vshrl.u32 %v204, 7
        %v206 = vsub.s32 3, %v205
        %v207 = vrot.slane %v155, %v206
        %209 = vbcast.lane.b32.xlu0 %v207, 256
        %v210 = vpop.permute.xlu0 %209
        %s212 = sor.u32 256, 8
        %213 = vbcast.lane.b32.xlu0 %v207, %s212
        %v214 = vpop.permute.xlu0 %213
        %v215 = vlaneseq
        %v216 = vshrl.u32 %v215, 7
        %v217 = vsub.s32 4, %v216
        %v218 = vrot.slane %v155, %v217
        %220 = vbcast.lane.b32.xlu0 %v218, 256
        %v221 = vpop.permute.xlu0 %220
        %s223 = sor.u32 256, 8
        %224 = vbcast.lane.b32.xlu0 %v218, %s223
        %v225 = vpop.permute.xlu0 %224
        %v226 = vlaneseq
        %v227 = vshrl.u32 %v226, 7
        %v228 = vsub.s32 5, %v227
        %v229 = vrot.slane %v155, %v228
        %231 = vbcast.lane.b32.xlu0 %v229, 256
        %v232 = vpop.permute.xlu0 %231
        %s234 = sor.u32 256, 8
        %235 = vbcast.lane.b32.xlu0 %v229, %s234
        %v236 = vpop.permute.xlu0 %235
        %v237 = vlaneseq
        %v238 = vshrl.u32 %v237, 7
        %v239 = vsub.s32 6, %v238
        %v240 = vrot.slane %v155, %v239
        %242 = vbcast.lane.b32.xlu0 %v240, 256
        %v243 = vpop.permute.xlu0 %242
        %s245 = sor.u32 256, 8
        %246 = vbcast.lane.b32.xlu0 %v240, %s245
        %v247 = vpop.permute.xlu0 %246
        %v248 = vlaneseq
        %v249 = vshrl.u32 %v248, 7
        %v250 = vsub.s32 7, %v249
        %v251 = vrot.slane %v155, %v250
        %253 = vbcast.lane.b32.xlu0 %v251, 256
        %v254 = vpop.permute.xlu0 %253
        %s256 = sor.u32 256, 8
        %257 = vbcast.lane.b32.xlu0 %v251, %s256
        %v258 = vpop.permute.xlu0 %257
        %v259 = vlaneseq
        %v260 = vshrl.u32 %v259, 7
        %v261 = vsub.s32 0, %v260
        %v262 = vrot.slane %v156, %v261
        %264 = vbcast.lane.b32.xlu0 %v262, 256
        %v265 = vpop.permute.xlu0 %264
        %s267 = sor.u32 256, 8
        %268 = vbcast.lane.b32.xlu0 %v262, %s267
        %v269 = vpop.permute.xlu0 %268
        %v270 = vlaneseq
        %v271 = vshrl.u32 %v270, 7
        %v272 = vsub.s32 1, %v271
        %v273 = vrot.slane %v156, %v272
        %275 = vbcast.lane.b32.xlu0 %v273, 256
        %v276 = vpop.permute.xlu0 %275
        %s278 = sor.u32 256, 8
        %279 = vbcast.lane.b32.xlu0 %v273, %s278
        %v280 = vpop.permute.xlu0 %279
        %v281 = vlaneseq
        %v282 = vshrl.u32 %v281, 7
        %v283 = vsub.s32 2, %v282
        %v284 = vrot.slane %v156, %v283
        %286 = vbcast.lane.b32.xlu0 %v284, 256
        %v287 = vpop.permute.xlu0 %286
        %s289 = sor.u32 256, 8
        %290 = vbcast.lane.b32.xlu0 %v284, %s289
        %v291 = vpop.permute.xlu0 %290
        %v292 = vlaneseq
        %v293 = vshrl.u32 %v292, 7
        %v294 = vsub.s32 3, %v293
        %v295 = vrot.slane %v156, %v294
        %297 = vbcast.lane.b32.xlu0 %v295, 256
        %v298 = vpop.permute.xlu0 %297
        %s300 = sor.u32 256, 8
        %301 = vbcast.lane.b32.xlu0 %v295, %s300
        %v302 = vpop.permute.xlu0 %301
        %v303 = vlaneseq
        %v304 = vshrl.u32 %v303, 7
        %v305 = vsub.s32 4, %v304
        %v306 = vrot.slane %v156, %v305
        %308 = vbcast.lane.b32.xlu0 %v306, 256
        %v309 = vpop.permute.xlu0 %308
        %s311 = sor.u32 256, 8
        %312 = vbcast.lane.b32.xlu0 %v306, %s311
        %v313 = vpop.permute.xlu0 %312
        %v314 = vlaneseq
        %v315 = vshrl.u32 %v314, 7
        %v316 = vsub.s32 5, %v315
        %v317 = vrot.slane %v156, %v316
        %319 = vbcast.lane.b32.xlu0 %v317, 256
        %v320 = vpop.permute.xlu0 %319
        %s322 = sor.u32 256, 8
        %323 = vbcast.lane.b32.xlu0 %v317, %s322
        %v324 = vpop.permute.xlu0 %323
        %v325 = vlaneseq
        %v326 = vshrl.u32 %v325, 7
        %v327 = vsub.s32 6, %v326
        %v328 = vrot.slane %v156, %v327
        %330 = vbcast.lane.b32.xlu0 %v328, 256
        %v331 = vpop.permute.xlu0 %330
        %s333 = sor.u32 256, 8
        %334 = vbcast.lane.b32.xlu0 %v328, %s333
        %v335 = vpop.permute.xlu0 %334
        %v336 = vlaneseq
        %v337 = vshrl.u32 %v336, 7
        %v338 = vsub.s32 7, %v337
        %v339 = vrot.slane %v156, %v338
        %341 = vbcast.lane.b32.xlu0 %v339, 256
        %v342 = vpop.permute.xlu0 %341
        %s344 = sor.u32 256, 8
        %345 = vbcast.lane.b32.xlu0 %v339, %s344
        %v346 = vpop.permute.xlu0 %345
        %v347 = vlaneseq
        %v348 = vshrl.u32 %v347, 7
        %v349 = vsub.s32 0, %v348
        %v350 = vrot.slane %v157, %v349
        %352 = vbcast.lane.b32.xlu0 %v350, 256
        %v353 = vpop.permute.xlu0 %352
        %s355 = sor.u32 256, 8
        %356 = vbcast.lane.b32.xlu0 %v350, %s355
        %v357 = vpop.permute.xlu0 %356
        %v358 = vlaneseq
        %v359 = vshrl.u32 %v358, 7
        %v360 = vsub.s32 1, %v359
        %v361 = vrot.slane %v157, %v360
        %363 = vbcast.lane.b32.xlu0 %v361, 256
        %v364 = vpop.permute.xlu0 %363
        %s366 = sor.u32 256, 8
        %367 = vbcast.lane.b32.xlu0 %v361, %s366
        %v368 = vpop.permute.xlu0 %367
        %v369 = vlaneseq
        %v370 = vshrl.u32 %v369, 7
        %v371 = vsub.s32 2, %v370
        %v372 = vrot.slane %v157, %v371
        %374 = vbcast.lane.b32.xlu0 %v372, 256
        %v375 = vpop.permute.xlu0 %374
        %s377 = sor.u32 256, 8
        %378 = vbcast.lane.b32.xlu0 %v372, %s377
        %v379 = vpop.permute.xlu0 %378
        %v380 = vlaneseq
        %v381 = vshrl.u32 %v380, 7
        %v382 = vsub.s32 3, %v381
        %v383 = vrot.slane %v157, %v382
        %385 = vbcast.lane.b32.xlu0 %v383, 256
        %v386 = vpop.permute.xlu0 %385
        %s388 = sor.u32 256, 8
        %389 = vbcast.lane.b32.xlu0 %v383, %s388
        %v390 = vpop.permute.xlu0 %389
        %v391 = vlaneseq
        %v392 = vshrl.u32 %v391, 7
        %v393 = vsub.s32 4, %v392
        %v394 = vrot.slane %v157, %v393
        %396 = vbcast.lane.b32.xlu0 %v394, 256
        %v397 = vpop.permute.xlu0 %396
        %s399 = sor.u32 256, 8
        %400 = vbcast.lane.b32.xlu0 %v394, %s399
        %v401 = vpop.permute.xlu0 %400
        %v402 = vlaneseq
        %v403 = vshrl.u32 %v402, 7
        %v404 = vsub.s32 5, %v403
        %v405 = vrot.slane %v157, %v404
        %407 = vbcast.lane.b32.xlu0 %v405, 256
        %v408 = vpop.permute.xlu0 %407
        %s410 = sor.u32 256, 8
        %411 = vbcast.lane.b32.xlu0 %v405, %s410
        %v412 = vpop.permute.xlu0 %411
        %v413 = vlaneseq
        %v414 = vshrl.u32 %v413, 7
        %v415 = vsub.s32 6, %v414
        %v416 = vrot.slane %v157, %v415
        %418 = vbcast.lane.b32.xlu0 %v416, 256
        %v419 = vpop.permute.xlu0 %418
        %s421 = sor.u32 256, 8
        %422 = vbcast.lane.b32.xlu0 %v416, %s421
        %v423 = vpop.permute.xlu0 %422
        %v424 = vlaneseq
        %v425 = vshrl.u32 %v424, 7
        %v426 = vsub.s32 7, %v425
        %v427 = vrot.slane %v157, %v426
        %429 = vbcast.lane.b32.xlu0 %v427, 256
        %v430 = vpop.permute.xlu0 %429
        %s432 = sor.u32 256, 8
        %433 = vbcast.lane.b32.xlu0 %v427, %s432
        %v434 = vpop.permute.xlu0 %433
        %v435 = vlaneseq
        %v436 = vshrl.u32 %v435, 7
        %v437 = vsub.s32 0, %v436
        %v438 = vrot.slane %v158, %v437
        %440 = vbcast.lane.b32.xlu0 %v438, 256
        %v441 = vpop.permute.xlu0 %440
        %s443 = sor.u32 256, 8
        %444 = vbcast.lane.b32.xlu0 %v438, %s443
        %v445 = vpop.permute.xlu0 %444
        %v446 = vlaneseq
        %v447 = vshrl.u32 %v446, 7
        %v448 = vsub.s32 1, %v447
        %v449 = vrot.slane %v158, %v448
        %451 = vbcast.lane.b32.xlu0 %v449, 256
        %v452 = vpop.permute.xlu0 %451
        %s454 = sor.u32 256, 8
        %455 = vbcast.lane.b32.xlu0 %v449, %s454
        %v456 = vpop.permute.xlu0 %455
        %v457 = vlaneseq
        %v458 = vshrl.u32 %v457, 7
        %v459 = vsub.s32 2, %v458
        %v460 = vrot.slane %v158, %v459
        %462 = vbcast.lane.b32.xlu0 %v460, 256
        %v463 = vpop.permute.xlu0 %462
        %s465 = sor.u32 256, 8
        %466 = vbcast.lane.b32.xlu0 %v460, %s465
        %v467 = vpop.permute.xlu0 %466
        %v468 = vlaneseq
        %v469 = vshrl.u32 %v468, 7
        %v470 = vsub.s32 3, %v469
        %v471 = vrot.slane %v158, %v470
        %473 = vbcast.lane.b32.xlu0 %v471, 256
        %v474 = vpop.permute.xlu0 %473
        %s476 = sor.u32 256, 8
        %477 = vbcast.lane.b32.xlu0 %v471, %s476
        %v478 = vpop.permute.xlu0 %477
        %v479 = vlaneseq
        %v480 = vshrl.u32 %v479, 7
        %v481 = vsub.s32 4, %v480
        %v482 = vrot.slane %v158, %v481
        %484 = vbcast.lane.b32.xlu0 %v482, 256
        %v485 = vpop.permute.xlu0 %484
        %s487 = sor.u32 256, 8
        %488 = vbcast.lane.b32.xlu0 %v482, %s487
        %v489 = vpop.permute.xlu0 %488
        %v490 = vlaneseq
        %v491 = vshrl.u32 %v490, 7
        %v492 = vsub.s32 5, %v491
        %v493 = vrot.slane %v158, %v492
        %495 = vbcast.lane.b32.xlu0 %v493, 256
        %v496 = vpop.permute.xlu0 %495
        %s498 = sor.u32 256, 8
        %499 = vbcast.lane.b32.xlu0 %v493, %s498
        %v500 = vpop.permute.xlu0 %499
        %v501 = vlaneseq
        %v502 = vshrl.u32 %v501, 7
        %v503 = vsub.s32 6, %v502
        %v504 = vrot.slane %v158, %v503
        %506 = vbcast.lane.b32.xlu0 %v504, 256
        %v507 = vpop.permute.xlu0 %506
        %s509 = sor.u32 256, 8
        %510 = vbcast.lane.b32.xlu0 %v504, %s509
        %v511 = vpop.permute.xlu0 %510
        %v512 = vlaneseq
        %v513 = vshrl.u32 %v512, 7
        %v514 = vsub.s32 7, %v513
        %v515 = vrot.slane %v158, %v514
        %517 = vbcast.lane.b32.xlu0 %v515, 256
        %v518 = vpop.permute.xlu0 %517
        %s520 = sor.u32 256, 8
        %521 = vbcast.lane.b32.xlu0 %v515, %s520
        %v522 = vpop.permute.xlu0 %521
        %v523 = vlaneseq
        %v524 = vshrl.u32 %v523, 7
        %v525 = vsub.s32 0, %v524
        %v526 = vrot.slane %v159, %v525
        %528 = vbcast.lane.b32.xlu0 %v526, 256
        %v529 = vpop.permute.xlu0 %528
        %s531 = sor.u32 256, 8
        %532 = vbcast.lane.b32.xlu0 %v526, %s531
        %v533 = vpop.permute.xlu0 %532
        %v534 = vlaneseq
        %v535 = vshrl.u32 %v534, 7
        %v536 = vsub.s32 1, %v535
        %v537 = vrot.slane %v159, %v536
        %539 = vbcast.lane.b32.xlu0 %v537, 256
        %v540 = vpop.permute.xlu0 %539
        %s542 = sor.u32 256, 8
        %543 = vbcast.lane.b32.xlu0 %v537, %s542
        %v544 = vpop.permute.xlu0 %543
        %v545 = vlaneseq
        %v546 = vshrl.u32 %v545, 7
        %v547 = vsub.s32 2, %v546
        %v548 = vrot.slane %v159, %v547
        %550 = vbcast.lane.b32.xlu0 %v548, 256
        %v551 = vpop.permute.xlu0 %550
        %s553 = sor.u32 256, 8
        %554 = vbcast.lane.b32.xlu0 %v548, %s553
        %v555 = vpop.permute.xlu0 %554
        %v556 = vlaneseq
        %v557 = vshrl.u32 %v556, 7
        %v558 = vsub.s32 3, %v557
        %v559 = vrot.slane %v159, %v558
        %561 = vbcast.lane.b32.xlu0 %v559, 256
        %v562 = vpop.permute.xlu0 %561
        %s564 = sor.u32 256, 8
        %565 = vbcast.lane.b32.xlu0 %v559, %s564
        %v566 = vpop.permute.xlu0 %565
        %v567 = vlaneseq
        %v568 = vshrl.u32 %v567, 7
        %v569 = vsub.s32 4, %v568
        %v570 = vrot.slane %v159, %v569
        %572 = vbcast.lane.b32.xlu0 %v570, 256
        %v573 = vpop.permute.xlu0 %572
        %s575 = sor.u32 256, 8
        %576 = vbcast.lane.b32.xlu0 %v570, %s575
        %v577 = vpop.permute.xlu0 %576
        %v578 = vlaneseq
        %v579 = vshrl.u32 %v578, 7
        %v580 = vsub.s32 5, %v579
        %v581 = vrot.slane %v159, %v580
        %583 = vbcast.lane.b32.xlu0 %v581, 256
        %v584 = vpop.permute.xlu0 %583
        %s586 = sor.u32 256, 8
        %587 = vbcast.lane.b32.xlu0 %v581, %s586
        %v588 = vpop.permute.xlu0 %587
        %v589 = vlaneseq
        %v590 = vshrl.u32 %v589, 7
        %v591 = vsub.s32 6, %v590
        %v592 = vrot.slane %v159, %v591
        %594 = vbcast.lane.b32.xlu0 %v592, 256
        %v595 = vpop.permute.xlu0 %594
        %s597 = sor.u32 256, 8
        %598 = vbcast.lane.b32.xlu0 %v592, %s597
        %v599 = vpop.permute.xlu0 %598
        %v600 = vlaneseq
        %v601 = vshrl.u32 %v600, 7
        %v602 = vsub.s32 7, %v601
        %v603 = vrot.slane %v159, %v602
        %605 = vbcast.lane.b32.xlu0 %v603, 256
        %v606 = vpop.permute.xlu0 %605
        %s608 = sor.u32 256, 8
        %609 = vbcast.lane.b32.xlu0 %v603, %s608
        %v610 = vpop.permute.xlu0 %609
        %v611 = vlaneseq
        %v612 = vshrl.u32 %v611, 7
        %v613 = vsub.s32 0, %v612
        %v614 = vrot.slane %v160, %v613
        %616 = vbcast.lane.b32.xlu0 %v614, 256
        %v617 = vpop.permute.xlu0 %616
        %s619 = sor.u32 256, 8
        %620 = vbcast.lane.b32.xlu0 %v614, %s619
        %v621 = vpop.permute.xlu0 %620
        %v622 = vlaneseq
        %v623 = vshrl.u32 %v622, 7
        %v624 = vsub.s32 1, %v623
        %v625 = vrot.slane %v160, %v624
        %627 = vbcast.lane.b32.xlu0 %v625, 256
        %v628 = vpop.permute.xlu0 %627
        %s630 = sor.u32 256, 8
        %631 = vbcast.lane.b32.xlu0 %v625, %s630
        %v632 = vpop.permute.xlu0 %631
        %v633 = vlaneseq
        %v634 = vshrl.u32 %v633, 7
        %v635 = vsub.s32 2, %v634
        %v636 = vrot.slane %v160, %v635
        %638 = vbcast.lane.b32.xlu0 %v636, 256
        %v639 = vpop.permute.xlu0 %638
        %s641 = sor.u32 256, 8
        %642 = vbcast.lane.b32.xlu0 %v636, %s641
        %v643 = vpop.permute.xlu0 %642
        %v644 = vlaneseq
        %v645 = vshrl.u32 %v644, 7
        %v646 = vsub.s32 3, %v645
        %v647 = vrot.slane %v160, %v646
        %649 = vbcast.lane.b32.xlu0 %v647, 256
        %v650 = vpop.permute.xlu0 %649
        %s652 = sor.u32 256, 8
        %653 = vbcast.lane.b32.xlu0 %v647, %s652
        %v654 = vpop.permute.xlu0 %653
        %v655 = vlaneseq
        %v656 = vshrl.u32 %v655, 7
        %v657 = vsub.s32 4, %v656
        %v658 = vrot.slane %v160, %v657
        %660 = vbcast.lane.b32.xlu0 %v658, 256
        %v661 = vpop.permute.xlu0 %660
        %s663 = sor.u32 256, 8
        %664 = vbcast.lane.b32.xlu0 %v658, %s663
        %v665 = vpop.permute.xlu0 %664
        %v666 = vlaneseq
        %v667 = vshrl.u32 %v666, 7
        %v668 = vsub.s32 5, %v667
        %v669 = vrot.slane %v160, %v668
        %671 = vbcast.lane.b32.xlu0 %v669, 256
        %v672 = vpop.permute.xlu0 %671
        %s674 = sor.u32 256, 8
        %675 = vbcast.lane.b32.xlu0 %v669, %s674
        %v676 = vpop.permute.xlu0 %675
        %v677 = vlaneseq
        %v678 = vshrl.u32 %v677, 7
        %v679 = vsub.s32 6, %v678
        %v680 = vrot.slane %v160, %v679
        %682 = vbcast.lane.b32.xlu0 %v680, 256
        %v683 = vpop.permute.xlu0 %682
        %s685 = sor.u32 256, 8
        %686 = vbcast.lane.b32.xlu0 %v680, %s685
        %v687 = vpop.permute.xlu0 %686
        %v688 = vlaneseq
        %v689 = vshrl.u32 %v688, 7
        %v690 = vsub.s32 7, %v689
        %v691 = vrot.slane %v160, %v690
        %693 = vbcast.lane.b32.xlu0 %v691, 256
        %v694 = vpop.permute.xlu0 %693
        %s696 = sor.u32 256, 8
        %697 = vbcast.lane.b32.xlu0 %v691, %s696
        %v698 = vpop.permute.xlu0 %697
        %v699 = vlaneseq
        %v700 = vshrl.u32 %v699, 7
        %v701 = vsub.s32 0, %v700
        %v702 = vrot.slane %v161, %v701
        %704 = vbcast.lane.b32.xlu0 %v702, 256
        %v705 = vpop.permute.xlu0 %704
        %s707 = sor.u32 256, 8
        %708 = vbcast.lane.b32.xlu0 %v702, %s707
        %v709 = vpop.permute.xlu0 %708
        %v710 = vlaneseq
        %v711 = vshrl.u32 %v710, 7
        %v712 = vsub.s32 1, %v711
        %v713 = vrot.slane %v161, %v712
        %715 = vbcast.lane.b32.xlu0 %v713, 256
        %v716 = vpop.permute.xlu0 %715
        %s718 = sor.u32 256, 8
        %719 = vbcast.lane.b32.xlu0 %v713, %s718
        %v720 = vpop.permute.xlu0 %719
        %v721 = vlaneseq
        %v722 = vshrl.u32 %v721, 7
        %v723 = vsub.s32 2, %v722
        %v724 = vrot.slane %v161, %v723
        %726 = vbcast.lane.b32.xlu0 %v724, 256
        %v727 = vpop.permute.xlu0 %726
        %s729 = sor.u32 256, 8
        %730 = vbcast.lane.b32.xlu0 %v724, %s729
        %v731 = vpop.permute.xlu0 %730
        %v732 = vlaneseq
        %v733 = vshrl.u32 %v732, 7
        %v734 = vsub.s32 3, %v733
        %v735 = vrot.slane %v161, %v734
        %737 = vbcast.lane.b32.xlu0 %v735, 256
        %v738 = vpop.permute.xlu0 %737
        %s740 = sor.u32 256, 8
        %741 = vbcast.lane.b32.xlu0 %v735, %s740
        %v742 = vpop.permute.xlu0 %741
        %v743 = vlaneseq
        %v744 = vshrl.u32 %v743, 7
        %v745 = vsub.s32 4, %v744
        %v746 = vrot.slane %v161, %v745
        %748 = vbcast.lane.b32.xlu0 %v746, 256
        %v749 = vpop.permute.xlu0 %748
        %s751 = sor.u32 256, 8
        %752 = vbcast.lane.b32.xlu0 %v746, %s751
        %v753 = vpop.permute.xlu0 %752
        %v754 = vlaneseq
        %v755 = vshrl.u32 %v754, 7
        %v756 = vsub.s32 5, %v755
        %v757 = vrot.slane %v161, %v756
        %759 = vbcast.lane.b32.xlu0 %v757, 256
        %v760 = vpop.permute.xlu0 %759
        %s762 = sor.u32 256, 8
        %763 = vbcast.lane.b32.xlu0 %v757, %s762
        %v764 = vpop.permute.xlu0 %763
        %v765 = vlaneseq
        %v766 = vshrl.u32 %v765, 7
        %v767 = vsub.s32 6, %v766
        %v768 = vrot.slane %v161, %v767
        %770 = vbcast.lane.b32.xlu0 %v768, 256
        %v771 = vpop.permute.xlu0 %770
        %s773 = sor.u32 256, 8
        %774 = vbcast.lane.b32.xlu0 %v768, %s773
        %v775 = vpop.permute.xlu0 %774
        %v776 = vlaneseq
        %v777 = vshrl.u32 %v776, 7
        %v778 = vsub.s32 7, %v777
        %v779 = vrot.slane %v161, %v778
        %781 = vbcast.lane.b32.xlu0 %v779, 256
        %v782 = vpop.permute.xlu0 %781
        %s784 = sor.u32 256, 8
        %785 = vbcast.lane.b32.xlu0 %v779, %s784
        %v786 = vpop.permute.xlu0 %785
        %v787 = vlaneseq
        %v788 = vshrl.u32 %v787, 7
        %v789 = vsub.s32 0, %v788
        %v790 = vrot.slane %v162, %v789
        %792 = vbcast.lane.b32.xlu0 %v790, 256
        %v793 = vpop.permute.xlu0 %792
        %s795 = sor.u32 256, 8
        %796 = vbcast.lane.b32.xlu0 %v790, %s795
        %v797 = vpop.permute.xlu0 %796
        %v798 = vlaneseq
        %v799 = vshrl.u32 %v798, 7
        %v800 = vsub.s32 1, %v799
        %v801 = vrot.slane %v162, %v800
        %803 = vbcast.lane.b32.xlu0 %v801, 256
        %v804 = vpop.permute.xlu0 %803
        %s806 = sor.u32 256, 8
        %807 = vbcast.lane.b32.xlu0 %v801, %s806
        %v808 = vpop.permute.xlu0 %807
        %v809 = vlaneseq
        %v810 = vshrl.u32 %v809, 7
        %v811 = vsub.s32 2, %v810
        %v812 = vrot.slane %v162, %v811
        %814 = vbcast.lane.b32.xlu0 %v812, 256
        %v815 = vpop.permute.xlu0 %814
        %s817 = sor.u32 256, 8
        %818 = vbcast.lane.b32.xlu0 %v812, %s817
        %v819 = vpop.permute.xlu0 %818
        %v820 = vlaneseq
        %v821 = vshrl.u32 %v820, 7
        %v822 = vsub.s32 3, %v821
        %v823 = vrot.slane %v162, %v822
        %825 = vbcast.lane.b32.xlu0 %v823, 256
        %v826 = vpop.permute.xlu0 %825
        %s828 = sor.u32 256, 8
        %829 = vbcast.lane.b32.xlu0 %v823, %s828
        %v830 = vpop.permute.xlu0 %829
        %v831 = vlaneseq
        %v832 = vshrl.u32 %v831, 7
        %v833 = vsub.s32 4, %v832
        %v834 = vrot.slane %v162, %v833
        %836 = vbcast.lane.b32.xlu0 %v834, 256
        %v837 = vpop.permute.xlu0 %836
        %s839 = sor.u32 256, 8
        %840 = vbcast.lane.b32.xlu0 %v834, %s839
        %v841 = vpop.permute.xlu0 %840
        %v842 = vlaneseq
        %v843 = vshrl.u32 %v842, 7
        %v844 = vsub.s32 5, %v843
        %v845 = vrot.slane %v162, %v844
        %847 = vbcast.lane.b32.xlu0 %v845, 256
        %v848 = vpop.permute.xlu0 %847
        %s850 = sor.u32 256, 8
        %851 = vbcast.lane.b32.xlu0 %v845, %s850
        %v852 = vpop.permute.xlu0 %851
        %v853 = vlaneseq
        %v854 = vshrl.u32 %v853, 7
        %v855 = vsub.s32 6, %v854
        %v856 = vrot.slane %v162, %v855
        %858 = vbcast.lane.b32.xlu0 %v856, 256
        %v859 = vpop.permute.xlu0 %858
        %s861 = sor.u32 256, 8
        %862 = vbcast.lane.b32.xlu0 %v856, %s861
        %v863 = vpop.permute.xlu0 %862
        %v864 = vlaneseq
        %v865 = vshrl.u32 %v864, 7
        %v866 = vsub.s32 7, %v865
        %v867 = vrot.slane %v162, %v866
        %869 = vbcast.lane.b32.xlu0 %v867, 256
        %v870 = vpop.permute.xlu0 %869
        %s872 = sor.u32 256, 8
        %873 = vbcast.lane.b32.xlu0 %v867, %s872
        %v874 = vpop.permute.xlu0 %873
        %vm875 = vcmask 7168
        %v876 = vsel %vm875, %v177, %v529
        %v877 = vsel %vm875, %v181, %v533
        %v878 = vsel %vm875, %v188, %v540
        %v879 = vsel %vm875, %v192, %v544
        %v880 = vsel %vm875, %v199, %v551
        %v881 = vsel %vm875, %v203, %v555
        %v882 = vsel %vm875, %v210, %v562
        %v883 = vsel %vm875, %v214, %v566
        %v884 = vsel %vm875, %v221, %v573
        %v885 = vsel %vm875, %v225, %v577
        %v886 = vsel %vm875, %v232, %v584
        %v887 = vsel %vm875, %v236, %v588
        %v888 = vsel %vm875, %v243, %v595
        %v889 = vsel %vm875, %v247, %v599
        %v890 = vsel %vm875, %v254, %v606
        %v891 = vsel %vm875, %v258, %v610
        %v892 = vsel %vm875, %v265, %v617
        %v893 = vsel %vm875, %v269, %v621
        %v894 = vsel %vm875, %v276, %v628
        %v895 = vsel %vm875, %v280, %v632
        %v896 = vsel %vm875, %v287, %v639
        %v897 = vsel %vm875, %v291, %v643
        %v898 = vsel %vm875, %v298, %v650
        %v899 = vsel %vm875, %v302, %v654
        %v900 = vsel %vm875, %v309, %v661
        %v901 = vsel %vm875, %v313, %v665
        %v902 = vsel %vm875, %v320, %v672
        %v903 = vsel %vm875, %v324, %v676
        %v904 = vsel %vm875, %v331, %v683
        %v905 = vsel %vm875, %v335, %v687
        %v906 = vsel %vm875, %v342, %v694
        %v907 = vsel %vm875, %v346, %v698
        %v908 = vsel %vm875, %v353, %v705
        %v909 = vsel %vm875, %v357, %v709
        %v910 = vsel %vm875, %v364, %v716
        %v911 = vsel %vm875, %v368, %v720
        %v912 = vsel %vm875, %v375, %v727
        %v913 = vsel %vm875, %v379, %v731
        %v914 = vsel %vm875, %v386, %v738
        %v915 = vsel %vm875, %v390, %v742
        %v916 = vsel %vm875, %v397, %v749
        %v917 = vsel %vm875, %v401, %v753
        %v918 = vsel %vm875, %v408, %v760
        %v919 = vsel %vm875, %v412, %v764
        %v920 = vsel %vm875, %v419, %v771
        %v921 = vsel %vm875, %v423, %v775
        %v922 = vsel %vm875, %v430, %v782
        %v923 = vsel %vm875, %v434, %v786
        %v924 = vsel %vm875, %v441, %v793
        %v925 = vsel %vm875, %v445, %v797
        %v926 = vsel %vm875, %v452, %v804
        %v927 = vsel %vm875, %v456, %v808
        %v928 = vsel %vm875, %v463, %v815
        %v929 = vsel %vm875, %v467, %v819
        %v930 = vsel %vm875, %v474, %v826
        %v931 = vsel %vm875, %v478, %v830
        %v932 = vsel %vm875, %v485, %v837
        %v933 = vsel %vm875, %v489, %v841
        %v934 = vsel %vm875, %v496, %v848
        %v935 = vsel %vm875, %v500, %v852
        %v936 = vsel %vm875, %v507, %v859
        %v937 = vsel %vm875, %v511, %v863
        %v938 = vsel %vm875, %v518, %v870
        %v939 = vsel %vm875, %v522, %v874
        %v940 = vcombine.high %v876, 0.0
        %v942 = vunpack.c.l.s4 1983009808
        %v943 = vunpack.c.0.s8 %v942
        %v944 = vlaneseq
        %v945 = vshrl.u32 %v944, 7
        %v946 = vsub.s32 %v943, %v945
        %v947 = vrot.slane %v876, %v946
        %v949 = vunpack.c.l.s4 1983009808
        %v950 = vunpack.c.0.s8 %v949
        %v951 = vlaneseq
        %v952 = vshrl.u32 %v951, 7
        %v953 = vsub.s32 %v950, %v952
        %v954 = vrot.slane %v940, %v953
        %v955 = vcombine.high %v947, 0.0
        %v957 = vunpack.c.l.s4 1934713408
        %v958 = vunpack.c.0.s8 %v957
        %v959 = vlaneseq
        %v960 = vshrl.u32 %v959, 7
        %v961 = vsub.s32 %v958, %v960
        %v962 = vrot.slane %v947, %v961
        %v964 = vunpack.c.l.s4 1934713408
        %v965 = vunpack.c.0.s8 %v964
        %v966 = vlaneseq
        %v967 = vshrl.u32 %v966, 7
        %v968 = vsub.s32 %v965, %v967
        %v969 = vrot.slane %v955, %v968
        %v970 = vcombine.high %v954, 0.0
        %v972 = vunpack.c.l.s4 1934713408
        %v973 = vunpack.c.0.s8 %v972
        %v974 = vlaneseq
        %v975 = vshrl.u32 %v974, 7
        %v976 = vsub.s32 %v973, %v975
        %v977 = vrot.slane %v954, %v976
        %v979 = vunpack.c.l.s4 1934713408
        %v980 = vunpack.c.0.s8 %v979
        %v981 = vlaneseq
        %v982 = vshrl.u32 %v981, 7
        %v983 = vsub.s32 %v980, %v982
        %v984 = vrot.slane %v970, %v983
        %v985 = vcombine.high %v962, 0.0
        %v986 = vcombine.high %v969, 0.0
        %v987 = vcombine.high %v977, 0.0
        %v988 = vcombine.high %v984, 0.0
        %v989 = vcombine.high %v877, 0.0
        %v991 = vunpack.c.l.s4 1983009808
        %v992 = vunpack.c.0.s8 %v991
        %v993 = vlaneseq
        %v994 = vshrl.u32 %v993, 7
        %v995 = vsub.s32 %v992, %v994
        %v996 = vrot.slane %v877, %v995
        %v998 = vunpack.c.l.s4 1983009808
        %v999 = vunpack.c.0.s8 %v998
        %v1000 = vlaneseq
        %v1001 = vshrl.u32 %v1000, 7
        %v1002 = vsub.s32 %v999, %v1001
        %v1003 = vrot.slane %v989, %v1002
        %v1004 = vcombine.high %v996, 0.0
        %v1006 = vunpack.c.l.s4 1934713408
        %v1007 = vunpack.c.0.s8 %v1006
        %v1008 = vlaneseq
        %v1009 = vshrl.u32 %v1008, 7
        %v1010 = vsub.s32 %v1007, %v1009
        %v1011 = vrot.slane %v996, %v1010
        %v1013 = vunpack.c.l.s4 1934713408
        %v1014 = vunpack.c.0.s8 %v1013
        %v1015 = vlaneseq
        %v1016 = vshrl.u32 %v1015, 7
        %v1017 = vsub.s32 %v1014, %v1016
        %v1018 = vrot.slane %v1004, %v1017
        %v1019 = vcombine.high %v1003, 0.0
        %v1021 = vunpack.c.l.s4 1934713408
        %v1022 = vunpack.c.0.s8 %v1021
        %v1023 = vlaneseq
        %v1024 = vshrl.u32 %v1023, 7
        %v1025 = vsub.s32 %v1022, %v1024
        %v1026 = vrot.slane %v1003, %v1025
        %v1028 = vunpack.c.l.s4 1934713408
        %v1029 = vunpack.c.0.s8 %v1028
        %v1030 = vlaneseq
        %v1031 = vshrl.u32 %v1030, 7
        %v1032 = vsub.s32 %v1029, %v1031
        %v1033 = vrot.slane %v1019, %v1032
        %v1034 = vcombine.high %v1011, 0.0
        %v1035 = vcombine.high %v1018, 0.0
        %v1036 = vcombine.high %v1026, 0.0
        %v1037 = vcombine.high %v1033, 0.0
        %v1038 = vcombine.high %v878, 0.0
        %v1040 = vunpack.c.l.s4 1983009808
        %v1041 = vunpack.c.0.s8 %v1040
        %v1042 = vlaneseq
        %v1043 = vshrl.u32 %v1042, 7
        %v1044 = vsub.s32 %v1041, %v1043
        %v1045 = vrot.slane %v878, %v1044
        %v1047 = vunpack.c.l.s4 1983009808
        %v1048 = vunpack.c.0.s8 %v1047
        %v1049 = vlaneseq
        %v1050 = vshrl.u32 %v1049, 7
        %v1051 = vsub.s32 %v1048, %v1050
        %v1052 = vrot.slane %v1038, %v1051
        %v1053 = vcombine.high %v1045, 0.0
        %v1055 = vunpack.c.l.s4 1934713408
        %v1056 = vunpack.c.0.s8 %v1055
        %v1057 = vlaneseq
        %v1058 = vshrl.u32 %v1057, 7
        %v1059 = vsub.s32 %v1056, %v1058
        %v1060 = vrot.slane %v1045, %v1059
        %v1062 = vunpack.c.l.s4 1934713408
        %v1063 = vunpack.c.0.s8 %v1062
        %v1064 = vlaneseq
        %v1065 = vshrl.u32 %v1064, 7
        %v1066 = vsub.s32 %v1063, %v1065
        %v1067 = vrot.slane %v1053, %v1066
        %v1068 = vcombine.high %v1052, 0.0
        %v1070 = vunpack.c.l.s4 1934713408
        %v1071 = vunpack.c.0.s8 %v1070
        %v1072 = vlaneseq
        %v1073 = vshrl.u32 %v1072, 7
        %v1074 = vsub.s32 %v1071, %v1073
        %v1075 = vrot.slane %v1052, %v1074
        %v1077 = vunpack.c.l.s4 1934713408
        %v1078 = vunpack.c.0.s8 %v1077
        %v1079 = vlaneseq
        %v1080 = vshrl.u32 %v1079, 7
        %v1081 = vsub.s32 %v1078, %v1080
        %v1082 = vrot.slane %v1068, %v1081
        %v1083 = vcombine.high %v1060, 0.0
        %v1084 = vcombine.high %v1067, 0.0
        %v1085 = vcombine.high %v1075, 0.0
        %v1086 = vcombine.high %v1082, 0.0
        %v1087 = vcombine.high %v879, 0.0
        %v1089 = vunpack.c.l.s4 1983009808
        %v1090 = vunpack.c.0.s8 %v1089
        %v1091 = vlaneseq
        %v1092 = vshrl.u32 %v1091, 7
        %v1093 = vsub.s32 %v1090, %v1092
        %v1094 = vrot.slane %v879, %v1093
        %v1096 = vunpack.c.l.s4 1983009808
        %v1097 = vunpack.c.0.s8 %v1096
        %v1098 = vlaneseq
        %v1099 = vshrl.u32 %v1098, 7
        %v1100 = vsub.s32 %v1097, %v1099
        %v1101 = vrot.slane %v1087, %v1100
        %v1102 = vcombine.high %v1094, 0.0
        %v1104 = vunpack.c.l.s4 1934713408
        %v1105 = vunpack.c.0.s8 %v1104
        %v1106 = vlaneseq
        %v1107 = vshrl.u32 %v1106, 7
        %v1108 = vsub.s32 %v1105, %v1107
        %v1109 = vrot.slane %v1094, %v1108
        %v1111 = vunpack.c.l.s4 1934713408
        %v1112 = vunpack.c.0.s8 %v1111
        %v1113 = vlaneseq
        %v1114 = vshrl.u32 %v1113, 7
        %v1115 = vsub.s32 %v1112, %v1114
        %v1116 = vrot.slane %v1102, %v1115
        %v1117 = vcombine.high %v1101, 0.0
        %v1119 = vunpack.c.l.s4 1934713408
        %v1120 = vunpack.c.0.s8 %v1119
        %v1121 = vlaneseq
        %v1122 = vshrl.u32 %v1121, 7
        %v1123 = vsub.s32 %v1120, %v1122
        %v1124 = vrot.slane %v1101, %v1123
        %v1126 = vunpack.c.l.s4 1934713408
        %v1127 = vunpack.c.0.s8 %v1126
        %v1128 = vlaneseq
        %v1129 = vshrl.u32 %v1128, 7
        %v1130 = vsub.s32 %v1127, %v1129
        %v1131 = vrot.slane %v1117, %v1130
        %v1132 = vcombine.high %v1109, 0.0
        %v1133 = vcombine.high %v1116, 0.0
        %v1134 = vcombine.high %v1124, 0.0
        %v1135 = vcombine.high %v1131, 0.0
        %v1136 = vcombine.high %v880, 0.0
        %v1138 = vunpack.c.l.s4 1983009808
        %v1139 = vunpack.c.0.s8 %v1138
        %v1140 = vlaneseq
        %v1141 = vshrl.u32 %v1140, 7
        %v1142 = vsub.s32 %v1139, %v1141
        %v1143 = vrot.slane %v880, %v1142
        %v1145 = vunpack.c.l.s4 1983009808
        %v1146 = vunpack.c.0.s8 %v1145
        %v1147 = vlaneseq
        %v1148 = vshrl.u32 %v1147, 7
        %v1149 = vsub.s32 %v1146, %v1148
        %v1150 = vrot.slane %v1136, %v1149
        %v1151 = vcombine.high %v1143, 0.0
        %v1153 = vunpack.c.l.s4 1934713408
        %v1154 = vunpack.c.0.s8 %v1153
        %v1155 = vlaneseq
        %v1156 = vshrl.u32 %v1155, 7
        %v1157 = vsub.s32 %v1154, %v1156
        %v1158 = vrot.slane %v1143, %v1157
        %v1160 = vunpack.c.l.s4 1934713408
        %v1161 = vunpack.c.0.s8 %v1160
        %v1162 = vlaneseq
        %v1163 = vshrl.u32 %v1162, 7
        %v1164 = vsub.s32 %v1161, %v1163
        %v1165 = vrot.slane %v1151, %v1164
        %v1166 = vcombine.high %v1150, 0.0
        %v1168 = vunpack.c.l.s4 1934713408
        %v1169 = vunpack.c.0.s8 %v1168
        %v1170 = vlaneseq
        %v1171 = vshrl.u32 %v1170, 7
        %v1172 = vsub.s32 %v1169, %v1171
        %v1173 = vrot.slane %v1150, %v1172
        %v1175 = vunpack.c.l.s4 1934713408
        %v1176 = vunpack.c.0.s8 %v1175
        %v1177 = vlaneseq
        %v1178 = vshrl.u32 %v1177, 7
        %v1179 = vsub.s32 %v1176, %v1178
        %v1180 = vrot.slane %v1166, %v1179
        %v1181 = vcombine.high %v1158, 0.0
        %v1182 = vcombine.high %v1165, 0.0
        %v1183 = vcombine.high %v1173, 0.0
        %v1184 = vcombine.high %v1180, 0.0
        %v1185 = vcombine.high %v881, 0.0
        %v1187 = vunpack.c.l.s4 1983009808
        %v1188 = vunpack.c.0.s8 %v1187
        %v1189 = vlaneseq
        %v1190 = vshrl.u32 %v1189, 7
        %v1191 = vsub.s32 %v1188, %v1190
        %v1192 = vrot.slane %v881, %v1191
        %v1194 = vunpack.c.l.s4 1983009808
        %v1195 = vunpack.c.0.s8 %v1194
        %v1196 = vlaneseq
        %v1197 = vshrl.u32 %v1196, 7
        %v1198 = vsub.s32 %v1195, %v1197
        %v1199 = vrot.slane %v1185, %v1198
        %v1200 = vcombine.high %v1192, 0.0
        %v1202 = vunpack.c.l.s4 1934713408
        %v1203 = vunpack.c.0.s8 %v1202
        %v1204 = vlaneseq
        %v1205 = vshrl.u32 %v1204, 7
        %v1206 = vsub.s32 %v1203, %v1205
        %v1207 = vrot.slane %v1192, %v1206
        %v1209 = vunpack.c.l.s4 1934713408
        %v1210 = vunpack.c.0.s8 %v1209
        %v1211 = vlaneseq
        %v1212 = vshrl.u32 %v1211, 7
        %v1213 = vsub.s32 %v1210, %v1212
        %v1214 = vrot.slane %v1200, %v1213
        %v1215 = vcombine.high %v1199, 0.0
        %v1217 = vunpack.c.l.s4 1934713408
        %v1218 = vunpack.c.0.s8 %v1217
        %v1219 = vlaneseq
        %v1220 = vshrl.u32 %v1219, 7
        %v1221 = vsub.s32 %v1218, %v1220
        %v1222 = vrot.slane %v1199, %v1221
        %v1224 = vunpack.c.l.s4 1934713408
        %v1225 = vunpack.c.0.s8 %v1224
        %v1226 = vlaneseq
        %v1227 = vshrl.u32 %v1226, 7
        %v1228 = vsub.s32 %v1225, %v1227
        %v1229 = vrot.slane %v1215, %v1228
        %v1230 = vcombine.high %v1207, 0.0
        %v1231 = vcombine.high %v1214, 0.0
        %v1232 = vcombine.high %v1222, 0.0
        %v1233 = vcombine.high %v1229, 0.0
        %v1234 = vcombine.high %v882, 0.0
        %v1236 = vunpack.c.l.s4 1983009808
        %v1237 = vunpack.c.0.s8 %v1236
        %v1238 = vlaneseq
        %v1239 = vshrl.u32 %v1238, 7
        %v1240 = vsub.s32 %v1237, %v1239
        %v1241 = vrot.slane %v882, %v1240
        %v1243 = vunpack.c.l.s4 1983009808
        %v1244 = vunpack.c.0.s8 %v1243
        %v1245 = vlaneseq
        %v1246 = vshrl.u32 %v1245, 7
        %v1247 = vsub.s32 %v1244, %v1246
        %v1248 = vrot.slane %v1234, %v1247
        %v1249 = vcombine.high %v1241, 0.0
        %v1251 = vunpack.c.l.s4 1934713408
        %v1252 = vunpack.c.0.s8 %v1251
        %v1253 = vlaneseq
        %v1254 = vshrl.u32 %v1253, 7
        %v1255 = vsub.s32 %v1252, %v1254
        %v1256 = vrot.slane %v1241, %v1255
        %v1258 = vunpack.c.l.s4 1934713408
        %v1259 = vunpack.c.0.s8 %v1258
        %v1260 = vlaneseq
        %v1261 = vshrl.u32 %v1260, 7
        %v1262 = vsub.s32 %v1259, %v1261
        %v1263 = vrot.slane %v1249, %v1262
        %v1264 = vcombine.high %v1248, 0.0
        %v1266 = vunpack.c.l.s4 1934713408
        %v1267 = vunpack.c.0.s8 %v1266
        %v1268 = vlaneseq
        %v1269 = vshrl.u32 %v1268, 7
        %v1270 = vsub.s32 %v1267, %v1269
        %v1271 = vrot.slane %v1248, %v1270
        %v1273 = vunpack.c.l.s4 1934713408
        %v1274 = vunpack.c.0.s8 %v1273
        %v1275 = vlaneseq
        %v1276 = vshrl.u32 %v1275, 7
        %v1277 = vsub.s32 %v1274, %v1276
        %v1278 = vrot.slane %v1264, %v1277
        %v1279 = vcombine.high %v1256, 0.0
        %v1280 = vcombine.high %v1263, 0.0
        %v1281 = vcombine.high %v1271, 0.0
        %v1282 = vcombine.high %v1278, 0.0
        %v1283 = vcombine.high %v883, 0.0
        %v1285 = vunpack.c.l.s4 1983009808
        %v1286 = vunpack.c.0.s8 %v1285
        %v1287 = vlaneseq
        %v1288 = vshrl.u32 %v1287, 7
        %v1289 = vsub.s32 %v1286, %v1288
        %v1290 = vrot.slane %v883, %v1289
        %v1292 = vunpack.c.l.s4 1983009808
        %v1293 = vunpack.c.0.s8 %v1292
        %v1294 = vlaneseq
        %v1295 = vshrl.u32 %v1294, 7
        %v1296 = vsub.s32 %v1293, %v1295
        %v1297 = vrot.slane %v1283, %v1296
        %v1298 = vcombine.high %v1290, 0.0
        %v1300 = vunpack.c.l.s4 1934713408
        %v1301 = vunpack.c.0.s8 %v1300
        %v1302 = vlaneseq
        %v1303 = vshrl.u32 %v1302, 7
        %v1304 = vsub.s32 %v1301, %v1303
        %v1305 = vrot.slane %v1290, %v1304
        %v1307 = vunpack.c.l.s4 1934713408
        %v1308 = vunpack.c.0.s8 %v1307
        %v1309 = vlaneseq
        %v1310 = vshrl.u32 %v1309, 7
        %v1311 = vsub.s32 %v1308, %v1310
        %v1312 = vrot.slane %v1298, %v1311
        %v1313 = vcombine.high %v1297, 0.0
        %v1315 = vunpack.c.l.s4 1934713408
        %v1316 = vunpack.c.0.s8 %v1315
        %v1317 = vlaneseq
        %v1318 = vshrl.u32 %v1317, 7
        %v1319 = vsub.s32 %v1316, %v1318
        %v1320 = vrot.slane %v1297, %v1319
        %v1322 = vunpack.c.l.s4 1934713408
        %v1323 = vunpack.c.0.s8 %v1322
        %v1324 = vlaneseq
        %v1325 = vshrl.u32 %v1324, 7
        %v1326 = vsub.s32 %v1323, %v1325
        %v1327 = vrot.slane %v1313, %v1326
        %v1328 = vcombine.high %v1305, 0.0
        %v1329 = vcombine.high %v1312, 0.0
        %v1330 = vcombine.high %v1320, 0.0
        %v1331 = vcombine.high %v1327, 0.0
        %v1332 = vcombine.high %v884, 0.0
        %v1334 = vunpack.c.l.s4 1983009808
        %v1335 = vunpack.c.0.s8 %v1334
        %v1336 = vlaneseq
        %v1337 = vshrl.u32 %v1336, 7
        %v1338 = vsub.s32 %v1335, %v1337
        %v1339 = vrot.slane %v884, %v1338
        %v1341 = vunpack.c.l.s4 1983009808
        %v1342 = vunpack.c.0.s8 %v1341
        %v1343 = vlaneseq
        %v1344 = vshrl.u32 %v1343, 7
        %v1345 = vsub.s32 %v1342, %v1344
        %v1346 = vrot.slane %v1332, %v1345
        %v1347 = vcombine.high %v1339, 0.0
        %v1349 = vunpack.c.l.s4 1934713408
        %v1350 = vunpack.c.0.s8 %v1349
        %v1351 = vlaneseq
        %v1352 = vshrl.u32 %v1351, 7
        %v1353 = vsub.s32 %v1350, %v1352
        %v1354 = vrot.slane %v1339, %v1353
        %v1356 = vunpack.c.l.s4 1934713408
        %v1357 = vunpack.c.0.s8 %v1356
        %v1358 = vlaneseq
        %v1359 = vshrl.u32 %v1358, 7
        %v1360 = vsub.s32 %v1357, %v1359
        %v1361 = vrot.slane %v1347, %v1360
        %v1362 = vcombine.high %v1346, 0.0
        %v1364 = vunpack.c.l.s4 1934713408
        %v1365 = vunpack.c.0.s8 %v1364
        %v1366 = vlaneseq
        %v1367 = vshrl.u32 %v1366, 7
        %v1368 = vsub.s32 %v1365, %v1367
        %v1369 = vrot.slane %v1346, %v1368
        %v1371 = vunpack.c.l.s4 1934713408
        %v1372 = vunpack.c.0.s8 %v1371
        %v1373 = vlaneseq
        %v1374 = vshrl.u32 %v1373, 7
        %v1375 = vsub.s32 %v1372, %v1374
        %v1376 = vrot.slane %v1362, %v1375
        %v1377 = vcombine.high %v1354, 0.0
        %v1378 = vcombine.high %v1361, 0.0
        %v1379 = vcombine.high %v1369, 0.0
        %v1380 = vcombine.high %v1376, 0.0
        %v1381 = vcombine.high %v885, 0.0
        %v1383 = vunpack.c.l.s4 1983009808
        %v1384 = vunpack.c.0.s8 %v1383
        %v1385 = vlaneseq
        %v1386 = vshrl.u32 %v1385, 7
        %v1387 = vsub.s32 %v1384, %v1386
        %v1388 = vrot.slane %v885, %v1387
        %v1390 = vunpack.c.l.s4 1983009808
        %v1391 = vunpack.c.0.s8 %v1390
        %v1392 = vlaneseq
        %v1393 = vshrl.u32 %v1392, 7
        %v1394 = vsub.s32 %v1391, %v1393
        %v1395 = vrot.slane %v1381, %v1394
        %v1396 = vcombine.high %v1388, 0.0
        %v1398 = vunpack.c.l.s4 1934713408
        %v1399 = vunpack.c.0.s8 %v1398
        %v1400 = vlaneseq
        %v1401 = vshrl.u32 %v1400, 7
        %v1402 = vsub.s32 %v1399, %v1401
        %v1403 = vrot.slane %v1388, %v1402
        %v1405 = vunpack.c.l.s4 1934713408
        %v1406 = vunpack.c.0.s8 %v1405
        %v1407 = vlaneseq
        %v1408 = vshrl.u32 %v1407, 7
        %v1409 = vsub.s32 %v1406, %v1408
        %v1410 = vrot.slane %v1396, %v1409
        %v1411 = vcombine.high %v1395, 0.0
        %v1413 = vunpack.c.l.s4 1934713408
        %v1414 = vunpack.c.0.s8 %v1413
        %v1415 = vlaneseq
        %v1416 = vshrl.u32 %v1415, 7
        %v1417 = vsub.s32 %v1414, %v1416
        %v1418 = vrot.slane %v1395, %v1417
        %v1420 = vunpack.c.l.s4 1934713408
        %v1421 = vunpack.c.0.s8 %v1420
        %v1422 = vlaneseq
        %v1423 = vshrl.u32 %v1422, 7
        %v1424 = vsub.s32 %v1421, %v1423
        %v1425 = vrot.slane %v1411, %v1424
        %v1426 = vcombine.high %v1403, 0.0
        %v1427 = vcombine.high %v1410, 0.0
        %v1428 = vcombine.high %v1418, 0.0
        %v1429 = vcombine.high %v1425, 0.0
        %v1430 = vcombine.high %v886, 0.0
        %v1432 = vunpack.c.l.s4 1983009808
        %v1433 = vunpack.c.0.s8 %v1432
        %v1434 = vlaneseq
        %v1435 = vshrl.u32 %v1434, 7
        %v1436 = vsub.s32 %v1433, %v1435
        %v1437 = vrot.slane %v886, %v1436
        %v1439 = vunpack.c.l.s4 1983009808
        %v1440 = vunpack.c.0.s8 %v1439
        %v1441 = vlaneseq
        %v1442 = vshrl.u32 %v1441, 7
        %v1443 = vsub.s32 %v1440, %v1442
        %v1444 = vrot.slane %v1430, %v1443
        %v1445 = vcombine.high %v1437, 0.0
        %v1447 = vunpack.c.l.s4 1934713408
        %v1448 = vunpack.c.0.s8 %v1447
        %v1449 = vlaneseq
        %v1450 = vshrl.u32 %v1449, 7
        %v1451 = vsub.s32 %v1448, %v1450
        %v1452 = vrot.slane %v1437, %v1451
        %v1454 = vunpack.c.l.s4 1934713408
        %v1455 = vunpack.c.0.s8 %v1454
        %v1456 = vlaneseq
        %v1457 = vshrl.u32 %v1456, 7
        %v1458 = vsub.s32 %v1455, %v1457
        %v1459 = vrot.slane %v1445, %v1458
        %v1460 = vcombine.high %v1444, 0.0
        %v1462 = vunpack.c.l.s4 1934713408
        %v1463 = vunpack.c.0.s8 %v1462
        %v1464 = vlaneseq
        %v1465 = vshrl.u32 %v1464, 7
        %v1466 = vsub.s32 %v1463, %v1465
        %v1467 = vrot.slane %v1444, %v1466
        %v1469 = vunpack.c.l.s4 1934713408
        %v1470 = vunpack.c.0.s8 %v1469
        %v1471 = vlaneseq
        %v1472 = vshrl.u32 %v1471, 7
        %v1473 = vsub.s32 %v1470, %v1472
        %v1474 = vrot.slane %v1460, %v1473
        %v1475 = vcombine.high %v1452, 0.0
        %v1476 = vcombine.high %v1459, 0.0
        %v1477 = vcombine.high %v1467, 0.0
        %v1478 = vcombine.high %v1474, 0.0
        %v1479 = vcombine.high %v887, 0.0
        %v1481 = vunpack.c.l.s4 1983009808
        %v1482 = vunpack.c.0.s8 %v1481
        %v1483 = vlaneseq
        %v1484 = vshrl.u32 %v1483, 7
        %v1485 = vsub.s32 %v1482, %v1484
        %v1486 = vrot.slane %v887, %v1485
        %v1488 = vunpack.c.l.s4 1983009808
        %v1489 = vunpack.c.0.s8 %v1488
        %v1490 = vlaneseq
        %v1491 = vshrl.u32 %v1490, 7
        %v1492 = vsub.s32 %v1489, %v1491
        %v1493 = vrot.slane %v1479, %v1492
        %v1494 = vcombine.high %v1486, 0.0
        %v1496 = vunpack.c.l.s4 1934713408
        %v1497 = vunpack.c.0.s8 %v1496
        %v1498 = vlaneseq
        %v1499 = vshrl.u32 %v1498, 7
        %v1500 = vsub.s32 %v1497, %v1499
        %v1501 = vrot.slane %v1486, %v1500
        %v1503 = vunpack.c.l.s4 1934713408
        %v1504 = vunpack.c.0.s8 %v1503
        %v1505 = vlaneseq
        %v1506 = vshrl.u32 %v1505, 7
        %v1507 = vsub.s32 %v1504, %v1506
        %v1508 = vrot.slane %v1494, %v1507
        %v1509 = vcombine.high %v1493, 0.0
        %v1511 = vunpack.c.l.s4 1934713408
        %v1512 = vunpack.c.0.s8 %v1511
        %v1513 = vlaneseq
        %v1514 = vshrl.u32 %v1513, 7
        %v1515 = vsub.s32 %v1512, %v1514
        %v1516 = vrot.slane %v1493, %v1515
        %v1518 = vunpack.c.l.s4 1934713408
        %v1519 = vunpack.c.0.s8 %v1518
        %v1520 = vlaneseq
        %v1521 = vshrl.u32 %v1520, 7
        %v1522 = vsub.s32 %v1519, %v1521
        %v1523 = vrot.slane %v1509, %v1522
        %v1524 = vcombine.high %v1501, 0.0
        %v1525 = vcombine.high %v1508, 0.0
        %v1526 = vcombine.high %v1516, 0.0
        %v1527 = vcombine.high %v1523, 0.0
        %v1528 = vcombine.high %v888, 0.0
        %v1530 = vunpack.c.l.s4 1983009808
        %v1531 = vunpack.c.0.s8 %v1530
        %v1532 = vlaneseq
        %v1533 = vshrl.u32 %v1532, 7
        %v1534 = vsub.s32 %v1531, %v1533
        %v1535 = vrot.slane %v888, %v1534
        %v1537 = vunpack.c.l.s4 1983009808
        %v1538 = vunpack.c.0.s8 %v1537
        %v1539 = vlaneseq
        %v1540 = vshrl.u32 %v1539, 7
        %v1541 = vsub.s32 %v1538, %v1540
        %v1542 = vrot.slane %v1528, %v1541
        %v1543 = vcombine.high %v1535, 0.0
        %v1545 = vunpack.c.l.s4 1934713408
        %v1546 = vunpack.c.0.s8 %v1545
        %v1547 = vlaneseq
        %v1548 = vshrl.u32 %v1547, 7
        %v1549 = vsub.s32 %v1546, %v1548
        %v1550 = vrot.slane %v1535, %v1549
        %v1552 = vunpack.c.l.s4 1934713408
        %v1553 = vunpack.c.0.s8 %v1552
        %v1554 = vlaneseq
        %v1555 = vshrl.u32 %v1554, 7
        %v1556 = vsub.s32 %v1553, %v1555
        %v1557 = vrot.slane %v1543, %v1556
        %v1558 = vcombine.high %v1542, 0.0
        %v1560 = vunpack.c.l.s4 1934713408
        %v1561 = vunpack.c.0.s8 %v1560
        %v1562 = vlaneseq
        %v1563 = vshrl.u32 %v1562, 7
        %v1564 = vsub.s32 %v1561, %v1563
        %v1565 = vrot.slane %v1542, %v1564
        %v1567 = vunpack.c.l.s4 1934713408
        %v1568 = vunpack.c.0.s8 %v1567
        %v1569 = vlaneseq
        %v1570 = vshrl.u32 %v1569, 7
        %v1571 = vsub.s32 %v1568, %v1570
        %v1572 = vrot.slane %v1558, %v1571
        %v1573 = vcombine.high %v1550, 0.0
        %v1574 = vcombine.high %v1557, 0.0
        %v1575 = vcombine.high %v1565, 0.0
        %v1576 = vcombine.high %v1572, 0.0
        %v1577 = vcombine.high %v889, 0.0
        %v1579 = vunpack.c.l.s4 1983009808
        %v1580 = vunpack.c.0.s8 %v1579
        %v1581 = vlaneseq
        %v1582 = vshrl.u32 %v1581, 7
        %v1583 = vsub.s32 %v1580, %v1582
        %v1584 = vrot.slane %v889, %v1583
        %v1586 = vunpack.c.l.s4 1983009808
        %v1587 = vunpack.c.0.s8 %v1586
        %v1588 = vlaneseq
        %v1589 = vshrl.u32 %v1588, 7
        %v1590 = vsub.s32 %v1587, %v1589
        %v1591 = vrot.slane %v1577, %v1590
        %v1592 = vcombine.high %v1584, 0.0
        %v1594 = vunpack.c.l.s4 1934713408
        %v1595 = vunpack.c.0.s8 %v1594
        %v1596 = vlaneseq
        %v1597 = vshrl.u32 %v1596, 7
        %v1598 = vsub.s32 %v1595, %v1597
        %v1599 = vrot.slane %v1584, %v1598
        %v1601 = vunpack.c.l.s4 1934713408
        %v1602 = vunpack.c.0.s8 %v1601
        %v1603 = vlaneseq
        %v1604 = vshrl.u32 %v1603, 7
        %v1605 = vsub.s32 %v1602, %v1604
        %v1606 = vrot.slane %v1592, %v1605
        %v1607 = vcombine.high %v1591, 0.0
        %v1609 = vunpack.c.l.s4 1934713408
        %v1610 = vunpack.c.0.s8 %v1609
        %v1611 = vlaneseq
        %v1612 = vshrl.u32 %v1611, 7
        %v1613 = vsub.s32 %v1610, %v1612
        %v1614 = vrot.slane %v1591, %v1613
        %v1616 = vunpack.c.l.s4 1934713408
        %v1617 = vunpack.c.0.s8 %v1616
        %v1618 = vlaneseq
        %v1619 = vshrl.u32 %v1618, 7
        %v1620 = vsub.s32 %v1617, %v1619
        %v1621 = vrot.slane %v1607, %v1620
        %v1622 = vcombine.high %v1599, 0.0
        %v1623 = vcombine.high %v1606, 0.0
        %v1624 = vcombine.high %v1614, 0.0
        %v1625 = vcombine.high %v1621, 0.0
        %v1626 = vcombine.high %v890, 0.0
        %v1628 = vunpack.c.l.s4 1983009808
        %v1629 = vunpack.c.0.s8 %v1628
        %v1630 = vlaneseq
        %v1631 = vshrl.u32 %v1630, 7
        %v1632 = vsub.s32 %v1629, %v1631
        %v1633 = vrot.slane %v890, %v1632
        %v1635 = vunpack.c.l.s4 1983009808
        %v1636 = vunpack.c.0.s8 %v1635
        %v1637 = vlaneseq
        %v1638 = vshrl.u32 %v1637, 7
        %v1639 = vsub.s32 %v1636, %v1638
        %v1640 = vrot.slane %v1626, %v1639
        %v1641 = vcombine.high %v1633, 0.0
        %v1643 = vunpack.c.l.s4 1934713408
        %v1644 = vunpack.c.0.s8 %v1643
        %v1645 = vlaneseq
        %v1646 = vshrl.u32 %v1645, 7
        %v1647 = vsub.s32 %v1644, %v1646
        %v1648 = vrot.slane %v1633, %v1647
        %v1650 = vunpack.c.l.s4 1934713408
        %v1651 = vunpack.c.0.s8 %v1650
        %v1652 = vlaneseq
        %v1653 = vshrl.u32 %v1652, 7
        %v1654 = vsub.s32 %v1651, %v1653
        %v1655 = vrot.slane %v1641, %v1654
        %v1656 = vcombine.high %v1640, 0.0
        %v1658 = vunpack.c.l.s4 1934713408
        %v1659 = vunpack.c.0.s8 %v1658
        %v1660 = vlaneseq
        %v1661 = vshrl.u32 %v1660, 7
        %v1662 = vsub.s32 %v1659, %v1661
        %v1663 = vrot.slane %v1640, %v1662
        %v1665 = vunpack.c.l.s4 1934713408
        %v1666 = vunpack.c.0.s8 %v1665
        %v1667 = vlaneseq
        %v1668 = vshrl.u32 %v1667, 7
        %v1669 = vsub.s32 %v1666, %v1668
        %v1670 = vrot.slane %v1656, %v1669
        %v1671 = vcombine.high %v1648, 0.0
        %v1672 = vcombine.high %v1655, 0.0
        %v1673 = vcombine.high %v1663, 0.0
        %v1674 = vcombine.high %v1670, 0.0
        %v1675 = vcombine.high %v891, 0.0
        %v1677 = vunpack.c.l.s4 1983009808
        %v1678 = vunpack.c.0.s8 %v1677
        %v1679 = vlaneseq
        %v1680 = vshrl.u32 %v1679, 7
        %v1681 = vsub.s32 %v1678, %v1680
        %v1682 = vrot.slane %v891, %v1681
        %v1684 = vunpack.c.l.s4 1983009808
        %v1685 = vunpack.c.0.s8 %v1684
        %v1686 = vlaneseq
        %v1687 = vshrl.u32 %v1686, 7
        %v1688 = vsub.s32 %v1685, %v1687
        %v1689 = vrot.slane %v1675, %v1688
        %v1690 = vcombine.high %v1682, 0.0
        %v1692 = vunpack.c.l.s4 1934713408
        %v1693 = vunpack.c.0.s8 %v1692
        %v1694 = vlaneseq
        %v1695 = vshrl.u32 %v1694, 7
        %v1696 = vsub.s32 %v1693, %v1695
        %v1697 = vrot.slane %v1682, %v1696
        %v1699 = vunpack.c.l.s4 1934713408
        %v1700 = vunpack.c.0.s8 %v1699
        %v1701 = vlaneseq
        %v1702 = vshrl.u32 %v1701, 7
        %v1703 = vsub.s32 %v1700, %v1702
        %v1704 = vrot.slane %v1690, %v1703
        %v1705 = vcombine.high %v1689, 0.0
        %v1707 = vunpack.c.l.s4 1934713408
        %v1708 = vunpack.c.0.s8 %v1707
        %v1709 = vlaneseq
        %v1710 = vshrl.u32 %v1709, 7
        %v1711 = vsub.s32 %v1708, %v1710
        %v1712 = vrot.slane %v1689, %v1711
        %v1714 = vunpack.c.l.s4 1934713408
        %v1715 = vunpack.c.0.s8 %v1714
        %v1716 = vlaneseq
        %v1717 = vshrl.u32 %v1716, 7
        %v1718 = vsub.s32 %v1715, %v1717
        %v1719 = vrot.slane %v1705, %v1718
        %v1720 = vcombine.high %v1697, 0.0
        %v1721 = vcombine.high %v1704, 0.0
        %v1722 = vcombine.high %v1712, 0.0
        %v1723 = vcombine.high %v1719, 0.0
        %v1724 = vcombine.high %v892, 0.0
        %v1726 = vunpack.c.l.s4 1983009808
        %v1727 = vunpack.c.0.s8 %v1726
        %v1728 = vlaneseq
        %v1729 = vshrl.u32 %v1728, 7
        %v1730 = vsub.s32 %v1727, %v1729
        %v1731 = vrot.slane %v892, %v1730
        %v1733 = vunpack.c.l.s4 1983009808
        %v1734 = vunpack.c.0.s8 %v1733
        %v1735 = vlaneseq
        %v1736 = vshrl.u32 %v1735, 7
        %v1737 = vsub.s32 %v1734, %v1736
        %v1738 = vrot.slane %v1724, %v1737
        %v1739 = vcombine.high %v1731, 0.0
        %v1741 = vunpack.c.l.s4 1934713408
        %v1742 = vunpack.c.0.s8 %v1741
        %v1743 = vlaneseq
        %v1744 = vshrl.u32 %v1743, 7
        %v1745 = vsub.s32 %v1742, %v1744
        %v1746 = vrot.slane %v1731, %v1745
        %v1748 = vunpack.c.l.s4 1934713408
        %v1749 = vunpack.c.0.s8 %v1748
        %v1750 = vlaneseq
        %v1751 = vshrl.u32 %v1750, 7
        %v1752 = vsub.s32 %v1749, %v1751
        %v1753 = vrot.slane %v1739, %v1752
        %v1754 = vcombine.high %v1738, 0.0
        %v1756 = vunpack.c.l.s4 1934713408
        %v1757 = vunpack.c.0.s8 %v1756
        %v1758 = vlaneseq
        %v1759 = vshrl.u32 %v1758, 7
        %v1760 = vsub.s32 %v1757, %v1759
        %v1761 = vrot.slane %v1738, %v1760
        %v1763 = vunpack.c.l.s4 1934713408
        %v1764 = vunpack.c.0.s8 %v1763
        %v1765 = vlaneseq
        %v1766 = vshrl.u32 %v1765, 7
        %v1767 = vsub.s32 %v1764, %v1766
        %v1768 = vrot.slane %v1754, %v1767
        %v1769 = vcombine.high %v1746, 0.0
        %v1770 = vcombine.high %v1753, 0.0
        %v1771 = vcombine.high %v1761, 0.0
        %v1772 = vcombine.high %v1768, 0.0
        %v1773 = vcombine.high %v893, 0.0
        %v1775 = vunpack.c.l.s4 1983009808
        %v1776 = vunpack.c.0.s8 %v1775
        %v1777 = vlaneseq
        %v1778 = vshrl.u32 %v1777, 7
        %v1779 = vsub.s32 %v1776, %v1778
        %v1780 = vrot.slane %v893, %v1779
        %v1782 = vunpack.c.l.s4 1983009808
        %v1783 = vunpack.c.0.s8 %v1782
        %v1784 = vlaneseq
        %v1785 = vshrl.u32 %v1784, 7
        %v1786 = vsub.s32 %v1783, %v1785
        %v1787 = vrot.slane %v1773, %v1786
        %v1788 = vcombine.high %v1780, 0.0
        %v1790 = vunpack.c.l.s4 1934713408
        %v1791 = vunpack.c.0.s8 %v1790
        %v1792 = vlaneseq
        %v1793 = vshrl.u32 %v1792, 7
        %v1794 = vsub.s32 %v1791, %v1793
        %v1795 = vrot.slane %v1780, %v1794
        %v1797 = vunpack.c.l.s4 1934713408
        %v1798 = vunpack.c.0.s8 %v1797
        %v1799 = vlaneseq
        %v1800 = vshrl.u32 %v1799, 7
        %v1801 = vsub.s32 %v1798, %v1800
        %v1802 = vrot.slane %v1788, %v1801
        %v1803 = vcombine.high %v1787, 0.0
        %v1805 = vunpack.c.l.s4 1934713408
        %v1806 = vunpack.c.0.s8 %v1805
        %v1807 = vlaneseq
        %v1808 = vshrl.u32 %v1807, 7
        %v1809 = vsub.s32 %v1806, %v1808
        %v1810 = vrot.slane %v1787, %v1809
        %v1812 = vunpack.c.l.s4 1934713408
        %v1813 = vunpack.c.0.s8 %v1812
        %v1814 = vlaneseq
        %v1815 = vshrl.u32 %v1814, 7
        %v1816 = vsub.s32 %v1813, %v1815
        %v1817 = vrot.slane %v1803, %v1816
        %v1818 = vcombine.high %v1795, 0.0
        %v1819 = vcombine.high %v1802, 0.0
        %v1820 = vcombine.high %v1810, 0.0
        %v1821 = vcombine.high %v1817, 0.0
        %v1822 = vcombine.high %v894, 0.0
        %v1824 = vunpack.c.l.s4 1983009808
        %v1825 = vunpack.c.0.s8 %v1824
        %v1826 = vlaneseq
        %v1827 = vshrl.u32 %v1826, 7
        %v1828 = vsub.s32 %v1825, %v1827
        %v1829 = vrot.slane %v894, %v1828
        %v1831 = vunpack.c.l.s4 1983009808
        %v1832 = vunpack.c.0.s8 %v1831
        %v1833 = vlaneseq
        %v1834 = vshrl.u32 %v1833, 7
        %v1835 = vsub.s32 %v1832, %v1834
        %v1836 = vrot.slane %v1822, %v1835
        %v1837 = vcombine.high %v1829, 0.0
        %v1839 = vunpack.c.l.s4 1934713408
        %v1840 = vunpack.c.0.s8 %v1839
        %v1841 = vlaneseq
        %v1842 = vshrl.u32 %v1841, 7
        %v1843 = vsub.s32 %v1840, %v1842
        %v1844 = vrot.slane %v1829, %v1843
        %v1846 = vunpack.c.l.s4 1934713408
        %v1847 = vunpack.c.0.s8 %v1846
        %v1848 = vlaneseq
        %v1849 = vshrl.u32 %v1848, 7
        %v1850 = vsub.s32 %v1847, %v1849
        %v1851 = vrot.slane %v1837, %v1850
        %v1852 = vcombine.high %v1836, 0.0
        %v1854 = vunpack.c.l.s4 1934713408
        %v1855 = vunpack.c.0.s8 %v1854
        %v1856 = vlaneseq
        %v1857 = vshrl.u32 %v1856, 7
        %v1858 = vsub.s32 %v1855, %v1857
        %v1859 = vrot.slane %v1836, %v1858
        %v1861 = vunpack.c.l.s4 1934713408
        %v1862 = vunpack.c.0.s8 %v1861
        %v1863 = vlaneseq
        %v1864 = vshrl.u32 %v1863, 7
        %v1865 = vsub.s32 %v1862, %v1864
        %v1866 = vrot.slane %v1852, %v1865
        %v1867 = vcombine.high %v1844, 0.0
        %v1868 = vcombine.high %v1851, 0.0
        %v1869 = vcombine.high %v1859, 0.0
        %v1870 = vcombine.high %v1866, 0.0
        %v1871 = vcombine.high %v895, 0.0
        %v1873 = vunpack.c.l.s4 1983009808
        %v1874 = vunpack.c.0.s8 %v1873
        %v1875 = vlaneseq
        %v1876 = vshrl.u32 %v1875, 7
        %v1877 = vsub.s32 %v1874, %v1876
        %v1878 = vrot.slane %v895, %v1877
        %v1880 = vunpack.c.l.s4 1983009808
        %v1881 = vunpack.c.0.s8 %v1880
        %v1882 = vlaneseq
        %v1883 = vshrl.u32 %v1882, 7
        %v1884 = vsub.s32 %v1881, %v1883
        %v1885 = vrot.slane %v1871, %v1884
        %v1886 = vcombine.high %v1878, 0.0
        %v1888 = vunpack.c.l.s4 1934713408
        %v1889 = vunpack.c.0.s8 %v1888
        %v1890 = vlaneseq
        %v1891 = vshrl.u32 %v1890, 7
        %v1892 = vsub.s32 %v1889, %v1891
        %v1893 = vrot.slane %v1878, %v1892
        %v1895 = vunpack.c.l.s4 1934713408
        %v1896 = vunpack.c.0.s8 %v1895
        %v1897 = vlaneseq
        %v1898 = vshrl.u32 %v1897, 7
        %v1899 = vsub.s32 %v1896, %v1898
        %v1900 = vrot.slane %v1886, %v1899
        %v1901 = vcombine.high %v1885, 0.0
        %v1903 = vunpack.c.l.s4 1934713408
        %v1904 = vunpack.c.0.s8 %v1903
        %v1905 = vlaneseq
        %v1906 = vshrl.u32 %v1905, 7
        %v1907 = vsub.s32 %v1904, %v1906
        %v1908 = vrot.slane %v1885, %v1907
        %v1910 = vunpack.c.l.s4 1934713408
        %v1911 = vunpack.c.0.s8 %v1910
        %v1912 = vlaneseq
        %v1913 = vshrl.u32 %v1912, 7
        %v1914 = vsub.s32 %v1911, %v1913
        %v1915 = vrot.slane %v1901, %v1914
        %v1916 = vcombine.high %v1893, 0.0
        %v1917 = vcombine.high %v1900, 0.0
        %v1918 = vcombine.high %v1908, 0.0
        %v1919 = vcombine.high %v1915, 0.0
        %v1920 = vcombine.high %v896, 0.0
        %v1922 = vunpack.c.l.s4 1983009808
        %v1923 = vunpack.c.0.s8 %v1922
        %v1924 = vlaneseq
        %v1925 = vshrl.u32 %v1924, 7
        %v1926 = vsub.s32 %v1923, %v1925
        %v1927 = vrot.slane %v896, %v1926
        %v1929 = vunpack.c.l.s4 1983009808
        %v1930 = vunpack.c.0.s8 %v1929
        %v1931 = vlaneseq
        %v1932 = vshrl.u32 %v1931, 7
        %v1933 = vsub.s32 %v1930, %v1932
        %v1934 = vrot.slane %v1920, %v1933
        %v1935 = vcombine.high %v1927, 0.0
        %v1937 = vunpack.c.l.s4 1934713408
        %v1938 = vunpack.c.0.s8 %v1937
        %v1939 = vlaneseq
        %v1940 = vshrl.u32 %v1939, 7
        %v1941 = vsub.s32 %v1938, %v1940
        %v1942 = vrot.slane %v1927, %v1941
        %v1944 = vunpack.c.l.s4 1934713408
        %v1945 = vunpack.c.0.s8 %v1944
        %v1946 = vlaneseq
        %v1947 = vshrl.u32 %v1946, 7
        %v1948 = vsub.s32 %v1945, %v1947
        %v1949 = vrot.slane %v1935, %v1948
        %v1950 = vcombine.high %v1934, 0.0
        %v1952 = vunpack.c.l.s4 1934713408
        %v1953 = vunpack.c.0.s8 %v1952
        %v1954 = vlaneseq
        %v1955 = vshrl.u32 %v1954, 7
        %v1956 = vsub.s32 %v1953, %v1955
        %v1957 = vrot.slane %v1934, %v1956
        %v1959 = vunpack.c.l.s4 1934713408
        %v1960 = vunpack.c.0.s8 %v1959
        %v1961 = vlaneseq
        %v1962 = vshrl.u32 %v1961, 7
        %v1963 = vsub.s32 %v1960, %v1962
        %v1964 = vrot.slane %v1950, %v1963
        %v1965 = vcombine.high %v1942, 0.0
        %v1966 = vcombine.high %v1949, 0.0
        %v1967 = vcombine.high %v1957, 0.0
        %v1968 = vcombine.high %v1964, 0.0
        %v1969 = vcombine.high %v897, 0.0
        %v1971 = vunpack.c.l.s4 1983009808
        %v1972 = vunpack.c.0.s8 %v1971
        %v1973 = vlaneseq
        %v1974 = vshrl.u32 %v1973, 7
        %v1975 = vsub.s32 %v1972, %v1974
        %v1976 = vrot.slane %v897, %v1975
        %v1978 = vunpack.c.l.s4 1983009808
        %v1979 = vunpack.c.0.s8 %v1978
        %v1980 = vlaneseq
        %v1981 = vshrl.u32 %v1980, 7
        %v1982 = vsub.s32 %v1979, %v1981
        %v1983 = vrot.slane %v1969, %v1982
        %v1984 = vcombine.high %v1976, 0.0
        %v1986 = vunpack.c.l.s4 1934713408
        %v1987 = vunpack.c.0.s8 %v1986
        %v1988 = vlaneseq
        %v1989 = vshrl.u32 %v1988, 7
        %v1990 = vsub.s32 %v1987, %v1989
        %v1991 = vrot.slane %v1976, %v1990
        %v1993 = vunpack.c.l.s4 1934713408
        %v1994 = vunpack.c.0.s8 %v1993
        %v1995 = vlaneseq
        %v1996 = vshrl.u32 %v1995, 7
        %v1997 = vsub.s32 %v1994, %v1996
        %v1998 = vrot.slane %v1984, %v1997
        %v1999 = vcombine.high %v1983, 0.0
        %v2001 = vunpack.c.l.s4 1934713408
        %v2002 = vunpack.c.0.s8 %v2001
        %v2003 = vlaneseq
        %v2004 = vshrl.u32 %v2003, 7
        %v2005 = vsub.s32 %v2002, %v2004
        %v2006 = vrot.slane %v1983, %v2005
        %v2008 = vunpack.c.l.s4 1934713408
        %v2009 = vunpack.c.0.s8 %v2008
        %v2010 = vlaneseq
        %v2011 = vshrl.u32 %v2010, 7
        %v2012 = vsub.s32 %v2009, %v2011
        %v2013 = vrot.slane %v1999, %v2012
        %v2014 = vcombine.high %v1991, 0.0
        %v2015 = vcombine.high %v1998, 0.0
        %v2016 = vcombine.high %v2006, 0.0
        %v2017 = vcombine.high %v2013, 0.0
        %v2018 = vcombine.high %v898, 0.0
        %v2020 = vunpack.c.l.s4 1983009808
        %v2021 = vunpack.c.0.s8 %v2020
        %v2022 = vlaneseq
        %v2023 = vshrl.u32 %v2022, 7
        %v2024 = vsub.s32 %v2021, %v2023
        %v2025 = vrot.slane %v898, %v2024
        %v2027 = vunpack.c.l.s4 1983009808
        %v2028 = vunpack.c.0.s8 %v2027
        %v2029 = vlaneseq
        %v2030 = vshrl.u32 %v2029, 7
        %v2031 = vsub.s32 %v2028, %v2030
        %v2032 = vrot.slane %v2018, %v2031
        %v2033 = vcombine.high %v2025, 0.0
        %v2035 = vunpack.c.l.s4 1934713408
        %v2036 = vunpack.c.0.s8 %v2035
        %v2037 = vlaneseq
        %v2038 = vshrl.u32 %v2037, 7
        %v2039 = vsub.s32 %v2036, %v2038
        %v2040 = vrot.slane %v2025, %v2039
        %v2042 = vunpack.c.l.s4 1934713408
        %v2043 = vunpack.c.0.s8 %v2042
        %v2044 = vlaneseq
        %v2045 = vshrl.u32 %v2044, 7
        %v2046 = vsub.s32 %v2043, %v2045
        %v2047 = vrot.slane %v2033, %v2046
        %v2048 = vcombine.high %v2032, 0.0
        %v2050 = vunpack.c.l.s4 1934713408
        %v2051 = vunpack.c.0.s8 %v2050
        %v2052 = vlaneseq
        %v2053 = vshrl.u32 %v2052, 7
        %v2054 = vsub.s32 %v2051, %v2053
        %v2055 = vrot.slane %v2032, %v2054
        %v2057 = vunpack.c.l.s4 1934713408
        %v2058 = vunpack.c.0.s8 %v2057
        %v2059 = vlaneseq
        %v2060 = vshrl.u32 %v2059, 7
        %v2061 = vsub.s32 %v2058, %v2060
        %v2062 = vrot.slane %v2048, %v2061
        %v2063 = vcombine.high %v2040, 0.0
        %v2064 = vcombine.high %v2047, 0.0
        %v2065 = vcombine.high %v2055, 0.0
        %v2066 = vcombine.high %v2062, 0.0
        %v2067 = vcombine.high %v899, 0.0
        %v2069 = vunpack.c.l.s4 1983009808
        %v2070 = vunpack.c.0.s8 %v2069
        %v2071 = vlaneseq
        %v2072 = vshrl.u32 %v2071, 7
        %v2073 = vsub.s32 %v2070, %v2072
        %v2074 = vrot.slane %v899, %v2073
        %v2076 = vunpack.c.l.s4 1983009808
        %v2077 = vunpack.c.0.s8 %v2076
        %v2078 = vlaneseq
        %v2079 = vshrl.u32 %v2078, 7
        %v2080 = vsub.s32 %v2077, %v2079
        %v2081 = vrot.slane %v2067, %v2080
        %v2082 = vcombine.high %v2074, 0.0
        %v2084 = vunpack.c.l.s4 1934713408
        %v2085 = vunpack.c.0.s8 %v2084
        %v2086 = vlaneseq
        %v2087 = vshrl.u32 %v2086, 7
        %v2088 = vsub.s32 %v2085, %v2087
        %v2089 = vrot.slane %v2074, %v2088
        %v2091 = vunpack.c.l.s4 1934713408
        %v2092 = vunpack.c.0.s8 %v2091
        %v2093 = vlaneseq
        %v2094 = vshrl.u32 %v2093, 7
        %v2095 = vsub.s32 %v2092, %v2094
        %v2096 = vrot.slane %v2082, %v2095
        %v2097 = vcombine.high %v2081, 0.0
        %v2099 = vunpack.c.l.s4 1934713408
        %v2100 = vunpack.c.0.s8 %v2099
        %v2101 = vlaneseq
        %v2102 = vshrl.u32 %v2101, 7
        %v2103 = vsub.s32 %v2100, %v2102
        %v2104 = vrot.slane %v2081, %v2103
        %v2106 = vunpack.c.l.s4 1934713408
        %v2107 = vunpack.c.0.s8 %v2106
        %v2108 = vlaneseq
        %v2109 = vshrl.u32 %v2108, 7
        %v2110 = vsub.s32 %v2107, %v2109
        %v2111 = vrot.slane %v2097, %v2110
        %v2112 = vcombine.high %v2089, 0.0
        %v2113 = vcombine.high %v2096, 0.0
        %v2114 = vcombine.high %v2104, 0.0
        %v2115 = vcombine.high %v2111, 0.0
        %v2116 = vcombine.high %v900, 0.0
        %v2118 = vunpack.c.l.s4 1983009808
        %v2119 = vunpack.c.0.s8 %v2118
        %v2120 = vlaneseq
        %v2121 = vshrl.u32 %v2120, 7
        %v2122 = vsub.s32 %v2119, %v2121
        %v2123 = vrot.slane %v900, %v2122
        %v2125 = vunpack.c.l.s4 1983009808
        %v2126 = vunpack.c.0.s8 %v2125
        %v2127 = vlaneseq
        %v2128 = vshrl.u32 %v2127, 7
        %v2129 = vsub.s32 %v2126, %v2128
        %v2130 = vrot.slane %v2116, %v2129
        %v2131 = vcombine.high %v2123, 0.0
        %v2133 = vunpack.c.l.s4 1934713408
        %v2134 = vunpack.c.0.s8 %v2133
        %v2135 = vlaneseq
        %v2136 = vshrl.u32 %v2135, 7
        %v2137 = vsub.s32 %v2134, %v2136
        %v2138 = vrot.slane %v2123, %v2137
        %v2140 = vunpack.c.l.s4 1934713408
        %v2141 = vunpack.c.0.s8 %v2140
        %v2142 = vlaneseq
        %v2143 = vshrl.u32 %v2142, 7
        %v2144 = vsub.s32 %v2141, %v2143
        %v2145 = vrot.slane %v2131, %v2144
        %v2146 = vcombine.high %v2130, 0.0
        %v2148 = vunpack.c.l.s4 1934713408
        %v2149 = vunpack.c.0.s8 %v2148
        %v2150 = vlaneseq
        %v2151 = vshrl.u32 %v2150, 7
        %v2152 = vsub.s32 %v2149, %v2151
        %v2153 = vrot.slane %v2130, %v2152
        %v2155 = vunpack.c.l.s4 1934713408
        %v2156 = vunpack.c.0.s8 %v2155
        %v2157 = vlaneseq
        %v2158 = vshrl.u32 %v2157, 7
        %v2159 = vsub.s32 %v2156, %v2158
        %v2160 = vrot.slane %v2146, %v2159
        %v2161 = vcombine.high %v2138, 0.0
        %v2162 = vcombine.high %v2145, 0.0
        %v2163 = vcombine.high %v2153, 0.0
        %v2164 = vcombine.high %v2160, 0.0
        %v2165 = vcombine.high %v901, 0.0
        %v2167 = vunpack.c.l.s4 1983009808
        %v2168 = vunpack.c.0.s8 %v2167
        %v2169 = vlaneseq
        %v2170 = vshrl.u32 %v2169, 7
        %v2171 = vsub.s32 %v2168, %v2170
        %v2172 = vrot.slane %v901, %v2171
        %v2174 = vunpack.c.l.s4 1983009808
        %v2175 = vunpack.c.0.s8 %v2174
        %v2176 = vlaneseq
        %v2177 = vshrl.u32 %v2176, 7
        %v2178 = vsub.s32 %v2175, %v2177
        %v2179 = vrot.slane %v2165, %v2178
        %v2180 = vcombine.high %v2172, 0.0
        %v2182 = vunpack.c.l.s4 1934713408
        %v2183 = vunpack.c.0.s8 %v2182
        %v2184 = vlaneseq
        %v2185 = vshrl.u32 %v2184, 7
        %v2186 = vsub.s32 %v2183, %v2185
        %v2187 = vrot.slane %v2172, %v2186
        %v2189 = vunpack.c.l.s4 1934713408
        %v2190 = vunpack.c.0.s8 %v2189
        %v2191 = vlaneseq
        %v2192 = vshrl.u32 %v2191, 7
        %v2193 = vsub.s32 %v2190, %v2192
        %v2194 = vrot.slane %v2180, %v2193
        %v2195 = vcombine.high %v2179, 0.0
        %v2197 = vunpack.c.l.s4 1934713408
        %v2198 = vunpack.c.0.s8 %v2197
        %v2199 = vlaneseq
        %v2200 = vshrl.u32 %v2199, 7
        %v2201 = vsub.s32 %v2198, %v2200
        %v2202 = vrot.slane %v2179, %v2201
        %v2204 = vunpack.c.l.s4 1934713408
        %v2205 = vunpack.c.0.s8 %v2204
        %v2206 = vlaneseq
        %v2207 = vshrl.u32 %v2206, 7
        %v2208 = vsub.s32 %v2205, %v2207
        %v2209 = vrot.slane %v2195, %v2208
        %v2210 = vcombine.high %v2187, 0.0
        %v2211 = vcombine.high %v2194, 0.0
        %v2212 = vcombine.high %v2202, 0.0
        %v2213 = vcombine.high %v2209, 0.0
        %v2214 = vcombine.high %v902, 0.0
        %v2216 = vunpack.c.l.s4 1983009808
        %v2217 = vunpack.c.0.s8 %v2216
        %v2218 = vlaneseq
        %v2219 = vshrl.u32 %v2218, 7
        %v2220 = vsub.s32 %v2217, %v2219
        %v2221 = vrot.slane %v902, %v2220
        %v2223 = vunpack.c.l.s4 1983009808
        %v2224 = vunpack.c.0.s8 %v2223
        %v2225 = vlaneseq
        %v2226 = vshrl.u32 %v2225, 7
        %v2227 = vsub.s32 %v2224, %v2226
        %v2228 = vrot.slane %v2214, %v2227
        %v2229 = vcombine.high %v2221, 0.0
        %v2231 = vunpack.c.l.s4 1934713408
        %v2232 = vunpack.c.0.s8 %v2231
        %v2233 = vlaneseq
        %v2234 = vshrl.u32 %v2233, 7
        %v2235 = vsub.s32 %v2232, %v2234
        %v2236 = vrot.slane %v2221, %v2235
        %v2238 = vunpack.c.l.s4 1934713408
        %v2239 = vunpack.c.0.s8 %v2238
        %v2240 = vlaneseq
        %v2241 = vshrl.u32 %v2240, 7
        %v2242 = vsub.s32 %v2239, %v2241
        %v2243 = vrot.slane %v2229, %v2242
        %v2244 = vcombine.high %v2228, 0.0
        %v2246 = vunpack.c.l.s4 1934713408
        %v2247 = vunpack.c.0.s8 %v2246
        %v2248 = vlaneseq
        %v2249 = vshrl.u32 %v2248, 7
        %v2250 = vsub.s32 %v2247, %v2249
        %v2251 = vrot.slane %v2228, %v2250
        %v2253 = vunpack.c.l.s4 1934713408
        %v2254 = vunpack.c.0.s8 %v2253
        %v2255 = vlaneseq
        %v2256 = vshrl.u32 %v2255, 7
        %v2257 = vsub.s32 %v2254, %v2256
        %v2258 = vrot.slane %v2244, %v2257
        %v2259 = vcombine.high %v2236, 0.0
        %v2260 = vcombine.high %v2243, 0.0
        %v2261 = vcombine.high %v2251, 0.0
        %v2262 = vcombine.high %v2258, 0.0
        %v2263 = vcombine.high %v903, 0.0
        %v2265 = vunpack.c.l.s4 1983009808
        %v2266 = vunpack.c.0.s8 %v2265
        %v2267 = vlaneseq
        %v2268 = vshrl.u32 %v2267, 7
        %v2269 = vsub.s32 %v2266, %v2268
        %v2270 = vrot.slane %v903, %v2269
        %v2272 = vunpack.c.l.s4 1983009808
        %v2273 = vunpack.c.0.s8 %v2272
        %v2274 = vlaneseq
        %v2275 = vshrl.u32 %v2274, 7
        %v2276 = vsub.s32 %v2273, %v2275
        %v2277 = vrot.slane %v2263, %v2276
        %v2278 = vcombine.high %v2270, 0.0
        %v2280 = vunpack.c.l.s4 1934713408
        %v2281 = vunpack.c.0.s8 %v2280
        %v2282 = vlaneseq
        %v2283 = vshrl.u32 %v2282, 7
        %v2284 = vsub.s32 %v2281, %v2283
        %v2285 = vrot.slane %v2270, %v2284
        %v2287 = vunpack.c.l.s4 1934713408
        %v2288 = vunpack.c.0.s8 %v2287
        %v2289 = vlaneseq
        %v2290 = vshrl.u32 %v2289, 7
        %v2291 = vsub.s32 %v2288, %v2290
        %v2292 = vrot.slane %v2278, %v2291
        %v2293 = vcombine.high %v2277, 0.0
        %v2295 = vunpack.c.l.s4 1934713408
        %v2296 = vunpack.c.0.s8 %v2295
        %v2297 = vlaneseq
        %v2298 = vshrl.u32 %v2297, 7
        %v2299 = vsub.s32 %v2296, %v2298
        %v2300 = vrot.slane %v2277, %v2299
        %v2302 = vunpack.c.l.s4 1934713408
        %v2303 = vunpack.c.0.s8 %v2302
        %v2304 = vlaneseq
        %v2305 = vshrl.u32 %v2304, 7
        %v2306 = vsub.s32 %v2303, %v2305
        %v2307 = vrot.slane %v2293, %v2306
        %v2308 = vcombine.high %v2285, 0.0
        %v2309 = vcombine.high %v2292, 0.0
        %v2310 = vcombine.high %v2300, 0.0
        %v2311 = vcombine.high %v2307, 0.0
        %v2312 = vcombine.high %v904, 0.0
        %v2314 = vunpack.c.l.s4 1983009808
        %v2315 = vunpack.c.0.s8 %v2314
        %v2316 = vlaneseq
        %v2317 = vshrl.u32 %v2316, 7
        %v2318 = vsub.s32 %v2315, %v2317
        %v2319 = vrot.slane %v904, %v2318
        %v2321 = vunpack.c.l.s4 1983009808
        %v2322 = vunpack.c.0.s8 %v2321
        %v2323 = vlaneseq
        %v2324 = vshrl.u32 %v2323, 7
        %v2325 = vsub.s32 %v2322, %v2324
        %v2326 = vrot.slane %v2312, %v2325
        %v2327 = vcombine.high %v2319, 0.0
        %v2329 = vunpack.c.l.s4 1934713408
        %v2330 = vunpack.c.0.s8 %v2329
        %v2331 = vlaneseq
        %v2332 = vshrl.u32 %v2331, 7
        %v2333 = vsub.s32 %v2330, %v2332
        %v2334 = vrot.slane %v2319, %v2333
        %v2336 = vunpack.c.l.s4 1934713408
        %v2337 = vunpack.c.0.s8 %v2336
        %v2338 = vlaneseq
        %v2339 = vshrl.u32 %v2338, 7
        %v2340 = vsub.s32 %v2337, %v2339
        %v2341 = vrot.slane %v2327, %v2340
        %v2342 = vcombine.high %v2326, 0.0
        %v2344 = vunpack.c.l.s4 1934713408
        %v2345 = vunpack.c.0.s8 %v2344
        %v2346 = vlaneseq
        %v2347 = vshrl.u32 %v2346, 7
        %v2348 = vsub.s32 %v2345, %v2347
        %v2349 = vrot.slane %v2326, %v2348
        %v2351 = vunpack.c.l.s4 1934713408
        %v2352 = vunpack.c.0.s8 %v2351
        %v2353 = vlaneseq
        %v2354 = vshrl.u32 %v2353, 7
        %v2355 = vsub.s32 %v2352, %v2354
        %v2356 = vrot.slane %v2342, %v2355
        %v2357 = vcombine.high %v2334, 0.0
        %v2358 = vcombine.high %v2341, 0.0
        %v2359 = vcombine.high %v2349, 0.0
        %v2360 = vcombine.high %v2356, 0.0
        %v2361 = vcombine.high %v905, 0.0
        %v2363 = vunpack.c.l.s4 1983009808
        %v2364 = vunpack.c.0.s8 %v2363
        %v2365 = vlaneseq
        %v2366 = vshrl.u32 %v2365, 7
        %v2367 = vsub.s32 %v2364, %v2366
        %v2368 = vrot.slane %v905, %v2367
        %v2370 = vunpack.c.l.s4 1983009808
        %v2371 = vunpack.c.0.s8 %v2370
        %v2372 = vlaneseq
        %v2373 = vshrl.u32 %v2372, 7
        %v2374 = vsub.s32 %v2371, %v2373
        %v2375 = vrot.slane %v2361, %v2374
        %v2376 = vcombine.high %v2368, 0.0
        %v2378 = vunpack.c.l.s4 1934713408
        %v2379 = vunpack.c.0.s8 %v2378
        %v2380 = vlaneseq
        %v2381 = vshrl.u32 %v2380, 7
        %v2382 = vsub.s32 %v2379, %v2381
        %v2383 = vrot.slane %v2368, %v2382
        %v2385 = vunpack.c.l.s4 1934713408
        %v2386 = vunpack.c.0.s8 %v2385
        %v2387 = vlaneseq
        %v2388 = vshrl.u32 %v2387, 7
        %v2389 = vsub.s32 %v2386, %v2388
        %v2390 = vrot.slane %v2376, %v2389
        %v2391 = vcombine.high %v2375, 0.0
        %v2393 = vunpack.c.l.s4 1934713408
        %v2394 = vunpack.c.0.s8 %v2393
        %v2395 = vlaneseq
        %v2396 = vshrl.u32 %v2395, 7
        %v2397 = vsub.s32 %v2394, %v2396
        %v2398 = vrot.slane %v2375, %v2397
        %v2400 = vunpack.c.l.s4 1934713408
        %v2401 = vunpack.c.0.s8 %v2400
        %v2402 = vlaneseq
        %v2403 = vshrl.u32 %v2402, 7
        %v2404 = vsub.s32 %v2401, %v2403
        %v2405 = vrot.slane %v2391, %v2404
        %v2406 = vcombine.high %v2383, 0.0
        %v2407 = vcombine.high %v2390, 0.0
        %v2408 = vcombine.high %v2398, 0.0
        %v2409 = vcombine.high %v2405, 0.0
        %v2410 = vcombine.high %v906, 0.0
        %v2412 = vunpack.c.l.s4 1983009808
        %v2413 = vunpack.c.0.s8 %v2412
        %v2414 = vlaneseq
        %v2415 = vshrl.u32 %v2414, 7
        %v2416 = vsub.s32 %v2413, %v2415
        %v2417 = vrot.slane %v906, %v2416
        %v2419 = vunpack.c.l.s4 1983009808
        %v2420 = vunpack.c.0.s8 %v2419
        %v2421 = vlaneseq
        %v2422 = vshrl.u32 %v2421, 7
        %v2423 = vsub.s32 %v2420, %v2422
        %v2424 = vrot.slane %v2410, %v2423
        %v2425 = vcombine.high %v2417, 0.0
        %v2427 = vunpack.c.l.s4 1934713408
        %v2428 = vunpack.c.0.s8 %v2427
        %v2429 = vlaneseq
        %v2430 = vshrl.u32 %v2429, 7
        %v2431 = vsub.s32 %v2428, %v2430
        %v2432 = vrot.slane %v2417, %v2431
        %v2434 = vunpack.c.l.s4 1934713408
        %v2435 = vunpack.c.0.s8 %v2434
        %v2436 = vlaneseq
        %v2437 = vshrl.u32 %v2436, 7
        %v2438 = vsub.s32 %v2435, %v2437
        %v2439 = vrot.slane %v2425, %v2438
        %v2440 = vcombine.high %v2424, 0.0
        %v2442 = vunpack.c.l.s4 1934713408
        %v2443 = vunpack.c.0.s8 %v2442
        %v2444 = vlaneseq
        %v2445 = vshrl.u32 %v2444, 7
        %v2446 = vsub.s32 %v2443, %v2445
        %v2447 = vrot.slane %v2424, %v2446
        %v2449 = vunpack.c.l.s4 1934713408
        %v2450 = vunpack.c.0.s8 %v2449
        %v2451 = vlaneseq
        %v2452 = vshrl.u32 %v2451, 7
        %v2453 = vsub.s32 %v2450, %v2452
        %v2454 = vrot.slane %v2440, %v2453
        %v2455 = vcombine.high %v2432, 0.0
        %v2456 = vcombine.high %v2439, 0.0
        %v2457 = vcombine.high %v2447, 0.0
        %v2458 = vcombine.high %v2454, 0.0
        %v2459 = vcombine.high %v907, 0.0
        %v2461 = vunpack.c.l.s4 1983009808
        %v2462 = vunpack.c.0.s8 %v2461
        %v2463 = vlaneseq
        %v2464 = vshrl.u32 %v2463, 7
        %v2465 = vsub.s32 %v2462, %v2464
        %v2466 = vrot.slane %v907, %v2465
        %v2468 = vunpack.c.l.s4 1983009808
        %v2469 = vunpack.c.0.s8 %v2468
        %v2470 = vlaneseq
        %v2471 = vshrl.u32 %v2470, 7
        %v2472 = vsub.s32 %v2469, %v2471
        %v2473 = vrot.slane %v2459, %v2472
        %v2474 = vcombine.high %v2466, 0.0
        %v2476 = vunpack.c.l.s4 1934713408
        %v2477 = vunpack.c.0.s8 %v2476
        %v2478 = vlaneseq
        %v2479 = vshrl.u32 %v2478, 7
        %v2480 = vsub.s32 %v2477, %v2479
        %v2481 = vrot.slane %v2466, %v2480
        %v2483 = vunpack.c.l.s4 1934713408
        %v2484 = vunpack.c.0.s8 %v2483
        %v2485 = vlaneseq
        %v2486 = vshrl.u32 %v2485, 7
        %v2487 = vsub.s32 %v2484, %v2486
        %v2488 = vrot.slane %v2474, %v2487
        %v2489 = vcombine.high %v2473, 0.0
        %v2491 = vunpack.c.l.s4 1934713408
        %v2492 = vunpack.c.0.s8 %v2491
        %v2493 = vlaneseq
        %v2494 = vshrl.u32 %v2493, 7
        %v2495 = vsub.s32 %v2492, %v2494
        %v2496 = vrot.slane %v2473, %v2495
        %v2498 = vunpack.c.l.s4 1934713408
        %v2499 = vunpack.c.0.s8 %v2498
        %v2500 = vlaneseq
        %v2501 = vshrl.u32 %v2500, 7
        %v2502 = vsub.s32 %v2499, %v2501
        %v2503 = vrot.slane %v2489, %v2502
        %v2504 = vcombine.high %v2481, 0.0
        %v2505 = vcombine.high %v2488, 0.0
        %v2506 = vcombine.high %v2496, 0.0
        %v2507 = vcombine.high %v2503, 0.0
        %v2508 = vcombine.high %v908, 0.0
        %v2510 = vunpack.c.l.s4 1983009808
        %v2511 = vunpack.c.0.s8 %v2510
        %v2512 = vlaneseq
        %v2513 = vshrl.u32 %v2512, 7
        %v2514 = vsub.s32 %v2511, %v2513
        %v2515 = vrot.slane %v908, %v2514
        %v2517 = vunpack.c.l.s4 1983009808
        %v2518 = vunpack.c.0.s8 %v2517
        %v2519 = vlaneseq
        %v2520 = vshrl.u32 %v2519, 7
        %v2521 = vsub.s32 %v2518, %v2520
        %v2522 = vrot.slane %v2508, %v2521
        %v2523 = vcombine.high %v2515, 0.0
        %v2525 = vunpack.c.l.s4 1934713408
        %v2526 = vunpack.c.0.s8 %v2525
        %v2527 = vlaneseq
        %v2528 = vshrl.u32 %v2527, 7
        %v2529 = vsub.s32 %v2526, %v2528
        %v2530 = vrot.slane %v2515, %v2529
        %v2532 = vunpack.c.l.s4 1934713408
        %v2533 = vunpack.c.0.s8 %v2532
        %v2534 = vlaneseq
        %v2535 = vshrl.u32 %v2534, 7
        %v2536 = vsub.s32 %v2533, %v2535
        %v2537 = vrot.slane %v2523, %v2536
        %v2538 = vcombine.high %v2522, 0.0
        %v2540 = vunpack.c.l.s4 1934713408
        %v2541 = vunpack.c.0.s8 %v2540
        %v2542 = vlaneseq
        %v2543 = vshrl.u32 %v2542, 7
        %v2544 = vsub.s32 %v2541, %v2543
        %v2545 = vrot.slane %v2522, %v2544
        %v2547 = vunpack.c.l.s4 1934713408
        %v2548 = vunpack.c.0.s8 %v2547
        %v2549 = vlaneseq
        %v2550 = vshrl.u32 %v2549, 7
        %v2551 = vsub.s32 %v2548, %v2550
        %v2552 = vrot.slane %v2538, %v2551
        %v2553 = vcombine.high %v2530, 0.0
        %v2554 = vcombine.high %v2537, 0.0
        %v2555 = vcombine.high %v2545, 0.0
        %v2556 = vcombine.high %v2552, 0.0
        %v2557 = vcombine.high %v909, 0.0
        %v2559 = vunpack.c.l.s4 1983009808
        %v2560 = vunpack.c.0.s8 %v2559
        %v2561 = vlaneseq
        %v2562 = vshrl.u32 %v2561, 7
        %v2563 = vsub.s32 %v2560, %v2562
        %v2564 = vrot.slane %v909, %v2563
        %v2566 = vunpack.c.l.s4 1983009808
        %v2567 = vunpack.c.0.s8 %v2566
        %v2568 = vlaneseq
        %v2569 = vshrl.u32 %v2568, 7
        %v2570 = vsub.s32 %v2567, %v2569
        %v2571 = vrot.slane %v2557, %v2570
        %v2572 = vcombine.high %v2564, 0.0
        %v2574 = vunpack.c.l.s4 1934713408
        %v2575 = vunpack.c.0.s8 %v2574
        %v2576 = vlaneseq
        %v2577 = vshrl.u32 %v2576, 7
        %v2578 = vsub.s32 %v2575, %v2577
        %v2579 = vrot.slane %v2564, %v2578
        %v2581 = vunpack.c.l.s4 1934713408
        %v2582 = vunpack.c.0.s8 %v2581
        %v2583 = vlaneseq
        %v2584 = vshrl.u32 %v2583, 7
        %v2585 = vsub.s32 %v2582, %v2584
        %v2586 = vrot.slane %v2572, %v2585
        %v2587 = vcombine.high %v2571, 0.0
        %v2589 = vunpack.c.l.s4 1934713408
        %v2590 = vunpack.c.0.s8 %v2589
        %v2591 = vlaneseq
        %v2592 = vshrl.u32 %v2591, 7
        %v2593 = vsub.s32 %v2590, %v2592
        %v2594 = vrot.slane %v2571, %v2593
        %v2596 = vunpack.c.l.s4 1934713408
        %v2597 = vunpack.c.0.s8 %v2596
        %v2598 = vlaneseq
        %v2599 = vshrl.u32 %v2598, 7
        %v2600 = vsub.s32 %v2597, %v2599
        %v2601 = vrot.slane %v2587, %v2600
        %v2602 = vcombine.high %v2579, 0.0
        %v2603 = vcombine.high %v2586, 0.0
        %v2604 = vcombine.high %v2594, 0.0
        %v2605 = vcombine.high %v2601, 0.0
        %v2606 = vcombine.high %v910, 0.0
        %v2608 = vunpack.c.l.s4 1983009808
        %v2609 = vunpack.c.0.s8 %v2608
        %v2610 = vlaneseq
        %v2611 = vshrl.u32 %v2610, 7
        %v2612 = vsub.s32 %v2609, %v2611
        %v2613 = vrot.slane %v910, %v2612
        %v2615 = vunpack.c.l.s4 1983009808
        %v2616 = vunpack.c.0.s8 %v2615
        %v2617 = vlaneseq
        %v2618 = vshrl.u32 %v2617, 7
        %v2619 = vsub.s32 %v2616, %v2618
        %v2620 = vrot.slane %v2606, %v2619
        %v2621 = vcombine.high %v2613, 0.0
        %v2623 = vunpack.c.l.s4 1934713408
        %v2624 = vunpack.c.0.s8 %v2623
        %v2625 = vlaneseq
        %v2626 = vshrl.u32 %v2625, 7
        %v2627 = vsub.s32 %v2624, %v2626
        %v2628 = vrot.slane %v2613, %v2627
        %v2630 = vunpack.c.l.s4 1934713408
        %v2631 = vunpack.c.0.s8 %v2630
        %v2632 = vlaneseq
        %v2633 = vshrl.u32 %v2632, 7
        %v2634 = vsub.s32 %v2631, %v2633
        %v2635 = vrot.slane %v2621, %v2634
        %v2636 = vcombine.high %v2620, 0.0
        %v2638 = vunpack.c.l.s4 1934713408
        %v2639 = vunpack.c.0.s8 %v2638
        %v2640 = vlaneseq
        %v2641 = vshrl.u32 %v2640, 7
        %v2642 = vsub.s32 %v2639, %v2641
        %v2643 = vrot.slane %v2620, %v2642
        %v2645 = vunpack.c.l.s4 1934713408
        %v2646 = vunpack.c.0.s8 %v2645
        %v2647 = vlaneseq
        %v2648 = vshrl.u32 %v2647, 7
        %v2649 = vsub.s32 %v2646, %v2648
        %v2650 = vrot.slane %v2636, %v2649
        %v2651 = vcombine.high %v2628, 0.0
        %v2652 = vcombine.high %v2635, 0.0
        %v2653 = vcombine.high %v2643, 0.0
        %v2654 = vcombine.high %v2650, 0.0
        %v2655 = vcombine.high %v911, 0.0
        %v2657 = vunpack.c.l.s4 1983009808
        %v2658 = vunpack.c.0.s8 %v2657
        %v2659 = vlaneseq
        %v2660 = vshrl.u32 %v2659, 7
        %v2661 = vsub.s32 %v2658, %v2660
        %v2662 = vrot.slane %v911, %v2661
        %v2664 = vunpack.c.l.s4 1983009808
        %v2665 = vunpack.c.0.s8 %v2664
        %v2666 = vlaneseq
        %v2667 = vshrl.u32 %v2666, 7
        %v2668 = vsub.s32 %v2665, %v2667
        %v2669 = vrot.slane %v2655, %v2668
        %v2670 = vcombine.high %v2662, 0.0
        %v2672 = vunpack.c.l.s4 1934713408
        %v2673 = vunpack.c.0.s8 %v2672
        %v2674 = vlaneseq
        %v2675 = vshrl.u32 %v2674, 7
        %v2676 = vsub.s32 %v2673, %v2675
        %v2677 = vrot.slane %v2662, %v2676
        %v2679 = vunpack.c.l.s4 1934713408
        %v2680 = vunpack.c.0.s8 %v2679
        %v2681 = vlaneseq
        %v2682 = vshrl.u32 %v2681, 7
        %v2683 = vsub.s32 %v2680, %v2682
        %v2684 = vrot.slane %v2670, %v2683
        %v2685 = vcombine.high %v2669, 0.0
        %v2687 = vunpack.c.l.s4 1934713408
        %v2688 = vunpack.c.0.s8 %v2687
        %v2689 = vlaneseq
        %v2690 = vshrl.u32 %v2689, 7
        %v2691 = vsub.s32 %v2688, %v2690
        %v2692 = vrot.slane %v2669, %v2691
        %v2694 = vunpack.c.l.s4 1934713408
        %v2695 = vunpack.c.0.s8 %v2694
        %v2696 = vlaneseq
        %v2697 = vshrl.u32 %v2696, 7
        %v2698 = vsub.s32 %v2695, %v2697
        %v2699 = vrot.slane %v2685, %v2698
        %v2700 = vcombine.high %v2677, 0.0
        %v2701 = vcombine.high %v2684, 0.0
        %v2702 = vcombine.high %v2692, 0.0
        %v2703 = vcombine.high %v2699, 0.0
        %v2704 = vcombine.high %v912, 0.0
        %v2706 = vunpack.c.l.s4 1983009808
        %v2707 = vunpack.c.0.s8 %v2706
        %v2708 = vlaneseq
        %v2709 = vshrl.u32 %v2708, 7
        %v2710 = vsub.s32 %v2707, %v2709
        %v2711 = vrot.slane %v912, %v2710
        %v2713 = vunpack.c.l.s4 1983009808
        %v2714 = vunpack.c.0.s8 %v2713
        %v2715 = vlaneseq
        %v2716 = vshrl.u32 %v2715, 7
        %v2717 = vsub.s32 %v2714, %v2716
        %v2718 = vrot.slane %v2704, %v2717
        %v2719 = vcombine.high %v2711, 0.0
        %v2721 = vunpack.c.l.s4 1934713408
        %v2722 = vunpack.c.0.s8 %v2721
        %v2723 = vlaneseq
        %v2724 = vshrl.u32 %v2723, 7
        %v2725 = vsub.s32 %v2722, %v2724
        %v2726 = vrot.slane %v2711, %v2725
        %v2728 = vunpack.c.l.s4 1934713408
        %v2729 = vunpack.c.0.s8 %v2728
        %v2730 = vlaneseq
        %v2731 = vshrl.u32 %v2730, 7
        %v2732 = vsub.s32 %v2729, %v2731
        %v2733 = vrot.slane %v2719, %v2732
        %v2734 = vcombine.high %v2718, 0.0
        %v2736 = vunpack.c.l.s4 1934713408
        %v2737 = vunpack.c.0.s8 %v2736
        %v2738 = vlaneseq
        %v2739 = vshrl.u32 %v2738, 7
        %v2740 = vsub.s32 %v2737, %v2739
        %v2741 = vrot.slane %v2718, %v2740
        %v2743 = vunpack.c.l.s4 1934713408
        %v2744 = vunpack.c.0.s8 %v2743
        %v2745 = vlaneseq
        %v2746 = vshrl.u32 %v2745, 7
        %v2747 = vsub.s32 %v2744, %v2746
        %v2748 = vrot.slane %v2734, %v2747
        %v2749 = vcombine.high %v2726, 0.0
        %v2750 = vcombine.high %v2733, 0.0
        %v2751 = vcombine.high %v2741, 0.0
        %v2752 = vcombine.high %v2748, 0.0
        %v2753 = vcombine.high %v913, 0.0
        %v2755 = vunpack.c.l.s4 1983009808
        %v2756 = vunpack.c.0.s8 %v2755
        %v2757 = vlaneseq
        %v2758 = vshrl.u32 %v2757, 7
        %v2759 = vsub.s32 %v2756, %v2758
        %v2760 = vrot.slane %v913, %v2759
        %v2762 = vunpack.c.l.s4 1983009808
        %v2763 = vunpack.c.0.s8 %v2762
        %v2764 = vlaneseq
        %v2765 = vshrl.u32 %v2764, 7
        %v2766 = vsub.s32 %v2763, %v2765
        %v2767 = vrot.slane %v2753, %v2766
        %v2768 = vcombine.high %v2760, 0.0
        %v2770 = vunpack.c.l.s4 1934713408
        %v2771 = vunpack.c.0.s8 %v2770
        %v2772 = vlaneseq
        %v2773 = vshrl.u32 %v2772, 7
        %v2774 = vsub.s32 %v2771, %v2773
        %v2775 = vrot.slane %v2760, %v2774
        %v2777 = vunpack.c.l.s4 1934713408
        %v2778 = vunpack.c.0.s8 %v2777
        %v2779 = vlaneseq
        %v2780 = vshrl.u32 %v2779, 7
        %v2781 = vsub.s32 %v2778, %v2780
        %v2782 = vrot.slane %v2768, %v2781
        %v2783 = vcombine.high %v2767, 0.0
        %v2785 = vunpack.c.l.s4 1934713408
        %v2786 = vunpack.c.0.s8 %v2785
        %v2787 = vlaneseq
        %v2788 = vshrl.u32 %v2787, 7
        %v2789 = vsub.s32 %v2786, %v2788
        %v2790 = vrot.slane %v2767, %v2789
        %v2792 = vunpack.c.l.s4 1934713408
        %v2793 = vunpack.c.0.s8 %v2792
        %v2794 = vlaneseq
        %v2795 = vshrl.u32 %v2794, 7
        %v2796 = vsub.s32 %v2793, %v2795
        %v2797 = vrot.slane %v2783, %v2796
        %v2798 = vcombine.high %v2775, 0.0
        %v2799 = vcombine.high %v2782, 0.0
        %v2800 = vcombine.high %v2790, 0.0
        %v2801 = vcombine.high %v2797, 0.0
        %v2802 = vcombine.high %v914, 0.0
        %v2804 = vunpack.c.l.s4 1983009808
        %v2805 = vunpack.c.0.s8 %v2804
        %v2806 = vlaneseq
        %v2807 = vshrl.u32 %v2806, 7
        %v2808 = vsub.s32 %v2805, %v2807
        %v2809 = vrot.slane %v914, %v2808
        %v2811 = vunpack.c.l.s4 1983009808
        %v2812 = vunpack.c.0.s8 %v2811
        %v2813 = vlaneseq
        %v2814 = vshrl.u32 %v2813, 7
        %v2815 = vsub.s32 %v2812, %v2814
        %v2816 = vrot.slane %v2802, %v2815
        %v2817 = vcombine.high %v2809, 0.0
        %v2819 = vunpack.c.l.s4 1934713408
        %v2820 = vunpack.c.0.s8 %v2819
        %v2821 = vlaneseq
        %v2822 = vshrl.u32 %v2821, 7
        %v2823 = vsub.s32 %v2820, %v2822
        %v2824 = vrot.slane %v2809, %v2823
        %v2826 = vunpack.c.l.s4 1934713408
        %v2827 = vunpack.c.0.s8 %v2826
        %v2828 = vlaneseq
        %v2829 = vshrl.u32 %v2828, 7
        %v2830 = vsub.s32 %v2827, %v2829
        %v2831 = vrot.slane %v2817, %v2830
        %v2832 = vcombine.high %v2816, 0.0
        %v2834 = vunpack.c.l.s4 1934713408
        %v2835 = vunpack.c.0.s8 %v2834
        %v2836 = vlaneseq
        %v2837 = vshrl.u32 %v2836, 7
        %v2838 = vsub.s32 %v2835, %v2837
        %v2839 = vrot.slane %v2816, %v2838
        %v2841 = vunpack.c.l.s4 1934713408
        %v2842 = vunpack.c.0.s8 %v2841
        %v2843 = vlaneseq
        %v2844 = vshrl.u32 %v2843, 7
        %v2845 = vsub.s32 %v2842, %v2844
        %v2846 = vrot.slane %v2832, %v2845
        %v2847 = vcombine.high %v2824, 0.0
        %v2848 = vcombine.high %v2831, 0.0
        %v2849 = vcombine.high %v2839, 0.0
        %v2850 = vcombine.high %v2846, 0.0
        %v2851 = vcombine.high %v915, 0.0
        %v2853 = vunpack.c.l.s4 1983009808
        %v2854 = vunpack.c.0.s8 %v2853
        %v2855 = vlaneseq
        %v2856 = vshrl.u32 %v2855, 7
        %v2857 = vsub.s32 %v2854, %v2856
        %v2858 = vrot.slane %v915, %v2857
        %v2860 = vunpack.c.l.s4 1983009808
        %v2861 = vunpack.c.0.s8 %v2860
        %v2862 = vlaneseq
        %v2863 = vshrl.u32 %v2862, 7
        %v2864 = vsub.s32 %v2861, %v2863
        %v2865 = vrot.slane %v2851, %v2864
        %v2866 = vcombine.high %v2858, 0.0
        %v2868 = vunpack.c.l.s4 1934713408
        %v2869 = vunpack.c.0.s8 %v2868
        %v2870 = vlaneseq
        %v2871 = vshrl.u32 %v2870, 7
        %v2872 = vsub.s32 %v2869, %v2871
        %v2873 = vrot.slane %v2858, %v2872
        %v2875 = vunpack.c.l.s4 1934713408
        %v2876 = vunpack.c.0.s8 %v2875
        %v2877 = vlaneseq
        %v2878 = vshrl.u32 %v2877, 7
        %v2879 = vsub.s32 %v2876, %v2878
        %v2880 = vrot.slane %v2866, %v2879
        %v2881 = vcombine.high %v2865, 0.0
        %v2883 = vunpack.c.l.s4 1934713408
        %v2884 = vunpack.c.0.s8 %v2883
        %v2885 = vlaneseq
        %v2886 = vshrl.u32 %v2885, 7
        %v2887 = vsub.s32 %v2884, %v2886
        %v2888 = vrot.slane %v2865, %v2887
        %v2890 = vunpack.c.l.s4 1934713408
        %v2891 = vunpack.c.0.s8 %v2890
        %v2892 = vlaneseq
        %v2893 = vshrl.u32 %v2892, 7
        %v2894 = vsub.s32 %v2891, %v2893
        %v2895 = vrot.slane %v2881, %v2894
        %v2896 = vcombine.high %v2873, 0.0
        %v2897 = vcombine.high %v2880, 0.0
        %v2898 = vcombine.high %v2888, 0.0
        %v2899 = vcombine.high %v2895, 0.0
        %v2900 = vcombine.high %v916, 0.0
        %v2902 = vunpack.c.l.s4 1983009808
        %v2903 = vunpack.c.0.s8 %v2902
        %v2904 = vlaneseq
        %v2905 = vshrl.u32 %v2904, 7
        %v2906 = vsub.s32 %v2903, %v2905
        %v2907 = vrot.slane %v916, %v2906
        %v2909 = vunpack.c.l.s4 1983009808
        %v2910 = vunpack.c.0.s8 %v2909
        %v2911 = vlaneseq
        %v2912 = vshrl.u32 %v2911, 7
        %v2913 = vsub.s32 %v2910, %v2912
        %v2914 = vrot.slane %v2900, %v2913
        %v2915 = vcombine.high %v2907, 0.0
        %v2917 = vunpack.c.l.s4 1934713408
        %v2918 = vunpack.c.0.s8 %v2917
        %v2919 = vlaneseq
        %v2920 = vshrl.u32 %v2919, 7
        %v2921 = vsub.s32 %v2918, %v2920
        %v2922 = vrot.slane %v2907, %v2921
        %v2924 = vunpack.c.l.s4 1934713408
        %v2925 = vunpack.c.0.s8 %v2924
        %v2926 = vlaneseq
        %v2927 = vshrl.u32 %v2926, 7
        %v2928 = vsub.s32 %v2925, %v2927
        %v2929 = vrot.slane %v2915, %v2928
        %v2930 = vcombine.high %v2914, 0.0
        %v2932 = vunpack.c.l.s4 1934713408
        %v2933 = vunpack.c.0.s8 %v2932
        %v2934 = vlaneseq
        %v2935 = vshrl.u32 %v2934, 7
        %v2936 = vsub.s32 %v2933, %v2935
        %v2937 = vrot.slane %v2914, %v2936
        %v2939 = vunpack.c.l.s4 1934713408
        %v2940 = vunpack.c.0.s8 %v2939
        %v2941 = vlaneseq
        %v2942 = vshrl.u32 %v2941, 7
        %v2943 = vsub.s32 %v2940, %v2942
        %v2944 = vrot.slane %v2930, %v2943
        %v2945 = vcombine.high %v2922, 0.0
        %v2946 = vcombine.high %v2929, 0.0
        %v2947 = vcombine.high %v2937, 0.0
        %v2948 = vcombine.high %v2944, 0.0
        %v2949 = vcombine.high %v917, 0.0
        %v2951 = vunpack.c.l.s4 1983009808
        %v2952 = vunpack.c.0.s8 %v2951
        %v2953 = vlaneseq
        %v2954 = vshrl.u32 %v2953, 7
        %v2955 = vsub.s32 %v2952, %v2954
        %v2956 = vrot.slane %v917, %v2955
        %v2958 = vunpack.c.l.s4 1983009808
        %v2959 = vunpack.c.0.s8 %v2958
        %v2960 = vlaneseq
        %v2961 = vshrl.u32 %v2960, 7
        %v2962 = vsub.s32 %v2959, %v2961
        %v2963 = vrot.slane %v2949, %v2962
        %v2964 = vcombine.high %v2956, 0.0
        %v2966 = vunpack.c.l.s4 1934713408
        %v2967 = vunpack.c.0.s8 %v2966
        %v2968 = vlaneseq
        %v2969 = vshrl.u32 %v2968, 7
        %v2970 = vsub.s32 %v2967, %v2969
        %v2971 = vrot.slane %v2956, %v2970
        %v2973 = vunpack.c.l.s4 1934713408
        %v2974 = vunpack.c.0.s8 %v2973
        %v2975 = vlaneseq
        %v2976 = vshrl.u32 %v2975, 7
        %v2977 = vsub.s32 %v2974, %v2976
        %v2978 = vrot.slane %v2964, %v2977
        %v2979 = vcombine.high %v2963, 0.0
        %v2981 = vunpack.c.l.s4 1934713408
        %v2982 = vunpack.c.0.s8 %v2981
        %v2983 = vlaneseq
        %v2984 = vshrl.u32 %v2983, 7
        %v2985 = vsub.s32 %v2982, %v2984
        %v2986 = vrot.slane %v2963, %v2985
        %v2988 = vunpack.c.l.s4 1934713408
        %v2989 = vunpack.c.0.s8 %v2988
        %v2990 = vlaneseq
        %v2991 = vshrl.u32 %v2990, 7
        %v2992 = vsub.s32 %v2989, %v2991
        %v2993 = vrot.slane %v2979, %v2992
        %v2994 = vcombine.high %v2971, 0.0
        %v2995 = vcombine.high %v2978, 0.0
        %v2996 = vcombine.high %v2986, 0.0
        %v2997 = vcombine.high %v2993, 0.0
        %v2998 = vcombine.high %v918, 0.0
        %v3000 = vunpack.c.l.s4 1983009808
        %v3001 = vunpack.c.0.s8 %v3000
        %v3002 = vlaneseq
        %v3003 = vshrl.u32 %v3002, 7
        %v3004 = vsub.s32 %v3001, %v3003
        %v3005 = vrot.slane %v918, %v3004
        %v3007 = vunpack.c.l.s4 1983009808
        %v3008 = vunpack.c.0.s8 %v3007
        %v3009 = vlaneseq
        %v3010 = vshrl.u32 %v3009, 7
        %v3011 = vsub.s32 %v3008, %v3010
        %v3012 = vrot.slane %v2998, %v3011
        %v3013 = vcombine.high %v3005, 0.0
        %v3015 = vunpack.c.l.s4 1934713408
        %v3016 = vunpack.c.0.s8 %v3015
        %v3017 = vlaneseq
        %v3018 = vshrl.u32 %v3017, 7
        %v3019 = vsub.s32 %v3016, %v3018
        %v3020 = vrot.slane %v3005, %v3019
        %v3022 = vunpack.c.l.s4 1934713408
        %v3023 = vunpack.c.0.s8 %v3022
        %v3024 = vlaneseq
        %v3025 = vshrl.u32 %v3024, 7
        %v3026 = vsub.s32 %v3023, %v3025
        %v3027 = vrot.slane %v3013, %v3026
        %v3028 = vcombine.high %v3012, 0.0
        %v3030 = vunpack.c.l.s4 1934713408
        %v3031 = vunpack.c.0.s8 %v3030
        %v3032 = vlaneseq
        %v3033 = vshrl.u32 %v3032, 7
        %v3034 = vsub.s32 %v3031, %v3033
        %v3035 = vrot.slane %v3012, %v3034
        %v3037 = vunpack.c.l.s4 1934713408
        %v3038 = vunpack.c.0.s8 %v3037
        %v3039 = vlaneseq
        %v3040 = vshrl.u32 %v3039, 7
        %v3041 = vsub.s32 %v3038, %v3040
        %v3042 = vrot.slane %v3028, %v3041
        %v3043 = vcombine.high %v3020, 0.0
        %v3044 = vcombine.high %v3027, 0.0
        %v3045 = vcombine.high %v3035, 0.0
        %v3046 = vcombine.high %v3042, 0.0
        %v3047 = vcombine.high %v919, 0.0
        %v3049 = vunpack.c.l.s4 1983009808
        %v3050 = vunpack.c.0.s8 %v3049
        %v3051 = vlaneseq
        %v3052 = vshrl.u32 %v3051, 7
        %v3053 = vsub.s32 %v3050, %v3052
        %v3054 = vrot.slane %v919, %v3053
        %v3056 = vunpack.c.l.s4 1983009808
        %v3057 = vunpack.c.0.s8 %v3056
        %v3058 = vlaneseq
        %v3059 = vshrl.u32 %v3058, 7
        %v3060 = vsub.s32 %v3057, %v3059
        %v3061 = vrot.slane %v3047, %v3060
        %v3062 = vcombine.high %v3054, 0.0
        %v3064 = vunpack.c.l.s4 1934713408
        %v3065 = vunpack.c.0.s8 %v3064
        %v3066 = vlaneseq
        %v3067 = vshrl.u32 %v3066, 7
        %v3068 = vsub.s32 %v3065, %v3067
        %v3069 = vrot.slane %v3054, %v3068
        %v3071 = vunpack.c.l.s4 1934713408
        %v3072 = vunpack.c.0.s8 %v3071
        %v3073 = vlaneseq
        %v3074 = vshrl.u32 %v3073, 7
        %v3075 = vsub.s32 %v3072, %v3074
        %v3076 = vrot.slane %v3062, %v3075
        %v3077 = vcombine.high %v3061, 0.0
        %v3079 = vunpack.c.l.s4 1934713408
        %v3080 = vunpack.c.0.s8 %v3079
        %v3081 = vlaneseq
        %v3082 = vshrl.u32 %v3081, 7
        %v3083 = vsub.s32 %v3080, %v3082
        %v3084 = vrot.slane %v3061, %v3083
        %v3086 = vunpack.c.l.s4 1934713408
        %v3087 = vunpack.c.0.s8 %v3086
        %v3088 = vlaneseq
        %v3089 = vshrl.u32 %v3088, 7
        %v3090 = vsub.s32 %v3087, %v3089
        %v3091 = vrot.slane %v3077, %v3090
        %v3092 = vcombine.high %v3069, 0.0
        %v3093 = vcombine.high %v3076, 0.0
        %v3094 = vcombine.high %v3084, 0.0
        %v3095 = vcombine.high %v3091, 0.0
        %v3096 = vcombine.high %v920, 0.0
        %v3098 = vunpack.c.l.s4 1983009808
        %v3099 = vunpack.c.0.s8 %v3098
        %v3100 = vlaneseq
        %v3101 = vshrl.u32 %v3100, 7
        %v3102 = vsub.s32 %v3099, %v3101
        %v3103 = vrot.slane %v920, %v3102
        %v3105 = vunpack.c.l.s4 1983009808
        %v3106 = vunpack.c.0.s8 %v3105
        %v3107 = vlaneseq
        %v3108 = vshrl.u32 %v3107, 7
        %v3109 = vsub.s32 %v3106, %v3108
        %v3110 = vrot.slane %v3096, %v3109
        %v3111 = vcombine.high %v3103, 0.0
        %v3113 = vunpack.c.l.s4 1934713408
        %v3114 = vunpack.c.0.s8 %v3113
        %v3115 = vlaneseq
        %v3116 = vshrl.u32 %v3115, 7
        %v3117 = vsub.s32 %v3114, %v3116
        %v3118 = vrot.slane %v3103, %v3117
        %v3120 = vunpack.c.l.s4 1934713408
        %v3121 = vunpack.c.0.s8 %v3120
        %v3122 = vlaneseq
        %v3123 = vshrl.u32 %v3122, 7
        %v3124 = vsub.s32 %v3121, %v3123
        %v3125 = vrot.slane %v3111, %v3124
        %v3126 = vcombine.high %v3110, 0.0
        %v3128 = vunpack.c.l.s4 1934713408
        %v3129 = vunpack.c.0.s8 %v3128
        %v3130 = vlaneseq
        %v3131 = vshrl.u32 %v3130, 7
        %v3132 = vsub.s32 %v3129, %v3131
        %v3133 = vrot.slane %v3110, %v3132
        %v3135 = vunpack.c.l.s4 1934713408
        %v3136 = vunpack.c.0.s8 %v3135
        %v3137 = vlaneseq
        %v3138 = vshrl.u32 %v3137, 7
        %v3139 = vsub.s32 %v3136, %v3138
        %v3140 = vrot.slane %v3126, %v3139
        %v3141 = vcombine.high %v3118, 0.0
        %v3142 = vcombine.high %v3125, 0.0
        %v3143 = vcombine.high %v3133, 0.0
        %v3144 = vcombine.high %v3140, 0.0
        %v3145 = vcombine.high %v921, 0.0
        %v3147 = vunpack.c.l.s4 1983009808
        %v3148 = vunpack.c.0.s8 %v3147
        %v3149 = vlaneseq
        %v3150 = vshrl.u32 %v3149, 7
        %v3151 = vsub.s32 %v3148, %v3150
        %v3152 = vrot.slane %v921, %v3151
        %v3154 = vunpack.c.l.s4 1983009808
        %v3155 = vunpack.c.0.s8 %v3154
        %v3156 = vlaneseq
        %v3157 = vshrl.u32 %v3156, 7
        %v3158 = vsub.s32 %v3155, %v3157
        %v3159 = vrot.slane %v3145, %v3158
        %v3160 = vcombine.high %v3152, 0.0
        %v3162 = vunpack.c.l.s4 1934713408
        %v3163 = vunpack.c.0.s8 %v3162
        %v3164 = vlaneseq
        %v3165 = vshrl.u32 %v3164, 7
        %v3166 = vsub.s32 %v3163, %v3165
        %v3167 = vrot.slane %v3152, %v3166
        %v3169 = vunpack.c.l.s4 1934713408
        %v3170 = vunpack.c.0.s8 %v3169
        %v3171 = vlaneseq
        %v3172 = vshrl.u32 %v3171, 7
        %v3173 = vsub.s32 %v3170, %v3172
        %v3174 = vrot.slane %v3160, %v3173
        %v3175 = vcombine.high %v3159, 0.0
        %v3177 = vunpack.c.l.s4 1934713408
        %v3178 = vunpack.c.0.s8 %v3177
        %v3179 = vlaneseq
        %v3180 = vshrl.u32 %v3179, 7
        %v3181 = vsub.s32 %v3178, %v3180
        %v3182 = vrot.slane %v3159, %v3181
        %v3184 = vunpack.c.l.s4 1934713408
        %v3185 = vunpack.c.0.s8 %v3184
        %v3186 = vlaneseq
        %v3187 = vshrl.u32 %v3186, 7
        %v3188 = vsub.s32 %v3185, %v3187
        %v3189 = vrot.slane %v3175, %v3188
        %v3190 = vcombine.high %v3167, 0.0
        %v3191 = vcombine.high %v3174, 0.0
        %v3192 = vcombine.high %v3182, 0.0
        %v3193 = vcombine.high %v3189, 0.0
        %v3194 = vcombine.high %v922, 0.0
        %v3196 = vunpack.c.l.s4 1983009808
        %v3197 = vunpack.c.0.s8 %v3196
        %v3198 = vlaneseq
        %v3199 = vshrl.u32 %v3198, 7
        %v3200 = vsub.s32 %v3197, %v3199
        %v3201 = vrot.slane %v922, %v3200
        %v3203 = vunpack.c.l.s4 1983009808
        %v3204 = vunpack.c.0.s8 %v3203
        %v3205 = vlaneseq
        %v3206 = vshrl.u32 %v3205, 7
        %v3207 = vsub.s32 %v3204, %v3206
        %v3208 = vrot.slane %v3194, %v3207
        %v3209 = vcombine.high %v3201, 0.0
        %v3211 = vunpack.c.l.s4 1934713408
        %v3212 = vunpack.c.0.s8 %v3211
        %v3213 = vlaneseq
        %v3214 = vshrl.u32 %v3213, 7
        %v3215 = vsub.s32 %v3212, %v3214
        %v3216 = vrot.slane %v3201, %v3215
        %v3218 = vunpack.c.l.s4 1934713408
        %v3219 = vunpack.c.0.s8 %v3218
        %v3220 = vlaneseq
        %v3221 = vshrl.u32 %v3220, 7
        %v3222 = vsub.s32 %v3219, %v3221
        %v3223 = vrot.slane %v3209, %v3222
        %v3224 = vcombine.high %v3208, 0.0
        %v3226 = vunpack.c.l.s4 1934713408
        %v3227 = vunpack.c.0.s8 %v3226
        %v3228 = vlaneseq
        %v3229 = vshrl.u32 %v3228, 7
        %v3230 = vsub.s32 %v3227, %v3229
        %v3231 = vrot.slane %v3208, %v3230
        %v3233 = vunpack.c.l.s4 1934713408
        %v3234 = vunpack.c.0.s8 %v3233
        %v3235 = vlaneseq
        %v3236 = vshrl.u32 %v3235, 7
        %v3237 = vsub.s32 %v3234, %v3236
        %v3238 = vrot.slane %v3224, %v3237
        %v3239 = vcombine.high %v3216, 0.0
        %v3240 = vcombine.high %v3223, 0.0
        %v3241 = vcombine.high %v3231, 0.0
        %v3242 = vcombine.high %v3238, 0.0
        %v3243 = vcombine.high %v923, 0.0
        %v3245 = vunpack.c.l.s4 1983009808
        %v3246 = vunpack.c.0.s8 %v3245
        %v3247 = vlaneseq
        %v3248 = vshrl.u32 %v3247, 7
        %v3249 = vsub.s32 %v3246, %v3248
        %v3250 = vrot.slane %v923, %v3249
        %v3252 = vunpack.c.l.s4 1983009808
        %v3253 = vunpack.c.0.s8 %v3252
        %v3254 = vlaneseq
        %v3255 = vshrl.u32 %v3254, 7
        %v3256 = vsub.s32 %v3253, %v3255
        %v3257 = vrot.slane %v3243, %v3256
        %v3258 = vcombine.high %v3250, 0.0
        %v3260 = vunpack.c.l.s4 1934713408
        %v3261 = vunpack.c.0.s8 %v3260
        %v3262 = vlaneseq
        %v3263 = vshrl.u32 %v3262, 7
        %v3264 = vsub.s32 %v3261, %v3263
        %v3265 = vrot.slane %v3250, %v3264
        %v3267 = vunpack.c.l.s4 1934713408
        %v3268 = vunpack.c.0.s8 %v3267
        %v3269 = vlaneseq
        %v3270 = vshrl.u32 %v3269, 7
        %v3271 = vsub.s32 %v3268, %v3270
        %v3272 = vrot.slane %v3258, %v3271
        %v3273 = vcombine.high %v3257, 0.0
        %v3275 = vunpack.c.l.s4 1934713408
        %v3276 = vunpack.c.0.s8 %v3275
        %v3277 = vlaneseq
        %v3278 = vshrl.u32 %v3277, 7
        %v3279 = vsub.s32 %v3276, %v3278
        %v3280 = vrot.slane %v3257, %v3279
        %v3282 = vunpack.c.l.s4 1934713408
        %v3283 = vunpack.c.0.s8 %v3282
        %v3284 = vlaneseq
        %v3285 = vshrl.u32 %v3284, 7
        %v3286 = vsub.s32 %v3283, %v3285
        %v3287 = vrot.slane %v3273, %v3286
        %v3288 = vcombine.high %v3265, 0.0
        %v3289 = vcombine.high %v3272, 0.0
        %v3290 = vcombine.high %v3280, 0.0
        %v3291 = vcombine.high %v3287, 0.0
        %v3292 = vcombine.high %v924, 0.0
        %v3294 = vunpack.c.l.s4 1983009808
        %v3295 = vunpack.c.0.s8 %v3294
        %v3296 = vlaneseq
        %v3297 = vshrl.u32 %v3296, 7
        %v3298 = vsub.s32 %v3295, %v3297
        %v3299 = vrot.slane %v924, %v3298
        %v3301 = vunpack.c.l.s4 1983009808
        %v3302 = vunpack.c.0.s8 %v3301
        %v3303 = vlaneseq
        %v3304 = vshrl.u32 %v3303, 7
        %v3305 = vsub.s32 %v3302, %v3304
        %v3306 = vrot.slane %v3292, %v3305
        %v3307 = vcombine.high %v3299, 0.0
        %v3309 = vunpack.c.l.s4 1934713408
        %v3310 = vunpack.c.0.s8 %v3309
        %v3311 = vlaneseq
        %v3312 = vshrl.u32 %v3311, 7
        %v3313 = vsub.s32 %v3310, %v3312
        %v3314 = vrot.slane %v3299, %v3313
        %v3316 = vunpack.c.l.s4 1934713408
        %v3317 = vunpack.c.0.s8 %v3316
        %v3318 = vlaneseq
        %v3319 = vshrl.u32 %v3318, 7
        %v3320 = vsub.s32 %v3317, %v3319
        %v3321 = vrot.slane %v3307, %v3320
        %v3322 = vcombine.high %v3306, 0.0
        %v3324 = vunpack.c.l.s4 1934713408
        %v3325 = vunpack.c.0.s8 %v3324
        %v3326 = vlaneseq
        %v3327 = vshrl.u32 %v3326, 7
        %v3328 = vsub.s32 %v3325, %v3327
        %v3329 = vrot.slane %v3306, %v3328
        %v3331 = vunpack.c.l.s4 1934713408
        %v3332 = vunpack.c.0.s8 %v3331
        %v3333 = vlaneseq
        %v3334 = vshrl.u32 %v3333, 7
        %v3335 = vsub.s32 %v3332, %v3334
        %v3336 = vrot.slane %v3322, %v3335
        %v3337 = vcombine.high %v3314, 0.0
        %v3338 = vcombine.high %v3321, 0.0
        %v3339 = vcombine.high %v3329, 0.0
        %v3340 = vcombine.high %v3336, 0.0
        %v3341 = vcombine.high %v925, 0.0
        %v3343 = vunpack.c.l.s4 1983009808
        %v3344 = vunpack.c.0.s8 %v3343
        %v3345 = vlaneseq
        %v3346 = vshrl.u32 %v3345, 7
        %v3347 = vsub.s32 %v3344, %v3346
        %v3348 = vrot.slane %v925, %v3347
        %v3350 = vunpack.c.l.s4 1983009808
        %v3351 = vunpack.c.0.s8 %v3350
        %v3352 = vlaneseq
        %v3353 = vshrl.u32 %v3352, 7
        %v3354 = vsub.s32 %v3351, %v3353
        %v3355 = vrot.slane %v3341, %v3354
        %v3356 = vcombine.high %v3348, 0.0
        %v3358 = vunpack.c.l.s4 1934713408
        %v3359 = vunpack.c.0.s8 %v3358
        %v3360 = vlaneseq
        %v3361 = vshrl.u32 %v3360, 7
        %v3362 = vsub.s32 %v3359, %v3361
        %v3363 = vrot.slane %v3348, %v3362
        %v3365 = vunpack.c.l.s4 1934713408
        %v3366 = vunpack.c.0.s8 %v3365
        %v3367 = vlaneseq
        %v3368 = vshrl.u32 %v3367, 7
        %v3369 = vsub.s32 %v3366, %v3368
        %v3370 = vrot.slane %v3356, %v3369
        %v3371 = vcombine.high %v3355, 0.0
        %v3373 = vunpack.c.l.s4 1934713408
        %v3374 = vunpack.c.0.s8 %v3373
        %v3375 = vlaneseq
        %v3376 = vshrl.u32 %v3375, 7
        %v3377 = vsub.s32 %v3374, %v3376
        %v3378 = vrot.slane %v3355, %v3377
        %v3380 = vunpack.c.l.s4 1934713408
        %v3381 = vunpack.c.0.s8 %v3380
        %v3382 = vlaneseq
        %v3383 = vshrl.u32 %v3382, 7
        %v3384 = vsub.s32 %v3381, %v3383
        %v3385 = vrot.slane %v3371, %v3384
        %v3386 = vcombine.high %v3363, 0.0
        %v3387 = vcombine.high %v3370, 0.0
        %v3388 = vcombine.high %v3378, 0.0
        %v3389 = vcombine.high %v3385, 0.0
        %v3390 = vcombine.high %v926, 0.0
        %v3392 = vunpack.c.l.s4 1983009808
        %v3393 = vunpack.c.0.s8 %v3392
        %v3394 = vlaneseq
        %v3395 = vshrl.u32 %v3394, 7
        %v3396 = vsub.s32 %v3393, %v3395
        %v3397 = vrot.slane %v926, %v3396
        %v3399 = vunpack.c.l.s4 1983009808
        %v3400 = vunpack.c.0.s8 %v3399
        %v3401 = vlaneseq
        %v3402 = vshrl.u32 %v3401, 7
        %v3403 = vsub.s32 %v3400, %v3402
        %v3404 = vrot.slane %v3390, %v3403
        %v3405 = vcombine.high %v3397, 0.0
        %v3407 = vunpack.c.l.s4 1934713408
        %v3408 = vunpack.c.0.s8 %v3407
        %v3409 = vlaneseq
        %v3410 = vshrl.u32 %v3409, 7
        %v3411 = vsub.s32 %v3408, %v3410
        %v3412 = vrot.slane %v3397, %v3411
        %v3414 = vunpack.c.l.s4 1934713408
        %v3415 = vunpack.c.0.s8 %v3414
        %v3416 = vlaneseq
        %v3417 = vshrl.u32 %v3416, 7
        %v3418 = vsub.s32 %v3415, %v3417
        %v3419 = vrot.slane %v3405, %v3418
        %v3420 = vcombine.high %v3404, 0.0
        %v3422 = vunpack.c.l.s4 1934713408
        %v3423 = vunpack.c.0.s8 %v3422
        %v3424 = vlaneseq
        %v3425 = vshrl.u32 %v3424, 7
        %v3426 = vsub.s32 %v3423, %v3425
        %v3427 = vrot.slane %v3404, %v3426
        %v3429 = vunpack.c.l.s4 1934713408
        %v3430 = vunpack.c.0.s8 %v3429
        %v3431 = vlaneseq
        %v3432 = vshrl.u32 %v3431, 7
        %v3433 = vsub.s32 %v3430, %v3432
        %v3434 = vrot.slane %v3420, %v3433
        %v3435 = vcombine.high %v3412, 0.0
        %v3436 = vcombine.high %v3419, 0.0
        %v3437 = vcombine.high %v3427, 0.0
        %v3438 = vcombine.high %v3434, 0.0
        %v3439 = vcombine.high %v927, 0.0
        %v3441 = vunpack.c.l.s4 1983009808
        %v3442 = vunpack.c.0.s8 %v3441
        %v3443 = vlaneseq
        %v3444 = vshrl.u32 %v3443, 7
        %v3445 = vsub.s32 %v3442, %v3444
        %v3446 = vrot.slane %v927, %v3445
        %v3448 = vunpack.c.l.s4 1983009808
        %v3449 = vunpack.c.0.s8 %v3448
        %v3450 = vlaneseq
        %v3451 = vshrl.u32 %v3450, 7
        %v3452 = vsub.s32 %v3449, %v3451
        %v3453 = vrot.slane %v3439, %v3452
        %v3454 = vcombine.high %v3446, 0.0
        %v3456 = vunpack.c.l.s4 1934713408
        %v3457 = vunpack.c.0.s8 %v3456
        %v3458 = vlaneseq
        %v3459 = vshrl.u32 %v3458, 7
        %v3460 = vsub.s32 %v3457, %v3459
        %v3461 = vrot.slane %v3446, %v3460
        %v3463 = vunpack.c.l.s4 1934713408
        %v3464 = vunpack.c.0.s8 %v3463
        %v3465 = vlaneseq
        %v3466 = vshrl.u32 %v3465, 7
        %v3467 = vsub.s32 %v3464, %v3466
        %v3468 = vrot.slane %v3454, %v3467
        %v3469 = vcombine.high %v3453, 0.0
        %v3471 = vunpack.c.l.s4 1934713408
        %v3472 = vunpack.c.0.s8 %v3471
        %v3473 = vlaneseq
        %v3474 = vshrl.u32 %v3473, 7
        %v3475 = vsub.s32 %v3472, %v3474
        %v3476 = vrot.slane %v3453, %v3475
        %v3478 = vunpack.c.l.s4 1934713408
        %v3479 = vunpack.c.0.s8 %v3478
        %v3480 = vlaneseq
        %v3481 = vshrl.u32 %v3480, 7
        %v3482 = vsub.s32 %v3479, %v3481
        %v3483 = vrot.slane %v3469, %v3482
        %v3484 = vcombine.high %v3461, 0.0
        %v3485 = vcombine.high %v3468, 0.0
        %v3486 = vcombine.high %v3476, 0.0
        %v3487 = vcombine.high %v3483, 0.0
        %v3488 = vcombine.high %v928, 0.0
        %v3490 = vunpack.c.l.s4 1983009808
        %v3491 = vunpack.c.0.s8 %v3490
        %v3492 = vlaneseq
        %v3493 = vshrl.u32 %v3492, 7
        %v3494 = vsub.s32 %v3491, %v3493
        %v3495 = vrot.slane %v928, %v3494
        %v3497 = vunpack.c.l.s4 1983009808
        %v3498 = vunpack.c.0.s8 %v3497
        %v3499 = vlaneseq
        %v3500 = vshrl.u32 %v3499, 7
        %v3501 = vsub.s32 %v3498, %v3500
        %v3502 = vrot.slane %v3488, %v3501
        %v3503 = vcombine.high %v3495, 0.0
        %v3505 = vunpack.c.l.s4 1934713408
        %v3506 = vunpack.c.0.s8 %v3505
        %v3507 = vlaneseq
        %v3508 = vshrl.u32 %v3507, 7
        %v3509 = vsub.s32 %v3506, %v3508
        %v3510 = vrot.slane %v3495, %v3509
        %v3512 = vunpack.c.l.s4 1934713408
        %v3513 = vunpack.c.0.s8 %v3512
        %v3514 = vlaneseq
        %v3515 = vshrl.u32 %v3514, 7
        %v3516 = vsub.s32 %v3513, %v3515
        %v3517 = vrot.slane %v3503, %v3516
        %v3518 = vcombine.high %v3502, 0.0
        %v3520 = vunpack.c.l.s4 1934713408
        %v3521 = vunpack.c.0.s8 %v3520
        %v3522 = vlaneseq
        %v3523 = vshrl.u32 %v3522, 7
        %v3524 = vsub.s32 %v3521, %v3523
        %v3525 = vrot.slane %v3502, %v3524
        %v3527 = vunpack.c.l.s4 1934713408
        %v3528 = vunpack.c.0.s8 %v3527
        %v3529 = vlaneseq
        %v3530 = vshrl.u32 %v3529, 7
        %v3531 = vsub.s32 %v3528, %v3530
        %v3532 = vrot.slane %v3518, %v3531
        %v3533 = vcombine.high %v3510, 0.0
        %v3534 = vcombine.high %v3517, 0.0
        %v3535 = vcombine.high %v3525, 0.0
        %v3536 = vcombine.high %v3532, 0.0
        %v3537 = vcombine.high %v929, 0.0
        %v3539 = vunpack.c.l.s4 1983009808
        %v3540 = vunpack.c.0.s8 %v3539
        %v3541 = vlaneseq
        %v3542 = vshrl.u32 %v3541, 7
        %v3543 = vsub.s32 %v3540, %v3542
        %v3544 = vrot.slane %v929, %v3543
        %v3546 = vunpack.c.l.s4 1983009808
        %v3547 = vunpack.c.0.s8 %v3546
        %v3548 = vlaneseq
        %v3549 = vshrl.u32 %v3548, 7
        %v3550 = vsub.s32 %v3547, %v3549
        %v3551 = vrot.slane %v3537, %v3550
        %v3552 = vcombine.high %v3544, 0.0
        %v3554 = vunpack.c.l.s4 1934713408
        %v3555 = vunpack.c.0.s8 %v3554
        %v3556 = vlaneseq
        %v3557 = vshrl.u32 %v3556, 7
        %v3558 = vsub.s32 %v3555, %v3557
        %v3559 = vrot.slane %v3544, %v3558
        %v3561 = vunpack.c.l.s4 1934713408
        %v3562 = vunpack.c.0.s8 %v3561
        %v3563 = vlaneseq
        %v3564 = vshrl.u32 %v3563, 7
        %v3565 = vsub.s32 %v3562, %v3564
        %v3566 = vrot.slane %v3552, %v3565
        %v3567 = vcombine.high %v3551, 0.0
        %v3569 = vunpack.c.l.s4 1934713408
        %v3570 = vunpack.c.0.s8 %v3569
        %v3571 = vlaneseq
        %v3572 = vshrl.u32 %v3571, 7
        %v3573 = vsub.s32 %v3570, %v3572
        %v3574 = vrot.slane %v3551, %v3573
        %v3576 = vunpack.c.l.s4 1934713408
        %v3577 = vunpack.c.0.s8 %v3576
        %v3578 = vlaneseq
        %v3579 = vshrl.u32 %v3578, 7
        %v3580 = vsub.s32 %v3577, %v3579
        %v3581 = vrot.slane %v3567, %v3580
        %v3582 = vcombine.high %v3559, 0.0
        %v3583 = vcombine.high %v3566, 0.0
        %v3584 = vcombine.high %v3574, 0.0
        %v3585 = vcombine.high %v3581, 0.0
        %v3586 = vcombine.high %v930, 0.0
        %v3588 = vunpack.c.l.s4 1983009808
        %v3589 = vunpack.c.0.s8 %v3588
        %v3590 = vlaneseq
        %v3591 = vshrl.u32 %v3590, 7
        %v3592 = vsub.s32 %v3589, %v3591
        %v3593 = vrot.slane %v930, %v3592
        %v3595 = vunpack.c.l.s4 1983009808
        %v3596 = vunpack.c.0.s8 %v3595
        %v3597 = vlaneseq
        %v3598 = vshrl.u32 %v3597, 7
        %v3599 = vsub.s32 %v3596, %v3598
        %v3600 = vrot.slane %v3586, %v3599
        %v3601 = vcombine.high %v3593, 0.0
        %v3603 = vunpack.c.l.s4 1934713408
        %v3604 = vunpack.c.0.s8 %v3603
        %v3605 = vlaneseq
        %v3606 = vshrl.u32 %v3605, 7
        %v3607 = vsub.s32 %v3604, %v3606
        %v3608 = vrot.slane %v3593, %v3607
        %v3610 = vunpack.c.l.s4 1934713408
        %v3611 = vunpack.c.0.s8 %v3610
        %v3612 = vlaneseq
        %v3613 = vshrl.u32 %v3612, 7
        %v3614 = vsub.s32 %v3611, %v3613
        %v3615 = vrot.slane %v3601, %v3614
        %v3616 = vcombine.high %v3600, 0.0
        %v3618 = vunpack.c.l.s4 1934713408
        %v3619 = vunpack.c.0.s8 %v3618
        %v3620 = vlaneseq
        %v3621 = vshrl.u32 %v3620, 7
        %v3622 = vsub.s32 %v3619, %v3621
        %v3623 = vrot.slane %v3600, %v3622
        %v3625 = vunpack.c.l.s4 1934713408
        %v3626 = vunpack.c.0.s8 %v3625
        %v3627 = vlaneseq
        %v3628 = vshrl.u32 %v3627, 7
        %v3629 = vsub.s32 %v3626, %v3628
        %v3630 = vrot.slane %v3616, %v3629
        %v3631 = vcombine.high %v3608, 0.0
        %v3632 = vcombine.high %v3615, 0.0
        %v3633 = vcombine.high %v3623, 0.0
        %v3634 = vcombine.high %v3630, 0.0
        %v3635 = vcombine.high %v931, 0.0
        %v3637 = vunpack.c.l.s4 1983009808
        %v3638 = vunpack.c.0.s8 %v3637
        %v3639 = vlaneseq
        %v3640 = vshrl.u32 %v3639, 7
        %v3641 = vsub.s32 %v3638, %v3640
        %v3642 = vrot.slane %v931, %v3641
        %v3644 = vunpack.c.l.s4 1983009808
        %v3645 = vunpack.c.0.s8 %v3644
        %v3646 = vlaneseq
        %v3647 = vshrl.u32 %v3646, 7
        %v3648 = vsub.s32 %v3645, %v3647
        %v3649 = vrot.slane %v3635, %v3648
        %v3650 = vcombine.high %v3642, 0.0
        %v3652 = vunpack.c.l.s4 1934713408
        %v3653 = vunpack.c.0.s8 %v3652
        %v3654 = vlaneseq
        %v3655 = vshrl.u32 %v3654, 7
        %v3656 = vsub.s32 %v3653, %v3655
        %v3657 = vrot.slane %v3642, %v3656
        %v3659 = vunpack.c.l.s4 1934713408
        %v3660 = vunpack.c.0.s8 %v3659
        %v3661 = vlaneseq
        %v3662 = vshrl.u32 %v3661, 7
        %v3663 = vsub.s32 %v3660, %v3662
        %v3664 = vrot.slane %v3650, %v3663
        %v3665 = vcombine.high %v3649, 0.0
        %v3667 = vunpack.c.l.s4 1934713408
        %v3668 = vunpack.c.0.s8 %v3667
        %v3669 = vlaneseq
        %v3670 = vshrl.u32 %v3669, 7
        %v3671 = vsub.s32 %v3668, %v3670
        %v3672 = vrot.slane %v3649, %v3671
        %v3674 = vunpack.c.l.s4 1934713408
        %v3675 = vunpack.c.0.s8 %v3674
        %v3676 = vlaneseq
        %v3677 = vshrl.u32 %v3676, 7
        %v3678 = vsub.s32 %v3675, %v3677
        %v3679 = vrot.slane %v3665, %v3678
        %v3680 = vcombine.high %v3657, 0.0
        %v3681 = vcombine.high %v3664, 0.0
        %v3682 = vcombine.high %v3672, 0.0
        %v3683 = vcombine.high %v3679, 0.0
        %v3684 = vcombine.high %v932, 0.0
        %v3686 = vunpack.c.l.s4 1983009808
        %v3687 = vunpack.c.0.s8 %v3686
        %v3688 = vlaneseq
        %v3689 = vshrl.u32 %v3688, 7
        %v3690 = vsub.s32 %v3687, %v3689
        %v3691 = vrot.slane %v932, %v3690
        %v3693 = vunpack.c.l.s4 1983009808
        %v3694 = vunpack.c.0.s8 %v3693
        %v3695 = vlaneseq
        %v3696 = vshrl.u32 %v3695, 7
        %v3697 = vsub.s32 %v3694, %v3696
        %v3698 = vrot.slane %v3684, %v3697
        %v3699 = vcombine.high %v3691, 0.0
        %v3701 = vunpack.c.l.s4 1934713408
        %v3702 = vunpack.c.0.s8 %v3701
        %v3703 = vlaneseq
        %v3704 = vshrl.u32 %v3703, 7
        %v3705 = vsub.s32 %v3702, %v3704
        %v3706 = vrot.slane %v3691, %v3705
        %v3708 = vunpack.c.l.s4 1934713408
        %v3709 = vunpack.c.0.s8 %v3708
        %v3710 = vlaneseq
        %v3711 = vshrl.u32 %v3710, 7
        %v3712 = vsub.s32 %v3709, %v3711
        %v3713 = vrot.slane %v3699, %v3712
        %v3714 = vcombine.high %v3698, 0.0
        %v3716 = vunpack.c.l.s4 1934713408
        %v3717 = vunpack.c.0.s8 %v3716
        %v3718 = vlaneseq
        %v3719 = vshrl.u32 %v3718, 7
        %v3720 = vsub.s32 %v3717, %v3719
        %v3721 = vrot.slane %v3698, %v3720
        %v3723 = vunpack.c.l.s4 1934713408
        %v3724 = vunpack.c.0.s8 %v3723
        %v3725 = vlaneseq
        %v3726 = vshrl.u32 %v3725, 7
        %v3727 = vsub.s32 %v3724, %v3726
        %v3728 = vrot.slane %v3714, %v3727
        %v3729 = vcombine.high %v3706, 0.0
        %v3730 = vcombine.high %v3713, 0.0
        %v3731 = vcombine.high %v3721, 0.0
        %v3732 = vcombine.high %v3728, 0.0
        %v3733 = vcombine.high %v933, 0.0
        %v3735 = vunpack.c.l.s4 1983009808
        %v3736 = vunpack.c.0.s8 %v3735
        %v3737 = vlaneseq
        %v3738 = vshrl.u32 %v3737, 7
        %v3739 = vsub.s32 %v3736, %v3738
        %v3740 = vrot.slane %v933, %v3739
        %v3742 = vunpack.c.l.s4 1983009808
        %v3743 = vunpack.c.0.s8 %v3742
        %v3744 = vlaneseq
        %v3745 = vshrl.u32 %v3744, 7
        %v3746 = vsub.s32 %v3743, %v3745
        %v3747 = vrot.slane %v3733, %v3746
        %v3748 = vcombine.high %v3740, 0.0
        %v3750 = vunpack.c.l.s4 1934713408
        %v3751 = vunpack.c.0.s8 %v3750
        %v3752 = vlaneseq
        %v3753 = vshrl.u32 %v3752, 7
        %v3754 = vsub.s32 %v3751, %v3753
        %v3755 = vrot.slane %v3740, %v3754
        %v3757 = vunpack.c.l.s4 1934713408
        %v3758 = vunpack.c.0.s8 %v3757
        %v3759 = vlaneseq
        %v3760 = vshrl.u32 %v3759, 7
        %v3761 = vsub.s32 %v3758, %v3760
        %v3762 = vrot.slane %v3748, %v3761
        %v3763 = vcombine.high %v3747, 0.0
        %v3765 = vunpack.c.l.s4 1934713408
        %v3766 = vunpack.c.0.s8 %v3765
        %v3767 = vlaneseq
        %v3768 = vshrl.u32 %v3767, 7
        %v3769 = vsub.s32 %v3766, %v3768
        %v3770 = vrot.slane %v3747, %v3769
        %v3772 = vunpack.c.l.s4 1934713408
        %v3773 = vunpack.c.0.s8 %v3772
        %v3774 = vlaneseq
        %v3775 = vshrl.u32 %v3774, 7
        %v3776 = vsub.s32 %v3773, %v3775
        %v3777 = vrot.slane %v3763, %v3776
        %v3778 = vcombine.high %v3755, 0.0
        %v3779 = vcombine.high %v3762, 0.0
        %v3780 = vcombine.high %v3770, 0.0
        %v3781 = vcombine.high %v3777, 0.0
        %v3782 = vcombine.high %v934, 0.0
        %v3784 = vunpack.c.l.s4 1983009808
        %v3785 = vunpack.c.0.s8 %v3784
        %v3786 = vlaneseq
        %v3787 = vshrl.u32 %v3786, 7
        %v3788 = vsub.s32 %v3785, %v3787
        %v3789 = vrot.slane %v934, %v3788
        %v3791 = vunpack.c.l.s4 1983009808
        %v3792 = vunpack.c.0.s8 %v3791
        %v3793 = vlaneseq
        %v3794 = vshrl.u32 %v3793, 7
        %v3795 = vsub.s32 %v3792, %v3794
        %v3796 = vrot.slane %v3782, %v3795
        %v3797 = vcombine.high %v3789, 0.0
        %v3799 = vunpack.c.l.s4 1934713408
        %v3800 = vunpack.c.0.s8 %v3799
        %v3801 = vlaneseq
        %v3802 = vshrl.u32 %v3801, 7
        %v3803 = vsub.s32 %v3800, %v3802
        %v3804 = vrot.slane %v3789, %v3803
        %v3806 = vunpack.c.l.s4 1934713408
        %v3807 = vunpack.c.0.s8 %v3806
        %v3808 = vlaneseq
        %v3809 = vshrl.u32 %v3808, 7
        %v3810 = vsub.s32 %v3807, %v3809
        %v3811 = vrot.slane %v3797, %v3810
        %v3812 = vcombine.high %v3796, 0.0
        %v3814 = vunpack.c.l.s4 1934713408
        %v3815 = vunpack.c.0.s8 %v3814
        %v3816 = vlaneseq
        %v3817 = vshrl.u32 %v3816, 7
        %v3818 = vsub.s32 %v3815, %v3817
        %v3819 = vrot.slane %v3796, %v3818
        %v3821 = vunpack.c.l.s4 1934713408
        %v3822 = vunpack.c.0.s8 %v3821
        %v3823 = vlaneseq
        %v3824 = vshrl.u32 %v3823, 7
        %v3825 = vsub.s32 %v3822, %v3824
        %v3826 = vrot.slane %v3812, %v3825
        %v3827 = vcombine.high %v3804, 0.0
        %v3828 = vcombine.high %v3811, 0.0
        %v3829 = vcombine.high %v3819, 0.0
        %v3830 = vcombine.high %v3826, 0.0
        %v3831 = vcombine.high %v935, 0.0
        %v3833 = vunpack.c.l.s4 1983009808
        %v3834 = vunpack.c.0.s8 %v3833
        %v3835 = vlaneseq
        %v3836 = vshrl.u32 %v3835, 7
        %v3837 = vsub.s32 %v3834, %v3836
        %v3838 = vrot.slane %v935, %v3837
        %v3840 = vunpack.c.l.s4 1983009808
        %v3841 = vunpack.c.0.s8 %v3840
        %v3842 = vlaneseq
        %v3843 = vshrl.u32 %v3842, 7
        %v3844 = vsub.s32 %v3841, %v3843
        %v3845 = vrot.slane %v3831, %v3844
        %v3846 = vcombine.high %v3838, 0.0
        %v3848 = vunpack.c.l.s4 1934713408
        %v3849 = vunpack.c.0.s8 %v3848
        %v3850 = vlaneseq
        %v3851 = vshrl.u32 %v3850, 7
        %v3852 = vsub.s32 %v3849, %v3851
        %v3853 = vrot.slane %v3838, %v3852
        %v3855 = vunpack.c.l.s4 1934713408
        %v3856 = vunpack.c.0.s8 %v3855
        %v3857 = vlaneseq
        %v3858 = vshrl.u32 %v3857, 7
        %v3859 = vsub.s32 %v3856, %v3858
        %v3860 = vrot.slane %v3846, %v3859
        %v3861 = vcombine.high %v3845, 0.0
        %v3863 = vunpack.c.l.s4 1934713408
        %v3864 = vunpack.c.0.s8 %v3863
        %v3865 = vlaneseq
        %v3866 = vshrl.u32 %v3865, 7
        %v3867 = vsub.s32 %v3864, %v3866
        %v3868 = vrot.slane %v3845, %v3867
        %v3870 = vunpack.c.l.s4 1934713408
        %v3871 = vunpack.c.0.s8 %v3870
        %v3872 = vlaneseq
        %v3873 = vshrl.u32 %v3872, 7
        %v3874 = vsub.s32 %v3871, %v3873
        %v3875 = vrot.slane %v3861, %v3874
        %v3876 = vcombine.high %v3853, 0.0
        %v3877 = vcombine.high %v3860, 0.0
        %v3878 = vcombine.high %v3868, 0.0
        %v3879 = vcombine.high %v3875, 0.0
        %v3880 = vcombine.high %v936, 0.0
        %v3882 = vunpack.c.l.s4 1983009808
        %v3883 = vunpack.c.0.s8 %v3882
        %v3884 = vlaneseq
        %v3885 = vshrl.u32 %v3884, 7
        %v3886 = vsub.s32 %v3883, %v3885
        %v3887 = vrot.slane %v936, %v3886
        %v3889 = vunpack.c.l.s4 1983009808
        %v3890 = vunpack.c.0.s8 %v3889
        %v3891 = vlaneseq
        %v3892 = vshrl.u32 %v3891, 7
        %v3893 = vsub.s32 %v3890, %v3892
        %v3894 = vrot.slane %v3880, %v3893
        %v3895 = vcombine.high %v3887, 0.0
        %v3897 = vunpack.c.l.s4 1934713408
        %v3898 = vunpack.c.0.s8 %v3897
        %v3899 = vlaneseq
        %v3900 = vshrl.u32 %v3899, 7
        %v3901 = vsub.s32 %v3898, %v3900
        %v3902 = vrot.slane %v3887, %v3901
        %v3904 = vunpack.c.l.s4 1934713408
        %v3905 = vunpack.c.0.s8 %v3904
        %v3906 = vlaneseq
        %v3907 = vshrl.u32 %v3906, 7
        %v3908 = vsub.s32 %v3905, %v3907
        %v3909 = vrot.slane %v3895, %v3908
        %v3910 = vcombine.high %v3894, 0.0
        %v3912 = vunpack.c.l.s4 1934713408
        %v3913 = vunpack.c.0.s8 %v3912
        %v3914 = vlaneseq
        %v3915 = vshrl.u32 %v3914, 7
        %v3916 = vsub.s32 %v3913, %v3915
        %v3917 = vrot.slane %v3894, %v3916
        %v3919 = vunpack.c.l.s4 1934713408
        %v3920 = vunpack.c.0.s8 %v3919
        %v3921 = vlaneseq
        %v3922 = vshrl.u32 %v3921, 7
        %v3923 = vsub.s32 %v3920, %v3922
        %v3924 = vrot.slane %v3910, %v3923
        %v3925 = vcombine.high %v3902, 0.0
        %v3926 = vcombine.high %v3909, 0.0
        %v3927 = vcombine.high %v3917, 0.0
        %v3928 = vcombine.high %v3924, 0.0
        %v3929 = vcombine.high %v937, 0.0
        %v3931 = vunpack.c.l.s4 1983009808
        %v3932 = vunpack.c.0.s8 %v3931
        %v3933 = vlaneseq
        %v3934 = vshrl.u32 %v3933, 7
        %v3935 = vsub.s32 %v3932, %v3934
        %v3936 = vrot.slane %v937, %v3935
        %v3938 = vunpack.c.l.s4 1983009808
        %v3939 = vunpack.c.0.s8 %v3938
        %v3940 = vlaneseq
        %v3941 = vshrl.u32 %v3940, 7
        %v3942 = vsub.s32 %v3939, %v3941
        %v3943 = vrot.slane %v3929, %v3942
        %v3944 = vcombine.high %v3936, 0.0
        %v3946 = vunpack.c.l.s4 1934713408
        %v3947 = vunpack.c.0.s8 %v3946
        %v3948 = vlaneseq
        %v3949 = vshrl.u32 %v3948, 7
        %v3950 = vsub.s32 %v3947, %v3949
        %v3951 = vrot.slane %v3936, %v3950
        %v3953 = vunpack.c.l.s4 1934713408
        %v3954 = vunpack.c.0.s8 %v3953
        %v3955 = vlaneseq
        %v3956 = vshrl.u32 %v3955, 7
        %v3957 = vsub.s32 %v3954, %v3956
        %v3958 = vrot.slane %v3944, %v3957
        %v3959 = vcombine.high %v3943, 0.0
        %v3961 = vunpack.c.l.s4 1934713408
        %v3962 = vunpack.c.0.s8 %v3961
        %v3963 = vlaneseq
        %v3964 = vshrl.u32 %v3963, 7
        %v3965 = vsub.s32 %v3962, %v3964
        %v3966 = vrot.slane %v3943, %v3965
        %v3968 = vunpack.c.l.s4 1934713408
        %v3969 = vunpack.c.0.s8 %v3968
        %v3970 = vlaneseq
        %v3971 = vshrl.u32 %v3970, 7
        %v3972 = vsub.s32 %v3969, %v3971
        %v3973 = vrot.slane %v3959, %v3972
        %v3974 = vcombine.high %v3951, 0.0
        %v3975 = vcombine.high %v3958, 0.0
        %v3976 = vcombine.high %v3966, 0.0
        %v3977 = vcombine.high %v3973, 0.0
        %v3978 = vcombine.high %v938, 0.0
        %v3980 = vunpack.c.l.s4 1983009808
        %v3981 = vunpack.c.0.s8 %v3980
        %v3982 = vlaneseq
        %v3983 = vshrl.u32 %v3982, 7
        %v3984 = vsub.s32 %v3981, %v3983
        %v3985 = vrot.slane %v938, %v3984
        %v3987 = vunpack.c.l.s4 1983009808
        %v3988 = vunpack.c.0.s8 %v3987
        %v3989 = vlaneseq
        %v3990 = vshrl.u32 %v3989, 7
        %v3991 = vsub.s32 %v3988, %v3990
        %v3992 = vrot.slane %v3978, %v3991
        %v3993 = vcombine.high %v3985, 0.0
        %v3995 = vunpack.c.l.s4 1934713408
        %v3996 = vunpack.c.0.s8 %v3995
        %v3997 = vlaneseq
        %v3998 = vshrl.u32 %v3997, 7
        %v3999 = vsub.s32 %v3996, %v3998
        %v4000 = vrot.slane %v3985, %v3999
        %v4002 = vunpack.c.l.s4 1934713408
        %v4003 = vunpack.c.0.s8 %v4002
        %v4004 = vlaneseq
        %v4005 = vshrl.u32 %v4004, 7
        %v4006 = vsub.s32 %v4003, %v4005
        %v4007 = vrot.slane %v3993, %v4006
        %v4008 = vcombine.high %v3992, 0.0
        %v4010 = vunpack.c.l.s4 1934713408
        %v4011 = vunpack.c.0.s8 %v4010
        %v4012 = vlaneseq
        %v4013 = vshrl.u32 %v4012, 7
        %v4014 = vsub.s32 %v4011, %v4013
        %v4015 = vrot.slane %v3992, %v4014
        %v4017 = vunpack.c.l.s4 1934713408
        %v4018 = vunpack.c.0.s8 %v4017
        %v4019 = vlaneseq
        %v4020 = vshrl.u32 %v4019, 7
        %v4021 = vsub.s32 %v4018, %v4020
        %v4022 = vrot.slane %v4008, %v4021
        %v4023 = vcombine.high %v4000, 0.0
        %v4024 = vcombine.high %v4007, 0.0
        %v4025 = vcombine.high %v4015, 0.0
        %v4026 = vcombine.high %v4022, 0.0
        %v4027 = vcombine.high %v939, 0.0
        %v4029 = vunpack.c.l.s4 1983009808
        %v4030 = vunpack.c.0.s8 %v4029
        %v4031 = vlaneseq
        %v4032 = vshrl.u32 %v4031, 7
        %v4033 = vsub.s32 %v4030, %v4032
        %v4034 = vrot.slane %v939, %v4033
        %v4036 = vunpack.c.l.s4 1983009808
        %v4037 = vunpack.c.0.s8 %v4036
        %v4038 = vlaneseq
        %v4039 = vshrl.u32 %v4038, 7
        %v4040 = vsub.s32 %v4037, %v4039
        %v4041 = vrot.slane %v4027, %v4040
        %v4042 = vcombine.high %v4034, 0.0
        %v4044 = vunpack.c.l.s4 1934713408
        %v4045 = vunpack.c.0.s8 %v4044
        %v4046 = vlaneseq
        %v4047 = vshrl.u32 %v4046, 7
        %v4048 = vsub.s32 %v4045, %v4047
        %v4049 = vrot.slane %v4034, %v4048
        %v4051 = vunpack.c.l.s4 1934713408
        %v4052 = vunpack.c.0.s8 %v4051
        %v4053 = vlaneseq
        %v4054 = vshrl.u32 %v4053, 7
        %v4055 = vsub.s32 %v4052, %v4054
        %v4056 = vrot.slane %v4042, %v4055
        %v4057 = vcombine.high %v4041, 0.0
        %v4059 = vunpack.c.l.s4 1934713408
        %v4060 = vunpack.c.0.s8 %v4059
        %v4061 = vlaneseq
        %v4062 = vshrl.u32 %v4061, 7
        %v4063 = vsub.s32 %v4060, %v4062
        %v4064 = vrot.slane %v4041, %v4063
        %v4066 = vunpack.c.l.s4 1934713408
        %v4067 = vunpack.c.0.s8 %v4066
        %v4068 = vlaneseq
        %v4069 = vshrl.u32 %v4068, 7
        %v4070 = vsub.s32 %v4067, %v4069
        %v4071 = vrot.slane %v4057, %v4070
        %v4072 = vcombine.high %v4049, 0.0
        %v4073 = vcombine.high %v4056, 0.0
        %v4074 = vcombine.high %v4064, 0.0
        %v4075 = vcombine.high %v4071, 0.0
        %4108 = vrot.lane.b32.xlu0 %v985, 2
        %v4109 = vpop.permute.xlu0 %4108
        %4110 = vrot.lane.b32.xlu0 %v1083, 2
        %v4111 = vpop.permute.xlu0 %4110
        %4112 = vrot.lane.b32.xlu0 %v1181, 2
        %v4113 = vpop.permute.xlu0 %4112
        %4114 = vrot.lane.b32.xlu0 %v1279, 2
        %v4115 = vpop.permute.xlu0 %4114
        %4116 = vrot.lane.b32.xlu0 %v1377, 2
        %v4117 = vpop.permute.xlu0 %4116
        %4118 = vrot.lane.b32.xlu0 %v1475, 2
        %v4119 = vpop.permute.xlu0 %4118
        %4120 = vrot.lane.b32.xlu0 %v1573, 2
        %v4121 = vpop.permute.xlu0 %4120
        %4122 = vrot.lane.b32.xlu0 %v1671, 2
        %v4123 = vpop.permute.xlu0 %4122
        %4124 = vrot.lane.b32.xlu0 %v1769, 2
        %v4125 = vpop.permute.xlu0 %4124
        %4126 = vrot.lane.b32.xlu0 %v1867, 2
        %v4127 = vpop.permute.xlu0 %4126
        %4128 = vrot.lane.b32.xlu0 %v1965, 2
        %v4129 = vpop.permute.xlu0 %4128
        %4130 = vrot.lane.b32.xlu0 %v2063, 2
        %v4131 = vpop.permute.xlu0 %4130
        %4132 = vrot.lane.b32.xlu0 %v2161, 2
        %v4133 = vpop.permute.xlu0 %4132
        %4134 = vrot.lane.b32.xlu0 %v2259, 2
        %v4135 = vpop.permute.xlu0 %4134
        %4136 = vrot.lane.b32.xlu0 %v2357, 2
        %v4137 = vpop.permute.xlu0 %4136
        %4138 = vrot.lane.b32.xlu0 %v2455, 2
        %v4139 = vpop.permute.xlu0 %4138
        %4140 = vrot.lane.b32.xlu0 %v2553, 2
        %v4141 = vpop.permute.xlu0 %4140
        %4142 = vrot.lane.b32.xlu0 %v2651, 2
        %v4143 = vpop.permute.xlu0 %4142
        %4144 = vrot.lane.b32.xlu0 %v2749, 2
        %v4145 = vpop.permute.xlu0 %4144
        %4146 = vrot.lane.b32.xlu0 %v2847, 2
        %v4147 = vpop.permute.xlu0 %4146
        %4148 = vrot.lane.b32.xlu0 %v2945, 2
        %v4149 = vpop.permute.xlu0 %4148
        %4150 = vrot.lane.b32.xlu0 %v3043, 2
        %v4151 = vpop.permute.xlu0 %4150
        %4152 = vrot.lane.b32.xlu0 %v3141, 2
        %v4153 = vpop.permute.xlu0 %4152
        %4154 = vrot.lane.b32.xlu0 %v3239, 2
        %v4155 = vpop.permute.xlu0 %4154
        %4156 = vrot.lane.b32.xlu0 %v3337, 2
        %v4157 = vpop.permute.xlu0 %4156
        %4158 = vrot.lane.b32.xlu0 %v3435, 2
        %v4159 = vpop.permute.xlu0 %4158
        %4160 = vrot.lane.b32.xlu0 %v3533, 2
        %v4161 = vpop.permute.xlu0 %4160
        %4162 = vrot.lane.b32.xlu0 %v3631, 2
        %v4163 = vpop.permute.xlu0 %4162
        %4164 = vrot.lane.b32.xlu0 %v3729, 2
        %v4165 = vpop.permute.xlu0 %4164
        %4166 = vrot.lane.b32.xlu0 %v3827, 2
        %v4167 = vpop.permute.xlu0 %4166
        %4168 = vrot.lane.b32.xlu0 %v3925, 2
        %v4169 = vpop.permute.xlu0 %4168
        %4170 = vrot.lane.b32.xlu0 %v4023, 2
        %v4171 = vpop.permute.xlu0 %4170
        %4236 = vrot.lane.b32.xlu0 %v969, 4
        %v4237 = vpop.permute.xlu0 %4236
        %4238 = vrot.lane.b32.xlu0 %v1067, 4
        %v4239 = vpop.permute.xlu0 %4238
        %4240 = vrot.lane.b32.xlu0 %v1165, 4
        %v4241 = vpop.permute.xlu0 %4240
        %4242 = vrot.lane.b32.xlu0 %v1263, 4
        %v4243 = vpop.permute.xlu0 %4242
        %4244 = vrot.lane.b32.xlu0 %v1361, 4
        %v4245 = vpop.permute.xlu0 %4244
        %4246 = vrot.lane.b32.xlu0 %v1459, 4
        %v4247 = vpop.permute.xlu0 %4246
        %4248 = vrot.lane.b32.xlu0 %v1557, 4
        %v4249 = vpop.permute.xlu0 %4248
        %4250 = vrot.lane.b32.xlu0 %v1655, 4
        %v4251 = vpop.permute.xlu0 %4250
        %4252 = vrot.lane.b32.xlu0 %v1753, 4
        %v4253 = vpop.permute.xlu0 %4252
        %4254 = vrot.lane.b32.xlu0 %v1851, 4
        %v4255 = vpop.permute.xlu0 %4254
        %4256 = vrot.lane.b32.xlu0 %v1949, 4
        %v4257 = vpop.permute.xlu0 %4256
        %4258 = vrot.lane.b32.xlu0 %v2047, 4
        %v4259 = vpop.permute.xlu0 %4258
        %4260 = vrot.lane.b32.xlu0 %v2145, 4
        %v4261 = vpop.permute.xlu0 %4260
        %4262 = vrot.lane.b32.xlu0 %v2243, 4
        %v4263 = vpop.permute.xlu0 %4262
        %4264 = vrot.lane.b32.xlu0 %v2341, 4
        %v4265 = vpop.permute.xlu0 %4264
        %4266 = vrot.lane.b32.xlu0 %v2439, 4
        %v4267 = vpop.permute.xlu0 %4266
        %4268 = vrot.lane.b32.xlu0 %v2537, 4
        %v4269 = vpop.permute.xlu0 %4268
        %4270 = vrot.lane.b32.xlu0 %v2635, 4
        %v4271 = vpop.permute.xlu0 %4270
        %4272 = vrot.lane.b32.xlu0 %v2733, 4
        %v4273 = vpop.permute.xlu0 %4272
        %4274 = vrot.lane.b32.xlu0 %v2831, 4
        %v4275 = vpop.permute.xlu0 %4274
        %4276 = vrot.lane.b32.xlu0 %v2929, 4
        %v4277 = vpop.permute.xlu0 %4276
        %4278 = vrot.lane.b32.xlu0 %v3027, 4
        %v4279 = vpop.permute.xlu0 %4278
        %4280 = vrot.lane.b32.xlu0 %v3125, 4
        %v4281 = vpop.permute.xlu0 %4280
        %4282 = vrot.lane.b32.xlu0 %v3223, 4
        %v4283 = vpop.permute.xlu0 %4282
        %4284 = vrot.lane.b32.xlu0 %v3321, 4
        %v4285 = vpop.permute.xlu0 %4284
        %4286 = vrot.lane.b32.xlu0 %v3419, 4
        %v4287 = vpop.permute.xlu0 %4286
        %4288 = vrot.lane.b32.xlu0 %v3517, 4
        %v4289 = vpop.permute.xlu0 %4288
        %4290 = vrot.lane.b32.xlu0 %v3615, 4
        %v4291 = vpop.permute.xlu0 %4290
        %4292 = vrot.lane.b32.xlu0 %v3713, 4
        %v4293 = vpop.permute.xlu0 %4292
        %4294 = vrot.lane.b32.xlu0 %v3811, 4
        %v4295 = vpop.permute.xlu0 %4294
        %4296 = vrot.lane.b32.xlu0 %v3909, 4
        %v4297 = vpop.permute.xlu0 %4296
        %4298 = vrot.lane.b32.xlu0 %v4007, 4
        %v4299 = vpop.permute.xlu0 %4298
        %4364 = vrot.lane.b32.xlu0 %v986, 6
        %v4365 = vpop.permute.xlu0 %4364
        %4366 = vrot.lane.b32.xlu0 %v1084, 6
        %v4367 = vpop.permute.xlu0 %4366
        %4368 = vrot.lane.b32.xlu0 %v1182, 6
        %v4369 = vpop.permute.xlu0 %4368
        %4370 = vrot.lane.b32.xlu0 %v1280, 6
        %v4371 = vpop.permute.xlu0 %4370
        %4372 = vrot.lane.b32.xlu0 %v1378, 6
        %v4373 = vpop.permute.xlu0 %4372
        %4374 = vrot.lane.b32.xlu0 %v1476, 6
        %v4375 = vpop.permute.xlu0 %4374
        %4376 = vrot.lane.b32.xlu0 %v1574, 6
        %v4377 = vpop.permute.xlu0 %4376
        %4378 = vrot.lane.b32.xlu0 %v1672, 6
        %v4379 = vpop.permute.xlu0 %4378
        %4380 = vrot.lane.b32.xlu0 %v1770, 6
        %v4381 = vpop.permute.xlu0 %4380
        %4382 = vrot.lane.b32.xlu0 %v1868, 6
        %v4383 = vpop.permute.xlu0 %4382
        %4384 = vrot.lane.b32.xlu0 %v1966, 6
        %v4385 = vpop.permute.xlu0 %4384
        %4386 = vrot.lane.b32.xlu0 %v2064, 6
        %v4387 = vpop.permute.xlu0 %4386
        %4388 = vrot.lane.b32.xlu0 %v2162, 6
        %v4389 = vpop.permute.xlu0 %4388
        %4390 = vrot.lane.b32.xlu0 %v2260, 6
        %v4391 = vpop.permute.xlu0 %4390
        %4392 = vrot.lane.b32.xlu0 %v2358, 6
        %v4393 = vpop.permute.xlu0 %4392
        %4394 = vrot.lane.b32.xlu0 %v2456, 6
        %v4395 = vpop.permute.xlu0 %4394
        %4396 = vrot.lane.b32.xlu0 %v2554, 6
        %v4397 = vpop.permute.xlu0 %4396
        %4398 = vrot.lane.b32.xlu0 %v2652, 6
        %v4399 = vpop.permute.xlu0 %4398
        %4400 = vrot.lane.b32.xlu0 %v2750, 6
        %v4401 = vpop.permute.xlu0 %4400
        %4402 = vrot.lane.b32.xlu0 %v2848, 6
        %v4403 = vpop.permute.xlu0 %4402
        %4404 = vrot.lane.b32.xlu0 %v2946, 6
        %v4405 = vpop.permute.xlu0 %4404
        %4406 = vrot.lane.b32.xlu0 %v3044, 6
        %v4407 = vpop.permute.xlu0 %4406
        %4408 = vrot.lane.b32.xlu0 %v3142, 6
        %v4409 = vpop.permute.xlu0 %4408
        %4410 = vrot.lane.b32.xlu0 %v3240, 6
        %v4411 = vpop.permute.xlu0 %4410
        %4412 = vrot.lane.b32.xlu0 %v3338, 6
        %v4413 = vpop.permute.xlu0 %4412
        %4414 = vrot.lane.b32.xlu0 %v3436, 6
        %v4415 = vpop.permute.xlu0 %4414
        %4416 = vrot.lane.b32.xlu0 %v3534, 6
        %v4417 = vpop.permute.xlu0 %4416
        %4418 = vrot.lane.b32.xlu0 %v3632, 6
        %v4419 = vpop.permute.xlu0 %4418
        %4420 = vrot.lane.b32.xlu0 %v3730, 6
        %v4421 = vpop.permute.xlu0 %4420
        %4422 = vrot.lane.b32.xlu0 %v3828, 6
        %v4423 = vpop.permute.xlu0 %4422
        %4424 = vrot.lane.b32.xlu0 %v3926, 6
        %v4425 = vpop.permute.xlu0 %4424
        %4426 = vrot.lane.b32.xlu0 %v4024, 6
        %v4427 = vpop.permute.xlu0 %4426
        %4492 = vrot.lane.b32.xlu0 %v977, 8
        %v4493 = vpop.permute.xlu0 %4492
        %4494 = vrot.lane.b32.xlu0 %v1075, 8
        %v4495 = vpop.permute.xlu0 %4494
        %4496 = vrot.lane.b32.xlu0 %v1173, 8
        %v4497 = vpop.permute.xlu0 %4496
        %4498 = vrot.lane.b32.xlu0 %v1271, 8
        %v4499 = vpop.permute.xlu0 %4498
        %4500 = vrot.lane.b32.xlu0 %v1369, 8
        %v4501 = vpop.permute.xlu0 %4500
        %4502 = vrot.lane.b32.xlu0 %v1467, 8
        %v4503 = vpop.permute.xlu0 %4502
        %4504 = vrot.lane.b32.xlu0 %v1565, 8
        %v4505 = vpop.permute.xlu0 %4504
        %4506 = vrot.lane.b32.xlu0 %v1663, 8
        %v4507 = vpop.permute.xlu0 %4506
        %4508 = vrot.lane.b32.xlu0 %v1761, 8
        %v4509 = vpop.permute.xlu0 %4508
        %4510 = vrot.lane.b32.xlu0 %v1859, 8
        %v4511 = vpop.permute.xlu0 %4510
        %4512 = vrot.lane.b32.xlu0 %v1957, 8
        %v4513 = vpop.permute.xlu0 %4512
        %4514 = vrot.lane.b32.xlu0 %v2055, 8
        %v4515 = vpop.permute.xlu0 %4514
        %4516 = vrot.lane.b32.xlu0 %v2153, 8
        %v4517 = vpop.permute.xlu0 %4516
        %4518 = vrot.lane.b32.xlu0 %v2251, 8
        %v4519 = vpop.permute.xlu0 %4518
        %4520 = vrot.lane.b32.xlu0 %v2349, 8
        %v4521 = vpop.permute.xlu0 %4520
        %4522 = vrot.lane.b32.xlu0 %v2447, 8
        %v4523 = vpop.permute.xlu0 %4522
        %4524 = vrot.lane.b32.xlu0 %v2545, 8
        %v4525 = vpop.permute.xlu0 %4524
        %4526 = vrot.lane.b32.xlu0 %v2643, 8
        %v4527 = vpop.permute.xlu0 %4526
        %4528 = vrot.lane.b32.xlu0 %v2741, 8
        %v4529 = vpop.permute.xlu0 %4528
        %4530 = vrot.lane.b32.xlu0 %v2839, 8
        %v4531 = vpop.permute.xlu0 %4530
        %4532 = vrot.lane.b32.xlu0 %v2937, 8
        %v4533 = vpop.permute.xlu0 %4532
        %4534 = vrot.lane.b32.xlu0 %v3035, 8
        %v4535 = vpop.permute.xlu0 %4534
        %4536 = vrot.lane.b32.xlu0 %v3133, 8
        %v4537 = vpop.permute.xlu0 %4536
        %4538 = vrot.lane.b32.xlu0 %v3231, 8
        %v4539 = vpop.permute.xlu0 %4538
        %4540 = vrot.lane.b32.xlu0 %v3329, 8
        %v4541 = vpop.permute.xlu0 %4540
        %4542 = vrot.lane.b32.xlu0 %v3427, 8
        %v4543 = vpop.permute.xlu0 %4542
        %4544 = vrot.lane.b32.xlu0 %v3525, 8
        %v4545 = vpop.permute.xlu0 %4544
        %4546 = vrot.lane.b32.xlu0 %v3623, 8
        %v4547 = vpop.permute.xlu0 %4546
        %4548 = vrot.lane.b32.xlu0 %v3721, 8
        %v4549 = vpop.permute.xlu0 %4548
        %4550 = vrot.lane.b32.xlu0 %v3819, 8
        %v4551 = vpop.permute.xlu0 %4550
        %4552 = vrot.lane.b32.xlu0 %v3917, 8
        %v4553 = vpop.permute.xlu0 %4552
        %4554 = vrot.lane.b32.xlu0 %v4015, 8
        %v4555 = vpop.permute.xlu0 %4554
        %4620 = vrot.lane.b32.xlu0 %v987, 10
        %v4621 = vpop.permute.xlu0 %4620
        %4622 = vrot.lane.b32.xlu0 %v1085, 10
        %v4623 = vpop.permute.xlu0 %4622
        %4624 = vrot.lane.b32.xlu0 %v1183, 10
        %v4625 = vpop.permute.xlu0 %4624
        %4626 = vrot.lane.b32.xlu0 %v1281, 10
        %v4627 = vpop.permute.xlu0 %4626
        %4628 = vrot.lane.b32.xlu0 %v1379, 10
        %v4629 = vpop.permute.xlu0 %4628
        %4630 = vrot.lane.b32.xlu0 %v1477, 10
        %v4631 = vpop.permute.xlu0 %4630
        %4632 = vrot.lane.b32.xlu0 %v1575, 10
        %v4633 = vpop.permute.xlu0 %4632
        %4634 = vrot.lane.b32.xlu0 %v1673, 10
        %v4635 = vpop.permute.xlu0 %4634
        %4636 = vrot.lane.b32.xlu0 %v1771, 10
        %v4637 = vpop.permute.xlu0 %4636
        %4638 = vrot.lane.b32.xlu0 %v1869, 10
        %v4639 = vpop.permute.xlu0 %4638
        %4640 = vrot.lane.b32.xlu0 %v1967, 10
        %v4641 = vpop.permute.xlu0 %4640
        %4642 = vrot.lane.b32.xlu0 %v2065, 10
        %v4643 = vpop.permute.xlu0 %4642
        %4644 = vrot.lane.b32.xlu0 %v2163, 10
        %v4645 = vpop.permute.xlu0 %4644
        %4646 = vrot.lane.b32.xlu0 %v2261, 10
        %v4647 = vpop.permute.xlu0 %4646
        %4648 = vrot.lane.b32.xlu0 %v2359, 10
        %v4649 = vpop.permute.xlu0 %4648
        %4650 = vrot.lane.b32.xlu0 %v2457, 10
        %v4651 = vpop.permute.xlu0 %4650
        %4652 = vrot.lane.b32.xlu0 %v2555, 10
        %v4653 = vpop.permute.xlu0 %4652
        %4654 = vrot.lane.b32.xlu0 %v2653, 10
        %v4655 = vpop.permute.xlu0 %4654
        %4656 = vrot.lane.b32.xlu0 %v2751, 10
        %v4657 = vpop.permute.xlu0 %4656
        %4658 = vrot.lane.b32.xlu0 %v2849, 10
        %v4659 = vpop.permute.xlu0 %4658
        %4660 = vrot.lane.b32.xlu0 %v2947, 10
        %v4661 = vpop.permute.xlu0 %4660
        %4662 = vrot.lane.b32.xlu0 %v3045, 10
        %v4663 = vpop.permute.xlu0 %4662
        %4664 = vrot.lane.b32.xlu0 %v3143, 10
        %v4665 = vpop.permute.xlu0 %4664
        %4666 = vrot.lane.b32.xlu0 %v3241, 10
        %v4667 = vpop.permute.xlu0 %4666
        %4668 = vrot.lane.b32.xlu0 %v3339, 10
        %v4669 = vpop.permute.xlu0 %4668
        %4670 = vrot.lane.b32.xlu0 %v3437, 10
        %v4671 = vpop.permute.xlu0 %4670
        %4672 = vrot.lane.b32.xlu0 %v3535, 10
        %v4673 = vpop.permute.xlu0 %4672
        %4674 = vrot.lane.b32.xlu0 %v3633, 10
        %v4675 = vpop.permute.xlu0 %4674
        %4676 = vrot.lane.b32.xlu0 %v3731, 10
        %v4677 = vpop.permute.xlu0 %4676
        %4678 = vrot.lane.b32.xlu0 %v3829, 10
        %v4679 = vpop.permute.xlu0 %4678
        %4680 = vrot.lane.b32.xlu0 %v3927, 10
        %v4681 = vpop.permute.xlu0 %4680
        %4682 = vrot.lane.b32.xlu0 %v4025, 10
        %v4683 = vpop.permute.xlu0 %4682
        %4748 = vrot.lane.b32.xlu0 %v984, 12
        %v4749 = vpop.permute.xlu0 %4748
        %4750 = vrot.lane.b32.xlu0 %v1082, 12
        %v4751 = vpop.permute.xlu0 %4750
        %4752 = vrot.lane.b32.xlu0 %v1180, 12
        %v4753 = vpop.permute.xlu0 %4752
        %4754 = vrot.lane.b32.xlu0 %v1278, 12
        %v4755 = vpop.permute.xlu0 %4754
        %4756 = vrot.lane.b32.xlu0 %v1376, 12
        %v4757 = vpop.permute.xlu0 %4756
        %4758 = vrot.lane.b32.xlu0 %v1474, 12
        %v4759 = vpop.permute.xlu0 %4758
        %4760 = vrot.lane.b32.xlu0 %v1572, 12
        %v4761 = vpop.permute.xlu0 %4760
        %4762 = vrot.lane.b32.xlu0 %v1670, 12
        %v4763 = vpop.permute.xlu0 %4762
        %4764 = vrot.lane.b32.xlu0 %v1768, 12
        %v4765 = vpop.permute.xlu0 %4764
        %4766 = vrot.lane.b32.xlu0 %v1866, 12
        %v4767 = vpop.permute.xlu0 %4766
        %4768 = vrot.lane.b32.xlu0 %v1964, 12
        %v4769 = vpop.permute.xlu0 %4768
        %4770 = vrot.lane.b32.xlu0 %v2062, 12
        %v4771 = vpop.permute.xlu0 %4770
        %4772 = vrot.lane.b32.xlu0 %v2160, 12
        %v4773 = vpop.permute.xlu0 %4772
        %4774 = vrot.lane.b32.xlu0 %v2258, 12
        %v4775 = vpop.permute.xlu0 %4774
        %4776 = vrot.lane.b32.xlu0 %v2356, 12
        %v4777 = vpop.permute.xlu0 %4776
        %4778 = vrot.lane.b32.xlu0 %v2454, 12
        %v4779 = vpop.permute.xlu0 %4778
        %4780 = vrot.lane.b32.xlu0 %v2552, 12
        %v4781 = vpop.permute.xlu0 %4780
        %4782 = vrot.lane.b32.xlu0 %v2650, 12
        %v4783 = vpop.permute.xlu0 %4782
        %4784 = vrot.lane.b32.xlu0 %v2748, 12
        %v4785 = vpop.permute.xlu0 %4784
        %4786 = vrot.lane.b32.xlu0 %v2846, 12
        %v4787 = vpop.permute.xlu0 %4786
        %4788 = vrot.lane.b32.xlu0 %v2944, 12
        %v4789 = vpop.permute.xlu0 %4788
        %4790 = vrot.lane.b32.xlu0 %v3042, 12
        %v4791 = vpop.permute.xlu0 %4790
        %4792 = vrot.lane.b32.xlu0 %v3140, 12
        %v4793 = vpop.permute.xlu0 %4792
        %4794 = vrot.lane.b32.xlu0 %v3238, 12
        %v4795 = vpop.permute.xlu0 %4794
        %4796 = vrot.lane.b32.xlu0 %v3336, 12
        %v4797 = vpop.permute.xlu0 %4796
        %4798 = vrot.lane.b32.xlu0 %v3434, 12
        %v4799 = vpop.permute.xlu0 %4798
        %4800 = vrot.lane.b32.xlu0 %v3532, 12
        %v4801 = vpop.permute.xlu0 %4800
        %4802 = vrot.lane.b32.xlu0 %v3630, 12
        %v4803 = vpop.permute.xlu0 %4802
        %4804 = vrot.lane.b32.xlu0 %v3728, 12
        %v4805 = vpop.permute.xlu0 %4804
        %4806 = vrot.lane.b32.xlu0 %v3826, 12
        %v4807 = vpop.permute.xlu0 %4806
        %4808 = vrot.lane.b32.xlu0 %v3924, 12
        %v4809 = vpop.permute.xlu0 %4808
        %4810 = vrot.lane.b32.xlu0 %v4022, 12
        %v4811 = vpop.permute.xlu0 %4810
        %4876 = vrot.lane.b32.xlu0 %v988, 14
        %v4877 = vpop.permute.xlu0 %4876
        %4878 = vrot.lane.b32.xlu0 %v1086, 14
        %v4879 = vpop.permute.xlu0 %4878
        %4880 = vrot.lane.b32.xlu0 %v1184, 14
        %v4881 = vpop.permute.xlu0 %4880
        %4882 = vrot.lane.b32.xlu0 %v1282, 14
        %v4883 = vpop.permute.xlu0 %4882
        %4884 = vrot.lane.b32.xlu0 %v1380, 14
        %v4885 = vpop.permute.xlu0 %4884
        %4886 = vrot.lane.b32.xlu0 %v1478, 14
        %v4887 = vpop.permute.xlu0 %4886
        %4888 = vrot.lane.b32.xlu0 %v1576, 14
        %v4889 = vpop.permute.xlu0 %4888
        %4890 = vrot.lane.b32.xlu0 %v1674, 14
        %v4891 = vpop.permute.xlu0 %4890
        %4892 = vrot.lane.b32.xlu0 %v1772, 14
        %v4893 = vpop.permute.xlu0 %4892
        %4894 = vrot.lane.b32.xlu0 %v1870, 14
        %v4895 = vpop.permute.xlu0 %4894
        %4896 = vrot.lane.b32.xlu0 %v1968, 14
        %v4897 = vpop.permute.xlu0 %4896
        %4898 = vrot.lane.b32.xlu0 %v2066, 14
        %v4899 = vpop.permute.xlu0 %4898
        %4900 = vrot.lane.b32.xlu0 %v2164, 14
        %v4901 = vpop.permute.xlu0 %4900
        %4902 = vrot.lane.b32.xlu0 %v2262, 14
        %v4903 = vpop.permute.xlu0 %4902
        %4904 = vrot.lane.b32.xlu0 %v2360, 14
        %v4905 = vpop.permute.xlu0 %4904
        %4906 = vrot.lane.b32.xlu0 %v2458, 14
        %v4907 = vpop.permute.xlu0 %4906
        %4908 = vrot.lane.b32.xlu0 %v2556, 14
        %v4909 = vpop.permute.xlu0 %4908
        %4910 = vrot.lane.b32.xlu0 %v2654, 14
        %v4911 = vpop.permute.xlu0 %4910
        %4912 = vrot.lane.b32.xlu0 %v2752, 14
        %v4913 = vpop.permute.xlu0 %4912
        %4914 = vrot.lane.b32.xlu0 %v2850, 14
        %v4915 = vpop.permute.xlu0 %4914
        %4916 = vrot.lane.b32.xlu0 %v2948, 14
        %v4917 = vpop.permute.xlu0 %4916
        %4918 = vrot.lane.b32.xlu0 %v3046, 14
        %v4919 = vpop.permute.xlu0 %4918
        %4920 = vrot.lane.b32.xlu0 %v3144, 14
        %v4921 = vpop.permute.xlu0 %4920
        %4922 = vrot.lane.b32.xlu0 %v3242, 14
        %v4923 = vpop.permute.xlu0 %4922
        %4924 = vrot.lane.b32.xlu0 %v3340, 14
        %v4925 = vpop.permute.xlu0 %4924
        %4926 = vrot.lane.b32.xlu0 %v3438, 14
        %v4927 = vpop.permute.xlu0 %4926
        %4928 = vrot.lane.b32.xlu0 %v3536, 14
        %v4929 = vpop.permute.xlu0 %4928
        %4930 = vrot.lane.b32.xlu0 %v3634, 14
        %v4931 = vpop.permute.xlu0 %4930
        %4932 = vrot.lane.b32.xlu0 %v3732, 14
        %v4933 = vpop.permute.xlu0 %4932
        %4934 = vrot.lane.b32.xlu0 %v3830, 14
        %v4935 = vpop.permute.xlu0 %4934
        %4936 = vrot.lane.b32.xlu0 %v3928, 14
        %v4937 = vpop.permute.xlu0 %4936
        %4938 = vrot.lane.b32.xlu0 %v4026, 14
        %v4939 = vpop.permute.xlu0 %4938
        %5004 = vrot.lane.b32.xlu0 %v1011, 16
        %v5005 = vpop.permute.xlu0 %5004
        %5006 = vrot.lane.b32.xlu0 %v1109, 16
        %v5007 = vpop.permute.xlu0 %5006
        %5008 = vrot.lane.b32.xlu0 %v1207, 16
        %v5009 = vpop.permute.xlu0 %5008
        %5010 = vrot.lane.b32.xlu0 %v1305, 16
        %v5011 = vpop.permute.xlu0 %5010
        %5012 = vrot.lane.b32.xlu0 %v1403, 16
        %v5013 = vpop.permute.xlu0 %5012
        %5014 = vrot.lane.b32.xlu0 %v1501, 16
        %v5015 = vpop.permute.xlu0 %5014
        %5016 = vrot.lane.b32.xlu0 %v1599, 16
        %v5017 = vpop.permute.xlu0 %5016
        %5018 = vrot.lane.b32.xlu0 %v1697, 16
        %v5019 = vpop.permute.xlu0 %5018
        %5020 = vrot.lane.b32.xlu0 %v1795, 16
        %v5021 = vpop.permute.xlu0 %5020
        %5022 = vrot.lane.b32.xlu0 %v1893, 16
        %v5023 = vpop.permute.xlu0 %5022
        %5024 = vrot.lane.b32.xlu0 %v1991, 16
        %v5025 = vpop.permute.xlu0 %5024
        %5026 = vrot.lane.b32.xlu0 %v2089, 16
        %v5027 = vpop.permute.xlu0 %5026
        %5028 = vrot.lane.b32.xlu0 %v2187, 16
        %v5029 = vpop.permute.xlu0 %5028
        %5030 = vrot.lane.b32.xlu0 %v2285, 16
        %v5031 = vpop.permute.xlu0 %5030
        %5032 = vrot.lane.b32.xlu0 %v2383, 16
        %v5033 = vpop.permute.xlu0 %5032
        %5034 = vrot.lane.b32.xlu0 %v2481, 16
        %v5035 = vpop.permute.xlu0 %5034
        %5036 = vrot.lane.b32.xlu0 %v2579, 16
        %v5037 = vpop.permute.xlu0 %5036
        %5038 = vrot.lane.b32.xlu0 %v2677, 16
        %v5039 = vpop.permute.xlu0 %5038
        %5040 = vrot.lane.b32.xlu0 %v2775, 16
        %v5041 = vpop.permute.xlu0 %5040
        %5042 = vrot.lane.b32.xlu0 %v2873, 16
        %v5043 = vpop.permute.xlu0 %5042
        %5044 = vrot.lane.b32.xlu0 %v2971, 16
        %v5045 = vpop.permute.xlu0 %5044
        %5046 = vrot.lane.b32.xlu0 %v3069, 16
        %v5047 = vpop.permute.xlu0 %5046
        %5048 = vrot.lane.b32.xlu0 %v3167, 16
        %v5049 = vpop.permute.xlu0 %5048
        %5050 = vrot.lane.b32.xlu0 %v3265, 16
        %v5051 = vpop.permute.xlu0 %5050
        %5052 = vrot.lane.b32.xlu0 %v3363, 16
        %v5053 = vpop.permute.xlu0 %5052
        %5054 = vrot.lane.b32.xlu0 %v3461, 16
        %v5055 = vpop.permute.xlu0 %5054
        %5056 = vrot.lane.b32.xlu0 %v3559, 16
        %v5057 = vpop.permute.xlu0 %5056
        %5058 = vrot.lane.b32.xlu0 %v3657, 16
        %v5059 = vpop.permute.xlu0 %5058
        %5060 = vrot.lane.b32.xlu0 %v3755, 16
        %v5061 = vpop.permute.xlu0 %5060
        %5062 = vrot.lane.b32.xlu0 %v3853, 16
        %v5063 = vpop.permute.xlu0 %5062
        %5064 = vrot.lane.b32.xlu0 %v3951, 16
        %v5065 = vpop.permute.xlu0 %5064
        %5066 = vrot.lane.b32.xlu0 %v4049, 16
        %v5067 = vpop.permute.xlu0 %5066
        %5132 = vrot.lane.b32.xlu0 %v1034, 18
        %v5133 = vpop.permute.xlu0 %5132
        %5134 = vrot.lane.b32.xlu0 %v1132, 18
        %v5135 = vpop.permute.xlu0 %5134
        %5136 = vrot.lane.b32.xlu0 %v1230, 18
        %v5137 = vpop.permute.xlu0 %5136
        %5138 = vrot.lane.b32.xlu0 %v1328, 18
        %v5139 = vpop.permute.xlu0 %5138
        %5140 = vrot.lane.b32.xlu0 %v1426, 18
        %v5141 = vpop.permute.xlu0 %5140
        %5142 = vrot.lane.b32.xlu0 %v1524, 18
        %v5143 = vpop.permute.xlu0 %5142
        %5144 = vrot.lane.b32.xlu0 %v1622, 18
        %v5145 = vpop.permute.xlu0 %5144
        %5146 = vrot.lane.b32.xlu0 %v1720, 18
        %v5147 = vpop.permute.xlu0 %5146
        %5148 = vrot.lane.b32.xlu0 %v1818, 18
        %v5149 = vpop.permute.xlu0 %5148
        %5150 = vrot.lane.b32.xlu0 %v1916, 18
        %v5151 = vpop.permute.xlu0 %5150
        %5152 = vrot.lane.b32.xlu0 %v2014, 18
        %v5153 = vpop.permute.xlu0 %5152
        %5154 = vrot.lane.b32.xlu0 %v2112, 18
        %v5155 = vpop.permute.xlu0 %5154
        %5156 = vrot.lane.b32.xlu0 %v2210, 18
        %v5157 = vpop.permute.xlu0 %5156
        %5158 = vrot.lane.b32.xlu0 %v2308, 18
        %v5159 = vpop.permute.xlu0 %5158
        %5160 = vrot.lane.b32.xlu0 %v2406, 18
        %v5161 = vpop.permute.xlu0 %5160
        %5162 = vrot.lane.b32.xlu0 %v2504, 18
        %v5163 = vpop.permute.xlu0 %5162
        %5164 = vrot.lane.b32.xlu0 %v2602, 18
        %v5165 = vpop.permute.xlu0 %5164
        %5166 = vrot.lane.b32.xlu0 %v2700, 18
        %v5167 = vpop.permute.xlu0 %5166
        %5168 = vrot.lane.b32.xlu0 %v2798, 18
        %v5169 = vpop.permute.xlu0 %5168
        %5170 = vrot.lane.b32.xlu0 %v2896, 18
        %v5171 = vpop.permute.xlu0 %5170
        %5172 = vrot.lane.b32.xlu0 %v2994, 18
        %v5173 = vpop.permute.xlu0 %5172
        %5174 = vrot.lane.b32.xlu0 %v3092, 18
        %v5175 = vpop.permute.xlu0 %5174
        %5176 = vrot.lane.b32.xlu0 %v3190, 18
        %v5177 = vpop.permute.xlu0 %5176
        %5178 = vrot.lane.b32.xlu0 %v3288, 18
        %v5179 = vpop.permute.xlu0 %5178
        %5180 = vrot.lane.b32.xlu0 %v3386, 18
        %v5181 = vpop.permute.xlu0 %5180
        %5182 = vrot.lane.b32.xlu0 %v3484, 18
        %v5183 = vpop.permute.xlu0 %5182
        %5184 = vrot.lane.b32.xlu0 %v3582, 18
        %v5185 = vpop.permute.xlu0 %5184
        %5186 = vrot.lane.b32.xlu0 %v3680, 18
        %v5187 = vpop.permute.xlu0 %5186
        %5188 = vrot.lane.b32.xlu0 %v3778, 18
        %v5189 = vpop.permute.xlu0 %5188
        %5190 = vrot.lane.b32.xlu0 %v3876, 18
        %v5191 = vpop.permute.xlu0 %5190
        %5192 = vrot.lane.b32.xlu0 %v3974, 18
        %v5193 = vpop.permute.xlu0 %5192
        %5194 = vrot.lane.b32.xlu0 %v4072, 18
        %v5195 = vpop.permute.xlu0 %5194
        %5260 = vrot.lane.b32.xlu0 %v1018, 20
        %v5261 = vpop.permute.xlu0 %5260
        %5262 = vrot.lane.b32.xlu0 %v1116, 20
        %v5263 = vpop.permute.xlu0 %5262
        %5264 = vrot.lane.b32.xlu0 %v1214, 20
        %v5265 = vpop.permute.xlu0 %5264
        %5266 = vrot.lane.b32.xlu0 %v1312, 20
        %v5267 = vpop.permute.xlu0 %5266
        %5268 = vrot.lane.b32.xlu0 %v1410, 20
        %v5269 = vpop.permute.xlu0 %5268
        %5270 = vrot.lane.b32.xlu0 %v1508, 20
        %v5271 = vpop.permute.xlu0 %5270
        %5272 = vrot.lane.b32.xlu0 %v1606, 20
        %v5273 = vpop.permute.xlu0 %5272
        %5274 = vrot.lane.b32.xlu0 %v1704, 20
        %v5275 = vpop.permute.xlu0 %5274
        %5276 = vrot.lane.b32.xlu0 %v1802, 20
        %v5277 = vpop.permute.xlu0 %5276
        %5278 = vrot.lane.b32.xlu0 %v1900, 20
        %v5279 = vpop.permute.xlu0 %5278
        %5280 = vrot.lane.b32.xlu0 %v1998, 20
        %v5281 = vpop.permute.xlu0 %5280
        %5282 = vrot.lane.b32.xlu0 %v2096, 20
        %v5283 = vpop.permute.xlu0 %5282
        %5284 = vrot.lane.b32.xlu0 %v2194, 20
        %v5285 = vpop.permute.xlu0 %5284
        %5286 = vrot.lane.b32.xlu0 %v2292, 20
        %v5287 = vpop.permute.xlu0 %5286
        %5288 = vrot.lane.b32.xlu0 %v2390, 20
        %v5289 = vpop.permute.xlu0 %5288
        %5290 = vrot.lane.b32.xlu0 %v2488, 20
        %v5291 = vpop.permute.xlu0 %5290
        %5292 = vrot.lane.b32.xlu0 %v2586, 20
        %v5293 = vpop.permute.xlu0 %5292
        %5294 = vrot.lane.b32.xlu0 %v2684, 20
        %v5295 = vpop.permute.xlu0 %5294
        %5296 = vrot.lane.b32.xlu0 %v2782, 20
        %v5297 = vpop.permute.xlu0 %5296
        %5298 = vrot.lane.b32.xlu0 %v2880, 20
        %v5299 = vpop.permute.xlu0 %5298
        %5300 = vrot.lane.b32.xlu0 %v2978, 20
        %v5301 = vpop.permute.xlu0 %5300
        %5302 = vrot.lane.b32.xlu0 %v3076, 20
        %v5303 = vpop.permute.xlu0 %5302
        %5304 = vrot.lane.b32.xlu0 %v3174, 20
        %v5305 = vpop.permute.xlu0 %5304
        %5306 = vrot.lane.b32.xlu0 %v3272, 20
        %v5307 = vpop.permute.xlu0 %5306
        %5308 = vrot.lane.b32.xlu0 %v3370, 20
        %v5309 = vpop.permute.xlu0 %5308
        %5310 = vrot.lane.b32.xlu0 %v3468, 20
        %v5311 = vpop.permute.xlu0 %5310
        %5312 = vrot.lane.b32.xlu0 %v3566, 20
        %v5313 = vpop.permute.xlu0 %5312
        %5314 = vrot.lane.b32.xlu0 %v3664, 20
        %v5315 = vpop.permute.xlu0 %5314
        %5316 = vrot.lane.b32.xlu0 %v3762, 20
        %v5317 = vpop.permute.xlu0 %5316
        %5318 = vrot.lane.b32.xlu0 %v3860, 20
        %v5319 = vpop.permute.xlu0 %5318
        %5320 = vrot.lane.b32.xlu0 %v3958, 20
        %v5321 = vpop.permute.xlu0 %5320
        %5322 = vrot.lane.b32.xlu0 %v4056, 20
        %v5323 = vpop.permute.xlu0 %5322
        %5388 = vrot.lane.b32.xlu0 %v1035, 22
        %v5389 = vpop.permute.xlu0 %5388
        %5390 = vrot.lane.b32.xlu0 %v1133, 22
        %v5391 = vpop.permute.xlu0 %5390
        %5392 = vrot.lane.b32.xlu0 %v1231, 22
        %v5393 = vpop.permute.xlu0 %5392
        %5394 = vrot.lane.b32.xlu0 %v1329, 22
        %v5395 = vpop.permute.xlu0 %5394
        %5396 = vrot.lane.b32.xlu0 %v1427, 22
        %v5397 = vpop.permute.xlu0 %5396
        %5398 = vrot.lane.b32.xlu0 %v1525, 22
        %v5399 = vpop.permute.xlu0 %5398
        %5400 = vrot.lane.b32.xlu0 %v1623, 22
        %v5401 = vpop.permute.xlu0 %5400
        %5402 = vrot.lane.b32.xlu0 %v1721, 22
        %v5403 = vpop.permute.xlu0 %5402
        %5404 = vrot.lane.b32.xlu0 %v1819, 22
        %v5405 = vpop.permute.xlu0 %5404
        %5406 = vrot.lane.b32.xlu0 %v1917, 22
        %v5407 = vpop.permute.xlu0 %5406
        %5408 = vrot.lane.b32.xlu0 %v2015, 22
        %v5409 = vpop.permute.xlu0 %5408
        %5410 = vrot.lane.b32.xlu0 %v2113, 22
        %v5411 = vpop.permute.xlu0 %5410
        %5412 = vrot.lane.b32.xlu0 %v2211, 22
        %v5413 = vpop.permute.xlu0 %5412
        %5414 = vrot.lane.b32.xlu0 %v2309, 22
        %v5415 = vpop.permute.xlu0 %5414
        %5416 = vrot.lane.b32.xlu0 %v2407, 22
        %v5417 = vpop.permute.xlu0 %5416
        %5418 = vrot.lane.b32.xlu0 %v2505, 22
        %v5419 = vpop.permute.xlu0 %5418
        %5420 = vrot.lane.b32.xlu0 %v2603, 22
        %v5421 = vpop.permute.xlu0 %5420
        %5422 = vrot.lane.b32.xlu0 %v2701, 22
        %v5423 = vpop.permute.xlu0 %5422
        %5424 = vrot.lane.b32.xlu0 %v2799, 22
        %v5425 = vpop.permute.xlu0 %5424
        %5426 = vrot.lane.b32.xlu0 %v2897, 22
        %v5427 = vpop.permute.xlu0 %5426
        %5428 = vrot.lane.b32.xlu0 %v2995, 22
        %v5429 = vpop.permute.xlu0 %5428
        %5430 = vrot.lane.b32.xlu0 %v3093, 22
        %v5431 = vpop.permute.xlu0 %5430
        %5432 = vrot.lane.b32.xlu0 %v3191, 22
        %v5433 = vpop.permute.xlu0 %5432
        %5434 = vrot.lane.b32.xlu0 %v3289, 22
        %v5435 = vpop.permute.xlu0 %5434
        %5436 = vrot.lane.b32.xlu0 %v3387, 22
        %v5437 = vpop.permute.xlu0 %5436
        %5438 = vrot.lane.b32.xlu0 %v3485, 22
        %v5439 = vpop.permute.xlu0 %5438
        %5440 = vrot.lane.b32.xlu0 %v3583, 22
        %v5441 = vpop.permute.xlu0 %5440
        %5442 = vrot.lane.b32.xlu0 %v3681, 22
        %v5443 = vpop.permute.xlu0 %5442
        %5444 = vrot.lane.b32.xlu0 %v3779, 22
        %v5445 = vpop.permute.xlu0 %5444
        %5446 = vrot.lane.b32.xlu0 %v3877, 22
        %v5447 = vpop.permute.xlu0 %5446
        %5448 = vrot.lane.b32.xlu0 %v3975, 22
        %v5449 = vpop.permute.xlu0 %5448
        %5450 = vrot.lane.b32.xlu0 %v4073, 22
        %v5451 = vpop.permute.xlu0 %5450
        %5516 = vrot.lane.b32.xlu0 %v1026, 24
        %v5517 = vpop.permute.xlu0 %5516
        %5518 = vrot.lane.b32.xlu0 %v1124, 24
        %v5519 = vpop.permute.xlu0 %5518
        %5520 = vrot.lane.b32.xlu0 %v1222, 24
        %v5521 = vpop.permute.xlu0 %5520
        %5522 = vrot.lane.b32.xlu0 %v1320, 24
        %v5523 = vpop.permute.xlu0 %5522
        %5524 = vrot.lane.b32.xlu0 %v1418, 24
        %v5525 = vpop.permute.xlu0 %5524
        %5526 = vrot.lane.b32.xlu0 %v1516, 24
        %v5527 = vpop.permute.xlu0 %5526
        %5528 = vrot.lane.b32.xlu0 %v1614, 24
        %v5529 = vpop.permute.xlu0 %5528
        %5530 = vrot.lane.b32.xlu0 %v1712, 24
        %v5531 = vpop.permute.xlu0 %5530
        %5532 = vrot.lane.b32.xlu0 %v1810, 24
        %v5533 = vpop.permute.xlu0 %5532
        %5534 = vrot.lane.b32.xlu0 %v1908, 24
        %v5535 = vpop.permute.xlu0 %5534
        %5536 = vrot.lane.b32.xlu0 %v2006, 24
        %v5537 = vpop.permute.xlu0 %5536
        %5538 = vrot.lane.b32.xlu0 %v2104, 24
        %v5539 = vpop.permute.xlu0 %5538
        %5540 = vrot.lane.b32.xlu0 %v2202, 24
        %v5541 = vpop.permute.xlu0 %5540
        %5542 = vrot.lane.b32.xlu0 %v2300, 24
        %v5543 = vpop.permute.xlu0 %5542
        %5544 = vrot.lane.b32.xlu0 %v2398, 24
        %v5545 = vpop.permute.xlu0 %5544
        %5546 = vrot.lane.b32.xlu0 %v2496, 24
        %v5547 = vpop.permute.xlu0 %5546
        %5548 = vrot.lane.b32.xlu0 %v2594, 24
        %v5549 = vpop.permute.xlu0 %5548
        %5550 = vrot.lane.b32.xlu0 %v2692, 24
        %v5551 = vpop.permute.xlu0 %5550
        %5552 = vrot.lane.b32.xlu0 %v2790, 24
        %v5553 = vpop.permute.xlu0 %5552
        %5554 = vrot.lane.b32.xlu0 %v2888, 24
        %v5555 = vpop.permute.xlu0 %5554
        %5556 = vrot.lane.b32.xlu0 %v2986, 24
        %v5557 = vpop.permute.xlu0 %5556
        %5558 = vrot.lane.b32.xlu0 %v3084, 24
        %v5559 = vpop.permute.xlu0 %5558
        %5560 = vrot.lane.b32.xlu0 %v3182, 24
        %v5561 = vpop.permute.xlu0 %5560
        %5562 = vrot.lane.b32.xlu0 %v3280, 24
        %v5563 = vpop.permute.xlu0 %5562
        %5564 = vrot.lane.b32.xlu0 %v3378, 24
        %v5565 = vpop.permute.xlu0 %5564
        %5566 = vrot.lane.b32.xlu0 %v3476, 24
        %v5567 = vpop.permute.xlu0 %5566
        %5568 = vrot.lane.b32.xlu0 %v3574, 24
        %v5569 = vpop.permute.xlu0 %5568
        %5570 = vrot.lane.b32.xlu0 %v3672, 24
        %v5571 = vpop.permute.xlu0 %5570
        %5572 = vrot.lane.b32.xlu0 %v3770, 24
        %v5573 = vpop.permute.xlu0 %5572
        %5574 = vrot.lane.b32.xlu0 %v3868, 24
        %v5575 = vpop.permute.xlu0 %5574
        %5576 = vrot.lane.b32.xlu0 %v3966, 24
        %v5577 = vpop.permute.xlu0 %5576
        %5578 = vrot.lane.b32.xlu0 %v4064, 24
        %v5579 = vpop.permute.xlu0 %5578
        %5644 = vrot.lane.b32.xlu0 %v1036, 26
        %v5645 = vpop.permute.xlu0 %5644
        %5646 = vrot.lane.b32.xlu0 %v1134, 26
        %v5647 = vpop.permute.xlu0 %5646
        %5648 = vrot.lane.b32.xlu0 %v1232, 26
        %v5649 = vpop.permute.xlu0 %5648
        %5650 = vrot.lane.b32.xlu0 %v1330, 26
        %v5651 = vpop.permute.xlu0 %5650
        %5652 = vrot.lane.b32.xlu0 %v1428, 26
        %v5653 = vpop.permute.xlu0 %5652
        %5654 = vrot.lane.b32.xlu0 %v1526, 26
        %v5655 = vpop.permute.xlu0 %5654
        %5656 = vrot.lane.b32.xlu0 %v1624, 26
        %v5657 = vpop.permute.xlu0 %5656
        %5658 = vrot.lane.b32.xlu0 %v1722, 26
        %v5659 = vpop.permute.xlu0 %5658
        %5660 = vrot.lane.b32.xlu0 %v1820, 26
        %v5661 = vpop.permute.xlu0 %5660
        %5662 = vrot.lane.b32.xlu0 %v1918, 26
        %v5663 = vpop.permute.xlu0 %5662
        %5664 = vrot.lane.b32.xlu0 %v2016, 26
        %v5665 = vpop.permute.xlu0 %5664
        %5666 = vrot.lane.b32.xlu0 %v2114, 26
        %v5667 = vpop.permute.xlu0 %5666
        %5668 = vrot.lane.b32.xlu0 %v2212, 26
        %v5669 = vpop.permute.xlu0 %5668
        %5670 = vrot.lane.b32.xlu0 %v2310, 26
        %v5671 = vpop.permute.xlu0 %5670
        %5672 = vrot.lane.b32.xlu0 %v2408, 26
        %v5673 = vpop.permute.xlu0 %5672
        %5674 = vrot.lane.b32.xlu0 %v2506, 26
        %v5675 = vpop.permute.xlu0 %5674
        %5676 = vrot.lane.b32.xlu0 %v2604, 26
        %v5677 = vpop.permute.xlu0 %5676
        %5678 = vrot.lane.b32.xlu0 %v2702, 26
        %v5679 = vpop.permute.xlu0 %5678
        %5680 = vrot.lane.b32.xlu0 %v2800, 26
        %v5681 = vpop.permute.xlu0 %5680
        %5682 = vrot.lane.b32.xlu0 %v2898, 26
        %v5683 = vpop.permute.xlu0 %5682
        %5684 = vrot.lane.b32.xlu0 %v2996, 26
        %v5685 = vpop.permute.xlu0 %5684
        %5686 = vrot.lane.b32.xlu0 %v3094, 26
        %v5687 = vpop.permute.xlu0 %5686
        %5688 = vrot.lane.b32.xlu0 %v3192, 26
        %v5689 = vpop.permute.xlu0 %5688
        %5690 = vrot.lane.b32.xlu0 %v3290, 26
        %v5691 = vpop.permute.xlu0 %5690
        %5692 = vrot.lane.b32.xlu0 %v3388, 26
        %v5693 = vpop.permute.xlu0 %5692
        %5694 = vrot.lane.b32.xlu0 %v3486, 26
        %v5695 = vpop.permute.xlu0 %5694
        %5696 = vrot.lane.b32.xlu0 %v3584, 26
        %v5697 = vpop.permute.xlu0 %5696
        %5698 = vrot.lane.b32.xlu0 %v3682, 26
        %v5699 = vpop.permute.xlu0 %5698
        %5700 = vrot.lane.b32.xlu0 %v3780, 26
        %v5701 = vpop.permute.xlu0 %5700
        %5702 = vrot.lane.b32.xlu0 %v3878, 26
        %v5703 = vpop.permute.xlu0 %5702
        %5704 = vrot.lane.b32.xlu0 %v3976, 26
        %v5705 = vpop.permute.xlu0 %5704
        %5706 = vrot.lane.b32.xlu0 %v4074, 26
        %v5707 = vpop.permute.xlu0 %5706
        %5772 = vrot.lane.b32.xlu0 %v1033, 28
        %v5773 = vpop.permute.xlu0 %5772
        %5774 = vrot.lane.b32.xlu0 %v1131, 28
        %v5775 = vpop.permute.xlu0 %5774
        %5776 = vrot.lane.b32.xlu0 %v1229, 28
        %v5777 = vpop.permute.xlu0 %5776
        %5778 = vrot.lane.b32.xlu0 %v1327, 28
        %v5779 = vpop.permute.xlu0 %5778
        %5780 = vrot.lane.b32.xlu0 %v1425, 28
        %v5781 = vpop.permute.xlu0 %5780
        %5782 = vrot.lane.b32.xlu0 %v1523, 28
        %v5783 = vpop.permute.xlu0 %5782
        %5784 = vrot.lane.b32.xlu0 %v1621, 28
        %v5785 = vpop.permute.xlu0 %5784
        %5786 = vrot.lane.b32.xlu0 %v1719, 28
        %v5787 = vpop.permute.xlu0 %5786
        %5788 = vrot.lane.b32.xlu0 %v1817, 28
        %v5789 = vpop.permute.xlu0 %5788
        %5790 = vrot.lane.b32.xlu0 %v1915, 28
        %v5791 = vpop.permute.xlu0 %5790
        %5792 = vrot.lane.b32.xlu0 %v2013, 28
        %v5793 = vpop.permute.xlu0 %5792
        %5794 = vrot.lane.b32.xlu0 %v2111, 28
        %v5795 = vpop.permute.xlu0 %5794
        %5796 = vrot.lane.b32.xlu0 %v2209, 28
        %v5797 = vpop.permute.xlu0 %5796
        %5798 = vrot.lane.b32.xlu0 %v2307, 28
        %v5799 = vpop.permute.xlu0 %5798
        %5800 = vrot.lane.b32.xlu0 %v2405, 28
        %v5801 = vpop.permute.xlu0 %5800
        %5802 = vrot.lane.b32.xlu0 %v2503, 28
        %v5803 = vpop.permute.xlu0 %5802
        %5804 = vrot.lane.b32.xlu0 %v2601, 28
        %v5805 = vpop.permute.xlu0 %5804
        %5806 = vrot.lane.b32.xlu0 %v2699, 28
        %v5807 = vpop.permute.xlu0 %5806
        %5808 = vrot.lane.b32.xlu0 %v2797, 28
        %v5809 = vpop.permute.xlu0 %5808
        %5810 = vrot.lane.b32.xlu0 %v2895, 28
        %v5811 = vpop.permute.xlu0 %5810
        %5812 = vrot.lane.b32.xlu0 %v2993, 28
        %v5813 = vpop.permute.xlu0 %5812
        %5814 = vrot.lane.b32.xlu0 %v3091, 28
        %v5815 = vpop.permute.xlu0 %5814
        %5816 = vrot.lane.b32.xlu0 %v3189, 28
        %v5817 = vpop.permute.xlu0 %5816
        %5818 = vrot.lane.b32.xlu0 %v3287, 28
        %v5819 = vpop.permute.xlu0 %5818
        %5820 = vrot.lane.b32.xlu0 %v3385, 28
        %v5821 = vpop.permute.xlu0 %5820
        %5822 = vrot.lane.b32.xlu0 %v3483, 28
        %v5823 = vpop.permute.xlu0 %5822
        %5824 = vrot.lane.b32.xlu0 %v3581, 28
        %v5825 = vpop.permute.xlu0 %5824
        %5826 = vrot.lane.b32.xlu0 %v3679, 28
        %v5827 = vpop.permute.xlu0 %5826
        %5828 = vrot.lane.b32.xlu0 %v3777, 28
        %v5829 = vpop.permute.xlu0 %5828
        %5830 = vrot.lane.b32.xlu0 %v3875, 28
        %v5831 = vpop.permute.xlu0 %5830
        %5832 = vrot.lane.b32.xlu0 %v3973, 28
        %v5833 = vpop.permute.xlu0 %5832
        %5834 = vrot.lane.b32.xlu0 %v4071, 28
        %v5835 = vpop.permute.xlu0 %5834
        %5900 = vrot.lane.b32.xlu0 %v1037, 30
        %v5901 = vpop.permute.xlu0 %5900
        %5902 = vrot.lane.b32.xlu0 %v1135, 30
        %v5903 = vpop.permute.xlu0 %5902
        %5904 = vrot.lane.b32.xlu0 %v1233, 30
        %v5905 = vpop.permute.xlu0 %5904
        %5906 = vrot.lane.b32.xlu0 %v1331, 30
        %v5907 = vpop.permute.xlu0 %5906
        %5908 = vrot.lane.b32.xlu0 %v1429, 30
        %v5909 = vpop.permute.xlu0 %5908
        %5910 = vrot.lane.b32.xlu0 %v1527, 30
        %v5911 = vpop.permute.xlu0 %5910
        %5912 = vrot.lane.b32.xlu0 %v1625, 30
        %v5913 = vpop.permute.xlu0 %5912
        %5914 = vrot.lane.b32.xlu0 %v1723, 30
        %v5915 = vpop.permute.xlu0 %5914
        %5916 = vrot.lane.b32.xlu0 %v1821, 30
        %v5917 = vpop.permute.xlu0 %5916
        %5918 = vrot.lane.b32.xlu0 %v1919, 30
        %v5919 = vpop.permute.xlu0 %5918
        %5920 = vrot.lane.b32.xlu0 %v2017, 30
        %v5921 = vpop.permute.xlu0 %5920
        %5922 = vrot.lane.b32.xlu0 %v2115, 30
        %v5923 = vpop.permute.xlu0 %5922
        %5924 = vrot.lane.b32.xlu0 %v2213, 30
        %v5925 = vpop.permute.xlu0 %5924
        %5926 = vrot.lane.b32.xlu0 %v2311, 30
        %v5927 = vpop.permute.xlu0 %5926
        %5928 = vrot.lane.b32.xlu0 %v2409, 30
        %v5929 = vpop.permute.xlu0 %5928
        %5930 = vrot.lane.b32.xlu0 %v2507, 30
        %v5931 = vpop.permute.xlu0 %5930
        %5932 = vrot.lane.b32.xlu0 %v2605, 30
        %v5933 = vpop.permute.xlu0 %5932
        %5934 = vrot.lane.b32.xlu0 %v2703, 30
        %v5935 = vpop.permute.xlu0 %5934
        %5936 = vrot.lane.b32.xlu0 %v2801, 30
        %v5937 = vpop.permute.xlu0 %5936
        %5938 = vrot.lane.b32.xlu0 %v2899, 30
        %v5939 = vpop.permute.xlu0 %5938
        %5940 = vrot.lane.b32.xlu0 %v2997, 30
        %v5941 = vpop.permute.xlu0 %5940
        %5942 = vrot.lane.b32.xlu0 %v3095, 30
        %v5943 = vpop.permute.xlu0 %5942
        %5944 = vrot.lane.b32.xlu0 %v3193, 30
        %v5945 = vpop.permute.xlu0 %5944
        %5946 = vrot.lane.b32.xlu0 %v3291, 30
        %v5947 = vpop.permute.xlu0 %5946
        %5948 = vrot.lane.b32.xlu0 %v3389, 30
        %v5949 = vpop.permute.xlu0 %5948
        %5950 = vrot.lane.b32.xlu0 %v3487, 30
        %v5951 = vpop.permute.xlu0 %5950
        %5952 = vrot.lane.b32.xlu0 %v3585, 30
        %v5953 = vpop.permute.xlu0 %5952
        %5954 = vrot.lane.b32.xlu0 %v3683, 30
        %v5955 = vpop.permute.xlu0 %5954
        %5956 = vrot.lane.b32.xlu0 %v3781, 30
        %v5957 = vpop.permute.xlu0 %5956
        %5958 = vrot.lane.b32.xlu0 %v3879, 30
        %v5959 = vpop.permute.xlu0 %5958
        %5960 = vrot.lane.b32.xlu0 %v3977, 30
        %v5961 = vpop.permute.xlu0 %5960
        %5962 = vrot.lane.b32.xlu0 %v4075, 30
        %v5963 = vpop.permute.xlu0 %5962
        %vm5996 = vcmask 15360
        %v5997 = vsel %vm5996, %v962, %v4109
        %v5998 = vsel %vm5996, %v1060, %v4111
        %v5999 = vsel %vm5996, %v1158, %v4113
        %v6000 = vsel %vm5996, %v1256, %v4115
        %v6001 = vsel %vm5996, %v1354, %v4117
        %v6002 = vsel %vm5996, %v1452, %v4119
        %v6003 = vsel %vm5996, %v1550, %v4121
        %v6004 = vsel %vm5996, %v1648, %v4123
        %v6005 = vsel %vm5996, %v1746, %v4125
        %v6006 = vsel %vm5996, %v1844, %v4127
        %v6007 = vsel %vm5996, %v1942, %v4129
        %v6008 = vsel %vm5996, %v2040, %v4131
        %v6009 = vsel %vm5996, %v2138, %v4133
        %v6010 = vsel %vm5996, %v2236, %v4135
        %v6011 = vsel %vm5996, %v2334, %v4137
        %v6012 = vsel %vm5996, %v2432, %v4139
        %v6013 = vsel %vm5996, %v2530, %v4141
        %v6014 = vsel %vm5996, %v2628, %v4143
        %v6015 = vsel %vm5996, %v2726, %v4145
        %v6016 = vsel %vm5996, %v2824, %v4147
        %v6017 = vsel %vm5996, %v2922, %v4149
        %v6018 = vsel %vm5996, %v3020, %v4151
        %v6019 = vsel %vm5996, %v3118, %v4153
        %v6020 = vsel %vm5996, %v3216, %v4155
        %v6021 = vsel %vm5996, %v3314, %v4157
        %v6022 = vsel %vm5996, %v3412, %v4159
        %v6023 = vsel %vm5996, %v3510, %v4161
        %v6024 = vsel %vm5996, %v3608, %v4163
        %v6025 = vsel %vm5996, %v3706, %v4165
        %v6026 = vsel %vm5996, %v3804, %v4167
        %v6027 = vsel %vm5996, %v3902, %v4169
        %v6028 = vsel %vm5996, %v4000, %v4171
        %vm6029 = vcmask 31744
        %v6030 = vsel %vm6029, %v5997, %v4237
        %v6031 = vsel %vm6029, %v5998, %v4239
        %v6032 = vsel %vm6029, %v5999, %v4241
        %v6033 = vsel %vm6029, %v6000, %v4243
        %v6034 = vsel %vm6029, %v6001, %v4245
        %v6035 = vsel %vm6029, %v6002, %v4247
        %v6036 = vsel %vm6029, %v6003, %v4249
        %v6037 = vsel %vm6029, %v6004, %v4251
        %v6038 = vsel %vm6029, %v6005, %v4253
        %v6039 = vsel %vm6029, %v6006, %v4255
        %v6040 = vsel %vm6029, %v6007, %v4257
        %v6041 = vsel %vm6029, %v6008, %v4259
        %v6042 = vsel %vm6029, %v6009, %v4261
        %v6043 = vsel %vm6029, %v6010, %v4263
        %v6044 = vsel %vm6029, %v6011, %v4265
        %v6045 = vsel %vm6029, %v6012, %v4267
        %v6046 = vsel %vm6029, %v6013, %v4269
        %v6047 = vsel %vm6029, %v6014, %v4271
        %v6048 = vsel %vm6029, %v6015, %v4273
        %v6049 = vsel %vm6029, %v6016, %v4275
        %v6050 = vsel %vm6029, %v6017, %v4277
        %v6051 = vsel %vm6029, %v6018, %v4279
        %v6052 = vsel %vm6029, %v6019, %v4281
        %v6053 = vsel %vm6029, %v6020, %v4283
        %v6054 = vsel %vm6029, %v6021, %v4285
        %v6055 = vsel %vm6029, %v6022, %v4287
        %v6056 = vsel %vm6029, %v6023, %v4289
        %v6057 = vsel %vm6029, %v6024, %v4291
        %v6058 = vsel %vm6029, %v6025, %v4293
        %v6059 = vsel %vm6029, %v6026, %v4295
        %v6060 = vsel %vm6029, %v6027, %v4297
        %v6061 = vsel %vm6029, %v6028, %v4299
        %vm6062 = vcmask 48128
        %v6063 = vsel %vm6062, %v6030, %v4365
        %v6064 = vsel %vm6062, %v6031, %v4367
        %v6065 = vsel %vm6062, %v6032, %v4369
        %v6066 = vsel %vm6062, %v6033, %v4371
        %v6067 = vsel %vm6062, %v6034, %v4373
        %v6068 = vsel %vm6062, %v6035, %v4375
        %v6069 = vsel %vm6062, %v6036, %v4377
        %v6070 = vsel %vm6062, %v6037, %v4379
        %v6071 = vsel %vm6062, %v6038, %v4381
        %v6072 = vsel %vm6062, %v6039, %v4383
        %v6073 = vsel %vm6062, %v6040, %v4385
        %v6074 = vsel %vm6062, %v6041, %v4387
        %v6075 = vsel %vm6062, %v6042, %v4389
        %v6076 = vsel %vm6062, %v6043, %v4391
        %v6077 = vsel %vm6062, %v6044, %v4393
        %v6078 = vsel %vm6062, %v6045, %v4395
        %v6079 = vsel %vm6062, %v6046, %v4397
        %v6080 = vsel %vm6062, %v6047, %v4399
        %v6081 = vsel %vm6062, %v6048, %v4401
        %v6082 = vsel %vm6062, %v6049, %v4403
        %v6083 = vsel %vm6062, %v6050, %v4405
        %v6084 = vsel %vm6062, %v6051, %v4407
        %v6085 = vsel %vm6062, %v6052, %v4409
        %v6086 = vsel %vm6062, %v6053, %v4411
        %v6087 = vsel %vm6062, %v6054, %v4413
        %v6088 = vsel %vm6062, %v6055, %v4415
        %v6089 = vsel %vm6062, %v6056, %v4417
        %v6090 = vsel %vm6062, %v6057, %v4419
        %v6091 = vsel %vm6062, %v6058, %v4421
        %v6092 = vsel %vm6062, %v6059, %v4423
        %v6093 = vsel %vm6062, %v6060, %v4425
        %v6094 = vsel %vm6062, %v6061, %v4427
        %vm6095 = vcmask 64512
        %v6096 = vsel %vm6095, %v6063, %v4493
        %v6097 = vsel %vm6095, %v6064, %v4495
        %v6098 = vsel %vm6095, %v6065, %v4497
        %v6099 = vsel %vm6095, %v6066, %v4499
        %v6100 = vsel %vm6095, %v6067, %v4501
        %v6101 = vsel %vm6095, %v6068, %v4503
        %v6102 = vsel %vm6095, %v6069, %v4505
        %v6103 = vsel %vm6095, %v6070, %v4507
        %v6104 = vsel %vm6095, %v6071, %v4509
        %v6105 = vsel %vm6095, %v6072, %v4511
        %v6106 = vsel %vm6095, %v6073, %v4513
        %v6107 = vsel %vm6095, %v6074, %v4515
        %v6108 = vsel %vm6095, %v6075, %v4517
        %v6109 = vsel %vm6095, %v6076, %v4519
        %v6110 = vsel %vm6095, %v6077, %v4521
        %v6111 = vsel %vm6095, %v6078, %v4523
        %v6112 = vsel %vm6095, %v6079, %v4525
        %v6113 = vsel %vm6095, %v6080, %v4527
        %v6114 = vsel %vm6095, %v6081, %v4529
        %v6115 = vsel %vm6095, %v6082, %v4531
        %v6116 = vsel %vm6095, %v6083, %v4533
        %v6117 = vsel %vm6095, %v6084, %v4535
        %v6118 = vsel %vm6095, %v6085, %v4537
        %v6119 = vsel %vm6095, %v6086, %v4539
        %v6120 = vsel %vm6095, %v6087, %v4541
        %v6121 = vsel %vm6095, %v6088, %v4543
        %v6122 = vsel %vm6095, %v6089, %v4545
        %v6123 = vsel %vm6095, %v6090, %v4547
        %v6124 = vsel %vm6095, %v6091, %v4549
        %v6125 = vsel %vm6095, %v6092, %v4551
        %v6126 = vsel %vm6095, %v6093, %v4553
        %v6127 = vsel %vm6095, %v6094, %v4555
        %vm6128 = vcmask 80896
        %v6129 = vsel %vm6128, %v6096, %v4621
        %v6130 = vsel %vm6128, %v6097, %v4623
        %v6131 = vsel %vm6128, %v6098, %v4625
        %v6132 = vsel %vm6128, %v6099, %v4627
        %v6133 = vsel %vm6128, %v6100, %v4629
        %v6134 = vsel %vm6128, %v6101, %v4631
        %v6135 = vsel %vm6128, %v6102, %v4633
        %v6136 = vsel %vm6128, %v6103, %v4635
        %v6137 = vsel %vm6128, %v6104, %v4637
        %v6138 = vsel %vm6128, %v6105, %v4639
        %v6139 = vsel %vm6128, %v6106, %v4641
        %v6140 = vsel %vm6128, %v6107, %v4643
        %v6141 = vsel %vm6128, %v6108, %v4645
        %v6142 = vsel %vm6128, %v6109, %v4647
        %v6143 = vsel %vm6128, %v6110, %v4649
        %v6144 = vsel %vm6128, %v6111, %v4651
        %v6145 = vsel %vm6128, %v6112, %v4653
        %v6146 = vsel %vm6128, %v6113, %v4655
        %v6147 = vsel %vm6128, %v6114, %v4657
        %v6148 = vsel %vm6128, %v6115, %v4659
        %v6149 = vsel %vm6128, %v6116, %v4661
        %v6150 = vsel %vm6128, %v6117, %v4663
        %v6151 = vsel %vm6128, %v6118, %v4665
        %v6152 = vsel %vm6128, %v6119, %v4667
        %v6153 = vsel %vm6128, %v6120, %v4669
        %v6154 = vsel %vm6128, %v6121, %v4671
        %v6155 = vsel %vm6128, %v6122, %v4673
        %v6156 = vsel %vm6128, %v6123, %v4675
        %v6157 = vsel %vm6128, %v6124, %v4677
        %v6158 = vsel %vm6128, %v6125, %v4679
        %v6159 = vsel %vm6128, %v6126, %v4681
        %v6160 = vsel %vm6128, %v6127, %v4683
        %vm6161 = vcmask 97280
        %v6162 = vsel %vm6161, %v6129, %v4749
        %v6163 = vsel %vm6161, %v6130, %v4751
        %v6164 = vsel %vm6161, %v6131, %v4753
        %v6165 = vsel %vm6161, %v6132, %v4755
        %v6166 = vsel %vm6161, %v6133, %v4757
        %v6167 = vsel %vm6161, %v6134, %v4759
        %v6168 = vsel %vm6161, %v6135, %v4761
        %v6169 = vsel %vm6161, %v6136, %v4763
        %v6170 = vsel %vm6161, %v6137, %v4765
        %v6171 = vsel %vm6161, %v6138, %v4767
        %v6172 = vsel %vm6161, %v6139, %v4769
        %v6173 = vsel %vm6161, %v6140, %v4771
        %v6174 = vsel %vm6161, %v6141, %v4773
        %v6175 = vsel %vm6161, %v6142, %v4775
        %v6176 = vsel %vm6161, %v6143, %v4777
        %v6177 = vsel %vm6161, %v6144, %v4779
        %v6178 = vsel %vm6161, %v6145, %v4781
        %v6179 = vsel %vm6161, %v6146, %v4783
        %v6180 = vsel %vm6161, %v6147, %v4785
        %v6181 = vsel %vm6161, %v6148, %v4787
        %v6182 = vsel %vm6161, %v6149, %v4789
        %v6183 = vsel %vm6161, %v6150, %v4791
        %v6184 = vsel %vm6161, %v6151, %v4793
        %v6185 = vsel %vm6161, %v6152, %v4795
        %v6186 = vsel %vm6161, %v6153, %v4797
        %v6187 = vsel %vm6161, %v6154, %v4799
        %v6188 = vsel %vm6161, %v6155, %v4801
        %v6189 = vsel %vm6161, %v6156, %v4803
        %v6190 = vsel %vm6161, %v6157, %v4805
        %v6191 = vsel %vm6161, %v6158, %v4807
        %v6192 = vsel %vm6161, %v6159, %v4809
        %v6193 = vsel %vm6161, %v6160, %v4811
        %vm6194 = vcmask 113664
        %v6195 = vsel %vm6194, %v6162, %v4877
        %v6196 = vsel %vm6194, %v6163, %v4879
        %v6197 = vsel %vm6194, %v6164, %v4881
        %v6198 = vsel %vm6194, %v6165, %v4883
        %v6199 = vsel %vm6194, %v6166, %v4885
        %v6200 = vsel %vm6194, %v6167, %v4887
        %v6201 = vsel %vm6194, %v6168, %v4889
        %v6202 = vsel %vm6194, %v6169, %v4891
        %v6203 = vsel %vm6194, %v6170, %v4893
        %v6204 = vsel %vm6194, %v6171, %v4895
        %v6205 = vsel %vm6194, %v6172, %v4897
        %v6206 = vsel %vm6194, %v6173, %v4899
        %v6207 = vsel %vm6194, %v6174, %v4901
        %v6208 = vsel %vm6194, %v6175, %v4903
        %v6209 = vsel %vm6194, %v6176, %v4905
        %v6210 = vsel %vm6194, %v6177, %v4907
        %v6211 = vsel %vm6194, %v6178, %v4909
        %v6212 = vsel %vm6194, %v6179, %v4911
        %v6213 = vsel %vm6194, %v6180, %v4913
        %v6214 = vsel %vm6194, %v6181, %v4915
        %v6215 = vsel %vm6194, %v6182, %v4917
        %v6216 = vsel %vm6194, %v6183, %v4919
        %v6217 = vsel %vm6194, %v6184, %v4921
        %v6218 = vsel %vm6194, %v6185, %v4923
        %v6219 = vsel %vm6194, %v6186, %v4925
        %v6220 = vsel %vm6194, %v6187, %v4927
        %v6221 = vsel %vm6194, %v6188, %v4929
        %v6222 = vsel %vm6194, %v6189, %v4931
        %v6223 = vsel %vm6194, %v6190, %v4933
        %v6224 = vsel %vm6194, %v6191, %v4935
        %v6225 = vsel %vm6194, %v6192, %v4937
        %v6226 = vsel %vm6194, %v6193, %v4939
        %vm6227 = vcmask 130048
        %v6228 = vsel %vm6227, %v6195, %v5005
        %v6229 = vsel %vm6227, %v6196, %v5007
        %v6230 = vsel %vm6227, %v6197, %v5009
        %v6231 = vsel %vm6227, %v6198, %v5011
        %v6232 = vsel %vm6227, %v6199, %v5013
        %v6233 = vsel %vm6227, %v6200, %v5015
        %v6234 = vsel %vm6227, %v6201, %v5017
        %v6235 = vsel %vm6227, %v6202, %v5019
        %v6236 = vsel %vm6227, %v6203, %v5021
        %v6237 = vsel %vm6227, %v6204, %v5023
        %v6238 = vsel %vm6227, %v6205, %v5025
        %v6239 = vsel %vm6227, %v6206, %v5027
        %v6240 = vsel %vm6227, %v6207, %v5029
        %v6241 = vsel %vm6227, %v6208, %v5031
        %v6242 = vsel %vm6227, %v6209, %v5033
        %v6243 = vsel %vm6227, %v6210, %v5035
        %v6244 = vsel %vm6227, %v6211, %v5037
        %v6245 = vsel %vm6227, %v6212, %v5039
        %v6246 = vsel %vm6227, %v6213, %v5041
        %v6247 = vsel %vm6227, %v6214, %v5043
        %v6248 = vsel %vm6227, %v6215, %v5045
        %v6249 = vsel %vm6227, %v6216, %v5047
        %v6250 = vsel %vm6227, %v6217, %v5049
        %v6251 = vsel %vm6227, %v6218, %v5051
        %v6252 = vsel %vm6227, %v6219, %v5053
        %v6253 = vsel %vm6227, %v6220, %v5055
        %v6254 = vsel %vm6227, %v6221, %v5057
        %v6255 = vsel %vm6227, %v6222, %v5059
        %v6256 = vsel %vm6227, %v6223, %v5061
        %v6257 = vsel %vm6227, %v6224, %v5063
        %v6258 = vsel %vm6227, %v6225, %v5065
        %v6259 = vsel %vm6227, %v6226, %v5067
        %vm6260 = vcmask 146432
        %v6261 = vsel %vm6260, %v6228, %v5133
        %v6262 = vsel %vm6260, %v6229, %v5135
        %v6263 = vsel %vm6260, %v6230, %v5137
        %v6264 = vsel %vm6260, %v6231, %v5139
        %v6265 = vsel %vm6260, %v6232, %v5141
        %v6266 = vsel %vm6260, %v6233, %v5143
        %v6267 = vsel %vm6260, %v6234, %v5145
        %v6268 = vsel %vm6260, %v6235, %v5147
        %v6269 = vsel %vm6260, %v6236, %v5149
        %v6270 = vsel %vm6260, %v6237, %v5151
        %v6271 = vsel %vm6260, %v6238, %v5153
        %v6272 = vsel %vm6260, %v6239, %v5155
        %v6273 = vsel %vm6260, %v6240, %v5157
        %v6274 = vsel %vm6260, %v6241, %v5159
        %v6275 = vsel %vm6260, %v6242, %v5161
        %v6276 = vsel %vm6260, %v6243, %v5163
        %v6277 = vsel %vm6260, %v6244, %v5165
        %v6278 = vsel %vm6260, %v6245, %v5167
        %v6279 = vsel %vm6260, %v6246, %v5169
        %v6280 = vsel %vm6260, %v6247, %v5171
        %v6281 = vsel %vm6260, %v6248, %v5173
        %v6282 = vsel %vm6260, %v6249, %v5175
        %v6283 = vsel %vm6260, %v6250, %v5177
        %v6284 = vsel %vm6260, %v6251, %v5179
        %v6285 = vsel %vm6260, %v6252, %v5181
        %v6286 = vsel %vm6260, %v6253, %v5183
        %v6287 = vsel %vm6260, %v6254, %v5185
        %v6288 = vsel %vm6260, %v6255, %v5187
        %v6289 = vsel %vm6260, %v6256, %v5189
        %v6290 = vsel %vm6260, %v6257, %v5191
        %v6291 = vsel %vm6260, %v6258, %v5193
        %v6292 = vsel %vm6260, %v6259, %v5195
        %vm6293 = vcmask 162816
        %v6294 = vsel %vm6293, %v6261, %v5261
        %v6295 = vsel %vm6293, %v6262, %v5263
        %v6296 = vsel %vm6293, %v6263, %v5265
        %v6297 = vsel %vm6293, %v6264, %v5267
        %v6298 = vsel %vm6293, %v6265, %v5269
        %v6299 = vsel %vm6293, %v6266, %v5271
        %v6300 = vsel %vm6293, %v6267, %v5273
        %v6301 = vsel %vm6293, %v6268, %v5275
        %v6302 = vsel %vm6293, %v6269, %v5277
        %v6303 = vsel %vm6293, %v6270, %v5279
        %v6304 = vsel %vm6293, %v6271, %v5281
        %v6305 = vsel %vm6293, %v6272, %v5283
        %v6306 = vsel %vm6293, %v6273, %v5285
        %v6307 = vsel %vm6293, %v6274, %v5287
        %v6308 = vsel %vm6293, %v6275, %v5289
        %v6309 = vsel %vm6293, %v6276, %v5291
        %v6310 = vsel %vm6293, %v6277, %v5293
        %v6311 = vsel %vm6293, %v6278, %v5295
        %v6312 = vsel %vm6293, %v6279, %v5297
        %v6313 = vsel %vm6293, %v6280, %v5299
        %v6314 = vsel %vm6293, %v6281, %v5301
        %v6315 = vsel %vm6293, %v6282, %v5303
        %v6316 = vsel %vm6293, %v6283, %v5305
        %v6317 = vsel %vm6293, %v6284, %v5307
        %v6318 = vsel %vm6293, %v6285, %v5309
        %v6319 = vsel %vm6293, %v6286, %v5311
        %v6320 = vsel %vm6293, %v6287, %v5313
        %v6321 = vsel %vm6293, %v6288, %v5315
        %v6322 = vsel %vm6293, %v6289, %v5317
        %v6323 = vsel %vm6293, %v6290, %v5319
        %v6324 = vsel %vm6293, %v6291, %v5321
        %v6325 = vsel %vm6293, %v6292, %v5323
        %vm6326 = vcmask 179200
        %v6327 = vsel %vm6326, %v6294, %v5389
        %v6328 = vsel %vm6326, %v6295, %v5391
        %v6329 = vsel %vm6326, %v6296, %v5393
        %v6330 = vsel %vm6326, %v6297, %v5395
        %v6331 = vsel %vm6326, %v6298, %v5397
        %v6332 = vsel %vm6326, %v6299, %v5399
        %v6333 = vsel %vm6326, %v6300, %v5401
        %v6334 = vsel %vm6326, %v6301, %v5403
        %v6335 = vsel %vm6326, %v6302, %v5405
        %v6336 = vsel %vm6326, %v6303, %v5407
        %v6337 = vsel %vm6326, %v6304, %v5409
        %v6338 = vsel %vm6326, %v6305, %v5411
        %v6339 = vsel %vm6326, %v6306, %v5413
        %v6340 = vsel %vm6326, %v6307, %v5415
        %v6341 = vsel %vm6326, %v6308, %v5417
        %v6342 = vsel %vm6326, %v6309, %v5419
        %v6343 = vsel %vm6326, %v6310, %v5421
        %v6344 = vsel %vm6326, %v6311, %v5423
        %v6345 = vsel %vm6326, %v6312, %v5425
        %v6346 = vsel %vm6326, %v6313, %v5427
        %v6347 = vsel %vm6326, %v6314, %v5429
        %v6348 = vsel %vm6326, %v6315, %v5431
        %v6349 = vsel %vm6326, %v6316, %v5433
        %v6350 = vsel %vm6326, %v6317, %v5435
        %v6351 = vsel %vm6326, %v6318, %v5437
        %v6352 = vsel %vm6326, %v6319, %v5439
        %v6353 = vsel %vm6326, %v6320, %v5441
        %v6354 = vsel %vm6326, %v6321, %v5443
        %v6355 = vsel %vm6326, %v6322, %v5445
        %v6356 = vsel %vm6326, %v6323, %v5447
        %v6357 = vsel %vm6326, %v6324, %v5449
        %v6358 = vsel %vm6326, %v6325, %v5451
        %vm6359 = vcmask 195584
        %v6360 = vsel %vm6359, %v6327, %v5517
        %v6361 = vsel %vm6359, %v6328, %v5519
        %v6362 = vsel %vm6359, %v6329, %v5521
        %v6363 = vsel %vm6359, %v6330, %v5523
        %v6364 = vsel %vm6359, %v6331, %v5525
        %v6365 = vsel %vm6359, %v6332, %v5527
        %v6366 = vsel %vm6359, %v6333, %v5529
        %v6367 = vsel %vm6359, %v6334, %v5531
        %v6368 = vsel %vm6359, %v6335, %v5533
        %v6369 = vsel %vm6359, %v6336, %v5535
        %v6370 = vsel %vm6359, %v6337, %v5537
        %v6371 = vsel %vm6359, %v6338, %v5539
        %v6372 = vsel %vm6359, %v6339, %v5541
        %v6373 = vsel %vm6359, %v6340, %v5543
        %v6374 = vsel %vm6359, %v6341, %v5545
        %v6375 = vsel %vm6359, %v6342, %v5547
        %v6376 = vsel %vm6359, %v6343, %v5549
        %v6377 = vsel %vm6359, %v6344, %v5551
        %v6378 = vsel %vm6359, %v6345, %v5553
        %v6379 = vsel %vm6359, %v6346, %v5555
        %v6380 = vsel %vm6359, %v6347, %v5557
        %v6381 = vsel %vm6359, %v6348, %v5559
        %v6382 = vsel %vm6359, %v6349, %v5561
        %v6383 = vsel %vm6359, %v6350, %v5563
        %v6384 = vsel %vm6359, %v6351, %v5565
        %v6385 = vsel %vm6359, %v6352, %v5567
        %v6386 = vsel %vm6359, %v6353, %v5569
        %v6387 = vsel %vm6359, %v6354, %v5571
        %v6388 = vsel %vm6359, %v6355, %v5573
        %v6389 = vsel %vm6359, %v6356, %v5575
        %v6390 = vsel %vm6359, %v6357, %v5577
        %v6391 = vsel %vm6359, %v6358, %v5579
        %vm6392 = vcmask 211968
        %v6393 = vsel %vm6392, %v6360, %v5645
        %v6394 = vsel %vm6392, %v6361, %v5647
        %v6395 = vsel %vm6392, %v6362, %v5649
        %v6396 = vsel %vm6392, %v6363, %v5651
        %v6397 = vsel %vm6392, %v6364, %v5653
        %v6398 = vsel %vm6392, %v6365, %v5655
        %v6399 = vsel %vm6392, %v6366, %v5657
        %v6400 = vsel %vm6392, %v6367, %v5659
        %v6401 = vsel %vm6392, %v6368, %v5661
        %v6402 = vsel %vm6392, %v6369, %v5663
        %v6403 = vsel %vm6392, %v6370, %v5665
        %v6404 = vsel %vm6392, %v6371, %v5667
        %v6405 = vsel %vm6392, %v6372, %v5669
        %v6406 = vsel %vm6392, %v6373, %v5671
        %v6407 = vsel %vm6392, %v6374, %v5673
        %v6408 = vsel %vm6392, %v6375, %v5675
        %v6409 = vsel %vm6392, %v6376, %v5677
        %v6410 = vsel %vm6392, %v6377, %v5679
        %v6411 = vsel %vm6392, %v6378, %v5681
        %v6412 = vsel %vm6392, %v6379, %v5683
        %v6413 = vsel %vm6392, %v6380, %v5685
        %v6414 = vsel %vm6392, %v6381, %v5687
        %v6415 = vsel %vm6392, %v6382, %v5689
        %v6416 = vsel %vm6392, %v6383, %v5691
        %v6417 = vsel %vm6392, %v6384, %v5693
        %v6418 = vsel %vm6392, %v6385, %v5695
        %v6419 = vsel %vm6392, %v6386, %v5697
        %v6420 = vsel %vm6392, %v6387, %v5699
        %v6421 = vsel %vm6392, %v6388, %v5701
        %v6422 = vsel %vm6392, %v6389, %v5703
        %v6423 = vsel %vm6392, %v6390, %v5705
        %v6424 = vsel %vm6392, %v6391, %v5707
        %vm6425 = vcmask 228352
        %v6426 = vsel %vm6425, %v6393, %v5773
        %v6427 = vsel %vm6425, %v6394, %v5775
        %v6428 = vsel %vm6425, %v6395, %v5777
        %v6429 = vsel %vm6425, %v6396, %v5779
        %v6430 = vsel %vm6425, %v6397, %v5781
        %v6431 = vsel %vm6425, %v6398, %v5783
        %v6432 = vsel %vm6425, %v6399, %v5785
        %v6433 = vsel %vm6425, %v6400, %v5787
        %v6434 = vsel %vm6425, %v6401, %v5789
        %v6435 = vsel %vm6425, %v6402, %v5791
        %v6436 = vsel %vm6425, %v6403, %v5793
        %v6437 = vsel %vm6425, %v6404, %v5795
        %v6438 = vsel %vm6425, %v6405, %v5797
        %v6439 = vsel %vm6425, %v6406, %v5799
        %v6440 = vsel %vm6425, %v6407, %v5801
        %v6441 = vsel %vm6425, %v6408, %v5803
        %v6442 = vsel %vm6425, %v6409, %v5805
        %v6443 = vsel %vm6425, %v6410, %v5807
        %v6444 = vsel %vm6425, %v6411, %v5809
        %v6445 = vsel %vm6425, %v6412, %v5811
        %v6446 = vsel %vm6425, %v6413, %v5813
        %v6447 = vsel %vm6425, %v6414, %v5815
        %v6448 = vsel %vm6425, %v6415, %v5817
        %v6449 = vsel %vm6425, %v6416, %v5819
        %v6450 = vsel %vm6425, %v6417, %v5821
        %v6451 = vsel %vm6425, %v6418, %v5823
        %v6452 = vsel %vm6425, %v6419, %v5825
        %v6453 = vsel %vm6425, %v6420, %v5827
        %v6454 = vsel %vm6425, %v6421, %v5829
        %v6455 = vsel %vm6425, %v6422, %v5831
        %v6456 = vsel %vm6425, %v6423, %v5833
        %v6457 = vsel %vm6425, %v6424, %v5835
        %vm6458 = vcmask 244736
        %v6459 = vsel %vm6458, %v6426, %v5901
        %v6460 = vsel %vm6458, %v6427, %v5903
        %v6461 = vsel %vm6458, %v6428, %v5905
        %v6462 = vsel %vm6458, %v6429, %v5907
        %v6463 = vsel %vm6458, %v6430, %v5909
        %v6464 = vsel %vm6458, %v6431, %v5911
        %v6465 = vsel %vm6458, %v6432, %v5913
        %v6466 = vsel %vm6458, %v6433, %v5915
        %v6467 = vsel %vm6458, %v6434, %v5917
        %v6468 = vsel %vm6458, %v6435, %v5919
        %v6469 = vsel %vm6458, %v6436, %v5921
        %v6470 = vsel %vm6458, %v6437, %v5923
        %v6471 = vsel %vm6458, %v6438, %v5925
        %v6472 = vsel %vm6458, %v6439, %v5927
        %v6473 = vsel %vm6458, %v6440, %v5929
        %v6474 = vsel %vm6458, %v6441, %v5931
        %v6475 = vsel %vm6458, %v6442, %v5933
        %v6476 = vsel %vm6458, %v6443, %v5935
        %v6477 = vsel %vm6458, %v6444, %v5937
        %v6478 = vsel %vm6458, %v6445, %v5939
        %v6479 = vsel %vm6458, %v6446, %v5941
        %v6480 = vsel %vm6458, %v6447, %v5943
        %v6481 = vsel %vm6458, %v6448, %v5945
        %v6482 = vsel %vm6458, %v6449, %v5947
        %v6483 = vsel %vm6458, %v6450, %v5949
        %v6484 = vsel %vm6458, %v6451, %v5951
        %v6485 = vsel %vm6458, %v6452, %v5953
        %v6486 = vsel %vm6458, %v6453, %v5955
        %v6487 = vsel %vm6458, %v6454, %v5957
        %v6488 = vsel %vm6458, %v6455, %v5959
        %v6489 = vsel %vm6458, %v6456, %v5961
        %v6490 = vsel %vm6458, %v6457, %v5963
        %vm6491 = vcmask 253952
        %6492 = vst.msk [vmem:[%s152] sm:$0x1] %vm6491, %v6459
        %6493 = vst.msk [vmem:[%s152 + $0x2] sm:$0x1] %vm6491, %v6460
        %6494 = vst.msk [vmem:[%s152 + $0x4] sm:$0x1] %vm6491, %v6461
        %6495 = vst.msk [vmem:[%s152 + $0x6] sm:$0x1] %vm6491, %v6462
        %6496 = vst.msk [vmem:[%s152 + $0x8] sm:$0x1] %vm6491, %v6463
        %6497 = vst.msk [vmem:[%s152 + $0xa] sm:$0x1] %vm6491, %v6464
        %6498 = vst.msk [vmem:[%s152 + $0xc] sm:$0x1] %vm6491, %v6465
        %6499 = vst.msk [vmem:[%s152 + $0xe] sm:$0x1] %vm6491, %v6466
        %6500 = vst.msk [vmem:[%s152 + $0x10] sm:$0x1] %vm6491, %v6467
        %6501 = vst.msk [vmem:[%s152 + $0x12] sm:$0x1] %vm6491, %v6468
        %6502 = vst.msk [vmem:[%s152 + $0x14] sm:$0x1] %vm6491, %v6469
        %6503 = vst.msk [vmem:[%s152 + $0x16] sm:$0x1] %vm6491, %v6470
        %6504 = vst.msk [vmem:[%s152 + $0x18] sm:$0x1] %vm6491, %v6471
        %6505 = vst.msk [vmem:[%s152 + $0x1a] sm:$0x1] %vm6491, %v6472
        %6506 = vst.msk [vmem:[%s152 + $0x1c] sm:$0x1] %vm6491, %v6473
        %6507 = vst.msk [vmem:[%s152 + $0x1e] sm:$0x1] %vm6491, %v6474
        %6508 = vst.msk [vmem:[%s152 + $0x20] sm:$0x1] %vm6491, %v6475
        %6509 = vst.msk [vmem:[%s152 + $0x22] sm:$0x1] %vm6491, %v6476
        %6510 = vst.msk [vmem:[%s152 + $0x24] sm:$0x1] %vm6491, %v6477
        %6511 = vst.msk [vmem:[%s152 + $0x26] sm:$0x1] %vm6491, %v6478
        %6512 = vst.msk [vmem:[%s152 + $0x28] sm:$0x1] %vm6491, %v6479
        %6513 = vst.msk [vmem:[%s152 + $0x2a] sm:$0x1] %vm6491, %v6480
        %6514 = vst.msk [vmem:[%s152 + $0x2c] sm:$0x1] %vm6491, %v6481
        %6515 = vst.msk [vmem:[%s152 + $0x2e] sm:$0x1] %vm6491, %v6482
        %6516 = vst.msk [vmem:[%s152 + $0x30] sm:$0x1] %vm6491, %v6483
        %6517 = vst.msk [vmem:[%s152 + $0x32] sm:$0x1] %vm6491, %v6484
        %6518 = vst.msk [vmem:[%s152 + $0x34] sm:$0x1] %vm6491, %v6485
        %6519 = vst.msk [vmem:[%s152 + $0x36] sm:$0x1] %vm6491, %v6486
        %6520 = vst.msk [vmem:[%s152 + $0x38] sm:$0x1] %vm6491, %v6487
        %6521 = vst.msk [vmem:[%s152 + $0x3a] sm:$0x1] %vm6491, %v6488
        %6522 = vst.msk [vmem:[%s152 + $0x3c] sm:$0x1] %vm6491, %v6489
        %6523 = vst.msk [vmem:[%s152 + $0x3e] sm:$0x1] %vm6491, %v6490
        %v6524 = vlaneseq
        %v6525 = vshrl.u32 %v6524, 7
        %v6526 = vsub.s32 0, %v6525
        %v6527 = vrot.slane %v163, %v6526
        %6529 = vbcast.lane.b32.xlu0 %v6527, 256
        %v6530 = vpop.permute.xlu0 %6529
        %s6532 = sor.u32 256, 8
        %6533 = vbcast.lane.b32.xlu0 %v6527, %s6532
        %v6534 = vpop.permute.xlu0 %6533
        %v6535 = vlaneseq
        %v6536 = vshrl.u32 %v6535, 7
        %v6537 = vsub.s32 1, %v6536
        %v6538 = vrot.slane %v163, %v6537
        %6540 = vbcast.lane.b32.xlu0 %v6538, 256
        %v6541 = vpop.permute.xlu0 %6540
        %s6543 = sor.u32 256, 8
        %6544 = vbcast.lane.b32.xlu0 %v6538, %s6543
        %v6545 = vpop.permute.xlu0 %6544
        %v6546 = vlaneseq
        %v6547 = vshrl.u32 %v6546, 7
        %v6548 = vsub.s32 2, %v6547
        %v6549 = vrot.slane %v163, %v6548
        %6551 = vbcast.lane.b32.xlu0 %v6549, 256
        %v6552 = vpop.permute.xlu0 %6551
        %s6554 = sor.u32 256, 8
        %6555 = vbcast.lane.b32.xlu0 %v6549, %s6554
        %v6556 = vpop.permute.xlu0 %6555
        %v6557 = vlaneseq
        %v6558 = vshrl.u32 %v6557, 7
        %v6559 = vsub.s32 3, %v6558
        %v6560 = vrot.slane %v163, %v6559
        %6562 = vbcast.lane.b32.xlu0 %v6560, 256
        %v6563 = vpop.permute.xlu0 %6562
        %s6565 = sor.u32 256, 8
        %6566 = vbcast.lane.b32.xlu0 %v6560, %s6565
        %v6567 = vpop.permute.xlu0 %6566
        %v6568 = vlaneseq
        %v6569 = vshrl.u32 %v6568, 7
        %v6570 = vsub.s32 4, %v6569
        %v6571 = vrot.slane %v163, %v6570
        %6573 = vbcast.lane.b32.xlu0 %v6571, 256
        %v6574 = vpop.permute.xlu0 %6573
        %s6576 = sor.u32 256, 8
        %6577 = vbcast.lane.b32.xlu0 %v6571, %s6576
        %v6578 = vpop.permute.xlu0 %6577
        %v6579 = vlaneseq
        %v6580 = vshrl.u32 %v6579, 7
        %v6581 = vsub.s32 5, %v6580
        %v6582 = vrot.slane %v163, %v6581
        %6584 = vbcast.lane.b32.xlu0 %v6582, 256
        %v6585 = vpop.permute.xlu0 %6584
        %s6587 = sor.u32 256, 8
        %6588 = vbcast.lane.b32.xlu0 %v6582, %s6587
        %v6589 = vpop.permute.xlu0 %6588
        %v6590 = vlaneseq
        %v6591 = vshrl.u32 %v6590, 7
        %v6592 = vsub.s32 6, %v6591
        %v6593 = vrot.slane %v163, %v6592
        %6595 = vbcast.lane.b32.xlu0 %v6593, 256
        %v6596 = vpop.permute.xlu0 %6595
        %s6598 = sor.u32 256, 8
        %6599 = vbcast.lane.b32.xlu0 %v6593, %s6598
        %v6600 = vpop.permute.xlu0 %6599
        %v6601 = vlaneseq
        %v6602 = vshrl.u32 %v6601, 7
        %v6603 = vsub.s32 7, %v6602
        %v6604 = vrot.slane %v163, %v6603
        %6606 = vbcast.lane.b32.xlu0 %v6604, 256
        %v6607 = vpop.permute.xlu0 %6606
        %s6609 = sor.u32 256, 8
        %6610 = vbcast.lane.b32.xlu0 %v6604, %s6609
        %v6611 = vpop.permute.xlu0 %6610
        %v6612 = vlaneseq
        %v6613 = vshrl.u32 %v6612, 7
        %v6614 = vsub.s32 0, %v6613
        %v6615 = vrot.slane %v164, %v6614
        %6617 = vbcast.lane.b32.xlu0 %v6615, 256
        %v6618 = vpop.permute.xlu0 %6617
        %s6620 = sor.u32 256, 8
        %6621 = vbcast.lane.b32.xlu0 %v6615, %s6620
        %v6622 = vpop.permute.xlu0 %6621
        %v6623 = vlaneseq
        %v6624 = vshrl.u32 %v6623, 7
        %v6625 = vsub.s32 1, %v6624
        %v6626 = vrot.slane %v164, %v6625
        %6628 = vbcast.lane.b32.xlu0 %v6626, 256
        %v6629 = vpop.permute.xlu0 %6628
        %s6631 = sor.u32 256, 8
        %6632 = vbcast.lane.b32.xlu0 %v6626, %s6631
        %v6633 = vpop.permute.xlu0 %6632
        %v6634 = vlaneseq
        %v6635 = vshrl.u32 %v6634, 7
        %v6636 = vsub.s32 2, %v6635
        %v6637 = vrot.slane %v164, %v6636
        %6639 = vbcast.lane.b32.xlu0 %v6637, 256
        %v6640 = vpop.permute.xlu0 %6639
        %s6642 = sor.u32 256, 8
        %6643 = vbcast.lane.b32.xlu0 %v6637, %s6642
        %v6644 = vpop.permute.xlu0 %6643
        %v6645 = vlaneseq
        %v6646 = vshrl.u32 %v6645, 7
        %v6647 = vsub.s32 3, %v6646
        %v6648 = vrot.slane %v164, %v6647
        %6650 = vbcast.lane.b32.xlu0 %v6648, 256
        %v6651 = vpop.permute.xlu0 %6650
        %s6653 = sor.u32 256, 8
        %6654 = vbcast.lane.b32.xlu0 %v6648, %s6653
        %v6655 = vpop.permute.xlu0 %6654
        %v6656 = vlaneseq
        %v6657 = vshrl.u32 %v6656, 7
        %v6658 = vsub.s32 4, %v6657
        %v6659 = vrot.slane %v164, %v6658
        %6661 = vbcast.lane.b32.xlu0 %v6659, 256
        %v6662 = vpop.permute.xlu0 %6661
        %s6664 = sor.u32 256, 8
        %6665 = vbcast.lane.b32.xlu0 %v6659, %s6664
        %v6666 = vpop.permute.xlu0 %6665
        %v6667 = vlaneseq
        %v6668 = vshrl.u32 %v6667, 7
        %v6669 = vsub.s32 5, %v6668
        %v6670 = vrot.slane %v164, %v6669
        %6672 = vbcast.lane.b32.xlu0 %v6670, 256
        %v6673 = vpop.permute.xlu0 %6672
        %s6675 = sor.u32 256, 8
        %6676 = vbcast.lane.b32.xlu0 %v6670, %s6675
        %v6677 = vpop.permute.xlu0 %6676
        %v6678 = vlaneseq
        %v6679 = vshrl.u32 %v6678, 7
        %v6680 = vsub.s32 6, %v6679
        %v6681 = vrot.slane %v164, %v6680
        %6683 = vbcast.lane.b32.xlu0 %v6681, 256
        %v6684 = vpop.permute.xlu0 %6683
        %s6686 = sor.u32 256, 8
        %6687 = vbcast.lane.b32.xlu0 %v6681, %s6686
        %v6688 = vpop.permute.xlu0 %6687
        %v6689 = vlaneseq
        %v6690 = vshrl.u32 %v6689, 7
        %v6691 = vsub.s32 7, %v6690
        %v6692 = vrot.slane %v164, %v6691
        %6694 = vbcast.lane.b32.xlu0 %v6692, 256
        %v6695 = vpop.permute.xlu0 %6694
        %s6697 = sor.u32 256, 8
        %6698 = vbcast.lane.b32.xlu0 %v6692, %s6697
        %v6699 = vpop.permute.xlu0 %6698
        %v6700 = vlaneseq
        %v6701 = vshrl.u32 %v6700, 7
        %v6702 = vsub.s32 0, %v6701
        %v6703 = vrot.slane %v165, %v6702
        %6705 = vbcast.lane.b32.xlu0 %v6703, 256
        %v6706 = vpop.permute.xlu0 %6705
        %s6708 = sor.u32 256, 8
        %6709 = vbcast.lane.b32.xlu0 %v6703, %s6708
        %v6710 = vpop.permute.xlu0 %6709
        %v6711 = vlaneseq
        %v6712 = vshrl.u32 %v6711, 7
        %v6713 = vsub.s32 1, %v6712
        %v6714 = vrot.slane %v165, %v6713
        %6716 = vbcast.lane.b32.xlu0 %v6714, 256
        %v6717 = vpop.permute.xlu0 %6716
        %s6719 = sor.u32 256, 8
        %6720 = vbcast.lane.b32.xlu0 %v6714, %s6719
        %v6721 = vpop.permute.xlu0 %6720
        %v6722 = vlaneseq
        %v6723 = vshrl.u32 %v6722, 7
        %v6724 = vsub.s32 2, %v6723
        %v6725 = vrot.slane %v165, %v6724
        %6727 = vbcast.lane.b32.xlu0 %v6725, 256
        %v6728 = vpop.permute.xlu0 %6727
        %s6730 = sor.u32 256, 8
        %6731 = vbcast.lane.b32.xlu0 %v6725, %s6730
        %v6732 = vpop.permute.xlu0 %6731
        %v6733 = vlaneseq
        %v6734 = vshrl.u32 %v6733, 7
        %v6735 = vsub.s32 3, %v6734
        %v6736 = vrot.slane %v165, %v6735
        %6738 = vbcast.lane.b32.xlu0 %v6736, 256
        %v6739 = vpop.permute.xlu0 %6738
        %s6741 = sor.u32 256, 8
        %6742 = vbcast.lane.b32.xlu0 %v6736, %s6741
        %v6743 = vpop.permute.xlu0 %6742
        %v6744 = vlaneseq
        %v6745 = vshrl.u32 %v6744, 7
        %v6746 = vsub.s32 4, %v6745
        %v6747 = vrot.slane %v165, %v6746
        %6749 = vbcast.lane.b32.xlu0 %v6747, 256
        %v6750 = vpop.permute.xlu0 %6749
        %s6752 = sor.u32 256, 8
        %6753 = vbcast.lane.b32.xlu0 %v6747, %s6752
        %v6754 = vpop.permute.xlu0 %6753
        %v6755 = vlaneseq
        %v6756 = vshrl.u32 %v6755, 7
        %v6757 = vsub.s32 5, %v6756
        %v6758 = vrot.slane %v165, %v6757
        %6760 = vbcast.lane.b32.xlu0 %v6758, 256
        %v6761 = vpop.permute.xlu0 %6760
        %s6763 = sor.u32 256, 8
        %6764 = vbcast.lane.b32.xlu0 %v6758, %s6763
        %v6765 = vpop.permute.xlu0 %6764
        %v6766 = vlaneseq
        %v6767 = vshrl.u32 %v6766, 7
        %v6768 = vsub.s32 6, %v6767
        %v6769 = vrot.slane %v165, %v6768
        %6771 = vbcast.lane.b32.xlu0 %v6769, 256
        %v6772 = vpop.permute.xlu0 %6771
        %s6774 = sor.u32 256, 8
        %6775 = vbcast.lane.b32.xlu0 %v6769, %s6774
        %v6776 = vpop.permute.xlu0 %6775
        %v6777 = vlaneseq
        %v6778 = vshrl.u32 %v6777, 7
        %v6779 = vsub.s32 7, %v6778
        %v6780 = vrot.slane %v165, %v6779
        %6782 = vbcast.lane.b32.xlu0 %v6780, 256
        %v6783 = vpop.permute.xlu0 %6782
        %s6785 = sor.u32 256, 8
        %6786 = vbcast.lane.b32.xlu0 %v6780, %s6785
        %v6787 = vpop.permute.xlu0 %6786
        %v6788 = vlaneseq
        %v6789 = vshrl.u32 %v6788, 7
        %v6790 = vsub.s32 0, %v6789
        %v6791 = vrot.slane %v166, %v6790
        %6793 = vbcast.lane.b32.xlu0 %v6791, 256
        %v6794 = vpop.permute.xlu0 %6793
        %s6796 = sor.u32 256, 8
        %6797 = vbcast.lane.b32.xlu0 %v6791, %s6796
        %v6798 = vpop.permute.xlu0 %6797
        %v6799 = vlaneseq
        %v6800 = vshrl.u32 %v6799, 7
        %v6801 = vsub.s32 1, %v6800
        %v6802 = vrot.slane %v166, %v6801
        %6804 = vbcast.lane.b32.xlu0 %v6802, 256
        %v6805 = vpop.permute.xlu0 %6804
        %s6807 = sor.u32 256, 8
        %6808 = vbcast.lane.b32.xlu0 %v6802, %s6807
        %v6809 = vpop.permute.xlu0 %6808
        %v6810 = vlaneseq
        %v6811 = vshrl.u32 %v6810, 7
        %v6812 = vsub.s32 2, %v6811
        %v6813 = vrot.slane %v166, %v6812
        %6815 = vbcast.lane.b32.xlu0 %v6813, 256
        %v6816 = vpop.permute.xlu0 %6815
        %s6818 = sor.u32 256, 8
        %6819 = vbcast.lane.b32.xlu0 %v6813, %s6818
        %v6820 = vpop.permute.xlu0 %6819
        %v6821 = vlaneseq
        %v6822 = vshrl.u32 %v6821, 7
        %v6823 = vsub.s32 3, %v6822
        %v6824 = vrot.slane %v166, %v6823
        %6826 = vbcast.lane.b32.xlu0 %v6824, 256
        %v6827 = vpop.permute.xlu0 %6826
        %s6829 = sor.u32 256, 8
        %6830 = vbcast.lane.b32.xlu0 %v6824, %s6829
        %v6831 = vpop.permute.xlu0 %6830
        %v6832 = vlaneseq
        %v6833 = vshrl.u32 %v6832, 7
        %v6834 = vsub.s32 4, %v6833
        %v6835 = vrot.slane %v166, %v6834
        %6837 = vbcast.lane.b32.xlu0 %v6835, 256
        %v6838 = vpop.permute.xlu0 %6837
        %s6840 = sor.u32 256, 8
        %6841 = vbcast.lane.b32.xlu0 %v6835, %s6840
        %v6842 = vpop.permute.xlu0 %6841
        %v6843 = vlaneseq
        %v6844 = vshrl.u32 %v6843, 7
        %v6845 = vsub.s32 5, %v6844
        %v6846 = vrot.slane %v166, %v6845
        %6848 = vbcast.lane.b32.xlu0 %v6846, 256
        %v6849 = vpop.permute.xlu0 %6848
        %s6851 = sor.u32 256, 8
        %6852 = vbcast.lane.b32.xlu0 %v6846, %s6851
        %v6853 = vpop.permute.xlu0 %6852
        %v6854 = vlaneseq
        %v6855 = vshrl.u32 %v6854, 7
        %v6856 = vsub.s32 6, %v6855
        %v6857 = vrot.slane %v166, %v6856
        %6859 = vbcast.lane.b32.xlu0 %v6857, 256
        %v6860 = vpop.permute.xlu0 %6859
        %s6862 = sor.u32 256, 8
        %6863 = vbcast.lane.b32.xlu0 %v6857, %s6862
        %v6864 = vpop.permute.xlu0 %6863
        %v6865 = vlaneseq
        %v6866 = vshrl.u32 %v6865, 7
        %v6867 = vsub.s32 7, %v6866
        %v6868 = vrot.slane %v166, %v6867
        %6870 = vbcast.lane.b32.xlu0 %v6868, 256
        %v6871 = vpop.permute.xlu0 %6870
        %s6873 = sor.u32 256, 8
        %6874 = vbcast.lane.b32.xlu0 %v6868, %s6873
        %v6875 = vpop.permute.xlu0 %6874
        %v6876 = vlaneseq
        %v6877 = vshrl.u32 %v6876, 7
        %v6878 = vsub.s32 0, %v6877
        %v6879 = vrot.slane %v167, %v6878
        %6881 = vbcast.lane.b32.xlu0 %v6879, 256
        %v6882 = vpop.permute.xlu0 %6881
        %s6884 = sor.u32 256, 8
        %6885 = vbcast.lane.b32.xlu0 %v6879, %s6884
        %v6886 = vpop.permute.xlu0 %6885
        %v6887 = vlaneseq
        %v6888 = vshrl.u32 %v6887, 7
        %v6889 = vsub.s32 1, %v6888
        %v6890 = vrot.slane %v167, %v6889
        %6892 = vbcast.lane.b32.xlu0 %v6890, 256
        %v6893 = vpop.permute.xlu0 %6892
        %s6895 = sor.u32 256, 8
        %6896 = vbcast.lane.b32.xlu0 %v6890, %s6895
        %v6897 = vpop.permute.xlu0 %6896
        %v6898 = vlaneseq
        %v6899 = vshrl.u32 %v6898, 7
        %v6900 = vsub.s32 2, %v6899
        %v6901 = vrot.slane %v167, %v6900
        %6903 = vbcast.lane.b32.xlu0 %v6901, 256
        %v6904 = vpop.permute.xlu0 %6903
        %s6906 = sor.u32 256, 8
        %6907 = vbcast.lane.b32.xlu0 %v6901, %s6906
        %v6908 = vpop.permute.xlu0 %6907
        %v6909 = vlaneseq
        %v6910 = vshrl.u32 %v6909, 7
        %v6911 = vsub.s32 3, %v6910
        %v6912 = vrot.slane %v167, %v6911
        %6914 = vbcast.lane.b32.xlu0 %v6912, 256
        %v6915 = vpop.permute.xlu0 %6914
        %s6917 = sor.u32 256, 8
        %6918 = vbcast.lane.b32.xlu0 %v6912, %s6917
        %v6919 = vpop.permute.xlu0 %6918
        %v6920 = vlaneseq
        %v6921 = vshrl.u32 %v6920, 7
        %v6922 = vsub.s32 4, %v6921
        %v6923 = vrot.slane %v167, %v6922
        %6925 = vbcast.lane.b32.xlu0 %v6923, 256
        %v6926 = vpop.permute.xlu0 %6925
        %s6928 = sor.u32 256, 8
        %6929 = vbcast.lane.b32.xlu0 %v6923, %s6928
        %v6930 = vpop.permute.xlu0 %6929
        %v6931 = vlaneseq
        %v6932 = vshrl.u32 %v6931, 7
        %v6933 = vsub.s32 5, %v6932
        %v6934 = vrot.slane %v167, %v6933
        %6936 = vbcast.lane.b32.xlu0 %v6934, 256
        %v6937 = vpop.permute.xlu0 %6936
        %s6939 = sor.u32 256, 8
        %6940 = vbcast.lane.b32.xlu0 %v6934, %s6939
        %v6941 = vpop.permute.xlu0 %6940
        %v6942 = vlaneseq
        %v6943 = vshrl.u32 %v6942, 7
        %v6944 = vsub.s32 6, %v6943
        %v6945 = vrot.slane %v167, %v6944
        %6947 = vbcast.lane.b32.xlu0 %v6945, 256
        %v6948 = vpop.permute.xlu0 %6947
        %s6950 = sor.u32 256, 8
        %6951 = vbcast.lane.b32.xlu0 %v6945, %s6950
        %v6952 = vpop.permute.xlu0 %6951
        %v6953 = vlaneseq
        %v6954 = vshrl.u32 %v6953, 7
        %v6955 = vsub.s32 7, %v6954
        %v6956 = vrot.slane %v167, %v6955
        %6958 = vbcast.lane.b32.xlu0 %v6956, 256
        %v6959 = vpop.permute.xlu0 %6958
        %s6961 = sor.u32 256, 8
        %6962 = vbcast.lane.b32.xlu0 %v6956, %s6961
        %v6963 = vpop.permute.xlu0 %6962
        %v6964 = vlaneseq
        %v6965 = vshrl.u32 %v6964, 7
        %v6966 = vsub.s32 0, %v6965
        %v6967 = vrot.slane %v168, %v6966
        %6969 = vbcast.lane.b32.xlu0 %v6967, 256
        %v6970 = vpop.permute.xlu0 %6969
        %s6972 = sor.u32 256, 8
        %6973 = vbcast.lane.b32.xlu0 %v6967, %s6972
        %v6974 = vpop.permute.xlu0 %6973
        %v6975 = vlaneseq
        %v6976 = vshrl.u32 %v6975, 7
        %v6977 = vsub.s32 1, %v6976
        %v6978 = vrot.slane %v168, %v6977
        %6980 = vbcast.lane.b32.xlu0 %v6978, 256
        %v6981 = vpop.permute.xlu0 %6980
        %s6983 = sor.u32 256, 8
        %6984 = vbcast.lane.b32.xlu0 %v6978, %s6983
        %v6985 = vpop.permute.xlu0 %6984
        %v6986 = vlaneseq
        %v6987 = vshrl.u32 %v6986, 7
        %v6988 = vsub.s32 2, %v6987
        %v6989 = vrot.slane %v168, %v6988
        %6991 = vbcast.lane.b32.xlu0 %v6989, 256
        %v6992 = vpop.permute.xlu0 %6991
        %s6994 = sor.u32 256, 8
        %6995 = vbcast.lane.b32.xlu0 %v6989, %s6994
        %v6996 = vpop.permute.xlu0 %6995
        %v6997 = vlaneseq
        %v6998 = vshrl.u32 %v6997, 7
        %v6999 = vsub.s32 3, %v6998
        %v7000 = vrot.slane %v168, %v6999
        %7002 = vbcast.lane.b32.xlu0 %v7000, 256
        %v7003 = vpop.permute.xlu0 %7002
        %s7005 = sor.u32 256, 8
        %7006 = vbcast.lane.b32.xlu0 %v7000, %s7005
        %v7007 = vpop.permute.xlu0 %7006
        %v7008 = vlaneseq
        %v7009 = vshrl.u32 %v7008, 7
        %v7010 = vsub.s32 4, %v7009
        %v7011 = vrot.slane %v168, %v7010
        %7013 = vbcast.lane.b32.xlu0 %v7011, 256
        %v7014 = vpop.permute.xlu0 %7013
        %s7016 = sor.u32 256, 8
        %7017 = vbcast.lane.b32.xlu0 %v7011, %s7016
        %v7018 = vpop.permute.xlu0 %7017
        %v7019 = vlaneseq
        %v7020 = vshrl.u32 %v7019, 7
        %v7021 = vsub.s32 5, %v7020
        %v7022 = vrot.slane %v168, %v7021
        %7024 = vbcast.lane.b32.xlu0 %v7022, 256
        %v7025 = vpop.permute.xlu0 %7024
        %s7027 = sor.u32 256, 8
        %7028 = vbcast.lane.b32.xlu0 %v7022, %s7027
        %v7029 = vpop.permute.xlu0 %7028
        %v7030 = vlaneseq
        %v7031 = vshrl.u32 %v7030, 7
        %v7032 = vsub.s32 6, %v7031
        %v7033 = vrot.slane %v168, %v7032
        %7035 = vbcast.lane.b32.xlu0 %v7033, 256
        %v7036 = vpop.permute.xlu0 %7035
        %s7038 = sor.u32 256, 8
        %7039 = vbcast.lane.b32.xlu0 %v7033, %s7038
        %v7040 = vpop.permute.xlu0 %7039
        %v7041 = vlaneseq
        %v7042 = vshrl.u32 %v7041, 7
        %v7043 = vsub.s32 7, %v7042
        %v7044 = vrot.slane %v168, %v7043
        %7046 = vbcast.lane.b32.xlu0 %v7044, 256
        %v7047 = vpop.permute.xlu0 %7046
        %s7049 = sor.u32 256, 8
        %7050 = vbcast.lane.b32.xlu0 %v7044, %s7049
        %v7051 = vpop.permute.xlu0 %7050
        %v7052 = vlaneseq
        %v7053 = vshrl.u32 %v7052, 7
        %v7054 = vsub.s32 0, %v7053
        %v7055 = vrot.slane %v169, %v7054
        %7057 = vbcast.lane.b32.xlu0 %v7055, 256
        %v7058 = vpop.permute.xlu0 %7057
        %s7060 = sor.u32 256, 8
        %7061 = vbcast.lane.b32.xlu0 %v7055, %s7060
        %v7062 = vpop.permute.xlu0 %7061
        %v7063 = vlaneseq
        %v7064 = vshrl.u32 %v7063, 7
        %v7065 = vsub.s32 1, %v7064
        %v7066 = vrot.slane %v169, %v7065
        %7068 = vbcast.lane.b32.xlu0 %v7066, 256
        %v7069 = vpop.permute.xlu0 %7068
        %s7071 = sor.u32 256, 8
        %7072 = vbcast.lane.b32.xlu0 %v7066, %s7071
        %v7073 = vpop.permute.xlu0 %7072
        %v7074 = vlaneseq
        %v7075 = vshrl.u32 %v7074, 7
        %v7076 = vsub.s32 2, %v7075
        %v7077 = vrot.slane %v169, %v7076
        %7079 = vbcast.lane.b32.xlu0 %v7077, 256
        %v7080 = vpop.permute.xlu0 %7079
        %s7082 = sor.u32 256, 8
        %7083 = vbcast.lane.b32.xlu0 %v7077, %s7082
        %v7084 = vpop.permute.xlu0 %7083
        %v7085 = vlaneseq
        %v7086 = vshrl.u32 %v7085, 7
        %v7087 = vsub.s32 3, %v7086
        %v7088 = vrot.slane %v169, %v7087
        %7090 = vbcast.lane.b32.xlu0 %v7088, 256
        %v7091 = vpop.permute.xlu0 %7090
        %s7093 = sor.u32 256, 8
        %7094 = vbcast.lane.b32.xlu0 %v7088, %s7093
        %v7095 = vpop.permute.xlu0 %7094
        %v7096 = vlaneseq
        %v7097 = vshrl.u32 %v7096, 7
        %v7098 = vsub.s32 4, %v7097
        %v7099 = vrot.slane %v169, %v7098
        %7101 = vbcast.lane.b32.xlu0 %v7099, 256
        %v7102 = vpop.permute.xlu0 %7101
        %s7104 = sor.u32 256, 8
        %7105 = vbcast.lane.b32.xlu0 %v7099, %s7104
        %v7106 = vpop.permute.xlu0 %7105
        %v7107 = vlaneseq
        %v7108 = vshrl.u32 %v7107, 7
        %v7109 = vsub.s32 5, %v7108
        %v7110 = vrot.slane %v169, %v7109
        %7112 = vbcast.lane.b32.xlu0 %v7110, 256
        %v7113 = vpop.permute.xlu0 %7112
        %s7115 = sor.u32 256, 8
        %7116 = vbcast.lane.b32.xlu0 %v7110, %s7115
        %v7117 = vpop.permute.xlu0 %7116
        %v7118 = vlaneseq
        %v7119 = vshrl.u32 %v7118, 7
        %v7120 = vsub.s32 6, %v7119
        %v7121 = vrot.slane %v169, %v7120
        %7123 = vbcast.lane.b32.xlu0 %v7121, 256
        %v7124 = vpop.permute.xlu0 %7123
        %s7126 = sor.u32 256, 8
        %7127 = vbcast.lane.b32.xlu0 %v7121, %s7126
        %v7128 = vpop.permute.xlu0 %7127
        %v7129 = vlaneseq
        %v7130 = vshrl.u32 %v7129, 7
        %v7131 = vsub.s32 7, %v7130
        %v7132 = vrot.slane %v169, %v7131
        %7134 = vbcast.lane.b32.xlu0 %v7132, 256
        %v7135 = vpop.permute.xlu0 %7134
        %s7137 = sor.u32 256, 8
        %7138 = vbcast.lane.b32.xlu0 %v7132, %s7137
        %v7139 = vpop.permute.xlu0 %7138
        %v7140 = vlaneseq
        %v7141 = vshrl.u32 %v7140, 7
        %v7142 = vsub.s32 0, %v7141
        %v7143 = vrot.slane %v170, %v7142
        %7145 = vbcast.lane.b32.xlu0 %v7143, 256
        %v7146 = vpop.permute.xlu0 %7145
        %s7148 = sor.u32 256, 8
        %7149 = vbcast.lane.b32.xlu0 %v7143, %s7148
        %v7150 = vpop.permute.xlu0 %7149
        %v7151 = vlaneseq
        %v7152 = vshrl.u32 %v7151, 7
        %v7153 = vsub.s32 1, %v7152
        %v7154 = vrot.slane %v170, %v7153
        %7156 = vbcast.lane.b32.xlu0 %v7154, 256
        %v7157 = vpop.permute.xlu0 %7156
        %s7159 = sor.u32 256, 8
        %7160 = vbcast.lane.b32.xlu0 %v7154, %s7159
        %v7161 = vpop.permute.xlu0 %7160
        %v7162 = vlaneseq
        %v7163 = vshrl.u32 %v7162, 7
        %v7164 = vsub.s32 2, %v7163
        %v7165 = vrot.slane %v170, %v7164
        %7167 = vbcast.lane.b32.xlu0 %v7165, 256
        %v7168 = vpop.permute.xlu0 %7167
        %s7170 = sor.u32 256, 8
        %7171 = vbcast.lane.b32.xlu0 %v7165, %s7170
        %v7172 = vpop.permute.xlu0 %7171
        %v7173 = vlaneseq
        %v7174 = vshrl.u32 %v7173, 7
        %v7175 = vsub.s32 3, %v7174
        %v7176 = vrot.slane %v170, %v7175
        %7178 = vbcast.lane.b32.xlu0 %v7176, 256
        %v7179 = vpop.permute.xlu0 %7178
        %s7181 = sor.u32 256, 8
        %7182 = vbcast.lane.b32.xlu0 %v7176, %s7181
        %v7183 = vpop.permute.xlu0 %7182
        %v7184 = vlaneseq
        %v7185 = vshrl.u32 %v7184, 7
        %v7186 = vsub.s32 4, %v7185
        %v7187 = vrot.slane %v170, %v7186
        %7189 = vbcast.lane.b32.xlu0 %v7187, 256
        %v7190 = vpop.permute.xlu0 %7189
        %s7192 = sor.u32 256, 8
        %7193 = vbcast.lane.b32.xlu0 %v7187, %s7192
        %v7194 = vpop.permute.xlu0 %7193
        %v7195 = vlaneseq
        %v7196 = vshrl.u32 %v7195, 7
        %v7197 = vsub.s32 5, %v7196
        %v7198 = vrot.slane %v170, %v7197
        %7200 = vbcast.lane.b32.xlu0 %v7198, 256
        %v7201 = vpop.permute.xlu0 %7200
        %s7203 = sor.u32 256, 8
        %7204 = vbcast.lane.b32.xlu0 %v7198, %s7203
        %v7205 = vpop.permute.xlu0 %7204
        %v7206 = vlaneseq
        %v7207 = vshrl.u32 %v7206, 7
        %v7208 = vsub.s32 6, %v7207
        %v7209 = vrot.slane %v170, %v7208
        %7211 = vbcast.lane.b32.xlu0 %v7209, 256
        %v7212 = vpop.permute.xlu0 %7211
        %s7214 = sor.u32 256, 8
        %7215 = vbcast.lane.b32.xlu0 %v7209, %s7214
        %v7216 = vpop.permute.xlu0 %7215
        %v7217 = vlaneseq
        %v7218 = vshrl.u32 %v7217, 7
        %v7219 = vsub.s32 7, %v7218
        %v7220 = vrot.slane %v170, %v7219
        %7222 = vbcast.lane.b32.xlu0 %v7220, 256
        %v7223 = vpop.permute.xlu0 %7222
        %s7225 = sor.u32 256, 8
        %7226 = vbcast.lane.b32.xlu0 %v7220, %s7225
        %v7227 = vpop.permute.xlu0 %7226
        %v7228 = vsel %vm875, %v6530, %v6882
        %v7229 = vsel %vm875, %v6534, %v6886
        %v7230 = vsel %vm875, %v6541, %v6893
        %v7231 = vsel %vm875, %v6545, %v6897
        %v7232 = vsel %vm875, %v6552, %v6904
        %v7233 = vsel %vm875, %v6556, %v6908
        %v7234 = vsel %vm875, %v6563, %v6915
        %v7235 = vsel %vm875, %v6567, %v6919
        %v7236 = vsel %vm875, %v6574, %v6926
        %v7237 = vsel %vm875, %v6578, %v6930
        %v7238 = vsel %vm875, %v6585, %v6937
        %v7239 = vsel %vm875, %v6589, %v6941
        %v7240 = vsel %vm875, %v6596, %v6948
        %v7241 = vsel %vm875, %v6600, %v6952
        %v7242 = vsel %vm875, %v6607, %v6959
        %v7243 = vsel %vm875, %v6611, %v6963
        %v7244 = vsel %vm875, %v6618, %v6970
        %v7245 = vsel %vm875, %v6622, %v6974
        %v7246 = vsel %vm875, %v6629, %v6981
        %v7247 = vsel %vm875, %v6633, %v6985
        %v7248 = vsel %vm875, %v6640, %v6992
        %v7249 = vsel %vm875, %v6644, %v6996
        %v7250 = vsel %vm875, %v6651, %v7003
        %v7251 = vsel %vm875, %v6655, %v7007
        %v7252 = vsel %vm875, %v6662, %v7014
        %v7253 = vsel %vm875, %v6666, %v7018
        %v7254 = vsel %vm875, %v6673, %v7025
        %v7255 = vsel %vm875, %v6677, %v7029
        %v7256 = vsel %vm875, %v6684, %v7036
        %v7257 = vsel %vm875, %v6688, %v7040
        %v7258 = vsel %vm875, %v6695, %v7047
        %v7259 = vsel %vm875, %v6699, %v7051
        %v7260 = vsel %vm875, %v6706, %v7058
        %v7261 = vsel %vm875, %v6710, %v7062
        %v7262 = vsel %vm875, %v6717, %v7069
        %v7263 = vsel %vm875, %v6721, %v7073
        %v7264 = vsel %vm875, %v6728, %v7080
        %v7265 = vsel %vm875, %v6732, %v7084
        %v7266 = vsel %vm875, %v6739, %v7091
        %v7267 = vsel %vm875, %v6743, %v7095
        %v7268 = vsel %vm875, %v6750, %v7102
        %v7269 = vsel %vm875, %v6754, %v7106
        %v7270 = vsel %vm875, %v6761, %v7113
        %v7271 = vsel %vm875, %v6765, %v7117
        %v7272 = vsel %vm875, %v6772, %v7124
        %v7273 = vsel %vm875, %v6776, %v7128
        %v7274 = vsel %vm875, %v6783, %v7135
        %v7275 = vsel %vm875, %v6787, %v7139
        %v7276 = vsel %vm875, %v6794, %v7146
        %v7277 = vsel %vm875, %v6798, %v7150
        %v7278 = vsel %vm875, %v6805, %v7157
        %v7279 = vsel %vm875, %v6809, %v7161
        %v7280 = vsel %vm875, %v6816, %v7168
        %v7281 = vsel %vm875, %v6820, %v7172
        %v7282 = vsel %vm875, %v6827, %v7179
        %v7283 = vsel %vm875, %v6831, %v7183
        %v7284 = vsel %vm875, %v6838, %v7190
        %v7285 = vsel %vm875, %v6842, %v7194
        %v7286 = vsel %vm875, %v6849, %v7201
        %v7287 = vsel %vm875, %v6853, %v7205
        %v7288 = vsel %vm875, %v6860, %v7212
        %v7289 = vsel %vm875, %v6864, %v7216
        %v7290 = vsel %vm875, %v6871, %v7223
        %v7291 = vsel %vm875, %v6875, %v7227
        %v7292 = vcombine.high %v7228, 0.0
        %v7294 = vunpack.c.l.s4 1983009808
        %v7295 = vunpack.c.0.s8 %v7294
        %v7296 = vlaneseq
        %v7297 = vshrl.u32 %v7296, 7
        %v7298 = vsub.s32 %v7295, %v7297
        %v7299 = vrot.slane %v7228, %v7298
        %v7301 = vunpack.c.l.s4 1983009808
        %v7302 = vunpack.c.0.s8 %v7301
        %v7303 = vlaneseq
        %v7304 = vshrl.u32 %v7303, 7
        %v7305 = vsub.s32 %v7302, %v7304
        %v7306 = vrot.slane %v7292, %v7305
        %v7307 = vcombine.high %v7299, 0.0
        %v7309 = vunpack.c.l.s4 1934713408
        %v7310 = vunpack.c.0.s8 %v7309
        %v7311 = vlaneseq
        %v7312 = vshrl.u32 %v7311, 7
        %v7313 = vsub.s32 %v7310, %v7312
        %v7314 = vrot.slane %v7299, %v7313
        %v7316 = vunpack.c.l.s4 1934713408
        %v7317 = vunpack.c.0.s8 %v7316
        %v7318 = vlaneseq
        %v7319 = vshrl.u32 %v7318, 7
        %v7320 = vsub.s32 %v7317, %v7319
        %v7321 = vrot.slane %v7307, %v7320
        %v7322 = vcombine.high %v7306, 0.0
        %v7324 = vunpack.c.l.s4 1934713408
        %v7325 = vunpack.c.0.s8 %v7324
        %v7326 = vlaneseq
        %v7327 = vshrl.u32 %v7326, 7
        %v7328 = vsub.s32 %v7325, %v7327
        %v7329 = vrot.slane %v7306, %v7328
        %v7331 = vunpack.c.l.s4 1934713408
        %v7332 = vunpack.c.0.s8 %v7331
        %v7333 = vlaneseq
        %v7334 = vshrl.u32 %v7333, 7
        %v7335 = vsub.s32 %v7332, %v7334
        %v7336 = vrot.slane %v7322, %v7335
        %v7337 = vcombine.high %v7314, 0.0
        %v7338 = vcombine.high %v7321, 0.0
        %v7339 = vcombine.high %v7329, 0.0
        %v7340 = vcombine.high %v7336, 0.0
        %v7341 = vcombine.high %v7229, 0.0
        %v7343 = vunpack.c.l.s4 1983009808
        %v7344 = vunpack.c.0.s8 %v7343
        %v7345 = vlaneseq
        %v7346 = vshrl.u32 %v7345, 7
        %v7347 = vsub.s32 %v7344, %v7346
        %v7348 = vrot.slane %v7229, %v7347
        %v7350 = vunpack.c.l.s4 1983009808
        %v7351 = vunpack.c.0.s8 %v7350
        %v7352 = vlaneseq
        %v7353 = vshrl.u32 %v7352, 7
        %v7354 = vsub.s32 %v7351, %v7353
        %v7355 = vrot.slane %v7341, %v7354
        %v7356 = vcombine.high %v7348, 0.0
        %v7358 = vunpack.c.l.s4 1934713408
        %v7359 = vunpack.c.0.s8 %v7358
        %v7360 = vlaneseq
        %v7361 = vshrl.u32 %v7360, 7
        %v7362 = vsub.s32 %v7359, %v7361
        %v7363 = vrot.slane %v7348, %v7362
        %v7365 = vunpack.c.l.s4 1934713408
        %v7366 = vunpack.c.0.s8 %v7365
        %v7367 = vlaneseq
        %v7368 = vshrl.u32 %v7367, 7
        %v7369 = vsub.s32 %v7366, %v7368
        %v7370 = vrot.slane %v7356, %v7369
        %v7371 = vcombine.high %v7355, 0.0
        %v7373 = vunpack.c.l.s4 1934713408
        %v7374 = vunpack.c.0.s8 %v7373
        %v7375 = vlaneseq
        %v7376 = vshrl.u32 %v7375, 7
        %v7377 = vsub.s32 %v7374, %v7376
        %v7378 = vrot.slane %v7355, %v7377
        %v7380 = vunpack.c.l.s4 1934713408
        %v7381 = vunpack.c.0.s8 %v7380
        %v7382 = vlaneseq
        %v7383 = vshrl.u32 %v7382, 7
        %v7384 = vsub.s32 %v7381, %v7383
        %v7385 = vrot.slane %v7371, %v7384
        %v7386 = vcombine.high %v7363, 0.0
        %v7387 = vcombine.high %v7370, 0.0
        %v7388 = vcombine.high %v7378, 0.0
        %v7389 = vcombine.high %v7385, 0.0
        %v7390 = vcombine.high %v7230, 0.0
        %v7392 = vunpack.c.l.s4 1983009808
        %v7393 = vunpack.c.0.s8 %v7392
        %v7394 = vlaneseq
        %v7395 = vshrl.u32 %v7394, 7
        %v7396 = vsub.s32 %v7393, %v7395
        %v7397 = vrot.slane %v7230, %v7396
        %v7399 = vunpack.c.l.s4 1983009808
        %v7400 = vunpack.c.0.s8 %v7399
        %v7401 = vlaneseq
        %v7402 = vshrl.u32 %v7401, 7
        %v7403 = vsub.s32 %v7400, %v7402
        %v7404 = vrot.slane %v7390, %v7403
        %v7405 = vcombine.high %v7397, 0.0
        %v7407 = vunpack.c.l.s4 1934713408
        %v7408 = vunpack.c.0.s8 %v7407
        %v7409 = vlaneseq
        %v7410 = vshrl.u32 %v7409, 7
        %v7411 = vsub.s32 %v7408, %v7410
        %v7412 = vrot.slane %v7397, %v7411
        %v7414 = vunpack.c.l.s4 1934713408
        %v7415 = vunpack.c.0.s8 %v7414
        %v7416 = vlaneseq
        %v7417 = vshrl.u32 %v7416, 7
        %v7418 = vsub.s32 %v7415, %v7417
        %v7419 = vrot.slane %v7405, %v7418
        %v7420 = vcombine.high %v7404, 0.0
        %v7422 = vunpack.c.l.s4 1934713408
        %v7423 = vunpack.c.0.s8 %v7422
        %v7424 = vlaneseq
        %v7425 = vshrl.u32 %v7424, 7
        %v7426 = vsub.s32 %v7423, %v7425
        %v7427 = vrot.slane %v7404, %v7426
        %v7429 = vunpack.c.l.s4 1934713408
        %v7430 = vunpack.c.0.s8 %v7429
        %v7431 = vlaneseq
        %v7432 = vshrl.u32 %v7431, 7
        %v7433 = vsub.s32 %v7430, %v7432
        %v7434 = vrot.slane %v7420, %v7433
        %v7435 = vcombine.high %v7412, 0.0
        %v7436 = vcombine.high %v7419, 0.0
        %v7437 = vcombine.high %v7427, 0.0
        %v7438 = vcombine.high %v7434, 0.0
        %v7439 = vcombine.high %v7231, 0.0
        %v7441 = vunpack.c.l.s4 1983009808
        %v7442 = vunpack.c.0.s8 %v7441
        %v7443 = vlaneseq
        %v7444 = vshrl.u32 %v7443, 7
        %v7445 = vsub.s32 %v7442, %v7444
        %v7446 = vrot.slane %v7231, %v7445
        %v7448 = vunpack.c.l.s4 1983009808
        %v7449 = vunpack.c.0.s8 %v7448
        %v7450 = vlaneseq
        %v7451 = vshrl.u32 %v7450, 7
        %v7452 = vsub.s32 %v7449, %v7451
        %v7453 = vrot.slane %v7439, %v7452
        %v7454 = vcombine.high %v7446, 0.0
        %v7456 = vunpack.c.l.s4 1934713408
        %v7457 = vunpack.c.0.s8 %v7456
        %v7458 = vlaneseq
        %v7459 = vshrl.u32 %v7458, 7
        %v7460 = vsub.s32 %v7457, %v7459
        %v7461 = vrot.slane %v7446, %v7460
        %v7463 = vunpack.c.l.s4 1934713408
        %v7464 = vunpack.c.0.s8 %v7463
        %v7465 = vlaneseq
        %v7466 = vshrl.u32 %v7465, 7
        %v7467 = vsub.s32 %v7464, %v7466
        %v7468 = vrot.slane %v7454, %v7467
        %v7469 = vcombine.high %v7453, 0.0
        %v7471 = vunpack.c.l.s4 1934713408
        %v7472 = vunpack.c.0.s8 %v7471
        %v7473 = vlaneseq
        %v7474 = vshrl.u32 %v7473, 7
        %v7475 = vsub.s32 %v7472, %v7474
        %v7476 = vrot.slane %v7453, %v7475
        %v7478 = vunpack.c.l.s4 1934713408
        %v7479 = vunpack.c.0.s8 %v7478
        %v7480 = vlaneseq
        %v7481 = vshrl.u32 %v7480, 7
        %v7482 = vsub.s32 %v7479, %v7481
        %v7483 = vrot.slane %v7469, %v7482
        %v7484 = vcombine.high %v7461, 0.0
        %v7485 = vcombine.high %v7468, 0.0
        %v7486 = vcombine.high %v7476, 0.0
        %v7487 = vcombine.high %v7483, 0.0
        %v7488 = vcombine.high %v7232, 0.0
        %v7490 = vunpack.c.l.s4 1983009808
        %v7491 = vunpack.c.0.s8 %v7490
        %v7492 = vlaneseq
        %v7493 = vshrl.u32 %v7492, 7
        %v7494 = vsub.s32 %v7491, %v7493
        %v7495 = vrot.slane %v7232, %v7494
        %v7497 = vunpack.c.l.s4 1983009808
        %v7498 = vunpack.c.0.s8 %v7497
        %v7499 = vlaneseq
        %v7500 = vshrl.u32 %v7499, 7
        %v7501 = vsub.s32 %v7498, %v7500
        %v7502 = vrot.slane %v7488, %v7501
        %v7503 = vcombine.high %v7495, 0.0
        %v7505 = vunpack.c.l.s4 1934713408
        %v7506 = vunpack.c.0.s8 %v7505
        %v7507 = vlaneseq
        %v7508 = vshrl.u32 %v7507, 7
        %v7509 = vsub.s32 %v7506, %v7508
        %v7510 = vrot.slane %v7495, %v7509
        %v7512 = vunpack.c.l.s4 1934713408
        %v7513 = vunpack.c.0.s8 %v7512
        %v7514 = vlaneseq
        %v7515 = vshrl.u32 %v7514, 7
        %v7516 = vsub.s32 %v7513, %v7515
        %v7517 = vrot.slane %v7503, %v7516
        %v7518 = vcombine.high %v7502, 0.0
        %v7520 = vunpack.c.l.s4 1934713408
        %v7521 = vunpack.c.0.s8 %v7520
        %v7522 = vlaneseq
        %v7523 = vshrl.u32 %v7522, 7
        %v7524 = vsub.s32 %v7521, %v7523
        %v7525 = vrot.slane %v7502, %v7524
        %v7527 = vunpack.c.l.s4 1934713408
        %v7528 = vunpack.c.0.s8 %v7527
        %v7529 = vlaneseq
        %v7530 = vshrl.u32 %v7529, 7
        %v7531 = vsub.s32 %v7528, %v7530
        %v7532 = vrot.slane %v7518, %v7531
        %v7533 = vcombine.high %v7510, 0.0
        %v7534 = vcombine.high %v7517, 0.0
        %v7535 = vcombine.high %v7525, 0.0
        %v7536 = vcombine.high %v7532, 0.0
        %v7537 = vcombine.high %v7233, 0.0
        %v7539 = vunpack.c.l.s4 1983009808
        %v7540 = vunpack.c.0.s8 %v7539
        %v7541 = vlaneseq
        %v7542 = vshrl.u32 %v7541, 7
        %v7543 = vsub.s32 %v7540, %v7542
        %v7544 = vrot.slane %v7233, %v7543
        %v7546 = vunpack.c.l.s4 1983009808
        %v7547 = vunpack.c.0.s8 %v7546
        %v7548 = vlaneseq
        %v7549 = vshrl.u32 %v7548, 7
        %v7550 = vsub.s32 %v7547, %v7549
        %v7551 = vrot.slane %v7537, %v7550
        %v7552 = vcombine.high %v7544, 0.0
        %v7554 = vunpack.c.l.s4 1934713408
        %v7555 = vunpack.c.0.s8 %v7554
        %v7556 = vlaneseq
        %v7557 = vshrl.u32 %v7556, 7
        %v7558 = vsub.s32 %v7555, %v7557
        %v7559 = vrot.slane %v7544, %v7558
        %v7561 = vunpack.c.l.s4 1934713408
        %v7562 = vunpack.c.0.s8 %v7561
        %v7563 = vlaneseq
        %v7564 = vshrl.u32 %v7563, 7
        %v7565 = vsub.s32 %v7562, %v7564
        %v7566 = vrot.slane %v7552, %v7565
        %v7567 = vcombine.high %v7551, 0.0
        %v7569 = vunpack.c.l.s4 1934713408
        %v7570 = vunpack.c.0.s8 %v7569
        %v7571 = vlaneseq
        %v7572 = vshrl.u32 %v7571, 7
        %v7573 = vsub.s32 %v7570, %v7572
        %v7574 = vrot.slane %v7551, %v7573
        %v7576 = vunpack.c.l.s4 1934713408
        %v7577 = vunpack.c.0.s8 %v7576
        %v7578 = vlaneseq
        %v7579 = vshrl.u32 %v7578, 7
        %v7580 = vsub.s32 %v7577, %v7579
        %v7581 = vrot.slane %v7567, %v7580
        %v7582 = vcombine.high %v7559, 0.0
        %v7583 = vcombine.high %v7566, 0.0
        %v7584 = vcombine.high %v7574, 0.0
        %v7585 = vcombine.high %v7581, 0.0
        %v7586 = vcombine.high %v7234, 0.0
        %v7588 = vunpack.c.l.s4 1983009808
        %v7589 = vunpack.c.0.s8 %v7588
        %v7590 = vlaneseq
        %v7591 = vshrl.u32 %v7590, 7
        %v7592 = vsub.s32 %v7589, %v7591
        %v7593 = vrot.slane %v7234, %v7592
        %v7595 = vunpack.c.l.s4 1983009808
        %v7596 = vunpack.c.0.s8 %v7595
        %v7597 = vlaneseq
        %v7598 = vshrl.u32 %v7597, 7
        %v7599 = vsub.s32 %v7596, %v7598
        %v7600 = vrot.slane %v7586, %v7599
        %v7601 = vcombine.high %v7593, 0.0
        %v7603 = vunpack.c.l.s4 1934713408
        %v7604 = vunpack.c.0.s8 %v7603
        %v7605 = vlaneseq
        %v7606 = vshrl.u32 %v7605, 7
        %v7607 = vsub.s32 %v7604, %v7606
        %v7608 = vrot.slane %v7593, %v7607
        %v7610 = vunpack.c.l.s4 1934713408
        %v7611 = vunpack.c.0.s8 %v7610
        %v7612 = vlaneseq
        %v7613 = vshrl.u32 %v7612, 7
        %v7614 = vsub.s32 %v7611, %v7613
        %v7615 = vrot.slane %v7601, %v7614
        %v7616 = vcombine.high %v7600, 0.0
        %v7618 = vunpack.c.l.s4 1934713408
        %v7619 = vunpack.c.0.s8 %v7618
        %v7620 = vlaneseq
        %v7621 = vshrl.u32 %v7620, 7
        %v7622 = vsub.s32 %v7619, %v7621
        %v7623 = vrot.slane %v7600, %v7622
        %v7625 = vunpack.c.l.s4 1934713408
        %v7626 = vunpack.c.0.s8 %v7625
        %v7627 = vlaneseq
        %v7628 = vshrl.u32 %v7627, 7
        %v7629 = vsub.s32 %v7626, %v7628
        %v7630 = vrot.slane %v7616, %v7629
        %v7631 = vcombine.high %v7608, 0.0
        %v7632 = vcombine.high %v7615, 0.0
        %v7633 = vcombine.high %v7623, 0.0
        %v7634 = vcombine.high %v7630, 0.0
        %v7635 = vcombine.high %v7235, 0.0
        %v7637 = vunpack.c.l.s4 1983009808
        %v7638 = vunpack.c.0.s8 %v7637
        %v7639 = vlaneseq
        %v7640 = vshrl.u32 %v7639, 7
        %v7641 = vsub.s32 %v7638, %v7640
        %v7642 = vrot.slane %v7235, %v7641
        %v7644 = vunpack.c.l.s4 1983009808
        %v7645 = vunpack.c.0.s8 %v7644
        %v7646 = vlaneseq
        %v7647 = vshrl.u32 %v7646, 7
        %v7648 = vsub.s32 %v7645, %v7647
        %v7649 = vrot.slane %v7635, %v7648
        %v7650 = vcombine.high %v7642, 0.0
        %v7652 = vunpack.c.l.s4 1934713408
        %v7653 = vunpack.c.0.s8 %v7652
        %v7654 = vlaneseq
        %v7655 = vshrl.u32 %v7654, 7
        %v7656 = vsub.s32 %v7653, %v7655
        %v7657 = vrot.slane %v7642, %v7656
        %v7659 = vunpack.c.l.s4 1934713408
        %v7660 = vunpack.c.0.s8 %v7659
        %v7661 = vlaneseq
        %v7662 = vshrl.u32 %v7661, 7
        %v7663 = vsub.s32 %v7660, %v7662
        %v7664 = vrot.slane %v7650, %v7663
        %v7665 = vcombine.high %v7649, 0.0
        %v7667 = vunpack.c.l.s4 1934713408
        %v7668 = vunpack.c.0.s8 %v7667
        %v7669 = vlaneseq
        %v7670 = vshrl.u32 %v7669, 7
        %v7671 = vsub.s32 %v7668, %v7670
        %v7672 = vrot.slane %v7649, %v7671
        %v7674 = vunpack.c.l.s4 1934713408
        %v7675 = vunpack.c.0.s8 %v7674
        %v7676 = vlaneseq
        %v7677 = vshrl.u32 %v7676, 7
        %v7678 = vsub.s32 %v7675, %v7677
        %v7679 = vrot.slane %v7665, %v7678
        %v7680 = vcombine.high %v7657, 0.0
        %v7681 = vcombine.high %v7664, 0.0
        %v7682 = vcombine.high %v7672, 0.0
        %v7683 = vcombine.high %v7679, 0.0
        %v7684 = vcombine.high %v7236, 0.0
        %v7686 = vunpack.c.l.s4 1983009808
        %v7687 = vunpack.c.0.s8 %v7686
        %v7688 = vlaneseq
        %v7689 = vshrl.u32 %v7688, 7
        %v7690 = vsub.s32 %v7687, %v7689
        %v7691 = vrot.slane %v7236, %v7690
        %v7693 = vunpack.c.l.s4 1983009808
        %v7694 = vunpack.c.0.s8 %v7693
        %v7695 = vlaneseq
        %v7696 = vshrl.u32 %v7695, 7
        %v7697 = vsub.s32 %v7694, %v7696
        %v7698 = vrot.slane %v7684, %v7697
        %v7699 = vcombine.high %v7691, 0.0
        %v7701 = vunpack.c.l.s4 1934713408
        %v7702 = vunpack.c.0.s8 %v7701
        %v7703 = vlaneseq
        %v7704 = vshrl.u32 %v7703, 7
        %v7705 = vsub.s32 %v7702, %v7704
        %v7706 = vrot.slane %v7691, %v7705
        %v7708 = vunpack.c.l.s4 1934713408
        %v7709 = vunpack.c.0.s8 %v7708
        %v7710 = vlaneseq
        %v7711 = vshrl.u32 %v7710, 7
        %v7712 = vsub.s32 %v7709, %v7711
        %v7713 = vrot.slane %v7699, %v7712
        %v7714 = vcombine.high %v7698, 0.0
        %v7716 = vunpack.c.l.s4 1934713408
        %v7717 = vunpack.c.0.s8 %v7716
        %v7718 = vlaneseq
        %v7719 = vshrl.u32 %v7718, 7
        %v7720 = vsub.s32 %v7717, %v7719
        %v7721 = vrot.slane %v7698, %v7720
        %v7723 = vunpack.c.l.s4 1934713408
        %v7724 = vunpack.c.0.s8 %v7723
        %v7725 = vlaneseq
        %v7726 = vshrl.u32 %v7725, 7
        %v7727 = vsub.s32 %v7724, %v7726
        %v7728 = vrot.slane %v7714, %v7727
        %v7729 = vcombine.high %v7706, 0.0
        %v7730 = vcombine.high %v7713, 0.0
        %v7731 = vcombine.high %v7721, 0.0
        %v7732 = vcombine.high %v7728, 0.0
        %v7733 = vcombine.high %v7237, 0.0
        %v7735 = vunpack.c.l.s4 1983009808
        %v7736 = vunpack.c.0.s8 %v7735
        %v7737 = vlaneseq
        %v7738 = vshrl.u32 %v7737, 7
        %v7739 = vsub.s32 %v7736, %v7738
        %v7740 = vrot.slane %v7237, %v7739
        %v7742 = vunpack.c.l.s4 1983009808
        %v7743 = vunpack.c.0.s8 %v7742
        %v7744 = vlaneseq
        %v7745 = vshrl.u32 %v7744, 7
        %v7746 = vsub.s32 %v7743, %v7745
        %v7747 = vrot.slane %v7733, %v7746
        %v7748 = vcombine.high %v7740, 0.0
        %v7750 = vunpack.c.l.s4 1934713408
        %v7751 = vunpack.c.0.s8 %v7750
        %v7752 = vlaneseq
        %v7753 = vshrl.u32 %v7752, 7
        %v7754 = vsub.s32 %v7751, %v7753
        %v7755 = vrot.slane %v7740, %v7754
        %v7757 = vunpack.c.l.s4 1934713408
        %v7758 = vunpack.c.0.s8 %v7757
        %v7759 = vlaneseq
        %v7760 = vshrl.u32 %v7759, 7
        %v7761 = vsub.s32 %v7758, %v7760
        %v7762 = vrot.slane %v7748, %v7761
        %v7763 = vcombine.high %v7747, 0.0
        %v7765 = vunpack.c.l.s4 1934713408
        %v7766 = vunpack.c.0.s8 %v7765
        %v7767 = vlaneseq
        %v7768 = vshrl.u32 %v7767, 7
        %v7769 = vsub.s32 %v7766, %v7768
        %v7770 = vrot.slane %v7747, %v7769
        %v7772 = vunpack.c.l.s4 1934713408
        %v7773 = vunpack.c.0.s8 %v7772
        %v7774 = vlaneseq
        %v7775 = vshrl.u32 %v7774, 7
        %v7776 = vsub.s32 %v7773, %v7775
        %v7777 = vrot.slane %v7763, %v7776
        %v7778 = vcombine.high %v7755, 0.0
        %v7779 = vcombine.high %v7762, 0.0
        %v7780 = vcombine.high %v7770, 0.0
        %v7781 = vcombine.high %v7777, 0.0
        %v7782 = vcombine.high %v7238, 0.0
        %v7784 = vunpack.c.l.s4 1983009808
        %v7785 = vunpack.c.0.s8 %v7784
        %v7786 = vlaneseq
        %v7787 = vshrl.u32 %v7786, 7
        %v7788 = vsub.s32 %v7785, %v7787
        %v7789 = vrot.slane %v7238, %v7788
        %v7791 = vunpack.c.l.s4 1983009808
        %v7792 = vunpack.c.0.s8 %v7791
        %v7793 = vlaneseq
        %v7794 = vshrl.u32 %v7793, 7
        %v7795 = vsub.s32 %v7792, %v7794
        %v7796 = vrot.slane %v7782, %v7795
        %v7797 = vcombine.high %v7789, 0.0
        %v7799 = vunpack.c.l.s4 1934713408
        %v7800 = vunpack.c.0.s8 %v7799
        %v7801 = vlaneseq
        %v7802 = vshrl.u32 %v7801, 7
        %v7803 = vsub.s32 %v7800, %v7802
        %v7804 = vrot.slane %v7789, %v7803
        %v7806 = vunpack.c.l.s4 1934713408
        %v7807 = vunpack.c.0.s8 %v7806
        %v7808 = vlaneseq
        %v7809 = vshrl.u32 %v7808, 7
        %v7810 = vsub.s32 %v7807, %v7809
        %v7811 = vrot.slane %v7797, %v7810
        %v7812 = vcombine.high %v7796, 0.0
        %v7814 = vunpack.c.l.s4 1934713408
        %v7815 = vunpack.c.0.s8 %v7814
        %v7816 = vlaneseq
        %v7817 = vshrl.u32 %v7816, 7
        %v7818 = vsub.s32 %v7815, %v7817
        %v7819 = vrot.slane %v7796, %v7818
        %v7821 = vunpack.c.l.s4 1934713408
        %v7822 = vunpack.c.0.s8 %v7821
        %v7823 = vlaneseq
        %v7824 = vshrl.u32 %v7823, 7
        %v7825 = vsub.s32 %v7822, %v7824
        %v7826 = vrot.slane %v7812, %v7825
        %v7827 = vcombine.high %v7804, 0.0
        %v7828 = vcombine.high %v7811, 0.0
        %v7829 = vcombine.high %v7819, 0.0
        %v7830 = vcombine.high %v7826, 0.0
        %v7831 = vcombine.high %v7239, 0.0
        %v7833 = vunpack.c.l.s4 1983009808
        %v7834 = vunpack.c.0.s8 %v7833
        %v7835 = vlaneseq
        %v7836 = vshrl.u32 %v7835, 7
        %v7837 = vsub.s32 %v7834, %v7836
        %v7838 = vrot.slane %v7239, %v7837
        %v7840 = vunpack.c.l.s4 1983009808
        %v7841 = vunpack.c.0.s8 %v7840
        %v7842 = vlaneseq
        %v7843 = vshrl.u32 %v7842, 7
        %v7844 = vsub.s32 %v7841, %v7843
        %v7845 = vrot.slane %v7831, %v7844
        %v7846 = vcombine.high %v7838, 0.0
        %v7848 = vunpack.c.l.s4 1934713408
        %v7849 = vunpack.c.0.s8 %v7848
        %v7850 = vlaneseq
        %v7851 = vshrl.u32 %v7850, 7
        %v7852 = vsub.s32 %v7849, %v7851
        %v7853 = vrot.slane %v7838, %v7852
        %v7855 = vunpack.c.l.s4 1934713408
        %v7856 = vunpack.c.0.s8 %v7855
        %v7857 = vlaneseq
        %v7858 = vshrl.u32 %v7857, 7
        %v7859 = vsub.s32 %v7856, %v7858
        %v7860 = vrot.slane %v7846, %v7859
        %v7861 = vcombine.high %v7845, 0.0
        %v7863 = vunpack.c.l.s4 1934713408
        %v7864 = vunpack.c.0.s8 %v7863
        %v7865 = vlaneseq
        %v7866 = vshrl.u32 %v7865, 7
        %v7867 = vsub.s32 %v7864, %v7866
        %v7868 = vrot.slane %v7845, %v7867
        %v7870 = vunpack.c.l.s4 1934713408
        %v7871 = vunpack.c.0.s8 %v7870
        %v7872 = vlaneseq
        %v7873 = vshrl.u32 %v7872, 7
        %v7874 = vsub.s32 %v7871, %v7873
        %v7875 = vrot.slane %v7861, %v7874
        %v7876 = vcombine.high %v7853, 0.0
        %v7877 = vcombine.high %v7860, 0.0
        %v7878 = vcombine.high %v7868, 0.0
        %v7879 = vcombine.high %v7875, 0.0
        %v7880 = vcombine.high %v7240, 0.0
        %v7882 = vunpack.c.l.s4 1983009808
        %v7883 = vunpack.c.0.s8 %v7882
        %v7884 = vlaneseq
        %v7885 = vshrl.u32 %v7884, 7
        %v7886 = vsub.s32 %v7883, %v7885
        %v7887 = vrot.slane %v7240, %v7886
        %v7889 = vunpack.c.l.s4 1983009808
        %v7890 = vunpack.c.0.s8 %v7889
        %v7891 = vlaneseq
        %v7892 = vshrl.u32 %v7891, 7
        %v7893 = vsub.s32 %v7890, %v7892
        %v7894 = vrot.slane %v7880, %v7893
        %v7895 = vcombine.high %v7887, 0.0
        %v7897 = vunpack.c.l.s4 1934713408
        %v7898 = vunpack.c.0.s8 %v7897
        %v7899 = vlaneseq
        %v7900 = vshrl.u32 %v7899, 7
        %v7901 = vsub.s32 %v7898, %v7900
        %v7902 = vrot.slane %v7887, %v7901
        %v7904 = vunpack.c.l.s4 1934713408
        %v7905 = vunpack.c.0.s8 %v7904
        %v7906 = vlaneseq
        %v7907 = vshrl.u32 %v7906, 7
        %v7908 = vsub.s32 %v7905, %v7907
        %v7909 = vrot.slane %v7895, %v7908
        %v7910 = vcombine.high %v7894, 0.0
        %v7912 = vunpack.c.l.s4 1934713408
        %v7913 = vunpack.c.0.s8 %v7912
        %v7914 = vlaneseq
        %v7915 = vshrl.u32 %v7914, 7
        %v7916 = vsub.s32 %v7913, %v7915
        %v7917 = vrot.slane %v7894, %v7916
        %v7919 = vunpack.c.l.s4 1934713408
        %v7920 = vunpack.c.0.s8 %v7919
        %v7921 = vlaneseq
        %v7922 = vshrl.u32 %v7921, 7
        %v7923 = vsub.s32 %v7920, %v7922
        %v7924 = vrot.slane %v7910, %v7923
        %v7925 = vcombine.high %v7902, 0.0
        %v7926 = vcombine.high %v7909, 0.0
        %v7927 = vcombine.high %v7917, 0.0
        %v7928 = vcombine.high %v7924, 0.0
        %v7929 = vcombine.high %v7241, 0.0
        %v7931 = vunpack.c.l.s4 1983009808
        %v7932 = vunpack.c.0.s8 %v7931
        %v7933 = vlaneseq
        %v7934 = vshrl.u32 %v7933, 7
        %v7935 = vsub.s32 %v7932, %v7934
        %v7936 = vrot.slane %v7241, %v7935
        %v7938 = vunpack.c.l.s4 1983009808
        %v7939 = vunpack.c.0.s8 %v7938
        %v7940 = vlaneseq
        %v7941 = vshrl.u32 %v7940, 7
        %v7942 = vsub.s32 %v7939, %v7941
        %v7943 = vrot.slane %v7929, %v7942
        %v7944 = vcombine.high %v7936, 0.0
        %v7946 = vunpack.c.l.s4 1934713408
        %v7947 = vunpack.c.0.s8 %v7946
        %v7948 = vlaneseq
        %v7949 = vshrl.u32 %v7948, 7
        %v7950 = vsub.s32 %v7947, %v7949
        %v7951 = vrot.slane %v7936, %v7950
        %v7953 = vunpack.c.l.s4 1934713408
        %v7954 = vunpack.c.0.s8 %v7953
        %v7955 = vlaneseq
        %v7956 = vshrl.u32 %v7955, 7
        %v7957 = vsub.s32 %v7954, %v7956
        %v7958 = vrot.slane %v7944, %v7957
        %v7959 = vcombine.high %v7943, 0.0
        %v7961 = vunpack.c.l.s4 1934713408
        %v7962 = vunpack.c.0.s8 %v7961
        %v7963 = vlaneseq
        %v7964 = vshrl.u32 %v7963, 7
        %v7965 = vsub.s32 %v7962, %v7964
        %v7966 = vrot.slane %v7943, %v7965
        %v7968 = vunpack.c.l.s4 1934713408
        %v7969 = vunpack.c.0.s8 %v7968
        %v7970 = vlaneseq
        %v7971 = vshrl.u32 %v7970, 7
        %v7972 = vsub.s32 %v7969, %v7971
        %v7973 = vrot.slane %v7959, %v7972
        %v7974 = vcombine.high %v7951, 0.0
        %v7975 = vcombine.high %v7958, 0.0
        %v7976 = vcombine.high %v7966, 0.0
        %v7977 = vcombine.high %v7973, 0.0
        %v7978 = vcombine.high %v7242, 0.0
        %v7980 = vunpack.c.l.s4 1983009808
        %v7981 = vunpack.c.0.s8 %v7980
        %v7982 = vlaneseq
        %v7983 = vshrl.u32 %v7982, 7
        %v7984 = vsub.s32 %v7981, %v7983
        %v7985 = vrot.slane %v7242, %v7984
        %v7987 = vunpack.c.l.s4 1983009808
        %v7988 = vunpack.c.0.s8 %v7987
        %v7989 = vlaneseq
        %v7990 = vshrl.u32 %v7989, 7
        %v7991 = vsub.s32 %v7988, %v7990
        %v7992 = vrot.slane %v7978, %v7991
        %v7993 = vcombine.high %v7985, 0.0
        %v7995 = vunpack.c.l.s4 1934713408
        %v7996 = vunpack.c.0.s8 %v7995
        %v7997 = vlaneseq
        %v7998 = vshrl.u32 %v7997, 7
        %v7999 = vsub.s32 %v7996, %v7998
        %v8000 = vrot.slane %v7985, %v7999
        %v8002 = vunpack.c.l.s4 1934713408
        %v8003 = vunpack.c.0.s8 %v8002
        %v8004 = vlaneseq
        %v8005 = vshrl.u32 %v8004, 7
        %v8006 = vsub.s32 %v8003, %v8005
        %v8007 = vrot.slane %v7993, %v8006
        %v8008 = vcombine.high %v7992, 0.0
        %v8010 = vunpack.c.l.s4 1934713408
        %v8011 = vunpack.c.0.s8 %v8010
        %v8012 = vlaneseq
        %v8013 = vshrl.u32 %v8012, 7
        %v8014 = vsub.s32 %v8011, %v8013
        %v8015 = vrot.slane %v7992, %v8014
        %v8017 = vunpack.c.l.s4 1934713408
        %v8018 = vunpack.c.0.s8 %v8017
        %v8019 = vlaneseq
        %v8020 = vshrl.u32 %v8019, 7
        %v8021 = vsub.s32 %v8018, %v8020
        %v8022 = vrot.slane %v8008, %v8021
        %v8023 = vcombine.high %v8000, 0.0
        %v8024 = vcombine.high %v8007, 0.0
        %v8025 = vcombine.high %v8015, 0.0
        %v8026 = vcombine.high %v8022, 0.0
        %v8027 = vcombine.high %v7243, 0.0
        %v8029 = vunpack.c.l.s4 1983009808
        %v8030 = vunpack.c.0.s8 %v8029
        %v8031 = vlaneseq
        %v8032 = vshrl.u32 %v8031, 7
        %v8033 = vsub.s32 %v8030, %v8032
        %v8034 = vrot.slane %v7243, %v8033
        %v8036 = vunpack.c.l.s4 1983009808
        %v8037 = vunpack.c.0.s8 %v8036
        %v8038 = vlaneseq
        %v8039 = vshrl.u32 %v8038, 7
        %v8040 = vsub.s32 %v8037, %v8039
        %v8041 = vrot.slane %v8027, %v8040
        %v8042 = vcombine.high %v8034, 0.0
        %v8044 = vunpack.c.l.s4 1934713408
        %v8045 = vunpack.c.0.s8 %v8044
        %v8046 = vlaneseq
        %v8047 = vshrl.u32 %v8046, 7
        %v8048 = vsub.s32 %v8045, %v8047
        %v8049 = vrot.slane %v8034, %v8048
        %v8051 = vunpack.c.l.s4 1934713408
        %v8052 = vunpack.c.0.s8 %v8051
        %v8053 = vlaneseq
        %v8054 = vshrl.u32 %v8053, 7
        %v8055 = vsub.s32 %v8052, %v8054
        %v8056 = vrot.slane %v8042, %v8055
        %v8057 = vcombine.high %v8041, 0.0
        %v8059 = vunpack.c.l.s4 1934713408
        %v8060 = vunpack.c.0.s8 %v8059
        %v8061 = vlaneseq
        %v8062 = vshrl.u32 %v8061, 7
        %v8063 = vsub.s32 %v8060, %v8062
        %v8064 = vrot.slane %v8041, %v8063
        %v8066 = vunpack.c.l.s4 1934713408
        %v8067 = vunpack.c.0.s8 %v8066
        %v8068 = vlaneseq
        %v8069 = vshrl.u32 %v8068, 7
        %v8070 = vsub.s32 %v8067, %v8069
        %v8071 = vrot.slane %v8057, %v8070
        %v8072 = vcombine.high %v8049, 0.0
        %v8073 = vcombine.high %v8056, 0.0
        %v8074 = vcombine.high %v8064, 0.0
        %v8075 = vcombine.high %v8071, 0.0
        %v8076 = vcombine.high %v7244, 0.0
        %v8078 = vunpack.c.l.s4 1983009808
        %v8079 = vunpack.c.0.s8 %v8078
        %v8080 = vlaneseq
        %v8081 = vshrl.u32 %v8080, 7
        %v8082 = vsub.s32 %v8079, %v8081
        %v8083 = vrot.slane %v7244, %v8082
        %v8085 = vunpack.c.l.s4 1983009808
        %v8086 = vunpack.c.0.s8 %v8085
        %v8087 = vlaneseq
        %v8088 = vshrl.u32 %v8087, 7
        %v8089 = vsub.s32 %v8086, %v8088
        %v8090 = vrot.slane %v8076, %v8089
        %v8091 = vcombine.high %v8083, 0.0
        %v8093 = vunpack.c.l.s4 1934713408
        %v8094 = vunpack.c.0.s8 %v8093
        %v8095 = vlaneseq
        %v8096 = vshrl.u32 %v8095, 7
        %v8097 = vsub.s32 %v8094, %v8096
        %v8098 = vrot.slane %v8083, %v8097
        %v8100 = vunpack.c.l.s4 1934713408
        %v8101 = vunpack.c.0.s8 %v8100
        %v8102 = vlaneseq
        %v8103 = vshrl.u32 %v8102, 7
        %v8104 = vsub.s32 %v8101, %v8103
        %v8105 = vrot.slane %v8091, %v8104
        %v8106 = vcombine.high %v8090, 0.0
        %v8108 = vunpack.c.l.s4 1934713408
        %v8109 = vunpack.c.0.s8 %v8108
        %v8110 = vlaneseq
        %v8111 = vshrl.u32 %v8110, 7
        %v8112 = vsub.s32 %v8109, %v8111
        %v8113 = vrot.slane %v8090, %v8112
        %v8115 = vunpack.c.l.s4 1934713408
        %v8116 = vunpack.c.0.s8 %v8115
        %v8117 = vlaneseq
        %v8118 = vshrl.u32 %v8117, 7
        %v8119 = vsub.s32 %v8116, %v8118
        %v8120 = vrot.slane %v8106, %v8119
        %v8121 = vcombine.high %v8098, 0.0
        %v8122 = vcombine.high %v8105, 0.0
        %v8123 = vcombine.high %v8113, 0.0
        %v8124 = vcombine.high %v8120, 0.0
        %v8125 = vcombine.high %v7245, 0.0
        %v8127 = vunpack.c.l.s4 1983009808
        %v8128 = vunpack.c.0.s8 %v8127
        %v8129 = vlaneseq
        %v8130 = vshrl.u32 %v8129, 7
        %v8131 = vsub.s32 %v8128, %v8130
        %v8132 = vrot.slane %v7245, %v8131
        %v8134 = vunpack.c.l.s4 1983009808
        %v8135 = vunpack.c.0.s8 %v8134
        %v8136 = vlaneseq
        %v8137 = vshrl.u32 %v8136, 7
        %v8138 = vsub.s32 %v8135, %v8137
        %v8139 = vrot.slane %v8125, %v8138
        %v8140 = vcombine.high %v8132, 0.0
        %v8142 = vunpack.c.l.s4 1934713408
        %v8143 = vunpack.c.0.s8 %v8142
        %v8144 = vlaneseq
        %v8145 = vshrl.u32 %v8144, 7
        %v8146 = vsub.s32 %v8143, %v8145
        %v8147 = vrot.slane %v8132, %v8146
        %v8149 = vunpack.c.l.s4 1934713408
        %v8150 = vunpack.c.0.s8 %v8149
        %v8151 = vlaneseq
        %v8152 = vshrl.u32 %v8151, 7
        %v8153 = vsub.s32 %v8150, %v8152
        %v8154 = vrot.slane %v8140, %v8153
        %v8155 = vcombine.high %v8139, 0.0
        %v8157 = vunpack.c.l.s4 1934713408
        %v8158 = vunpack.c.0.s8 %v8157
        %v8159 = vlaneseq
        %v8160 = vshrl.u32 %v8159, 7
        %v8161 = vsub.s32 %v8158, %v8160
        %v8162 = vrot.slane %v8139, %v8161
        %v8164 = vunpack.c.l.s4 1934713408
        %v8165 = vunpack.c.0.s8 %v8164
        %v8166 = vlaneseq
        %v8167 = vshrl.u32 %v8166, 7
        %v8168 = vsub.s32 %v8165, %v8167
        %v8169 = vrot.slane %v8155, %v8168
        %v8170 = vcombine.high %v8147, 0.0
        %v8171 = vcombine.high %v8154, 0.0
        %v8172 = vcombine.high %v8162, 0.0
        %v8173 = vcombine.high %v8169, 0.0
        %v8174 = vcombine.high %v7246, 0.0
        %v8176 = vunpack.c.l.s4 1983009808
        %v8177 = vunpack.c.0.s8 %v8176
        %v8178 = vlaneseq
        %v8179 = vshrl.u32 %v8178, 7
        %v8180 = vsub.s32 %v8177, %v8179
        %v8181 = vrot.slane %v7246, %v8180
        %v8183 = vunpack.c.l.s4 1983009808
        %v8184 = vunpack.c.0.s8 %v8183
        %v8185 = vlaneseq
        %v8186 = vshrl.u32 %v8185, 7
        %v8187 = vsub.s32 %v8184, %v8186
        %v8188 = vrot.slane %v8174, %v8187
        %v8189 = vcombine.high %v8181, 0.0
        %v8191 = vunpack.c.l.s4 1934713408
        %v8192 = vunpack.c.0.s8 %v8191
        %v8193 = vlaneseq
        %v8194 = vshrl.u32 %v8193, 7
        %v8195 = vsub.s32 %v8192, %v8194
        %v8196 = vrot.slane %v8181, %v8195
        %v8198 = vunpack.c.l.s4 1934713408
        %v8199 = vunpack.c.0.s8 %v8198
        %v8200 = vlaneseq
        %v8201 = vshrl.u32 %v8200, 7
        %v8202 = vsub.s32 %v8199, %v8201
        %v8203 = vrot.slane %v8189, %v8202
        %v8204 = vcombine.high %v8188, 0.0
        %v8206 = vunpack.c.l.s4 1934713408
        %v8207 = vunpack.c.0.s8 %v8206
        %v8208 = vlaneseq
        %v8209 = vshrl.u32 %v8208, 7
        %v8210 = vsub.s32 %v8207, %v8209
        %v8211 = vrot.slane %v8188, %v8210
        %v8213 = vunpack.c.l.s4 1934713408
        %v8214 = vunpack.c.0.s8 %v8213
        %v8215 = vlaneseq
        %v8216 = vshrl.u32 %v8215, 7
        %v8217 = vsub.s32 %v8214, %v8216
        %v8218 = vrot.slane %v8204, %v8217
        %v8219 = vcombine.high %v8196, 0.0
        %v8220 = vcombine.high %v8203, 0.0
        %v8221 = vcombine.high %v8211, 0.0
        %v8222 = vcombine.high %v8218, 0.0
        %v8223 = vcombine.high %v7247, 0.0
        %v8225 = vunpack.c.l.s4 1983009808
        %v8226 = vunpack.c.0.s8 %v8225
        %v8227 = vlaneseq
        %v8228 = vshrl.u32 %v8227, 7
        %v8229 = vsub.s32 %v8226, %v8228
        %v8230 = vrot.slane %v7247, %v8229
        %v8232 = vunpack.c.l.s4 1983009808
        %v8233 = vunpack.c.0.s8 %v8232
        %v8234 = vlaneseq
        %v8235 = vshrl.u32 %v8234, 7
        %v8236 = vsub.s32 %v8233, %v8235
        %v8237 = vrot.slane %v8223, %v8236
        %v8238 = vcombine.high %v8230, 0.0
        %v8240 = vunpack.c.l.s4 1934713408
        %v8241 = vunpack.c.0.s8 %v8240
        %v8242 = vlaneseq
        %v8243 = vshrl.u32 %v8242, 7
        %v8244 = vsub.s32 %v8241, %v8243
        %v8245 = vrot.slane %v8230, %v8244
        %v8247 = vunpack.c.l.s4 1934713408
        %v8248 = vunpack.c.0.s8 %v8247
        %v8249 = vlaneseq
        %v8250 = vshrl.u32 %v8249, 7
        %v8251 = vsub.s32 %v8248, %v8250
        %v8252 = vrot.slane %v8238, %v8251
        %v8253 = vcombine.high %v8237, 0.0
        %v8255 = vunpack.c.l.s4 1934713408
        %v8256 = vunpack.c.0.s8 %v8255
        %v8257 = vlaneseq
        %v8258 = vshrl.u32 %v8257, 7
        %v8259 = vsub.s32 %v8256, %v8258
        %v8260 = vrot.slane %v8237, %v8259
        %v8262 = vunpack.c.l.s4 1934713408
        %v8263 = vunpack.c.0.s8 %v8262
        %v8264 = vlaneseq
        %v8265 = vshrl.u32 %v8264, 7
        %v8266 = vsub.s32 %v8263, %v8265
        %v8267 = vrot.slane %v8253, %v8266
        %v8268 = vcombine.high %v8245, 0.0
        %v8269 = vcombine.high %v8252, 0.0
        %v8270 = vcombine.high %v8260, 0.0
        %v8271 = vcombine.high %v8267, 0.0
        %v8272 = vcombine.high %v7248, 0.0
        %v8274 = vunpack.c.l.s4 1983009808
        %v8275 = vunpack.c.0.s8 %v8274
        %v8276 = vlaneseq
        %v8277 = vshrl.u32 %v8276, 7
        %v8278 = vsub.s32 %v8275, %v8277
        %v8279 = vrot.slane %v7248, %v8278
        %v8281 = vunpack.c.l.s4 1983009808
        %v8282 = vunpack.c.0.s8 %v8281
        %v8283 = vlaneseq
        %v8284 = vshrl.u32 %v8283, 7
        %v8285 = vsub.s32 %v8282, %v8284
        %v8286 = vrot.slane %v8272, %v8285
        %v8287 = vcombine.high %v8279, 0.0
        %v8289 = vunpack.c.l.s4 1934713408
        %v8290 = vunpack.c.0.s8 %v8289
        %v8291 = vlaneseq
        %v8292 = vshrl.u32 %v8291, 7
        %v8293 = vsub.s32 %v8290, %v8292
        %v8294 = vrot.slane %v8279, %v8293
        %v8296 = vunpack.c.l.s4 1934713408
        %v8297 = vunpack.c.0.s8 %v8296
        %v8298 = vlaneseq
        %v8299 = vshrl.u32 %v8298, 7
        %v8300 = vsub.s32 %v8297, %v8299
        %v8301 = vrot.slane %v8287, %v8300
        %v8302 = vcombine.high %v8286, 0.0
        %v8304 = vunpack.c.l.s4 1934713408
        %v8305 = vunpack.c.0.s8 %v8304
        %v8306 = vlaneseq
        %v8307 = vshrl.u32 %v8306, 7
        %v8308 = vsub.s32 %v8305, %v8307
        %v8309 = vrot.slane %v8286, %v8308
        %v8311 = vunpack.c.l.s4 1934713408
        %v8312 = vunpack.c.0.s8 %v8311
        %v8313 = vlaneseq
        %v8314 = vshrl.u32 %v8313, 7
        %v8315 = vsub.s32 %v8312, %v8314
        %v8316 = vrot.slane %v8302, %v8315
        %v8317 = vcombine.high %v8294, 0.0
        %v8318 = vcombine.high %v8301, 0.0
        %v8319 = vcombine.high %v8309, 0.0
        %v8320 = vcombine.high %v8316, 0.0
        %v8321 = vcombine.high %v7249, 0.0
        %v8323 = vunpack.c.l.s4 1983009808
        %v8324 = vunpack.c.0.s8 %v8323
        %v8325 = vlaneseq
        %v8326 = vshrl.u32 %v8325, 7
        %v8327 = vsub.s32 %v8324, %v8326
        %v8328 = vrot.slane %v7249, %v8327
        %v8330 = vunpack.c.l.s4 1983009808
        %v8331 = vunpack.c.0.s8 %v8330
        %v8332 = vlaneseq
        %v8333 = vshrl.u32 %v8332, 7
        %v8334 = vsub.s32 %v8331, %v8333
        %v8335 = vrot.slane %v8321, %v8334
        %v8336 = vcombine.high %v8328, 0.0
        %v8338 = vunpack.c.l.s4 1934713408
        %v8339 = vunpack.c.0.s8 %v8338
        %v8340 = vlaneseq
        %v8341 = vshrl.u32 %v8340, 7
        %v8342 = vsub.s32 %v8339, %v8341
        %v8343 = vrot.slane %v8328, %v8342
        %v8345 = vunpack.c.l.s4 1934713408
        %v8346 = vunpack.c.0.s8 %v8345
        %v8347 = vlaneseq
        %v8348 = vshrl.u32 %v8347, 7
        %v8349 = vsub.s32 %v8346, %v8348
        %v8350 = vrot.slane %v8336, %v8349
        %v8351 = vcombine.high %v8335, 0.0
        %v8353 = vunpack.c.l.s4 1934713408
        %v8354 = vunpack.c.0.s8 %v8353
        %v8355 = vlaneseq
        %v8356 = vshrl.u32 %v8355, 7
        %v8357 = vsub.s32 %v8354, %v8356
        %v8358 = vrot.slane %v8335, %v8357
        %v8360 = vunpack.c.l.s4 1934713408
        %v8361 = vunpack.c.0.s8 %v8360
        %v8362 = vlaneseq
        %v8363 = vshrl.u32 %v8362, 7
        %v8364 = vsub.s32 %v8361, %v8363
        %v8365 = vrot.slane %v8351, %v8364
        %v8366 = vcombine.high %v8343, 0.0
        %v8367 = vcombine.high %v8350, 0.0
        %v8368 = vcombine.high %v8358, 0.0
        %v8369 = vcombine.high %v8365, 0.0
        %v8370 = vcombine.high %v7250, 0.0
        %v8372 = vunpack.c.l.s4 1983009808
        %v8373 = vunpack.c.0.s8 %v8372
        %v8374 = vlaneseq
        %v8375 = vshrl.u32 %v8374, 7
        %v8376 = vsub.s32 %v8373, %v8375
        %v8377 = vrot.slane %v7250, %v8376
        %v8379 = vunpack.c.l.s4 1983009808
        %v8380 = vunpack.c.0.s8 %v8379
        %v8381 = vlaneseq
        %v8382 = vshrl.u32 %v8381, 7
        %v8383 = vsub.s32 %v8380, %v8382
        %v8384 = vrot.slane %v8370, %v8383
        %v8385 = vcombine.high %v8377, 0.0
        %v8387 = vunpack.c.l.s4 1934713408
        %v8388 = vunpack.c.0.s8 %v8387
        %v8389 = vlaneseq
        %v8390 = vshrl.u32 %v8389, 7
        %v8391 = vsub.s32 %v8388, %v8390
        %v8392 = vrot.slane %v8377, %v8391
        %v8394 = vunpack.c.l.s4 1934713408
        %v8395 = vunpack.c.0.s8 %v8394
        %v8396 = vlaneseq
        %v8397 = vshrl.u32 %v8396, 7
        %v8398 = vsub.s32 %v8395, %v8397
        %v8399 = vrot.slane %v8385, %v8398
        %v8400 = vcombine.high %v8384, 0.0
        %v8402 = vunpack.c.l.s4 1934713408
        %v8403 = vunpack.c.0.s8 %v8402
        %v8404 = vlaneseq
        %v8405 = vshrl.u32 %v8404, 7
        %v8406 = vsub.s32 %v8403, %v8405
        %v8407 = vrot.slane %v8384, %v8406
        %v8409 = vunpack.c.l.s4 1934713408
        %v8410 = vunpack.c.0.s8 %v8409
        %v8411 = vlaneseq
        %v8412 = vshrl.u32 %v8411, 7
        %v8413 = vsub.s32 %v8410, %v8412
        %v8414 = vrot.slane %v8400, %v8413
        %v8415 = vcombine.high %v8392, 0.0
        %v8416 = vcombine.high %v8399, 0.0
        %v8417 = vcombine.high %v8407, 0.0
        %v8418 = vcombine.high %v8414, 0.0
        %v8419 = vcombine.high %v7251, 0.0
        %v8421 = vunpack.c.l.s4 1983009808
        %v8422 = vunpack.c.0.s8 %v8421
        %v8423 = vlaneseq
        %v8424 = vshrl.u32 %v8423, 7
        %v8425 = vsub.s32 %v8422, %v8424
        %v8426 = vrot.slane %v7251, %v8425
        %v8428 = vunpack.c.l.s4 1983009808
        %v8429 = vunpack.c.0.s8 %v8428
        %v8430 = vlaneseq
        %v8431 = vshrl.u32 %v8430, 7
        %v8432 = vsub.s32 %v8429, %v8431
        %v8433 = vrot.slane %v8419, %v8432
        %v8434 = vcombine.high %v8426, 0.0
        %v8436 = vunpack.c.l.s4 1934713408
        %v8437 = vunpack.c.0.s8 %v8436
        %v8438 = vlaneseq
        %v8439 = vshrl.u32 %v8438, 7
        %v8440 = vsub.s32 %v8437, %v8439
        %v8441 = vrot.slane %v8426, %v8440
        %v8443 = vunpack.c.l.s4 1934713408
        %v8444 = vunpack.c.0.s8 %v8443
        %v8445 = vlaneseq
        %v8446 = vshrl.u32 %v8445, 7
        %v8447 = vsub.s32 %v8444, %v8446
        %v8448 = vrot.slane %v8434, %v8447
        %v8449 = vcombine.high %v8433, 0.0
        %v8451 = vunpack.c.l.s4 1934713408
        %v8452 = vunpack.c.0.s8 %v8451
        %v8453 = vlaneseq
        %v8454 = vshrl.u32 %v8453, 7
        %v8455 = vsub.s32 %v8452, %v8454
        %v8456 = vrot.slane %v8433, %v8455
        %v8458 = vunpack.c.l.s4 1934713408
        %v8459 = vunpack.c.0.s8 %v8458
        %v8460 = vlaneseq
        %v8461 = vshrl.u32 %v8460, 7
        %v8462 = vsub.s32 %v8459, %v8461
        %v8463 = vrot.slane %v8449, %v8462
        %v8464 = vcombine.high %v8441, 0.0
        %v8465 = vcombine.high %v8448, 0.0
        %v8466 = vcombine.high %v8456, 0.0
        %v8467 = vcombine.high %v8463, 0.0
        %v8468 = vcombine.high %v7252, 0.0
        %v8470 = vunpack.c.l.s4 1983009808
        %v8471 = vunpack.c.0.s8 %v8470
        %v8472 = vlaneseq
        %v8473 = vshrl.u32 %v8472, 7
        %v8474 = vsub.s32 %v8471, %v8473
        %v8475 = vrot.slane %v7252, %v8474
        %v8477 = vunpack.c.l.s4 1983009808
        %v8478 = vunpack.c.0.s8 %v8477
        %v8479 = vlaneseq
        %v8480 = vshrl.u32 %v8479, 7
        %v8481 = vsub.s32 %v8478, %v8480
        %v8482 = vrot.slane %v8468, %v8481
        %v8483 = vcombine.high %v8475, 0.0
        %v8485 = vunpack.c.l.s4 1934713408
        %v8486 = vunpack.c.0.s8 %v8485
        %v8487 = vlaneseq
        %v8488 = vshrl.u32 %v8487, 7
        %v8489 = vsub.s32 %v8486, %v8488
        %v8490 = vrot.slane %v8475, %v8489
        %v8492 = vunpack.c.l.s4 1934713408
        %v8493 = vunpack.c.0.s8 %v8492
        %v8494 = vlaneseq
        %v8495 = vshrl.u32 %v8494, 7
        %v8496 = vsub.s32 %v8493, %v8495
        %v8497 = vrot.slane %v8483, %v8496
        %v8498 = vcombine.high %v8482, 0.0
        %v8500 = vunpack.c.l.s4 1934713408
        %v8501 = vunpack.c.0.s8 %v8500
        %v8502 = vlaneseq
        %v8503 = vshrl.u32 %v8502, 7
        %v8504 = vsub.s32 %v8501, %v8503
        %v8505 = vrot.slane %v8482, %v8504
        %v8507 = vunpack.c.l.s4 1934713408
        %v8508 = vunpack.c.0.s8 %v8507
        %v8509 = vlaneseq
        %v8510 = vshrl.u32 %v8509, 7
        %v8511 = vsub.s32 %v8508, %v8510
        %v8512 = vrot.slane %v8498, %v8511
        %v8513 = vcombine.high %v8490, 0.0
        %v8514 = vcombine.high %v8497, 0.0
        %v8515 = vcombine.high %v8505, 0.0
        %v8516 = vcombine.high %v8512, 0.0
        %v8517 = vcombine.high %v7253, 0.0
        %v8519 = vunpack.c.l.s4 1983009808
        %v8520 = vunpack.c.0.s8 %v8519
        %v8521 = vlaneseq
        %v8522 = vshrl.u32 %v8521, 7
        %v8523 = vsub.s32 %v8520, %v8522
        %v8524 = vrot.slane %v7253, %v8523
        %v8526 = vunpack.c.l.s4 1983009808
        %v8527 = vunpack.c.0.s8 %v8526
        %v8528 = vlaneseq
        %v8529 = vshrl.u32 %v8528, 7
        %v8530 = vsub.s32 %v8527, %v8529
        %v8531 = vrot.slane %v8517, %v8530
        %v8532 = vcombine.high %v8524, 0.0
        %v8534 = vunpack.c.l.s4 1934713408
        %v8535 = vunpack.c.0.s8 %v8534
        %v8536 = vlaneseq
        %v8537 = vshrl.u32 %v8536, 7
        %v8538 = vsub.s32 %v8535, %v8537
        %v8539 = vrot.slane %v8524, %v8538
        %v8541 = vunpack.c.l.s4 1934713408
        %v8542 = vunpack.c.0.s8 %v8541
        %v8543 = vlaneseq
        %v8544 = vshrl.u32 %v8543, 7
        %v8545 = vsub.s32 %v8542, %v8544
        %v8546 = vrot.slane %v8532, %v8545
        %v8547 = vcombine.high %v8531, 0.0
        %v8549 = vunpack.c.l.s4 1934713408
        %v8550 = vunpack.c.0.s8 %v8549
        %v8551 = vlaneseq
        %v8552 = vshrl.u32 %v8551, 7
        %v8553 = vsub.s32 %v8550, %v8552
        %v8554 = vrot.slane %v8531, %v8553
        %v8556 = vunpack.c.l.s4 1934713408
        %v8557 = vunpack.c.0.s8 %v8556
        %v8558 = vlaneseq
        %v8559 = vshrl.u32 %v8558, 7
        %v8560 = vsub.s32 %v8557, %v8559
        %v8561 = vrot.slane %v8547, %v8560
        %v8562 = vcombine.high %v8539, 0.0
        %v8563 = vcombine.high %v8546, 0.0
        %v8564 = vcombine.high %v8554, 0.0
        %v8565 = vcombine.high %v8561, 0.0
        %v8566 = vcombine.high %v7254, 0.0
        %v8568 = vunpack.c.l.s4 1983009808
        %v8569 = vunpack.c.0.s8 %v8568
        %v8570 = vlaneseq
        %v8571 = vshrl.u32 %v8570, 7
        %v8572 = vsub.s32 %v8569, %v8571
        %v8573 = vrot.slane %v7254, %v8572
        %v8575 = vunpack.c.l.s4 1983009808
        %v8576 = vunpack.c.0.s8 %v8575
        %v8577 = vlaneseq
        %v8578 = vshrl.u32 %v8577, 7
        %v8579 = vsub.s32 %v8576, %v8578
        %v8580 = vrot.slane %v8566, %v8579
        %v8581 = vcombine.high %v8573, 0.0
        %v8583 = vunpack.c.l.s4 1934713408
        %v8584 = vunpack.c.0.s8 %v8583
        %v8585 = vlaneseq
        %v8586 = vshrl.u32 %v8585, 7
        %v8587 = vsub.s32 %v8584, %v8586
        %v8588 = vrot.slane %v8573, %v8587
        %v8590 = vunpack.c.l.s4 1934713408
        %v8591 = vunpack.c.0.s8 %v8590
        %v8592 = vlaneseq
        %v8593 = vshrl.u32 %v8592, 7
        %v8594 = vsub.s32 %v8591, %v8593
        %v8595 = vrot.slane %v8581, %v8594
        %v8596 = vcombine.high %v8580, 0.0
        %v8598 = vunpack.c.l.s4 1934713408
        %v8599 = vunpack.c.0.s8 %v8598
        %v8600 = vlaneseq
        %v8601 = vshrl.u32 %v8600, 7
        %v8602 = vsub.s32 %v8599, %v8601
        %v8603 = vrot.slane %v8580, %v8602
        %v8605 = vunpack.c.l.s4 1934713408
        %v8606 = vunpack.c.0.s8 %v8605
        %v8607 = vlaneseq
        %v8608 = vshrl.u32 %v8607, 7
        %v8609 = vsub.s32 %v8606, %v8608
        %v8610 = vrot.slane %v8596, %v8609
        %v8611 = vcombine.high %v8588, 0.0
        %v8612 = vcombine.high %v8595, 0.0
        %v8613 = vcombine.high %v8603, 0.0
        %v8614 = vcombine.high %v8610, 0.0
        %v8615 = vcombine.high %v7255, 0.0
        %v8617 = vunpack.c.l.s4 1983009808
        %v8618 = vunpack.c.0.s8 %v8617
        %v8619 = vlaneseq
        %v8620 = vshrl.u32 %v8619, 7
        %v8621 = vsub.s32 %v8618, %v8620
        %v8622 = vrot.slane %v7255, %v8621
        %v8624 = vunpack.c.l.s4 1983009808
        %v8625 = vunpack.c.0.s8 %v8624
        %v8626 = vlaneseq
        %v8627 = vshrl.u32 %v8626, 7
        %v8628 = vsub.s32 %v8625, %v8627
        %v8629 = vrot.slane %v8615, %v8628
        %v8630 = vcombine.high %v8622, 0.0
        %v8632 = vunpack.c.l.s4 1934713408
        %v8633 = vunpack.c.0.s8 %v8632
        %v8634 = vlaneseq
        %v8635 = vshrl.u32 %v8634, 7
        %v8636 = vsub.s32 %v8633, %v8635
        %v8637 = vrot.slane %v8622, %v8636
        %v8639 = vunpack.c.l.s4 1934713408
        %v8640 = vunpack.c.0.s8 %v8639
        %v8641 = vlaneseq
        %v8642 = vshrl.u32 %v8641, 7
        %v8643 = vsub.s32 %v8640, %v8642
        %v8644 = vrot.slane %v8630, %v8643
        %v8645 = vcombine.high %v8629, 0.0
        %v8647 = vunpack.c.l.s4 1934713408
        %v8648 = vunpack.c.0.s8 %v8647
        %v8649 = vlaneseq
        %v8650 = vshrl.u32 %v8649, 7
        %v8651 = vsub.s32 %v8648, %v8650
        %v8652 = vrot.slane %v8629, %v8651
        %v8654 = vunpack.c.l.s4 1934713408
        %v8655 = vunpack.c.0.s8 %v8654
        %v8656 = vlaneseq
        %v8657 = vshrl.u32 %v8656, 7
        %v8658 = vsub.s32 %v8655, %v8657
        %v8659 = vrot.slane %v8645, %v8658
        %v8660 = vcombine.high %v8637, 0.0
        %v8661 = vcombine.high %v8644, 0.0
        %v8662 = vcombine.high %v8652, 0.0
        %v8663 = vcombine.high %v8659, 0.0
        %v8664 = vcombine.high %v7256, 0.0
        %v8666 = vunpack.c.l.s4 1983009808
        %v8667 = vunpack.c.0.s8 %v8666
        %v8668 = vlaneseq
        %v8669 = vshrl.u32 %v8668, 7
        %v8670 = vsub.s32 %v8667, %v8669
        %v8671 = vrot.slane %v7256, %v8670
        %v8673 = vunpack.c.l.s4 1983009808
        %v8674 = vunpack.c.0.s8 %v8673
        %v8675 = vlaneseq
        %v8676 = vshrl.u32 %v8675, 7
        %v8677 = vsub.s32 %v8674, %v8676
        %v8678 = vrot.slane %v8664, %v8677
        %v8679 = vcombine.high %v8671, 0.0
        %v8681 = vunpack.c.l.s4 1934713408
        %v8682 = vunpack.c.0.s8 %v8681
        %v8683 = vlaneseq
        %v8684 = vshrl.u32 %v8683, 7
        %v8685 = vsub.s32 %v8682, %v8684
        %v8686 = vrot.slane %v8671, %v8685
        %v8688 = vunpack.c.l.s4 1934713408
        %v8689 = vunpack.c.0.s8 %v8688
        %v8690 = vlaneseq
        %v8691 = vshrl.u32 %v8690, 7
        %v8692 = vsub.s32 %v8689, %v8691
        %v8693 = vrot.slane %v8679, %v8692
        %v8694 = vcombine.high %v8678, 0.0
        %v8696 = vunpack.c.l.s4 1934713408
        %v8697 = vunpack.c.0.s8 %v8696
        %v8698 = vlaneseq
        %v8699 = vshrl.u32 %v8698, 7
        %v8700 = vsub.s32 %v8697, %v8699
        %v8701 = vrot.slane %v8678, %v8700
        %v8703 = vunpack.c.l.s4 1934713408
        %v8704 = vunpack.c.0.s8 %v8703
        %v8705 = vlaneseq
        %v8706 = vshrl.u32 %v8705, 7
        %v8707 = vsub.s32 %v8704, %v8706
        %v8708 = vrot.slane %v8694, %v8707
        %v8709 = vcombine.high %v8686, 0.0
        %v8710 = vcombine.high %v8693, 0.0
        %v8711 = vcombine.high %v8701, 0.0
        %v8712 = vcombine.high %v8708, 0.0
        %v8713 = vcombine.high %v7257, 0.0
        %v8715 = vunpack.c.l.s4 1983009808
        %v8716 = vunpack.c.0.s8 %v8715
        %v8717 = vlaneseq
        %v8718 = vshrl.u32 %v8717, 7
        %v8719 = vsub.s32 %v8716, %v8718
        %v8720 = vrot.slane %v7257, %v8719
        %v8722 = vunpack.c.l.s4 1983009808
        %v8723 = vunpack.c.0.s8 %v8722
        %v8724 = vlaneseq
        %v8725 = vshrl.u32 %v8724, 7
        %v8726 = vsub.s32 %v8723, %v8725
        %v8727 = vrot.slane %v8713, %v8726
        %v8728 = vcombine.high %v8720, 0.0
        %v8730 = vunpack.c.l.s4 1934713408
        %v8731 = vunpack.c.0.s8 %v8730
        %v8732 = vlaneseq
        %v8733 = vshrl.u32 %v8732, 7
        %v8734 = vsub.s32 %v8731, %v8733
        %v8735 = vrot.slane %v8720, %v8734
        %v8737 = vunpack.c.l.s4 1934713408
        %v8738 = vunpack.c.0.s8 %v8737
        %v8739 = vlaneseq
        %v8740 = vshrl.u32 %v8739, 7
        %v8741 = vsub.s32 %v8738, %v8740
        %v8742 = vrot.slane %v8728, %v8741
        %v8743 = vcombine.high %v8727, 0.0
        %v8745 = vunpack.c.l.s4 1934713408
        %v8746 = vunpack.c.0.s8 %v8745
        %v8747 = vlaneseq
        %v8748 = vshrl.u32 %v8747, 7
        %v8749 = vsub.s32 %v8746, %v8748
        %v8750 = vrot.slane %v8727, %v8749
        %v8752 = vunpack.c.l.s4 1934713408
        %v8753 = vunpack.c.0.s8 %v8752
        %v8754 = vlaneseq
        %v8755 = vshrl.u32 %v8754, 7
        %v8756 = vsub.s32 %v8753, %v8755
        %v8757 = vrot.slane %v8743, %v8756
        %v8758 = vcombine.high %v8735, 0.0
        %v8759 = vcombine.high %v8742, 0.0
        %v8760 = vcombine.high %v8750, 0.0
        %v8761 = vcombine.high %v8757, 0.0
        %v8762 = vcombine.high %v7258, 0.0
        %v8764 = vunpack.c.l.s4 1983009808
        %v8765 = vunpack.c.0.s8 %v8764
        %v8766 = vlaneseq
        %v8767 = vshrl.u32 %v8766, 7
        %v8768 = vsub.s32 %v8765, %v8767
        %v8769 = vrot.slane %v7258, %v8768
        %v8771 = vunpack.c.l.s4 1983009808
        %v8772 = vunpack.c.0.s8 %v8771
        %v8773 = vlaneseq
        %v8774 = vshrl.u32 %v8773, 7
        %v8775 = vsub.s32 %v8772, %v8774
        %v8776 = vrot.slane %v8762, %v8775
        %v8777 = vcombine.high %v8769, 0.0
        %v8779 = vunpack.c.l.s4 1934713408
        %v8780 = vunpack.c.0.s8 %v8779
        %v8781 = vlaneseq
        %v8782 = vshrl.u32 %v8781, 7
        %v8783 = vsub.s32 %v8780, %v8782
        %v8784 = vrot.slane %v8769, %v8783
        %v8786 = vunpack.c.l.s4 1934713408
        %v8787 = vunpack.c.0.s8 %v8786
        %v8788 = vlaneseq
        %v8789 = vshrl.u32 %v8788, 7
        %v8790 = vsub.s32 %v8787, %v8789
        %v8791 = vrot.slane %v8777, %v8790
        %v8792 = vcombine.high %v8776, 0.0
        %v8794 = vunpack.c.l.s4 1934713408
        %v8795 = vunpack.c.0.s8 %v8794
        %v8796 = vlaneseq
        %v8797 = vshrl.u32 %v8796, 7
        %v8798 = vsub.s32 %v8795, %v8797
        %v8799 = vrot.slane %v8776, %v8798
        %v8801 = vunpack.c.l.s4 1934713408
        %v8802 = vunpack.c.0.s8 %v8801
        %v8803 = vlaneseq
        %v8804 = vshrl.u32 %v8803, 7
        %v8805 = vsub.s32 %v8802, %v8804
        %v8806 = vrot.slane %v8792, %v8805
        %v8807 = vcombine.high %v8784, 0.0
        %v8808 = vcombine.high %v8791, 0.0
        %v8809 = vcombine.high %v8799, 0.0
        %v8810 = vcombine.high %v8806, 0.0
        %v8811 = vcombine.high %v7259, 0.0
        %v8813 = vunpack.c.l.s4 1983009808
        %v8814 = vunpack.c.0.s8 %v8813
        %v8815 = vlaneseq
        %v8816 = vshrl.u32 %v8815, 7
        %v8817 = vsub.s32 %v8814, %v8816
        %v8818 = vrot.slane %v7259, %v8817
        %v8820 = vunpack.c.l.s4 1983009808
        %v8821 = vunpack.c.0.s8 %v8820
        %v8822 = vlaneseq
        %v8823 = vshrl.u32 %v8822, 7
        %v8824 = vsub.s32 %v8821, %v8823
        %v8825 = vrot.slane %v8811, %v8824
        %v8826 = vcombine.high %v8818, 0.0
        %v8828 = vunpack.c.l.s4 1934713408
        %v8829 = vunpack.c.0.s8 %v8828
        %v8830 = vlaneseq
        %v8831 = vshrl.u32 %v8830, 7
        %v8832 = vsub.s32 %v8829, %v8831
        %v8833 = vrot.slane %v8818, %v8832
        %v8835 = vunpack.c.l.s4 1934713408
        %v8836 = vunpack.c.0.s8 %v8835
        %v8837 = vlaneseq
        %v8838 = vshrl.u32 %v8837, 7
        %v8839 = vsub.s32 %v8836, %v8838
        %v8840 = vrot.slane %v8826, %v8839
        %v8841 = vcombine.high %v8825, 0.0
        %v8843 = vunpack.c.l.s4 1934713408
        %v8844 = vunpack.c.0.s8 %v8843
        %v8845 = vlaneseq
        %v8846 = vshrl.u32 %v8845, 7
        %v8847 = vsub.s32 %v8844, %v8846
        %v8848 = vrot.slane %v8825, %v8847
        %v8850 = vunpack.c.l.s4 1934713408
        %v8851 = vunpack.c.0.s8 %v8850
        %v8852 = vlaneseq
        %v8853 = vshrl.u32 %v8852, 7
        %v8854 = vsub.s32 %v8851, %v8853
        %v8855 = vrot.slane %v8841, %v8854
        %v8856 = vcombine.high %v8833, 0.0
        %v8857 = vcombine.high %v8840, 0.0
        %v8858 = vcombine.high %v8848, 0.0
        %v8859 = vcombine.high %v8855, 0.0
        %v8860 = vcombine.high %v7260, 0.0
        %v8862 = vunpack.c.l.s4 1983009808
        %v8863 = vunpack.c.0.s8 %v8862
        %v8864 = vlaneseq
        %v8865 = vshrl.u32 %v8864, 7
        %v8866 = vsub.s32 %v8863, %v8865
        %v8867 = vrot.slane %v7260, %v8866
        %v8869 = vunpack.c.l.s4 1983009808
        %v8870 = vunpack.c.0.s8 %v8869
        %v8871 = vlaneseq
        %v8872 = vshrl.u32 %v8871, 7
        %v8873 = vsub.s32 %v8870, %v8872
        %v8874 = vrot.slane %v8860, %v8873
        %v8875 = vcombine.high %v8867, 0.0
        %v8877 = vunpack.c.l.s4 1934713408
        %v8878 = vunpack.c.0.s8 %v8877
        %v8879 = vlaneseq
        %v8880 = vshrl.u32 %v8879, 7
        %v8881 = vsub.s32 %v8878, %v8880
        %v8882 = vrot.slane %v8867, %v8881
        %v8884 = vunpack.c.l.s4 1934713408
        %v8885 = vunpack.c.0.s8 %v8884
        %v8886 = vlaneseq
        %v8887 = vshrl.u32 %v8886, 7
        %v8888 = vsub.s32 %v8885, %v8887
        %v8889 = vrot.slane %v8875, %v8888
        %v8890 = vcombine.high %v8874, 0.0
        %v8892 = vunpack.c.l.s4 1934713408
        %v8893 = vunpack.c.0.s8 %v8892
        %v8894 = vlaneseq
        %v8895 = vshrl.u32 %v8894, 7
        %v8896 = vsub.s32 %v8893, %v8895
        %v8897 = vrot.slane %v8874, %v8896
        %v8899 = vunpack.c.l.s4 1934713408
        %v8900 = vunpack.c.0.s8 %v8899
        %v8901 = vlaneseq
        %v8902 = vshrl.u32 %v8901, 7
        %v8903 = vsub.s32 %v8900, %v8902
        %v8904 = vrot.slane %v8890, %v8903
        %v8905 = vcombine.high %v8882, 0.0
        %v8906 = vcombine.high %v8889, 0.0
        %v8907 = vcombine.high %v8897, 0.0
        %v8908 = vcombine.high %v8904, 0.0
        %v8909 = vcombine.high %v7261, 0.0
        %v8911 = vunpack.c.l.s4 1983009808
        %v8912 = vunpack.c.0.s8 %v8911
        %v8913 = vlaneseq
        %v8914 = vshrl.u32 %v8913, 7
        %v8915 = vsub.s32 %v8912, %v8914
        %v8916 = vrot.slane %v7261, %v8915
        %v8918 = vunpack.c.l.s4 1983009808
        %v8919 = vunpack.c.0.s8 %v8918
        %v8920 = vlaneseq
        %v8921 = vshrl.u32 %v8920, 7
        %v8922 = vsub.s32 %v8919, %v8921
        %v8923 = vrot.slane %v8909, %v8922
        %v8924 = vcombine.high %v8916, 0.0
        %v8926 = vunpack.c.l.s4 1934713408
        %v8927 = vunpack.c.0.s8 %v8926
        %v8928 = vlaneseq
        %v8929 = vshrl.u32 %v8928, 7
        %v8930 = vsub.s32 %v8927, %v8929
        %v8931 = vrot.slane %v8916, %v8930
        %v8933 = vunpack.c.l.s4 1934713408
        %v8934 = vunpack.c.0.s8 %v8933
        %v8935 = vlaneseq
        %v8936 = vshrl.u32 %v8935, 7
        %v8937 = vsub.s32 %v8934, %v8936
        %v8938 = vrot.slane %v8924, %v8937
        %v8939 = vcombine.high %v8923, 0.0
        %v8941 = vunpack.c.l.s4 1934713408
        %v8942 = vunpack.c.0.s8 %v8941
        %v8943 = vlaneseq
        %v8944 = vshrl.u32 %v8943, 7
        %v8945 = vsub.s32 %v8942, %v8944
        %v8946 = vrot.slane %v8923, %v8945
        %v8948 = vunpack.c.l.s4 1934713408
        %v8949 = vunpack.c.0.s8 %v8948
        %v8950 = vlaneseq
        %v8951 = vshrl.u32 %v8950, 7
        %v8952 = vsub.s32 %v8949, %v8951
        %v8953 = vrot.slane %v8939, %v8952
        %v8954 = vcombine.high %v8931, 0.0
        %v8955 = vcombine.high %v8938, 0.0
        %v8956 = vcombine.high %v8946, 0.0
        %v8957 = vcombine.high %v8953, 0.0
        %v8958 = vcombine.high %v7262, 0.0
        %v8960 = vunpack.c.l.s4 1983009808
        %v8961 = vunpack.c.0.s8 %v8960
        %v8962 = vlaneseq
        %v8963 = vshrl.u32 %v8962, 7
        %v8964 = vsub.s32 %v8961, %v8963
        %v8965 = vrot.slane %v7262, %v8964
        %v8967 = vunpack.c.l.s4 1983009808
        %v8968 = vunpack.c.0.s8 %v8967
        %v8969 = vlaneseq
        %v8970 = vshrl.u32 %v8969, 7
        %v8971 = vsub.s32 %v8968, %v8970
        %v8972 = vrot.slane %v8958, %v8971
        %v8973 = vcombine.high %v8965, 0.0
        %v8975 = vunpack.c.l.s4 1934713408
        %v8976 = vunpack.c.0.s8 %v8975
        %v8977 = vlaneseq
        %v8978 = vshrl.u32 %v8977, 7
        %v8979 = vsub.s32 %v8976, %v8978
        %v8980 = vrot.slane %v8965, %v8979
        %v8982 = vunpack.c.l.s4 1934713408
        %v8983 = vunpack.c.0.s8 %v8982
        %v8984 = vlaneseq
        %v8985 = vshrl.u32 %v8984, 7
        %v8986 = vsub.s32 %v8983, %v8985
        %v8987 = vrot.slane %v8973, %v8986
        %v8988 = vcombine.high %v8972, 0.0
        %v8990 = vunpack.c.l.s4 1934713408
        %v8991 = vunpack.c.0.s8 %v8990
        %v8992 = vlaneseq
        %v8993 = vshrl.u32 %v8992, 7
        %v8994 = vsub.s32 %v8991, %v8993
        %v8995 = vrot.slane %v8972, %v8994
        %v8997 = vunpack.c.l.s4 1934713408
        %v8998 = vunpack.c.0.s8 %v8997
        %v8999 = vlaneseq
        %v9000 = vshrl.u32 %v8999, 7
        %v9001 = vsub.s32 %v8998, %v9000
        %v9002 = vrot.slane %v8988, %v9001
        %v9003 = vcombine.high %v8980, 0.0
        %v9004 = vcombine.high %v8987, 0.0
        %v9005 = vcombine.high %v8995, 0.0
        %v9006 = vcombine.high %v9002, 0.0
        %v9007 = vcombine.high %v7263, 0.0
        %v9009 = vunpack.c.l.s4 1983009808
        %v9010 = vunpack.c.0.s8 %v9009
        %v9011 = vlaneseq
        %v9012 = vshrl.u32 %v9011, 7
        %v9013 = vsub.s32 %v9010, %v9012
        %v9014 = vrot.slane %v7263, %v9013
        %v9016 = vunpack.c.l.s4 1983009808
        %v9017 = vunpack.c.0.s8 %v9016
        %v9018 = vlaneseq
        %v9019 = vshrl.u32 %v9018, 7
        %v9020 = vsub.s32 %v9017, %v9019
        %v9021 = vrot.slane %v9007, %v9020
        %v9022 = vcombine.high %v9014, 0.0
        %v9024 = vunpack.c.l.s4 1934713408
        %v9025 = vunpack.c.0.s8 %v9024
        %v9026 = vlaneseq
        %v9027 = vshrl.u32 %v9026, 7
        %v9028 = vsub.s32 %v9025, %v9027
        %v9029 = vrot.slane %v9014, %v9028
        %v9031 = vunpack.c.l.s4 1934713408
        %v9032 = vunpack.c.0.s8 %v9031
        %v9033 = vlaneseq
        %v9034 = vshrl.u32 %v9033, 7
        %v9035 = vsub.s32 %v9032, %v9034
        %v9036 = vrot.slane %v9022, %v9035
        %v9037 = vcombine.high %v9021, 0.0
        %v9039 = vunpack.c.l.s4 1934713408
        %v9040 = vunpack.c.0.s8 %v9039
        %v9041 = vlaneseq
        %v9042 = vshrl.u32 %v9041, 7
        %v9043 = vsub.s32 %v9040, %v9042
        %v9044 = vrot.slane %v9021, %v9043
        %v9046 = vunpack.c.l.s4 1934713408
        %v9047 = vunpack.c.0.s8 %v9046
        %v9048 = vlaneseq
        %v9049 = vshrl.u32 %v9048, 7
        %v9050 = vsub.s32 %v9047, %v9049
        %v9051 = vrot.slane %v9037, %v9050
        %v9052 = vcombine.high %v9029, 0.0
        %v9053 = vcombine.high %v9036, 0.0
        %v9054 = vcombine.high %v9044, 0.0
        %v9055 = vcombine.high %v9051, 0.0
        %v9056 = vcombine.high %v7264, 0.0
        %v9058 = vunpack.c.l.s4 1983009808
        %v9059 = vunpack.c.0.s8 %v9058
        %v9060 = vlaneseq
        %v9061 = vshrl.u32 %v9060, 7
        %v9062 = vsub.s32 %v9059, %v9061
        %v9063 = vrot.slane %v7264, %v9062
        %v9065 = vunpack.c.l.s4 1983009808
        %v9066 = vunpack.c.0.s8 %v9065
        %v9067 = vlaneseq
        %v9068 = vshrl.u32 %v9067, 7
        %v9069 = vsub.s32 %v9066, %v9068
        %v9070 = vrot.slane %v9056, %v9069
        %v9071 = vcombine.high %v9063, 0.0
        %v9073 = vunpack.c.l.s4 1934713408
        %v9074 = vunpack.c.0.s8 %v9073
        %v9075 = vlaneseq
        %v9076 = vshrl.u32 %v9075, 7
        %v9077 = vsub.s32 %v9074, %v9076
        %v9078 = vrot.slane %v9063, %v9077
        %v9080 = vunpack.c.l.s4 1934713408
        %v9081 = vunpack.c.0.s8 %v9080
        %v9082 = vlaneseq
        %v9083 = vshrl.u32 %v9082, 7
        %v9084 = vsub.s32 %v9081, %v9083
        %v9085 = vrot.slane %v9071, %v9084
        %v9086 = vcombine.high %v9070, 0.0
        %v9088 = vunpack.c.l.s4 1934713408
        %v9089 = vunpack.c.0.s8 %v9088
        %v9090 = vlaneseq
        %v9091 = vshrl.u32 %v9090, 7
        %v9092 = vsub.s32 %v9089, %v9091
        %v9093 = vrot.slane %v9070, %v9092
        %v9095 = vunpack.c.l.s4 1934713408
        %v9096 = vunpack.c.0.s8 %v9095
        %v9097 = vlaneseq
        %v9098 = vshrl.u32 %v9097, 7
        %v9099 = vsub.s32 %v9096, %v9098
        %v9100 = vrot.slane %v9086, %v9099
        %v9101 = vcombine.high %v9078, 0.0
        %v9102 = vcombine.high %v9085, 0.0
        %v9103 = vcombine.high %v9093, 0.0
        %v9104 = vcombine.high %v9100, 0.0
        %v9105 = vcombine.high %v7265, 0.0
        %v9107 = vunpack.c.l.s4 1983009808
        %v9108 = vunpack.c.0.s8 %v9107
        %v9109 = vlaneseq
        %v9110 = vshrl.u32 %v9109, 7
        %v9111 = vsub.s32 %v9108, %v9110
        %v9112 = vrot.slane %v7265, %v9111
        %v9114 = vunpack.c.l.s4 1983009808
        %v9115 = vunpack.c.0.s8 %v9114
        %v9116 = vlaneseq
        %v9117 = vshrl.u32 %v9116, 7
        %v9118 = vsub.s32 %v9115, %v9117
        %v9119 = vrot.slane %v9105, %v9118
        %v9120 = vcombine.high %v9112, 0.0
        %v9122 = vunpack.c.l.s4 1934713408
        %v9123 = vunpack.c.0.s8 %v9122
        %v9124 = vlaneseq
        %v9125 = vshrl.u32 %v9124, 7
        %v9126 = vsub.s32 %v9123, %v9125
        %v9127 = vrot.slane %v9112, %v9126
        %v9129 = vunpack.c.l.s4 1934713408
        %v9130 = vunpack.c.0.s8 %v9129
        %v9131 = vlaneseq
        %v9132 = vshrl.u32 %v9131, 7
        %v9133 = vsub.s32 %v9130, %v9132
        %v9134 = vrot.slane %v9120, %v9133
        %v9135 = vcombine.high %v9119, 0.0
        %v9137 = vunpack.c.l.s4 1934713408
        %v9138 = vunpack.c.0.s8 %v9137
        %v9139 = vlaneseq
        %v9140 = vshrl.u32 %v9139, 7
        %v9141 = vsub.s32 %v9138, %v9140
        %v9142 = vrot.slane %v9119, %v9141
        %v9144 = vunpack.c.l.s4 1934713408
        %v9145 = vunpack.c.0.s8 %v9144
        %v9146 = vlaneseq
        %v9147 = vshrl.u32 %v9146, 7
        %v9148 = vsub.s32 %v9145, %v9147
        %v9149 = vrot.slane %v9135, %v9148
        %v9150 = vcombine.high %v9127, 0.0
        %v9151 = vcombine.high %v9134, 0.0
        %v9152 = vcombine.high %v9142, 0.0
        %v9153 = vcombine.high %v9149, 0.0
        %v9154 = vcombine.high %v7266, 0.0
        %v9156 = vunpack.c.l.s4 1983009808
        %v9157 = vunpack.c.0.s8 %v9156
        %v9158 = vlaneseq
        %v9159 = vshrl.u32 %v9158, 7
        %v9160 = vsub.s32 %v9157, %v9159
        %v9161 = vrot.slane %v7266, %v9160
        %v9163 = vunpack.c.l.s4 1983009808
        %v9164 = vunpack.c.0.s8 %v9163
        %v9165 = vlaneseq
        %v9166 = vshrl.u32 %v9165, 7
        %v9167 = vsub.s32 %v9164, %v9166
        %v9168 = vrot.slane %v9154, %v9167
        %v9169 = vcombine.high %v9161, 0.0
        %v9171 = vunpack.c.l.s4 1934713408
        %v9172 = vunpack.c.0.s8 %v9171
        %v9173 = vlaneseq
        %v9174 = vshrl.u32 %v9173, 7
        %v9175 = vsub.s32 %v9172, %v9174
        %v9176 = vrot.slane %v9161, %v9175
        %v9178 = vunpack.c.l.s4 1934713408
        %v9179 = vunpack.c.0.s8 %v9178
        %v9180 = vlaneseq
        %v9181 = vshrl.u32 %v9180, 7
        %v9182 = vsub.s32 %v9179, %v9181
        %v9183 = vrot.slane %v9169, %v9182
        %v9184 = vcombine.high %v9168, 0.0
        %v9186 = vunpack.c.l.s4 1934713408
        %v9187 = vunpack.c.0.s8 %v9186
        %v9188 = vlaneseq
        %v9189 = vshrl.u32 %v9188, 7
        %v9190 = vsub.s32 %v9187, %v9189
        %v9191 = vrot.slane %v9168, %v9190
        %v9193 = vunpack.c.l.s4 1934713408
        %v9194 = vunpack.c.0.s8 %v9193
        %v9195 = vlaneseq
        %v9196 = vshrl.u32 %v9195, 7
        %v9197 = vsub.s32 %v9194, %v9196
        %v9198 = vrot.slane %v9184, %v9197
        %v9199 = vcombine.high %v9176, 0.0
        %v9200 = vcombine.high %v9183, 0.0
        %v9201 = vcombine.high %v9191, 0.0
        %v9202 = vcombine.high %v9198, 0.0
        %v9203 = vcombine.high %v7267, 0.0
        %v9205 = vunpack.c.l.s4 1983009808
        %v9206 = vunpack.c.0.s8 %v9205
        %v9207 = vlaneseq
        %v9208 = vshrl.u32 %v9207, 7
        %v9209 = vsub.s32 %v9206, %v9208
        %v9210 = vrot.slane %v7267, %v9209
        %v9212 = vunpack.c.l.s4 1983009808
        %v9213 = vunpack.c.0.s8 %v9212
        %v9214 = vlaneseq
        %v9215 = vshrl.u32 %v9214, 7
        %v9216 = vsub.s32 %v9213, %v9215
        %v9217 = vrot.slane %v9203, %v9216
        %v9218 = vcombine.high %v9210, 0.0
        %v9220 = vunpack.c.l.s4 1934713408
        %v9221 = vunpack.c.0.s8 %v9220
        %v9222 = vlaneseq
        %v9223 = vshrl.u32 %v9222, 7
        %v9224 = vsub.s32 %v9221, %v9223
        %v9225 = vrot.slane %v9210, %v9224
        %v9227 = vunpack.c.l.s4 1934713408
        %v9228 = vunpack.c.0.s8 %v9227
        %v9229 = vlaneseq
        %v9230 = vshrl.u32 %v9229, 7
        %v9231 = vsub.s32 %v9228, %v9230
        %v9232 = vrot.slane %v9218, %v9231
        %v9233 = vcombine.high %v9217, 0.0
        %v9235 = vunpack.c.l.s4 1934713408
        %v9236 = vunpack.c.0.s8 %v9235
        %v9237 = vlaneseq
        %v9238 = vshrl.u32 %v9237, 7
        %v9239 = vsub.s32 %v9236, %v9238
        %v9240 = vrot.slane %v9217, %v9239
        %v9242 = vunpack.c.l.s4 1934713408
        %v9243 = vunpack.c.0.s8 %v9242
        %v9244 = vlaneseq
        %v9245 = vshrl.u32 %v9244, 7
        %v9246 = vsub.s32 %v9243, %v9245
        %v9247 = vrot.slane %v9233, %v9246
        %v9248 = vcombine.high %v9225, 0.0
        %v9249 = vcombine.high %v9232, 0.0
        %v9250 = vcombine.high %v9240, 0.0
        %v9251 = vcombine.high %v9247, 0.0
        %v9252 = vcombine.high %v7268, 0.0
        %v9254 = vunpack.c.l.s4 1983009808
        %v9255 = vunpack.c.0.s8 %v9254
        %v9256 = vlaneseq
        %v9257 = vshrl.u32 %v9256, 7
        %v9258 = vsub.s32 %v9255, %v9257
        %v9259 = vrot.slane %v7268, %v9258
        %v9261 = vunpack.c.l.s4 1983009808
        %v9262 = vunpack.c.0.s8 %v9261
        %v9263 = vlaneseq
        %v9264 = vshrl.u32 %v9263, 7
        %v9265 = vsub.s32 %v9262, %v9264
        %v9266 = vrot.slane %v9252, %v9265
        %v9267 = vcombine.high %v9259, 0.0
        %v9269 = vunpack.c.l.s4 1934713408
        %v9270 = vunpack.c.0.s8 %v9269
        %v9271 = vlaneseq
        %v9272 = vshrl.u32 %v9271, 7
        %v9273 = vsub.s32 %v9270, %v9272
        %v9274 = vrot.slane %v9259, %v9273
        %v9276 = vunpack.c.l.s4 1934713408
        %v9277 = vunpack.c.0.s8 %v9276
        %v9278 = vlaneseq
        %v9279 = vshrl.u32 %v9278, 7
        %v9280 = vsub.s32 %v9277, %v9279
        %v9281 = vrot.slane %v9267, %v9280
        %v9282 = vcombine.high %v9266, 0.0
        %v9284 = vunpack.c.l.s4 1934713408
        %v9285 = vunpack.c.0.s8 %v9284
        %v9286 = vlaneseq
        %v9287 = vshrl.u32 %v9286, 7
        %v9288 = vsub.s32 %v9285, %v9287
        %v9289 = vrot.slane %v9266, %v9288
        %v9291 = vunpack.c.l.s4 1934713408
        %v9292 = vunpack.c.0.s8 %v9291
        %v9293 = vlaneseq
        %v9294 = vshrl.u32 %v9293, 7
        %v9295 = vsub.s32 %v9292, %v9294
        %v9296 = vrot.slane %v9282, %v9295
        %v9297 = vcombine.high %v9274, 0.0
        %v9298 = vcombine.high %v9281, 0.0
        %v9299 = vcombine.high %v9289, 0.0
        %v9300 = vcombine.high %v9296, 0.0
        %v9301 = vcombine.high %v7269, 0.0
        %v9303 = vunpack.c.l.s4 1983009808
        %v9304 = vunpack.c.0.s8 %v9303
        %v9305 = vlaneseq
        %v9306 = vshrl.u32 %v9305, 7
        %v9307 = vsub.s32 %v9304, %v9306
        %v9308 = vrot.slane %v7269, %v9307
        %v9310 = vunpack.c.l.s4 1983009808
        %v9311 = vunpack.c.0.s8 %v9310
        %v9312 = vlaneseq
        %v9313 = vshrl.u32 %v9312, 7
        %v9314 = vsub.s32 %v9311, %v9313
        %v9315 = vrot.slane %v9301, %v9314
        %v9316 = vcombine.high %v9308, 0.0
        %v9318 = vunpack.c.l.s4 1934713408
        %v9319 = vunpack.c.0.s8 %v9318
        %v9320 = vlaneseq
        %v9321 = vshrl.u32 %v9320, 7
        %v9322 = vsub.s32 %v9319, %v9321
        %v9323 = vrot.slane %v9308, %v9322
        %v9325 = vunpack.c.l.s4 1934713408
        %v9326 = vunpack.c.0.s8 %v9325
        %v9327 = vlaneseq
        %v9328 = vshrl.u32 %v9327, 7
        %v9329 = vsub.s32 %v9326, %v9328
        %v9330 = vrot.slane %v9316, %v9329
        %v9331 = vcombine.high %v9315, 0.0
        %v9333 = vunpack.c.l.s4 1934713408
        %v9334 = vunpack.c.0.s8 %v9333
        %v9335 = vlaneseq
        %v9336 = vshrl.u32 %v9335, 7
        %v9337 = vsub.s32 %v9334, %v9336
        %v9338 = vrot.slane %v9315, %v9337
        %v9340 = vunpack.c.l.s4 1934713408
        %v9341 = vunpack.c.0.s8 %v9340
        %v9342 = vlaneseq
        %v9343 = vshrl.u32 %v9342, 7
        %v9344 = vsub.s32 %v9341, %v9343
        %v9345 = vrot.slane %v9331, %v9344
        %v9346 = vcombine.high %v9323, 0.0
        %v9347 = vcombine.high %v9330, 0.0
        %v9348 = vcombine.high %v9338, 0.0
        %v9349 = vcombine.high %v9345, 0.0
        %v9350 = vcombine.high %v7270, 0.0
        %v9352 = vunpack.c.l.s4 1983009808
        %v9353 = vunpack.c.0.s8 %v9352
        %v9354 = vlaneseq
        %v9355 = vshrl.u32 %v9354, 7
        %v9356 = vsub.s32 %v9353, %v9355
        %v9357 = vrot.slane %v7270, %v9356
        %v9359 = vunpack.c.l.s4 1983009808
        %v9360 = vunpack.c.0.s8 %v9359
        %v9361 = vlaneseq
        %v9362 = vshrl.u32 %v9361, 7
        %v9363 = vsub.s32 %v9360, %v9362
        %v9364 = vrot.slane %v9350, %v9363
        %v9365 = vcombine.high %v9357, 0.0
        %v9367 = vunpack.c.l.s4 1934713408
        %v9368 = vunpack.c.0.s8 %v9367
        %v9369 = vlaneseq
        %v9370 = vshrl.u32 %v9369, 7
        %v9371 = vsub.s32 %v9368, %v9370
        %v9372 = vrot.slane %v9357, %v9371
        %v9374 = vunpack.c.l.s4 1934713408
        %v9375 = vunpack.c.0.s8 %v9374
        %v9376 = vlaneseq
        %v9377 = vshrl.u32 %v9376, 7
        %v9378 = vsub.s32 %v9375, %v9377
        %v9379 = vrot.slane %v9365, %v9378
        %v9380 = vcombine.high %v9364, 0.0
        %v9382 = vunpack.c.l.s4 1934713408
        %v9383 = vunpack.c.0.s8 %v9382
        %v9384 = vlaneseq
        %v9385 = vshrl.u32 %v9384, 7
        %v9386 = vsub.s32 %v9383, %v9385
        %v9387 = vrot.slane %v9364, %v9386
        %v9389 = vunpack.c.l.s4 1934713408
        %v9390 = vunpack.c.0.s8 %v9389
        %v9391 = vlaneseq
        %v9392 = vshrl.u32 %v9391, 7
        %v9393 = vsub.s32 %v9390, %v9392
        %v9394 = vrot.slane %v9380, %v9393
        %v9395 = vcombine.high %v9372, 0.0
        %v9396 = vcombine.high %v9379, 0.0
        %v9397 = vcombine.high %v9387, 0.0
        %v9398 = vcombine.high %v9394, 0.0
        %v9399 = vcombine.high %v7271, 0.0
        %v9401 = vunpack.c.l.s4 1983009808
        %v9402 = vunpack.c.0.s8 %v9401
        %v9403 = vlaneseq
        %v9404 = vshrl.u32 %v9403, 7
        %v9405 = vsub.s32 %v9402, %v9404
        %v9406 = vrot.slane %v7271, %v9405
        %v9408 = vunpack.c.l.s4 1983009808
        %v9409 = vunpack.c.0.s8 %v9408
        %v9410 = vlaneseq
        %v9411 = vshrl.u32 %v9410, 7
        %v9412 = vsub.s32 %v9409, %v9411
        %v9413 = vrot.slane %v9399, %v9412
        %v9414 = vcombine.high %v9406, 0.0
        %v9416 = vunpack.c.l.s4 1934713408
        %v9417 = vunpack.c.0.s8 %v9416
        %v9418 = vlaneseq
        %v9419 = vshrl.u32 %v9418, 7
        %v9420 = vsub.s32 %v9417, %v9419
        %v9421 = vrot.slane %v9406, %v9420
        %v9423 = vunpack.c.l.s4 1934713408
        %v9424 = vunpack.c.0.s8 %v9423
        %v9425 = vlaneseq
        %v9426 = vshrl.u32 %v9425, 7
        %v9427 = vsub.s32 %v9424, %v9426
        %v9428 = vrot.slane %v9414, %v9427
        %v9429 = vcombine.high %v9413, 0.0
        %v9431 = vunpack.c.l.s4 1934713408
        %v9432 = vunpack.c.0.s8 %v9431
        %v9433 = vlaneseq
        %v9434 = vshrl.u32 %v9433, 7
        %v9435 = vsub.s32 %v9432, %v9434
        %v9436 = vrot.slane %v9413, %v9435
        %v9438 = vunpack.c.l.s4 1934713408
        %v9439 = vunpack.c.0.s8 %v9438
        %v9440 = vlaneseq
        %v9441 = vshrl.u32 %v9440, 7
        %v9442 = vsub.s32 %v9439, %v9441
        %v9443 = vrot.slane %v9429, %v9442
        %v9444 = vcombine.high %v9421, 0.0
        %v9445 = vcombine.high %v9428, 0.0
        %v9446 = vcombine.high %v9436, 0.0
        %v9447 = vcombine.high %v9443, 0.0
        %v9448 = vcombine.high %v7272, 0.0
        %v9450 = vunpack.c.l.s4 1983009808
        %v9451 = vunpack.c.0.s8 %v9450
        %v9452 = vlaneseq
        %v9453 = vshrl.u32 %v9452, 7
        %v9454 = vsub.s32 %v9451, %v9453
        %v9455 = vrot.slane %v7272, %v9454
        %v9457 = vunpack.c.l.s4 1983009808
        %v9458 = vunpack.c.0.s8 %v9457
        %v9459 = vlaneseq
        %v9460 = vshrl.u32 %v9459, 7
        %v9461 = vsub.s32 %v9458, %v9460
        %v9462 = vrot.slane %v9448, %v9461
        %v9463 = vcombine.high %v9455, 0.0
        %v9465 = vunpack.c.l.s4 1934713408
        %v9466 = vunpack.c.0.s8 %v9465
        %v9467 = vlaneseq
        %v9468 = vshrl.u32 %v9467, 7
        %v9469 = vsub.s32 %v9466, %v9468
        %v9470 = vrot.slane %v9455, %v9469
        %v9472 = vunpack.c.l.s4 1934713408
        %v9473 = vunpack.c.0.s8 %v9472
        %v9474 = vlaneseq
        %v9475 = vshrl.u32 %v9474, 7
        %v9476 = vsub.s32 %v9473, %v9475
        %v9477 = vrot.slane %v9463, %v9476
        %v9478 = vcombine.high %v9462, 0.0
        %v9480 = vunpack.c.l.s4 1934713408
        %v9481 = vunpack.c.0.s8 %v9480
        %v9482 = vlaneseq
        %v9483 = vshrl.u32 %v9482, 7
        %v9484 = vsub.s32 %v9481, %v9483
        %v9485 = vrot.slane %v9462, %v9484
        %v9487 = vunpack.c.l.s4 1934713408
        %v9488 = vunpack.c.0.s8 %v9487
        %v9489 = vlaneseq
        %v9490 = vshrl.u32 %v9489, 7
        %v9491 = vsub.s32 %v9488, %v9490
        %v9492 = vrot.slane %v9478, %v9491
        %v9493 = vcombine.high %v9470, 0.0
        %v9494 = vcombine.high %v9477, 0.0
        %v9495 = vcombine.high %v9485, 0.0
        %v9496 = vcombine.high %v9492, 0.0
        %v9497 = vcombine.high %v7273, 0.0
        %v9499 = vunpack.c.l.s4 1983009808
        %v9500 = vunpack.c.0.s8 %v9499
        %v9501 = vlaneseq
        %v9502 = vshrl.u32 %v9501, 7
        %v9503 = vsub.s32 %v9500, %v9502
        %v9504 = vrot.slane %v7273, %v9503
        %v9506 = vunpack.c.l.s4 1983009808
        %v9507 = vunpack.c.0.s8 %v9506
        %v9508 = vlaneseq
        %v9509 = vshrl.u32 %v9508, 7
        %v9510 = vsub.s32 %v9507, %v9509
        %v9511 = vrot.slane %v9497, %v9510
        %v9512 = vcombine.high %v9504, 0.0
        %v9514 = vunpack.c.l.s4 1934713408
        %v9515 = vunpack.c.0.s8 %v9514
        %v9516 = vlaneseq
        %v9517 = vshrl.u32 %v9516, 7
        %v9518 = vsub.s32 %v9515, %v9517
        %v9519 = vrot.slane %v9504, %v9518
        %v9521 = vunpack.c.l.s4 1934713408
        %v9522 = vunpack.c.0.s8 %v9521
        %v9523 = vlaneseq
        %v9524 = vshrl.u32 %v9523, 7
        %v9525 = vsub.s32 %v9522, %v9524
        %v9526 = vrot.slane %v9512, %v9525
        %v9527 = vcombine.high %v9511, 0.0
        %v9529 = vunpack.c.l.s4 1934713408
        %v9530 = vunpack.c.0.s8 %v9529
        %v9531 = vlaneseq
        %v9532 = vshrl.u32 %v9531, 7
        %v9533 = vsub.s32 %v9530, %v9532
        %v9534 = vrot.slane %v9511, %v9533
        %v9536 = vunpack.c.l.s4 1934713408
        %v9537 = vunpack.c.0.s8 %v9536
        %v9538 = vlaneseq
        %v9539 = vshrl.u32 %v9538, 7
        %v9540 = vsub.s32 %v9537, %v9539
        %v9541 = vrot.slane %v9527, %v9540
        %v9542 = vcombine.high %v9519, 0.0
        %v9543 = vcombine.high %v9526, 0.0
        %v9544 = vcombine.high %v9534, 0.0
        %v9545 = vcombine.high %v9541, 0.0
        %v9546 = vcombine.high %v7274, 0.0
        %v9548 = vunpack.c.l.s4 1983009808
        %v9549 = vunpack.c.0.s8 %v9548
        %v9550 = vlaneseq
        %v9551 = vshrl.u32 %v9550, 7
        %v9552 = vsub.s32 %v9549, %v9551
        %v9553 = vrot.slane %v7274, %v9552
        %v9555 = vunpack.c.l.s4 1983009808
        %v9556 = vunpack.c.0.s8 %v9555
        %v9557 = vlaneseq
        %v9558 = vshrl.u32 %v9557, 7
        %v9559 = vsub.s32 %v9556, %v9558
        %v9560 = vrot.slane %v9546, %v9559
        %v9561 = vcombine.high %v9553, 0.0
        %v9563 = vunpack.c.l.s4 1934713408
        %v9564 = vunpack.c.0.s8 %v9563
        %v9565 = vlaneseq
        %v9566 = vshrl.u32 %v9565, 7
        %v9567 = vsub.s32 %v9564, %v9566
        %v9568 = vrot.slane %v9553, %v9567
        %v9570 = vunpack.c.l.s4 1934713408
        %v9571 = vunpack.c.0.s8 %v9570
        %v9572 = vlaneseq
        %v9573 = vshrl.u32 %v9572, 7
        %v9574 = vsub.s32 %v9571, %v9573
        %v9575 = vrot.slane %v9561, %v9574
        %v9576 = vcombine.high %v9560, 0.0
        %v9578 = vunpack.c.l.s4 1934713408
        %v9579 = vunpack.c.0.s8 %v9578
        %v9580 = vlaneseq
        %v9581 = vshrl.u32 %v9580, 7
        %v9582 = vsub.s32 %v9579, %v9581
        %v9583 = vrot.slane %v9560, %v9582
        %v9585 = vunpack.c.l.s4 1934713408
        %v9586 = vunpack.c.0.s8 %v9585
        %v9587 = vlaneseq
        %v9588 = vshrl.u32 %v9587, 7
        %v9589 = vsub.s32 %v9586, %v9588
        %v9590 = vrot.slane %v9576, %v9589
        %v9591 = vcombine.high %v9568, 0.0
        %v9592 = vcombine.high %v9575, 0.0
        %v9593 = vcombine.high %v9583, 0.0
        %v9594 = vcombine.high %v9590, 0.0
        %v9595 = vcombine.high %v7275, 0.0
        %v9597 = vunpack.c.l.s4 1983009808
        %v9598 = vunpack.c.0.s8 %v9597
        %v9599 = vlaneseq
        %v9600 = vshrl.u32 %v9599, 7
        %v9601 = vsub.s32 %v9598, %v9600
        %v9602 = vrot.slane %v7275, %v9601
        %v9604 = vunpack.c.l.s4 1983009808
        %v9605 = vunpack.c.0.s8 %v9604
        %v9606 = vlaneseq
        %v9607 = vshrl.u32 %v9606, 7
        %v9608 = vsub.s32 %v9605, %v9607
        %v9609 = vrot.slane %v9595, %v9608
        %v9610 = vcombine.high %v9602, 0.0
        %v9612 = vunpack.c.l.s4 1934713408
        %v9613 = vunpack.c.0.s8 %v9612
        %v9614 = vlaneseq
        %v9615 = vshrl.u32 %v9614, 7
        %v9616 = vsub.s32 %v9613, %v9615
        %v9617 = vrot.slane %v9602, %v9616
        %v9619 = vunpack.c.l.s4 1934713408
        %v9620 = vunpack.c.0.s8 %v9619
        %v9621 = vlaneseq
        %v9622 = vshrl.u32 %v9621, 7
        %v9623 = vsub.s32 %v9620, %v9622
        %v9624 = vrot.slane %v9610, %v9623
        %v9625 = vcombine.high %v9609, 0.0
        %v9627 = vunpack.c.l.s4 1934713408
        %v9628 = vunpack.c.0.s8 %v9627
        %v9629 = vlaneseq
        %v9630 = vshrl.u32 %v9629, 7
        %v9631 = vsub.s32 %v9628, %v9630
        %v9632 = vrot.slane %v9609, %v9631
        %v9634 = vunpack.c.l.s4 1934713408
        %v9635 = vunpack.c.0.s8 %v9634
        %v9636 = vlaneseq
        %v9637 = vshrl.u32 %v9636, 7
        %v9638 = vsub.s32 %v9635, %v9637
        %v9639 = vrot.slane %v9625, %v9638
        %v9640 = vcombine.high %v9617, 0.0
        %v9641 = vcombine.high %v9624, 0.0
        %v9642 = vcombine.high %v9632, 0.0
        %v9643 = vcombine.high %v9639, 0.0
        %v9644 = vcombine.high %v7276, 0.0
        %v9646 = vunpack.c.l.s4 1983009808
        %v9647 = vunpack.c.0.s8 %v9646
        %v9648 = vlaneseq
        %v9649 = vshrl.u32 %v9648, 7
        %v9650 = vsub.s32 %v9647, %v9649
        %v9651 = vrot.slane %v7276, %v9650
        %v9653 = vunpack.c.l.s4 1983009808
        %v9654 = vunpack.c.0.s8 %v9653
        %v9655 = vlaneseq
        %v9656 = vshrl.u32 %v9655, 7
        %v9657 = vsub.s32 %v9654, %v9656
        %v9658 = vrot.slane %v9644, %v9657
        %v9659 = vcombine.high %v9651, 0.0
        %v9661 = vunpack.c.l.s4 1934713408
        %v9662 = vunpack.c.0.s8 %v9661
        %v9663 = vlaneseq
        %v9664 = vshrl.u32 %v9663, 7
        %v9665 = vsub.s32 %v9662, %v9664
        %v9666 = vrot.slane %v9651, %v9665
        %v9668 = vunpack.c.l.s4 1934713408
        %v9669 = vunpack.c.0.s8 %v9668
        %v9670 = vlaneseq
        %v9671 = vshrl.u32 %v9670, 7
        %v9672 = vsub.s32 %v9669, %v9671
        %v9673 = vrot.slane %v9659, %v9672
        %v9674 = vcombine.high %v9658, 0.0
        %v9676 = vunpack.c.l.s4 1934713408
        %v9677 = vunpack.c.0.s8 %v9676
        %v9678 = vlaneseq
        %v9679 = vshrl.u32 %v9678, 7
        %v9680 = vsub.s32 %v9677, %v9679
        %v9681 = vrot.slane %v9658, %v9680
        %v9683 = vunpack.c.l.s4 1934713408
        %v9684 = vunpack.c.0.s8 %v9683
        %v9685 = vlaneseq
        %v9686 = vshrl.u32 %v9685, 7
        %v9687 = vsub.s32 %v9684, %v9686
        %v9688 = vrot.slane %v9674, %v9687
        %v9689 = vcombine.high %v9666, 0.0
        %v9690 = vcombine.high %v9673, 0.0
        %v9691 = vcombine.high %v9681, 0.0
        %v9692 = vcombine.high %v9688, 0.0
        %v9693 = vcombine.high %v7277, 0.0
        %v9695 = vunpack.c.l.s4 1983009808
        %v9696 = vunpack.c.0.s8 %v9695
        %v9697 = vlaneseq
        %v9698 = vshrl.u32 %v9697, 7
        %v9699 = vsub.s32 %v9696, %v9698
        %v9700 = vrot.slane %v7277, %v9699
        %v9702 = vunpack.c.l.s4 1983009808
        %v9703 = vunpack.c.0.s8 %v9702
        %v9704 = vlaneseq
        %v9705 = vshrl.u32 %v9704, 7
        %v9706 = vsub.s32 %v9703, %v9705
        %v9707 = vrot.slane %v9693, %v9706
        %v9708 = vcombine.high %v9700, 0.0
        %v9710 = vunpack.c.l.s4 1934713408
        %v9711 = vunpack.c.0.s8 %v9710
        %v9712 = vlaneseq
        %v9713 = vshrl.u32 %v9712, 7
        %v9714 = vsub.s32 %v9711, %v9713
        %v9715 = vrot.slane %v9700, %v9714
        %v9717 = vunpack.c.l.s4 1934713408
        %v9718 = vunpack.c.0.s8 %v9717
        %v9719 = vlaneseq
        %v9720 = vshrl.u32 %v9719, 7
        %v9721 = vsub.s32 %v9718, %v9720
        %v9722 = vrot.slane %v9708, %v9721
        %v9723 = vcombine.high %v9707, 0.0
        %v9725 = vunpack.c.l.s4 1934713408
        %v9726 = vunpack.c.0.s8 %v9725
        %v9727 = vlaneseq
        %v9728 = vshrl.u32 %v9727, 7
        %v9729 = vsub.s32 %v9726, %v9728
        %v9730 = vrot.slane %v9707, %v9729
        %v9732 = vunpack.c.l.s4 1934713408
        %v9733 = vunpack.c.0.s8 %v9732
        %v9734 = vlaneseq
        %v9735 = vshrl.u32 %v9734, 7
        %v9736 = vsub.s32 %v9733, %v9735
        %v9737 = vrot.slane %v9723, %v9736
        %v9738 = vcombine.high %v9715, 0.0
        %v9739 = vcombine.high %v9722, 0.0
        %v9740 = vcombine.high %v9730, 0.0
        %v9741 = vcombine.high %v9737, 0.0
        %v9742 = vcombine.high %v7278, 0.0
        %v9744 = vunpack.c.l.s4 1983009808
        %v9745 = vunpack.c.0.s8 %v9744
        %v9746 = vlaneseq
        %v9747 = vshrl.u32 %v9746, 7
        %v9748 = vsub.s32 %v9745, %v9747
        %v9749 = vrot.slane %v7278, %v9748
        %v9751 = vunpack.c.l.s4 1983009808
        %v9752 = vunpack.c.0.s8 %v9751
        %v9753 = vlaneseq
        %v9754 = vshrl.u32 %v9753, 7
        %v9755 = vsub.s32 %v9752, %v9754
        %v9756 = vrot.slane %v9742, %v9755
        %v9757 = vcombine.high %v9749, 0.0
        %v9759 = vunpack.c.l.s4 1934713408
        %v9760 = vunpack.c.0.s8 %v9759
        %v9761 = vlaneseq
        %v9762 = vshrl.u32 %v9761, 7
        %v9763 = vsub.s32 %v9760, %v9762
        %v9764 = vrot.slane %v9749, %v9763
        %v9766 = vunpack.c.l.s4 1934713408
        %v9767 = vunpack.c.0.s8 %v9766
        %v9768 = vlaneseq
        %v9769 = vshrl.u32 %v9768, 7
        %v9770 = vsub.s32 %v9767, %v9769
        %v9771 = vrot.slane %v9757, %v9770
        %v9772 = vcombine.high %v9756, 0.0
        %v9774 = vunpack.c.l.s4 1934713408
        %v9775 = vunpack.c.0.s8 %v9774
        %v9776 = vlaneseq
        %v9777 = vshrl.u32 %v9776, 7
        %v9778 = vsub.s32 %v9775, %v9777
        %v9779 = vrot.slane %v9756, %v9778
        %v9781 = vunpack.c.l.s4 1934713408
        %v9782 = vunpack.c.0.s8 %v9781
        %v9783 = vlaneseq
        %v9784 = vshrl.u32 %v9783, 7
        %v9785 = vsub.s32 %v9782, %v9784
        %v9786 = vrot.slane %v9772, %v9785
        %v9787 = vcombine.high %v9764, 0.0
        %v9788 = vcombine.high %v9771, 0.0
        %v9789 = vcombine.high %v9779, 0.0
        %v9790 = vcombine.high %v9786, 0.0
        %v9791 = vcombine.high %v7279, 0.0
        %v9793 = vunpack.c.l.s4 1983009808
        %v9794 = vunpack.c.0.s8 %v9793
        %v9795 = vlaneseq
        %v9796 = vshrl.u32 %v9795, 7
        %v9797 = vsub.s32 %v9794, %v9796
        %v9798 = vrot.slane %v7279, %v9797
        %v9800 = vunpack.c.l.s4 1983009808
        %v9801 = vunpack.c.0.s8 %v9800
        %v9802 = vlaneseq
        %v9803 = vshrl.u32 %v9802, 7
        %v9804 = vsub.s32 %v9801, %v9803
        %v9805 = vrot.slane %v9791, %v9804
        %v9806 = vcombine.high %v9798, 0.0
        %v9808 = vunpack.c.l.s4 1934713408
        %v9809 = vunpack.c.0.s8 %v9808
        %v9810 = vlaneseq
        %v9811 = vshrl.u32 %v9810, 7
        %v9812 = vsub.s32 %v9809, %v9811
        %v9813 = vrot.slane %v9798, %v9812
        %v9815 = vunpack.c.l.s4 1934713408
        %v9816 = vunpack.c.0.s8 %v9815
        %v9817 = vlaneseq
        %v9818 = vshrl.u32 %v9817, 7
        %v9819 = vsub.s32 %v9816, %v9818
        %v9820 = vrot.slane %v9806, %v9819
        %v9821 = vcombine.high %v9805, 0.0
        %v9823 = vunpack.c.l.s4 1934713408
        %v9824 = vunpack.c.0.s8 %v9823
        %v9825 = vlaneseq
        %v9826 = vshrl.u32 %v9825, 7
        %v9827 = vsub.s32 %v9824, %v9826
        %v9828 = vrot.slane %v9805, %v9827
        %v9830 = vunpack.c.l.s4 1934713408
        %v9831 = vunpack.c.0.s8 %v9830
        %v9832 = vlaneseq
        %v9833 = vshrl.u32 %v9832, 7
        %v9834 = vsub.s32 %v9831, %v9833
        %v9835 = vrot.slane %v9821, %v9834
        %v9836 = vcombine.high %v9813, 0.0
        %v9837 = vcombine.high %v9820, 0.0
        %v9838 = vcombine.high %v9828, 0.0
        %v9839 = vcombine.high %v9835, 0.0
        %v9840 = vcombine.high %v7280, 0.0
        %v9842 = vunpack.c.l.s4 1983009808
        %v9843 = vunpack.c.0.s8 %v9842
        %v9844 = vlaneseq
        %v9845 = vshrl.u32 %v9844, 7
        %v9846 = vsub.s32 %v9843, %v9845
        %v9847 = vrot.slane %v7280, %v9846
        %v9849 = vunpack.c.l.s4 1983009808
        %v9850 = vunpack.c.0.s8 %v9849
        %v9851 = vlaneseq
        %v9852 = vshrl.u32 %v9851, 7
        %v9853 = vsub.s32 %v9850, %v9852
        %v9854 = vrot.slane %v9840, %v9853
        %v9855 = vcombine.high %v9847, 0.0
        %v9857 = vunpack.c.l.s4 1934713408
        %v9858 = vunpack.c.0.s8 %v9857
        %v9859 = vlaneseq
        %v9860 = vshrl.u32 %v9859, 7
        %v9861 = vsub.s32 %v9858, %v9860
        %v9862 = vrot.slane %v9847, %v9861
        %v9864 = vunpack.c.l.s4 1934713408
        %v9865 = vunpack.c.0.s8 %v9864
        %v9866 = vlaneseq
        %v9867 = vshrl.u32 %v9866, 7
        %v9868 = vsub.s32 %v9865, %v9867
        %v9869 = vrot.slane %v9855, %v9868
        %v9870 = vcombine.high %v9854, 0.0
        %v9872 = vunpack.c.l.s4 1934713408
        %v9873 = vunpack.c.0.s8 %v9872
        %v9874 = vlaneseq
        %v9875 = vshrl.u32 %v9874, 7
        %v9876 = vsub.s32 %v9873, %v9875
        %v9877 = vrot.slane %v9854, %v9876
        %v9879 = vunpack.c.l.s4 1934713408
        %v9880 = vunpack.c.0.s8 %v9879
        %v9881 = vlaneseq
        %v9882 = vshrl.u32 %v9881, 7
        %v9883 = vsub.s32 %v9880, %v9882
        %v9884 = vrot.slane %v9870, %v9883
        %v9885 = vcombine.high %v9862, 0.0
        %v9886 = vcombine.high %v9869, 0.0
        %v9887 = vcombine.high %v9877, 0.0
        %v9888 = vcombine.high %v9884, 0.0
        %v9889 = vcombine.high %v7281, 0.0
        %v9891 = vunpack.c.l.s4 1983009808
        %v9892 = vunpack.c.0.s8 %v9891
        %v9893 = vlaneseq
        %v9894 = vshrl.u32 %v9893, 7
        %v9895 = vsub.s32 %v9892, %v9894
        %v9896 = vrot.slane %v7281, %v9895
        %v9898 = vunpack.c.l.s4 1983009808
        %v9899 = vunpack.c.0.s8 %v9898
        %v9900 = vlaneseq
        %v9901 = vshrl.u32 %v9900, 7
        %v9902 = vsub.s32 %v9899, %v9901
        %v9903 = vrot.slane %v9889, %v9902
        %v9904 = vcombine.high %v9896, 0.0
        %v9906 = vunpack.c.l.s4 1934713408
        %v9907 = vunpack.c.0.s8 %v9906
        %v9908 = vlaneseq
        %v9909 = vshrl.u32 %v9908, 7
        %v9910 = vsub.s32 %v9907, %v9909
        %v9911 = vrot.slane %v9896, %v9910
        %v9913 = vunpack.c.l.s4 1934713408
        %v9914 = vunpack.c.0.s8 %v9913
        %v9915 = vlaneseq
        %v9916 = vshrl.u32 %v9915, 7
        %v9917 = vsub.s32 %v9914, %v9916
        %v9918 = vrot.slane %v9904, %v9917
        %v9919 = vcombine.high %v9903, 0.0
        %v9921 = vunpack.c.l.s4 1934713408
        %v9922 = vunpack.c.0.s8 %v9921
        %v9923 = vlaneseq
        %v9924 = vshrl.u32 %v9923, 7
        %v9925 = vsub.s32 %v9922, %v9924
        %v9926 = vrot.slane %v9903, %v9925
        %v9928 = vunpack.c.l.s4 1934713408
        %v9929 = vunpack.c.0.s8 %v9928
        %v9930 = vlaneseq
        %v9931 = vshrl.u32 %v9930, 7
        %v9932 = vsub.s32 %v9929, %v9931
        %v9933 = vrot.slane %v9919, %v9932
        %v9934 = vcombine.high %v9911, 0.0
        %v9935 = vcombine.high %v9918, 0.0
        %v9936 = vcombine.high %v9926, 0.0
        %v9937 = vcombine.high %v9933, 0.0
        %v9938 = vcombine.high %v7282, 0.0
        %v9940 = vunpack.c.l.s4 1983009808
        %v9941 = vunpack.c.0.s8 %v9940
        %v9942 = vlaneseq
        %v9943 = vshrl.u32 %v9942, 7
        %v9944 = vsub.s32 %v9941, %v9943
        %v9945 = vrot.slane %v7282, %v9944
        %v9947 = vunpack.c.l.s4 1983009808
        %v9948 = vunpack.c.0.s8 %v9947
        %v9949 = vlaneseq
        %v9950 = vshrl.u32 %v9949, 7
        %v9951 = vsub.s32 %v9948, %v9950
        %v9952 = vrot.slane %v9938, %v9951
        %v9953 = vcombine.high %v9945, 0.0
        %v9955 = vunpack.c.l.s4 1934713408
        %v9956 = vunpack.c.0.s8 %v9955
        %v9957 = vlaneseq
        %v9958 = vshrl.u32 %v9957, 7
        %v9959 = vsub.s32 %v9956, %v9958
        %v9960 = vrot.slane %v9945, %v9959
        %v9962 = vunpack.c.l.s4 1934713408
        %v9963 = vunpack.c.0.s8 %v9962
        %v9964 = vlaneseq
        %v9965 = vshrl.u32 %v9964, 7
        %v9966 = vsub.s32 %v9963, %v9965
        %v9967 = vrot.slane %v9953, %v9966
        %v9968 = vcombine.high %v9952, 0.0
        %v9970 = vunpack.c.l.s4 1934713408
        %v9971 = vunpack.c.0.s8 %v9970
        %v9972 = vlaneseq
        %v9973 = vshrl.u32 %v9972, 7
        %v9974 = vsub.s32 %v9971, %v9973
        %v9975 = vrot.slane %v9952, %v9974
        %v9977 = vunpack.c.l.s4 1934713408
        %v9978 = vunpack.c.0.s8 %v9977
        %v9979 = vlaneseq
        %v9980 = vshrl.u32 %v9979, 7
        %v9981 = vsub.s32 %v9978, %v9980
        %v9982 = vrot.slane %v9968, %v9981
        %v9983 = vcombine.high %v9960, 0.0
        %v9984 = vcombine.high %v9967, 0.0
        %v9985 = vcombine.high %v9975, 0.0
        %v9986 = vcombine.high %v9982, 0.0
        %v9987 = vcombine.high %v7283, 0.0
        %v9989 = vunpack.c.l.s4 1983009808
        %v9990 = vunpack.c.0.s8 %v9989
        %v9991 = vlaneseq
        %v9992 = vshrl.u32 %v9991, 7
        %v9993 = vsub.s32 %v9990, %v9992
        %v9994 = vrot.slane %v7283, %v9993
        %v9996 = vunpack.c.l.s4 1983009808
        %v9997 = vunpack.c.0.s8 %v9996
        %v9998 = vlaneseq
        %v9999 = vshrl.u32 %v9998, 7
        %v10000 = vsub.s32 %v9997, %v9999
        %v10001 = vrot.slane %v9987, %v10000
        %v10002 = vcombine.high %v9994, 0.0
        %v10004 = vunpack.c.l.s4 1934713408
        %v10005 = vunpack.c.0.s8 %v10004
        %v10006 = vlaneseq
        %v10007 = vshrl.u32 %v10006, 7
        %v10008 = vsub.s32 %v10005, %v10007
        %v10009 = vrot.slane %v9994, %v10008
        %v10011 = vunpack.c.l.s4 1934713408
        %v10012 = vunpack.c.0.s8 %v10011
        %v10013 = vlaneseq
        %v10014 = vshrl.u32 %v10013, 7
        %v10015 = vsub.s32 %v10012, %v10014
        %v10016 = vrot.slane %v10002, %v10015
        %v10017 = vcombine.high %v10001, 0.0
        %v10019 = vunpack.c.l.s4 1934713408
        %v10020 = vunpack.c.0.s8 %v10019
        %v10021 = vlaneseq
        %v10022 = vshrl.u32 %v10021, 7
        %v10023 = vsub.s32 %v10020, %v10022
        %v10024 = vrot.slane %v10001, %v10023
        %v10026 = vunpack.c.l.s4 1934713408
        %v10027 = vunpack.c.0.s8 %v10026
        %v10028 = vlaneseq
        %v10029 = vshrl.u32 %v10028, 7
        %v10030 = vsub.s32 %v10027, %v10029
        %v10031 = vrot.slane %v10017, %v10030
        %v10032 = vcombine.high %v10009, 0.0
        %v10033 = vcombine.high %v10016, 0.0
        %v10034 = vcombine.high %v10024, 0.0
        %v10035 = vcombine.high %v10031, 0.0
        %v10036 = vcombine.high %v7284, 0.0
        %v10038 = vunpack.c.l.s4 1983009808
        %v10039 = vunpack.c.0.s8 %v10038
        %v10040 = vlaneseq
        %v10041 = vshrl.u32 %v10040, 7
        %v10042 = vsub.s32 %v10039, %v10041
        %v10043 = vrot.slane %v7284, %v10042
        %v10045 = vunpack.c.l.s4 1983009808
        %v10046 = vunpack.c.0.s8 %v10045
        %v10047 = vlaneseq
        %v10048 = vshrl.u32 %v10047, 7
        %v10049 = vsub.s32 %v10046, %v10048
        %v10050 = vrot.slane %v10036, %v10049
        %v10051 = vcombine.high %v10043, 0.0
        %v10053 = vunpack.c.l.s4 1934713408
        %v10054 = vunpack.c.0.s8 %v10053
        %v10055 = vlaneseq
        %v10056 = vshrl.u32 %v10055, 7
        %v10057 = vsub.s32 %v10054, %v10056
        %v10058 = vrot.slane %v10043, %v10057
        %v10060 = vunpack.c.l.s4 1934713408
        %v10061 = vunpack.c.0.s8 %v10060
        %v10062 = vlaneseq
        %v10063 = vshrl.u32 %v10062, 7
        %v10064 = vsub.s32 %v10061, %v10063
        %v10065 = vrot.slane %v10051, %v10064
        %v10066 = vcombine.high %v10050, 0.0
        %v10068 = vunpack.c.l.s4 1934713408
        %v10069 = vunpack.c.0.s8 %v10068
        %v10070 = vlaneseq
        %v10071 = vshrl.u32 %v10070, 7
        %v10072 = vsub.s32 %v10069, %v10071
        %v10073 = vrot.slane %v10050, %v10072
        %v10075 = vunpack.c.l.s4 1934713408
        %v10076 = vunpack.c.0.s8 %v10075
        %v10077 = vlaneseq
        %v10078 = vshrl.u32 %v10077, 7
        %v10079 = vsub.s32 %v10076, %v10078
        %v10080 = vrot.slane %v10066, %v10079
        %v10081 = vcombine.high %v10058, 0.0
        %v10082 = vcombine.high %v10065, 0.0
        %v10083 = vcombine.high %v10073, 0.0
        %v10084 = vcombine.high %v10080, 0.0
        %v10085 = vcombine.high %v7285, 0.0
        %v10087 = vunpack.c.l.s4 1983009808
        %v10088 = vunpack.c.0.s8 %v10087
        %v10089 = vlaneseq
        %v10090 = vshrl.u32 %v10089, 7
        %v10091 = vsub.s32 %v10088, %v10090
        %v10092 = vrot.slane %v7285, %v10091
        %v10094 = vunpack.c.l.s4 1983009808
        %v10095 = vunpack.c.0.s8 %v10094
        %v10096 = vlaneseq
        %v10097 = vshrl.u32 %v10096, 7
        %v10098 = vsub.s32 %v10095, %v10097
        %v10099 = vrot.slane %v10085, %v10098
        %v10100 = vcombine.high %v10092, 0.0
        %v10102 = vunpack.c.l.s4 1934713408
        %v10103 = vunpack.c.0.s8 %v10102
        %v10104 = vlaneseq
        %v10105 = vshrl.u32 %v10104, 7
        %v10106 = vsub.s32 %v10103, %v10105
        %v10107 = vrot.slane %v10092, %v10106
        %v10109 = vunpack.c.l.s4 1934713408
        %v10110 = vunpack.c.0.s8 %v10109
        %v10111 = vlaneseq
        %v10112 = vshrl.u32 %v10111, 7
        %v10113 = vsub.s32 %v10110, %v10112
        %v10114 = vrot.slane %v10100, %v10113
        %v10115 = vcombine.high %v10099, 0.0
        %v10117 = vunpack.c.l.s4 1934713408
        %v10118 = vunpack.c.0.s8 %v10117
        %v10119 = vlaneseq
        %v10120 = vshrl.u32 %v10119, 7
        %v10121 = vsub.s32 %v10118, %v10120
        %v10122 = vrot.slane %v10099, %v10121
        %v10124 = vunpack.c.l.s4 1934713408
        %v10125 = vunpack.c.0.s8 %v10124
        %v10126 = vlaneseq
        %v10127 = vshrl.u32 %v10126, 7
        %v10128 = vsub.s32 %v10125, %v10127
        %v10129 = vrot.slane %v10115, %v10128
        %v10130 = vcombine.high %v10107, 0.0
        %v10131 = vcombine.high %v10114, 0.0
        %v10132 = vcombine.high %v10122, 0.0
        %v10133 = vcombine.high %v10129, 0.0
        %v10134 = vcombine.high %v7286, 0.0
        %v10136 = vunpack.c.l.s4 1983009808
        %v10137 = vunpack.c.0.s8 %v10136
        %v10138 = vlaneseq
        %v10139 = vshrl.u32 %v10138, 7
        %v10140 = vsub.s32 %v10137, %v10139
        %v10141 = vrot.slane %v7286, %v10140
        %v10143 = vunpack.c.l.s4 1983009808
        %v10144 = vunpack.c.0.s8 %v10143
        %v10145 = vlaneseq
        %v10146 = vshrl.u32 %v10145, 7
        %v10147 = vsub.s32 %v10144, %v10146
        %v10148 = vrot.slane %v10134, %v10147
        %v10149 = vcombine.high %v10141, 0.0
        %v10151 = vunpack.c.l.s4 1934713408
        %v10152 = vunpack.c.0.s8 %v10151
        %v10153 = vlaneseq
        %v10154 = vshrl.u32 %v10153, 7
        %v10155 = vsub.s32 %v10152, %v10154
        %v10156 = vrot.slane %v10141, %v10155
        %v10158 = vunpack.c.l.s4 1934713408
        %v10159 = vunpack.c.0.s8 %v10158
        %v10160 = vlaneseq
        %v10161 = vshrl.u32 %v10160, 7
        %v10162 = vsub.s32 %v10159, %v10161
        %v10163 = vrot.slane %v10149, %v10162
        %v10164 = vcombine.high %v10148, 0.0
        %v10166 = vunpack.c.l.s4 1934713408
        %v10167 = vunpack.c.0.s8 %v10166
        %v10168 = vlaneseq
        %v10169 = vshrl.u32 %v10168, 7
        %v10170 = vsub.s32 %v10167, %v10169
        %v10171 = vrot.slane %v10148, %v10170
        %v10173 = vunpack.c.l.s4 1934713408
        %v10174 = vunpack.c.0.s8 %v10173
        %v10175 = vlaneseq
        %v10176 = vshrl.u32 %v10175, 7
        %v10177 = vsub.s32 %v10174, %v10176
        %v10178 = vrot.slane %v10164, %v10177
        %v10179 = vcombine.high %v10156, 0.0
        %v10180 = vcombine.high %v10163, 0.0
        %v10181 = vcombine.high %v10171, 0.0
        %v10182 = vcombine.high %v10178, 0.0
        %v10183 = vcombine.high %v7287, 0.0
        %v10185 = vunpack.c.l.s4 1983009808
        %v10186 = vunpack.c.0.s8 %v10185
        %v10187 = vlaneseq
        %v10188 = vshrl.u32 %v10187, 7
        %v10189 = vsub.s32 %v10186, %v10188
        %v10190 = vrot.slane %v7287, %v10189
        %v10192 = vunpack.c.l.s4 1983009808
        %v10193 = vunpack.c.0.s8 %v10192
        %v10194 = vlaneseq
        %v10195 = vshrl.u32 %v10194, 7
        %v10196 = vsub.s32 %v10193, %v10195
        %v10197 = vrot.slane %v10183, %v10196
        %v10198 = vcombine.high %v10190, 0.0
        %v10200 = vunpack.c.l.s4 1934713408
        %v10201 = vunpack.c.0.s8 %v10200
        %v10202 = vlaneseq
        %v10203 = vshrl.u32 %v10202, 7
        %v10204 = vsub.s32 %v10201, %v10203
        %v10205 = vrot.slane %v10190, %v10204
        %v10207 = vunpack.c.l.s4 1934713408
        %v10208 = vunpack.c.0.s8 %v10207
        %v10209 = vlaneseq
        %v10210 = vshrl.u32 %v10209, 7
        %v10211 = vsub.s32 %v10208, %v10210
        %v10212 = vrot.slane %v10198, %v10211
        %v10213 = vcombine.high %v10197, 0.0
        %v10215 = vunpack.c.l.s4 1934713408
        %v10216 = vunpack.c.0.s8 %v10215
        %v10217 = vlaneseq
        %v10218 = vshrl.u32 %v10217, 7
        %v10219 = vsub.s32 %v10216, %v10218
        %v10220 = vrot.slane %v10197, %v10219
        %v10222 = vunpack.c.l.s4 1934713408
        %v10223 = vunpack.c.0.s8 %v10222
        %v10224 = vlaneseq
        %v10225 = vshrl.u32 %v10224, 7
        %v10226 = vsub.s32 %v10223, %v10225
        %v10227 = vrot.slane %v10213, %v10226
        %v10228 = vcombine.high %v10205, 0.0
        %v10229 = vcombine.high %v10212, 0.0
        %v10230 = vcombine.high %v10220, 0.0
        %v10231 = vcombine.high %v10227, 0.0
        %v10232 = vcombine.high %v7288, 0.0
        %v10234 = vunpack.c.l.s4 1983009808
        %v10235 = vunpack.c.0.s8 %v10234
        %v10236 = vlaneseq
        %v10237 = vshrl.u32 %v10236, 7
        %v10238 = vsub.s32 %v10235, %v10237
        %v10239 = vrot.slane %v7288, %v10238
        %v10241 = vunpack.c.l.s4 1983009808
        %v10242 = vunpack.c.0.s8 %v10241
        %v10243 = vlaneseq
        %v10244 = vshrl.u32 %v10243, 7
        %v10245 = vsub.s32 %v10242, %v10244
        %v10246 = vrot.slane %v10232, %v10245
        %v10247 = vcombine.high %v10239, 0.0
        %v10249 = vunpack.c.l.s4 1934713408
        %v10250 = vunpack.c.0.s8 %v10249
        %v10251 = vlaneseq
        %v10252 = vshrl.u32 %v10251, 7
        %v10253 = vsub.s32 %v10250, %v10252
        %v10254 = vrot.slane %v10239, %v10253
        %v10256 = vunpack.c.l.s4 1934713408
        %v10257 = vunpack.c.0.s8 %v10256
        %v10258 = vlaneseq
        %v10259 = vshrl.u32 %v10258, 7
        %v10260 = vsub.s32 %v10257, %v10259
        %v10261 = vrot.slane %v10247, %v10260
        %v10262 = vcombine.high %v10246, 0.0
        %v10264 = vunpack.c.l.s4 1934713408
        %v10265 = vunpack.c.0.s8 %v10264
        %v10266 = vlaneseq
        %v10267 = vshrl.u32 %v10266, 7
        %v10268 = vsub.s32 %v10265, %v10267
        %v10269 = vrot.slane %v10246, %v10268
        %v10271 = vunpack.c.l.s4 1934713408
        %v10272 = vunpack.c.0.s8 %v10271
        %v10273 = vlaneseq
        %v10274 = vshrl.u32 %v10273, 7
        %v10275 = vsub.s32 %v10272, %v10274
        %v10276 = vrot.slane %v10262, %v10275
        %v10277 = vcombine.high %v10254, 0.0
        %v10278 = vcombine.high %v10261, 0.0
        %v10279 = vcombine.high %v10269, 0.0
        %v10280 = vcombine.high %v10276, 0.0
        %v10281 = vcombine.high %v7289, 0.0
        %v10283 = vunpack.c.l.s4 1983009808
        %v10284 = vunpack.c.0.s8 %v10283
        %v10285 = vlaneseq
        %v10286 = vshrl.u32 %v10285, 7
        %v10287 = vsub.s32 %v10284, %v10286
        %v10288 = vrot.slane %v7289, %v10287
        %v10290 = vunpack.c.l.s4 1983009808
        %v10291 = vunpack.c.0.s8 %v10290
        %v10292 = vlaneseq
        %v10293 = vshrl.u32 %v10292, 7
        %v10294 = vsub.s32 %v10291, %v10293
        %v10295 = vrot.slane %v10281, %v10294
        %v10296 = vcombine.high %v10288, 0.0
        %v10298 = vunpack.c.l.s4 1934713408
        %v10299 = vunpack.c.0.s8 %v10298
        %v10300 = vlaneseq
        %v10301 = vshrl.u32 %v10300, 7
        %v10302 = vsub.s32 %v10299, %v10301
        %v10303 = vrot.slane %v10288, %v10302
        %v10305 = vunpack.c.l.s4 1934713408
        %v10306 = vunpack.c.0.s8 %v10305
        %v10307 = vlaneseq
        %v10308 = vshrl.u32 %v10307, 7
        %v10309 = vsub.s32 %v10306, %v10308
        %v10310 = vrot.slane %v10296, %v10309
        %v10311 = vcombine.high %v10295, 0.0
        %v10313 = vunpack.c.l.s4 1934713408
        %v10314 = vunpack.c.0.s8 %v10313
        %v10315 = vlaneseq
        %v10316 = vshrl.u32 %v10315, 7
        %v10317 = vsub.s32 %v10314, %v10316
        %v10318 = vrot.slane %v10295, %v10317
        %v10320 = vunpack.c.l.s4 1934713408
        %v10321 = vunpack.c.0.s8 %v10320
        %v10322 = vlaneseq
        %v10323 = vshrl.u32 %v10322, 7
        %v10324 = vsub.s32 %v10321, %v10323
        %v10325 = vrot.slane %v10311, %v10324
        %v10326 = vcombine.high %v10303, 0.0
        %v10327 = vcombine.high %v10310, 0.0
        %v10328 = vcombine.high %v10318, 0.0
        %v10329 = vcombine.high %v10325, 0.0
        %v10330 = vcombine.high %v7290, 0.0
        %v10332 = vunpack.c.l.s4 1983009808
        %v10333 = vunpack.c.0.s8 %v10332
        %v10334 = vlaneseq
        %v10335 = vshrl.u32 %v10334, 7
        %v10336 = vsub.s32 %v10333, %v10335
        %v10337 = vrot.slane %v7290, %v10336
        %v10339 = vunpack.c.l.s4 1983009808
        %v10340 = vunpack.c.0.s8 %v10339
        %v10341 = vlaneseq
        %v10342 = vshrl.u32 %v10341, 7
        %v10343 = vsub.s32 %v10340, %v10342
        %v10344 = vrot.slane %v10330, %v10343
        %v10345 = vcombine.high %v10337, 0.0
        %v10347 = vunpack.c.l.s4 1934713408
        %v10348 = vunpack.c.0.s8 %v10347
        %v10349 = vlaneseq
        %v10350 = vshrl.u32 %v10349, 7
        %v10351 = vsub.s32 %v10348, %v10350
        %v10352 = vrot.slane %v10337, %v10351
        %v10354 = vunpack.c.l.s4 1934713408
        %v10355 = vunpack.c.0.s8 %v10354
        %v10356 = vlaneseq
        %v10357 = vshrl.u32 %v10356, 7
        %v10358 = vsub.s32 %v10355, %v10357
        %v10359 = vrot.slane %v10345, %v10358
        %v10360 = vcombine.high %v10344, 0.0
        %v10362 = vunpack.c.l.s4 1934713408
        %v10363 = vunpack.c.0.s8 %v10362
        %v10364 = vlaneseq
        %v10365 = vshrl.u32 %v10364, 7
        %v10366 = vsub.s32 %v10363, %v10365
        %v10367 = vrot.slane %v10344, %v10366
        %v10369 = vunpack.c.l.s4 1934713408
        %v10370 = vunpack.c.0.s8 %v10369
        %v10371 = vlaneseq
        %v10372 = vshrl.u32 %v10371, 7
        %v10373 = vsub.s32 %v10370, %v10372
        %v10374 = vrot.slane %v10360, %v10373
        %v10375 = vcombine.high %v10352, 0.0
        %v10376 = vcombine.high %v10359, 0.0
        %v10377 = vcombine.high %v10367, 0.0
        %v10378 = vcombine.high %v10374, 0.0
        %v10379 = vcombine.high %v7291, 0.0
        %v10381 = vunpack.c.l.s4 1983009808
        %v10382 = vunpack.c.0.s8 %v10381
        %v10383 = vlaneseq
        %v10384 = vshrl.u32 %v10383, 7
        %v10385 = vsub.s32 %v10382, %v10384
        %v10386 = vrot.slane %v7291, %v10385
        %v10388 = vunpack.c.l.s4 1983009808
        %v10389 = vunpack.c.0.s8 %v10388
        %v10390 = vlaneseq
        %v10391 = vshrl.u32 %v10390, 7
        %v10392 = vsub.s32 %v10389, %v10391
        %v10393 = vrot.slane %v10379, %v10392
        %v10394 = vcombine.high %v10386, 0.0
        %v10396 = vunpack.c.l.s4 1934713408
        %v10397 = vunpack.c.0.s8 %v10396
        %v10398 = vlaneseq
        %v10399 = vshrl.u32 %v10398, 7
        %v10400 = vsub.s32 %v10397, %v10399
        %v10401 = vrot.slane %v10386, %v10400
        %v10403 = vunpack.c.l.s4 1934713408
        %v10404 = vunpack.c.0.s8 %v10403
        %v10405 = vlaneseq
        %v10406 = vshrl.u32 %v10405, 7
        %v10407 = vsub.s32 %v10404, %v10406
        %v10408 = vrot.slane %v10394, %v10407
        %v10409 = vcombine.high %v10393, 0.0
        %v10411 = vunpack.c.l.s4 1934713408
        %v10412 = vunpack.c.0.s8 %v10411
        %v10413 = vlaneseq
        %v10414 = vshrl.u32 %v10413, 7
        %v10415 = vsub.s32 %v10412, %v10414
        %v10416 = vrot.slane %v10393, %v10415
        %v10418 = vunpack.c.l.s4 1934713408
        %v10419 = vunpack.c.0.s8 %v10418
        %v10420 = vlaneseq
        %v10421 = vshrl.u32 %v10420, 7
        %v10422 = vsub.s32 %v10419, %v10421
        %v10423 = vrot.slane %v10409, %v10422
        %v10424 = vcombine.high %v10401, 0.0
        %v10425 = vcombine.high %v10408, 0.0
        %v10426 = vcombine.high %v10416, 0.0
        %v10427 = vcombine.high %v10423, 0.0
        %10460 = vrot.lane.b32.xlu0 %v7337, 2
        %v10461 = vpop.permute.xlu0 %10460
        %10462 = vrot.lane.b32.xlu0 %v7435, 2
        %v10463 = vpop.permute.xlu0 %10462
        %10464 = vrot.lane.b32.xlu0 %v7533, 2
        %v10465 = vpop.permute.xlu0 %10464
        %10466 = vrot.lane.b32.xlu0 %v7631, 2
        %v10467 = vpop.permute.xlu0 %10466
        %10468 = vrot.lane.b32.xlu0 %v7729, 2
        %v10469 = vpop.permute.xlu0 %10468
        %10470 = vrot.lane.b32.xlu0 %v7827, 2
        %v10471 = vpop.permute.xlu0 %10470
        %10472 = vrot.lane.b32.xlu0 %v7925, 2
        %v10473 = vpop.permute.xlu0 %10472
        %10474 = vrot.lane.b32.xlu0 %v8023, 2
        %v10475 = vpop.permute.xlu0 %10474
        %10476 = vrot.lane.b32.xlu0 %v8121, 2
        %v10477 = vpop.permute.xlu0 %10476
        %10478 = vrot.lane.b32.xlu0 %v8219, 2
        %v10479 = vpop.permute.xlu0 %10478
        %10480 = vrot.lane.b32.xlu0 %v8317, 2
        %v10481 = vpop.permute.xlu0 %10480
        %10482 = vrot.lane.b32.xlu0 %v8415, 2
        %v10483 = vpop.permute.xlu0 %10482
        %10484 = vrot.lane.b32.xlu0 %v8513, 2
        %v10485 = vpop.permute.xlu0 %10484
        %10486 = vrot.lane.b32.xlu0 %v8611, 2
        %v10487 = vpop.permute.xlu0 %10486
        %10488 = vrot.lane.b32.xlu0 %v8709, 2
        %v10489 = vpop.permute.xlu0 %10488
        %10490 = vrot.lane.b32.xlu0 %v8807, 2
        %v10491 = vpop.permute.xlu0 %10490
        %10492 = vrot.lane.b32.xlu0 %v8905, 2
        %v10493 = vpop.permute.xlu0 %10492
        %10494 = vrot.lane.b32.xlu0 %v9003, 2
        %v10495 = vpop.permute.xlu0 %10494
        %10496 = vrot.lane.b32.xlu0 %v9101, 2
        %v10497 = vpop.permute.xlu0 %10496
        %10498 = vrot.lane.b32.xlu0 %v9199, 2
        %v10499 = vpop.permute.xlu0 %10498
        %10500 = vrot.lane.b32.xlu0 %v9297, 2
        %v10501 = vpop.permute.xlu0 %10500
        %10502 = vrot.lane.b32.xlu0 %v9395, 2
        %v10503 = vpop.permute.xlu0 %10502
        %10504 = vrot.lane.b32.xlu0 %v9493, 2
        %v10505 = vpop.permute.xlu0 %10504
        %10506 = vrot.lane.b32.xlu0 %v9591, 2
        %v10507 = vpop.permute.xlu0 %10506
        %10508 = vrot.lane.b32.xlu0 %v9689, 2
        %v10509 = vpop.permute.xlu0 %10508
        %10510 = vrot.lane.b32.xlu0 %v9787, 2
        %v10511 = vpop.permute.xlu0 %10510
        %10512 = vrot.lane.b32.xlu0 %v9885, 2
        %v10513 = vpop.permute.xlu0 %10512
        %10514 = vrot.lane.b32.xlu0 %v9983, 2
        %v10515 = vpop.permute.xlu0 %10514
        %10516 = vrot.lane.b32.xlu0 %v10081, 2
        %v10517 = vpop.permute.xlu0 %10516
        %10518 = vrot.lane.b32.xlu0 %v10179, 2
        %v10519 = vpop.permute.xlu0 %10518
        %10520 = vrot.lane.b32.xlu0 %v10277, 2
        %v10521 = vpop.permute.xlu0 %10520
        %10522 = vrot.lane.b32.xlu0 %v10375, 2
        %v10523 = vpop.permute.xlu0 %10522
        %10588 = vrot.lane.b32.xlu0 %v7321, 4
        %v10589 = vpop.permute.xlu0 %10588
        %10590 = vrot.lane.b32.xlu0 %v7419, 4
        %v10591 = vpop.permute.xlu0 %10590
        %10592 = vrot.lane.b32.xlu0 %v7517, 4
        %v10593 = vpop.permute.xlu0 %10592
        %10594 = vrot.lane.b32.xlu0 %v7615, 4
        %v10595 = vpop.permute.xlu0 %10594
        %10596 = vrot.lane.b32.xlu0 %v7713, 4
        %v10597 = vpop.permute.xlu0 %10596
        %10598 = vrot.lane.b32.xlu0 %v7811, 4
        %v10599 = vpop.permute.xlu0 %10598
        %10600 = vrot.lane.b32.xlu0 %v7909, 4
        %v10601 = vpop.permute.xlu0 %10600
        %10602 = vrot.lane.b32.xlu0 %v8007, 4
        %v10603 = vpop.permute.xlu0 %10602
        %10604 = vrot.lane.b32.xlu0 %v8105, 4
        %v10605 = vpop.permute.xlu0 %10604
        %10606 = vrot.lane.b32.xlu0 %v8203, 4
        %v10607 = vpop.permute.xlu0 %10606
        %10608 = vrot.lane.b32.xlu0 %v8301, 4
        %v10609 = vpop.permute.xlu0 %10608
        %10610 = vrot.lane.b32.xlu0 %v8399, 4
        %v10611 = vpop.permute.xlu0 %10610
        %10612 = vrot.lane.b32.xlu0 %v8497, 4
        %v10613 = vpop.permute.xlu0 %10612
        %10614 = vrot.lane.b32.xlu0 %v8595, 4
        %v10615 = vpop.permute.xlu0 %10614
        %10616 = vrot.lane.b32.xlu0 %v8693, 4
        %v10617 = vpop.permute.xlu0 %10616
        %10618 = vrot.lane.b32.xlu0 %v8791, 4
        %v10619 = vpop.permute.xlu0 %10618
        %10620 = vrot.lane.b32.xlu0 %v8889, 4
        %v10621 = vpop.permute.xlu0 %10620
        %10622 = vrot.lane.b32.xlu0 %v8987, 4
        %v10623 = vpop.permute.xlu0 %10622
        %10624 = vrot.lane.b32.xlu0 %v9085, 4
        %v10625 = vpop.permute.xlu0 %10624
        %10626 = vrot.lane.b32.xlu0 %v9183, 4
        %v10627 = vpop.permute.xlu0 %10626
        %10628 = vrot.lane.b32.xlu0 %v9281, 4
        %v10629 = vpop.permute.xlu0 %10628
        %10630 = vrot.lane.b32.xlu0 %v9379, 4
        %v10631 = vpop.permute.xlu0 %10630
        %10632 = vrot.lane.b32.xlu0 %v9477, 4
        %v10633 = vpop.permute.xlu0 %10632
        %10634 = vrot.lane.b32.xlu0 %v9575, 4
        %v10635 = vpop.permute.xlu0 %10634
        %10636 = vrot.lane.b32.xlu0 %v9673, 4
        %v10637 = vpop.permute.xlu0 %10636
        %10638 = vrot.lane.b32.xlu0 %v9771, 4
        %v10639 = vpop.permute.xlu0 %10638
        %10640 = vrot.lane.b32.xlu0 %v9869, 4
        %v10641 = vpop.permute.xlu0 %10640
        %10642 = vrot.lane.b32.xlu0 %v9967, 4
        %v10643 = vpop.permute.xlu0 %10642
        %10644 = vrot.lane.b32.xlu0 %v10065, 4
        %v10645 = vpop.permute.xlu0 %10644
        %10646 = vrot.lane.b32.xlu0 %v10163, 4
        %v10647 = vpop.permute.xlu0 %10646
        %10648 = vrot.lane.b32.xlu0 %v10261, 4
        %v10649 = vpop.permute.xlu0 %10648
        %10650 = vrot.lane.b32.xlu0 %v10359, 4
        %v10651 = vpop.permute.xlu0 %10650
        %10716 = vrot.lane.b32.xlu0 %v7338, 6
        %v10717 = vpop.permute.xlu0 %10716
        %10718 = vrot.lane.b32.xlu0 %v7436, 6
        %v10719 = vpop.permute.xlu0 %10718
        %10720 = vrot.lane.b32.xlu0 %v7534, 6
        %v10721 = vpop.permute.xlu0 %10720
        %10722 = vrot.lane.b32.xlu0 %v7632, 6
        %v10723 = vpop.permute.xlu0 %10722
        %10724 = vrot.lane.b32.xlu0 %v7730, 6
        %v10725 = vpop.permute.xlu0 %10724
        %10726 = vrot.lane.b32.xlu0 %v7828, 6
        %v10727 = vpop.permute.xlu0 %10726
        %10728 = vrot.lane.b32.xlu0 %v7926, 6
        %v10729 = vpop.permute.xlu0 %10728
        %10730 = vrot.lane.b32.xlu0 %v8024, 6
        %v10731 = vpop.permute.xlu0 %10730
        %10732 = vrot.lane.b32.xlu0 %v8122, 6
        %v10733 = vpop.permute.xlu0 %10732
        %10734 = vrot.lane.b32.xlu0 %v8220, 6
        %v10735 = vpop.permute.xlu0 %10734
        %10736 = vrot.lane.b32.xlu0 %v8318, 6
        %v10737 = vpop.permute.xlu0 %10736
        %10738 = vrot.lane.b32.xlu0 %v8416, 6
        %v10739 = vpop.permute.xlu0 %10738
        %10740 = vrot.lane.b32.xlu0 %v8514, 6
        %v10741 = vpop.permute.xlu0 %10740
        %10742 = vrot.lane.b32.xlu0 %v8612, 6
        %v10743 = vpop.permute.xlu0 %10742
        %10744 = vrot.lane.b32.xlu0 %v8710, 6
        %v10745 = vpop.permute.xlu0 %10744
        %10746 = vrot.lane.b32.xlu0 %v8808, 6
        %v10747 = vpop.permute.xlu0 %10746
        %10748 = vrot.lane.b32.xlu0 %v8906, 6
        %v10749 = vpop.permute.xlu0 %10748
        %10750 = vrot.lane.b32.xlu0 %v9004, 6
        %v10751 = vpop.permute.xlu0 %10750
        %10752 = vrot.lane.b32.xlu0 %v9102, 6
        %v10753 = vpop.permute.xlu0 %10752
        %10754 = vrot.lane.b32.xlu0 %v9200, 6
        %v10755 = vpop.permute.xlu0 %10754
        %10756 = vrot.lane.b32.xlu0 %v9298, 6
        %v10757 = vpop.permute.xlu0 %10756
        %10758 = vrot.lane.b32.xlu0 %v9396, 6
        %v10759 = vpop.permute.xlu0 %10758
        %10760 = vrot.lane.b32.xlu0 %v9494, 6
        %v10761 = vpop.permute.xlu0 %10760
        %10762 = vrot.lane.b32.xlu0 %v9592, 6
        %v10763 = vpop.permute.xlu0 %10762
        %10764 = vrot.lane.b32.xlu0 %v9690, 6
        %v10765 = vpop.permute.xlu0 %10764
        %10766 = vrot.lane.b32.xlu0 %v9788, 6
        %v10767 = vpop.permute.xlu0 %10766
        %10768 = vrot.lane.b32.xlu0 %v9886, 6
        %v10769 = vpop.permute.xlu0 %10768
        %10770 = vrot.lane.b32.xlu0 %v9984, 6
        %v10771 = vpop.permute.xlu0 %10770
        %10772 = vrot.lane.b32.xlu0 %v10082, 6
        %v10773 = vpop.permute.xlu0 %10772
        %10774 = vrot.lane.b32.xlu0 %v10180, 6
        %v10775 = vpop.permute.xlu0 %10774
        %10776 = vrot.lane.b32.xlu0 %v10278, 6
        %v10777 = vpop.permute.xlu0 %10776
        %10778 = vrot.lane.b32.xlu0 %v10376, 6
        %v10779 = vpop.permute.xlu0 %10778
        %10844 = vrot.lane.b32.xlu0 %v7329, 8
        %v10845 = vpop.permute.xlu0 %10844
        %10846 = vrot.lane.b32.xlu0 %v7427, 8
        %v10847 = vpop.permute.xlu0 %10846
        %10848 = vrot.lane.b32.xlu0 %v7525, 8
        %v10849 = vpop.permute.xlu0 %10848
        %10850 = vrot.lane.b32.xlu0 %v7623, 8
        %v10851 = vpop.permute.xlu0 %10850
        %10852 = vrot.lane.b32.xlu0 %v7721, 8
        %v10853 = vpop.permute.xlu0 %10852
        %10854 = vrot.lane.b32.xlu0 %v7819, 8
        %v10855 = vpop.permute.xlu0 %10854
        %10856 = vrot.lane.b32.xlu0 %v7917, 8
        %v10857 = vpop.permute.xlu0 %10856
        %10858 = vrot.lane.b32.xlu0 %v8015, 8
        %v10859 = vpop.permute.xlu0 %10858
        %10860 = vrot.lane.b32.xlu0 %v8113, 8
        %v10861 = vpop.permute.xlu0 %10860
        %10862 = vrot.lane.b32.xlu0 %v8211, 8
        %v10863 = vpop.permute.xlu0 %10862
        %10864 = vrot.lane.b32.xlu0 %v8309, 8
        %v10865 = vpop.permute.xlu0 %10864
        %10866 = vrot.lane.b32.xlu0 %v8407, 8
        %v10867 = vpop.permute.xlu0 %10866
        %10868 = vrot.lane.b32.xlu0 %v8505, 8
        %v10869 = vpop.permute.xlu0 %10868
        %10870 = vrot.lane.b32.xlu0 %v8603, 8
        %v10871 = vpop.permute.xlu0 %10870
        %10872 = vrot.lane.b32.xlu0 %v8701, 8
        %v10873 = vpop.permute.xlu0 %10872
        %10874 = vrot.lane.b32.xlu0 %v8799, 8
        %v10875 = vpop.permute.xlu0 %10874
        %10876 = vrot.lane.b32.xlu0 %v8897, 8
        %v10877 = vpop.permute.xlu0 %10876
        %10878 = vrot.lane.b32.xlu0 %v8995, 8
        %v10879 = vpop.permute.xlu0 %10878
        %10880 = vrot.lane.b32.xlu0 %v9093, 8
        %v10881 = vpop.permute.xlu0 %10880
        %10882 = vrot.lane.b32.xlu0 %v9191, 8
        %v10883 = vpop.permute.xlu0 %10882
        %10884 = vrot.lane.b32.xlu0 %v9289, 8
        %v10885 = vpop.permute.xlu0 %10884
        %10886 = vrot.lane.b32.xlu0 %v9387, 8
        %v10887 = vpop.permute.xlu0 %10886
        %10888 = vrot.lane.b32.xlu0 %v9485, 8
        %v10889 = vpop.permute.xlu0 %10888
        %10890 = vrot.lane.b32.xlu0 %v9583, 8
        %v10891 = vpop.permute.xlu0 %10890
        %10892 = vrot.lane.b32.xlu0 %v9681, 8
        %v10893 = vpop.permute.xlu0 %10892
        %10894 = vrot.lane.b32.xlu0 %v9779, 8
        %v10895 = vpop.permute.xlu0 %10894
        %10896 = vrot.lane.b32.xlu0 %v9877, 8
        %v10897 = vpop.permute.xlu0 %10896
        %10898 = vrot.lane.b32.xlu0 %v9975, 8
        %v10899 = vpop.permute.xlu0 %10898
        %10900 = vrot.lane.b32.xlu0 %v10073, 8
        %v10901 = vpop.permute.xlu0 %10900
        %10902 = vrot.lane.b32.xlu0 %v10171, 8
        %v10903 = vpop.permute.xlu0 %10902
        %10904 = vrot.lane.b32.xlu0 %v10269, 8
        %v10905 = vpop.permute.xlu0 %10904
        %10906 = vrot.lane.b32.xlu0 %v10367, 8
        %v10907 = vpop.permute.xlu0 %10906
        %10972 = vrot.lane.b32.xlu0 %v7339, 10
        %v10973 = vpop.permute.xlu0 %10972
        %10974 = vrot.lane.b32.xlu0 %v7437, 10
        %v10975 = vpop.permute.xlu0 %10974
        %10976 = vrot.lane.b32.xlu0 %v7535, 10
        %v10977 = vpop.permute.xlu0 %10976
        %10978 = vrot.lane.b32.xlu0 %v7633, 10
        %v10979 = vpop.permute.xlu0 %10978
        %10980 = vrot.lane.b32.xlu0 %v7731, 10
        %v10981 = vpop.permute.xlu0 %10980
        %10982 = vrot.lane.b32.xlu0 %v7829, 10
        %v10983 = vpop.permute.xlu0 %10982
        %10984 = vrot.lane.b32.xlu0 %v7927, 10
        %v10985 = vpop.permute.xlu0 %10984
        %10986 = vrot.lane.b32.xlu0 %v8025, 10
        %v10987 = vpop.permute.xlu0 %10986
        %10988 = vrot.lane.b32.xlu0 %v8123, 10
        %v10989 = vpop.permute.xlu0 %10988
        %10990 = vrot.lane.b32.xlu0 %v8221, 10
        %v10991 = vpop.permute.xlu0 %10990
        %10992 = vrot.lane.b32.xlu0 %v8319, 10
        %v10993 = vpop.permute.xlu0 %10992
        %10994 = vrot.lane.b32.xlu0 %v8417, 10
        %v10995 = vpop.permute.xlu0 %10994
        %10996 = vrot.lane.b32.xlu0 %v8515, 10
        %v10997 = vpop.permute.xlu0 %10996
        %10998 = vrot.lane.b32.xlu0 %v8613, 10
        %v10999 = vpop.permute.xlu0 %10998
        %11000 = vrot.lane.b32.xlu0 %v8711, 10
        %v11001 = vpop.permute.xlu0 %11000
        %11002 = vrot.lane.b32.xlu0 %v8809, 10
        %v11003 = vpop.permute.xlu0 %11002
        %11004 = vrot.lane.b32.xlu0 %v8907, 10
        %v11005 = vpop.permute.xlu0 %11004
        %11006 = vrot.lane.b32.xlu0 %v9005, 10
        %v11007 = vpop.permute.xlu0 %11006
        %11008 = vrot.lane.b32.xlu0 %v9103, 10
        %v11009 = vpop.permute.xlu0 %11008
        %11010 = vrot.lane.b32.xlu0 %v9201, 10
        %v11011 = vpop.permute.xlu0 %11010
        %11012 = vrot.lane.b32.xlu0 %v9299, 10
        %v11013 = vpop.permute.xlu0 %11012
        %11014 = vrot.lane.b32.xlu0 %v9397, 10
        %v11015 = vpop.permute.xlu0 %11014
        %11016 = vrot.lane.b32.xlu0 %v9495, 10
        %v11017 = vpop.permute.xlu0 %11016
        %11018 = vrot.lane.b32.xlu0 %v9593, 10
        %v11019 = vpop.permute.xlu0 %11018
        %11020 = vrot.lane.b32.xlu0 %v9691, 10
        %v11021 = vpop.permute.xlu0 %11020
        %11022 = vrot.lane.b32.xlu0 %v9789, 10
        %v11023 = vpop.permute.xlu0 %11022
        %11024 = vrot.lane.b32.xlu0 %v9887, 10
        %v11025 = vpop.permute.xlu0 %11024
        %11026 = vrot.lane.b32.xlu0 %v9985, 10
        %v11027 = vpop.permute.xlu0 %11026
        %11028 = vrot.lane.b32.xlu0 %v10083, 10
        %v11029 = vpop.permute.xlu0 %11028
        %11030 = vrot.lane.b32.xlu0 %v10181, 10
        %v11031 = vpop.permute.xlu0 %11030
        %11032 = vrot.lane.b32.xlu0 %v10279, 10
        %v11033 = vpop.permute.xlu0 %11032
        %11034 = vrot.lane.b32.xlu0 %v10377, 10
        %v11035 = vpop.permute.xlu0 %11034
        %11100 = vrot.lane.b32.xlu0 %v7336, 12
        %v11101 = vpop.permute.xlu0 %11100
        %11102 = vrot.lane.b32.xlu0 %v7434, 12
        %v11103 = vpop.permute.xlu0 %11102
        %11104 = vrot.lane.b32.xlu0 %v7532, 12
        %v11105 = vpop.permute.xlu0 %11104
        %11106 = vrot.lane.b32.xlu0 %v7630, 12
        %v11107 = vpop.permute.xlu0 %11106
        %11108 = vrot.lane.b32.xlu0 %v7728, 12
        %v11109 = vpop.permute.xlu0 %11108
        %11110 = vrot.lane.b32.xlu0 %v7826, 12
        %v11111 = vpop.permute.xlu0 %11110
        %11112 = vrot.lane.b32.xlu0 %v7924, 12
        %v11113 = vpop.permute.xlu0 %11112
        %11114 = vrot.lane.b32.xlu0 %v8022, 12
        %v11115 = vpop.permute.xlu0 %11114
        %11116 = vrot.lane.b32.xlu0 %v8120, 12
        %v11117 = vpop.permute.xlu0 %11116
        %11118 = vrot.lane.b32.xlu0 %v8218, 12
        %v11119 = vpop.permute.xlu0 %11118
        %11120 = vrot.lane.b32.xlu0 %v8316, 12
        %v11121 = vpop.permute.xlu0 %11120
        %11122 = vrot.lane.b32.xlu0 %v8414, 12
        %v11123 = vpop.permute.xlu0 %11122
        %11124 = vrot.lane.b32.xlu0 %v8512, 12
        %v11125 = vpop.permute.xlu0 %11124
        %11126 = vrot.lane.b32.xlu0 %v8610, 12
        %v11127 = vpop.permute.xlu0 %11126
        %11128 = vrot.lane.b32.xlu0 %v8708, 12
        %v11129 = vpop.permute.xlu0 %11128
        %11130 = vrot.lane.b32.xlu0 %v8806, 12
        %v11131 = vpop.permute.xlu0 %11130
        %11132 = vrot.lane.b32.xlu0 %v8904, 12
        %v11133 = vpop.permute.xlu0 %11132
        %11134 = vrot.lane.b32.xlu0 %v9002, 12
        %v11135 = vpop.permute.xlu0 %11134
        %11136 = vrot.lane.b32.xlu0 %v9100, 12
        %v11137 = vpop.permute.xlu0 %11136
        %11138 = vrot.lane.b32.xlu0 %v9198, 12
        %v11139 = vpop.permute.xlu0 %11138
        %11140 = vrot.lane.b32.xlu0 %v9296, 12
        %v11141 = vpop.permute.xlu0 %11140
        %11142 = vrot.lane.b32.xlu0 %v9394, 12
        %v11143 = vpop.permute.xlu0 %11142
        %11144 = vrot.lane.b32.xlu0 %v9492, 12
        %v11145 = vpop.permute.xlu0 %11144
        %11146 = vrot.lane.b32.xlu0 %v9590, 12
        %v11147 = vpop.permute.xlu0 %11146
        %11148 = vrot.lane.b32.xlu0 %v9688, 12
        %v11149 = vpop.permute.xlu0 %11148
        %11150 = vrot.lane.b32.xlu0 %v9786, 12
        %v11151 = vpop.permute.xlu0 %11150
        %11152 = vrot.lane.b32.xlu0 %v9884, 12
        %v11153 = vpop.permute.xlu0 %11152
        %11154 = vrot.lane.b32.xlu0 %v9982, 12
        %v11155 = vpop.permute.xlu0 %11154
        %11156 = vrot.lane.b32.xlu0 %v10080, 12
        %v11157 = vpop.permute.xlu0 %11156
        %11158 = vrot.lane.b32.xlu0 %v10178, 12
        %v11159 = vpop.permute.xlu0 %11158
        %11160 = vrot.lane.b32.xlu0 %v10276, 12
        %v11161 = vpop.permute.xlu0 %11160
        %11162 = vrot.lane.b32.xlu0 %v10374, 12
        %v11163 = vpop.permute.xlu0 %11162
        %11228 = vrot.lane.b32.xlu0 %v7340, 14
        %v11229 = vpop.permute.xlu0 %11228
        %11230 = vrot.lane.b32.xlu0 %v7438, 14
        %v11231 = vpop.permute.xlu0 %11230
        %11232 = vrot.lane.b32.xlu0 %v7536, 14
        %v11233 = vpop.permute.xlu0 %11232
        %11234 = vrot.lane.b32.xlu0 %v7634, 14
        %v11235 = vpop.permute.xlu0 %11234
        %11236 = vrot.lane.b32.xlu0 %v7732, 14
        %v11237 = vpop.permute.xlu0 %11236
        %11238 = vrot.lane.b32.xlu0 %v7830, 14
        %v11239 = vpop.permute.xlu0 %11238
        %11240 = vrot.lane.b32.xlu0 %v7928, 14
        %v11241 = vpop.permute.xlu0 %11240
        %11242 = vrot.lane.b32.xlu0 %v8026, 14
        %v11243 = vpop.permute.xlu0 %11242
        %11244 = vrot.lane.b32.xlu0 %v8124, 14
        %v11245 = vpop.permute.xlu0 %11244
        %11246 = vrot.lane.b32.xlu0 %v8222, 14
        %v11247 = vpop.permute.xlu0 %11246
        %11248 = vrot.lane.b32.xlu0 %v8320, 14
        %v11249 = vpop.permute.xlu0 %11248
        %11250 = vrot.lane.b32.xlu0 %v8418, 14
        %v11251 = vpop.permute.xlu0 %11250
        %11252 = vrot.lane.b32.xlu0 %v8516, 14
        %v11253 = vpop.permute.xlu0 %11252
        %11254 = vrot.lane.b32.xlu0 %v8614, 14
        %v11255 = vpop.permute.xlu0 %11254
        %11256 = vrot.lane.b32.xlu0 %v8712, 14
        %v11257 = vpop.permute.xlu0 %11256
        %11258 = vrot.lane.b32.xlu0 %v8810, 14
        %v11259 = vpop.permute.xlu0 %11258
        %11260 = vrot.lane.b32.xlu0 %v8908, 14
        %v11261 = vpop.permute.xlu0 %11260
        %11262 = vrot.lane.b32.xlu0 %v9006, 14
        %v11263 = vpop.permute.xlu0 %11262
        %11264 = vrot.lane.b32.xlu0 %v9104, 14
        %v11265 = vpop.permute.xlu0 %11264
        %11266 = vrot.lane.b32.xlu0 %v9202, 14
        %v11267 = vpop.permute.xlu0 %11266
        %11268 = vrot.lane.b32.xlu0 %v9300, 14
        %v11269 = vpop.permute.xlu0 %11268
        %11270 = vrot.lane.b32.xlu0 %v9398, 14
        %v11271 = vpop.permute.xlu0 %11270
        %11272 = vrot.lane.b32.xlu0 %v9496, 14
        %v11273 = vpop.permute.xlu0 %11272
        %11274 = vrot.lane.b32.xlu0 %v9594, 14
        %v11275 = vpop.permute.xlu0 %11274
        %11276 = vrot.lane.b32.xlu0 %v9692, 14
        %v11277 = vpop.permute.xlu0 %11276
        %11278 = vrot.lane.b32.xlu0 %v9790, 14
        %v11279 = vpop.permute.xlu0 %11278
        %11280 = vrot.lane.b32.xlu0 %v9888, 14
        %v11281 = vpop.permute.xlu0 %11280
        %11282 = vrot.lane.b32.xlu0 %v9986, 14
        %v11283 = vpop.permute.xlu0 %11282
        %11284 = vrot.lane.b32.xlu0 %v10084, 14
        %v11285 = vpop.permute.xlu0 %11284
        %11286 = vrot.lane.b32.xlu0 %v10182, 14
        %v11287 = vpop.permute.xlu0 %11286
        %11288 = vrot.lane.b32.xlu0 %v10280, 14
        %v11289 = vpop.permute.xlu0 %11288
        %11290 = vrot.lane.b32.xlu0 %v10378, 14
        %v11291 = vpop.permute.xlu0 %11290
        %11356 = vrot.lane.b32.xlu0 %v7363, 16
        %v11357 = vpop.permute.xlu0 %11356
        %11358 = vrot.lane.b32.xlu0 %v7461, 16
        %v11359 = vpop.permute.xlu0 %11358
        %11360 = vrot.lane.b32.xlu0 %v7559, 16
        %v11361 = vpop.permute.xlu0 %11360
        %11362 = vrot.lane.b32.xlu0 %v7657, 16
        %v11363 = vpop.permute.xlu0 %11362
        %11364 = vrot.lane.b32.xlu0 %v7755, 16
        %v11365 = vpop.permute.xlu0 %11364
        %11366 = vrot.lane.b32.xlu0 %v7853, 16
        %v11367 = vpop.permute.xlu0 %11366
        %11368 = vrot.lane.b32.xlu0 %v7951, 16
        %v11369 = vpop.permute.xlu0 %11368
        %11370 = vrot.lane.b32.xlu0 %v8049, 16
        %v11371 = vpop.permute.xlu0 %11370
        %11372 = vrot.lane.b32.xlu0 %v8147, 16
        %v11373 = vpop.permute.xlu0 %11372
        %11374 = vrot.lane.b32.xlu0 %v8245, 16
        %v11375 = vpop.permute.xlu0 %11374
        %11376 = vrot.lane.b32.xlu0 %v8343, 16
        %v11377 = vpop.permute.xlu0 %11376
        %11378 = vrot.lane.b32.xlu0 %v8441, 16
        %v11379 = vpop.permute.xlu0 %11378
        %11380 = vrot.lane.b32.xlu0 %v8539, 16
        %v11381 = vpop.permute.xlu0 %11380
        %11382 = vrot.lane.b32.xlu0 %v8637, 16
        %v11383 = vpop.permute.xlu0 %11382
        %11384 = vrot.lane.b32.xlu0 %v8735, 16
        %v11385 = vpop.permute.xlu0 %11384
        %11386 = vrot.lane.b32.xlu0 %v8833, 16
        %v11387 = vpop.permute.xlu0 %11386
        %11388 = vrot.lane.b32.xlu0 %v8931, 16
        %v11389 = vpop.permute.xlu0 %11388
        %11390 = vrot.lane.b32.xlu0 %v9029, 16
        %v11391 = vpop.permute.xlu0 %11390
        %11392 = vrot.lane.b32.xlu0 %v9127, 16
        %v11393 = vpop.permute.xlu0 %11392
        %11394 = vrot.lane.b32.xlu0 %v9225, 16
        %v11395 = vpop.permute.xlu0 %11394
        %11396 = vrot.lane.b32.xlu0 %v9323, 16
        %v11397 = vpop.permute.xlu0 %11396
        %11398 = vrot.lane.b32.xlu0 %v9421, 16
        %v11399 = vpop.permute.xlu0 %11398
        %11400 = vrot.lane.b32.xlu0 %v9519, 16
        %v11401 = vpop.permute.xlu0 %11400
        %11402 = vrot.lane.b32.xlu0 %v9617, 16
        %v11403 = vpop.permute.xlu0 %11402
        %11404 = vrot.lane.b32.xlu0 %v9715, 16
        %v11405 = vpop.permute.xlu0 %11404
        %11406 = vrot.lane.b32.xlu0 %v9813, 16
        %v11407 = vpop.permute.xlu0 %11406
        %11408 = vrot.lane.b32.xlu0 %v9911, 16
        %v11409 = vpop.permute.xlu0 %11408
        %11410 = vrot.lane.b32.xlu0 %v10009, 16
        %v11411 = vpop.permute.xlu0 %11410
        %11412 = vrot.lane.b32.xlu0 %v10107, 16
        %v11413 = vpop.permute.xlu0 %11412
        %11414 = vrot.lane.b32.xlu0 %v10205, 16
        %v11415 = vpop.permute.xlu0 %11414
        %11416 = vrot.lane.b32.xlu0 %v10303, 16
        %v11417 = vpop.permute.xlu0 %11416
        %11418 = vrot.lane.b32.xlu0 %v10401, 16
        %v11419 = vpop.permute.xlu0 %11418
        %11484 = vrot.lane.b32.xlu0 %v7386, 18
        %v11485 = vpop.permute.xlu0 %11484
        %11486 = vrot.lane.b32.xlu0 %v7484, 18
        %v11487 = vpop.permute.xlu0 %11486
        %11488 = vrot.lane.b32.xlu0 %v7582, 18
        %v11489 = vpop.permute.xlu0 %11488
        %11490 = vrot.lane.b32.xlu0 %v7680, 18
        %v11491 = vpop.permute.xlu0 %11490
        %11492 = vrot.lane.b32.xlu0 %v7778, 18
        %v11493 = vpop.permute.xlu0 %11492
        %11494 = vrot.lane.b32.xlu0 %v7876, 18
        %v11495 = vpop.permute.xlu0 %11494
        %11496 = vrot.lane.b32.xlu0 %v7974, 18
        %v11497 = vpop.permute.xlu0 %11496
        %11498 = vrot.lane.b32.xlu0 %v8072, 18
        %v11499 = vpop.permute.xlu0 %11498
        %11500 = vrot.lane.b32.xlu0 %v8170, 18
        %v11501 = vpop.permute.xlu0 %11500
        %11502 = vrot.lane.b32.xlu0 %v8268, 18
        %v11503 = vpop.permute.xlu0 %11502
        %11504 = vrot.lane.b32.xlu0 %v8366, 18
        %v11505 = vpop.permute.xlu0 %11504
        %11506 = vrot.lane.b32.xlu0 %v8464, 18
        %v11507 = vpop.permute.xlu0 %11506
        %11508 = vrot.lane.b32.xlu0 %v8562, 18
        %v11509 = vpop.permute.xlu0 %11508
        %11510 = vrot.lane.b32.xlu0 %v8660, 18
        %v11511 = vpop.permute.xlu0 %11510
        %11512 = vrot.lane.b32.xlu0 %v8758, 18
        %v11513 = vpop.permute.xlu0 %11512
        %11514 = vrot.lane.b32.xlu0 %v8856, 18
        %v11515 = vpop.permute.xlu0 %11514
        %11516 = vrot.lane.b32.xlu0 %v8954, 18
        %v11517 = vpop.permute.xlu0 %11516
        %11518 = vrot.lane.b32.xlu0 %v9052, 18
        %v11519 = vpop.permute.xlu0 %11518
        %11520 = vrot.lane.b32.xlu0 %v9150, 18
        %v11521 = vpop.permute.xlu0 %11520
        %11522 = vrot.lane.b32.xlu0 %v9248, 18
        %v11523 = vpop.permute.xlu0 %11522
        %11524 = vrot.lane.b32.xlu0 %v9346, 18
        %v11525 = vpop.permute.xlu0 %11524
        %11526 = vrot.lane.b32.xlu0 %v9444, 18
        %v11527 = vpop.permute.xlu0 %11526
        %11528 = vrot.lane.b32.xlu0 %v9542, 18
        %v11529 = vpop.permute.xlu0 %11528
        %11530 = vrot.lane.b32.xlu0 %v9640, 18
        %v11531 = vpop.permute.xlu0 %11530
        %11532 = vrot.lane.b32.xlu0 %v9738, 18
        %v11533 = vpop.permute.xlu0 %11532
        %11534 = vrot.lane.b32.xlu0 %v9836, 18
        %v11535 = vpop.permute.xlu0 %11534
        %11536 = vrot.lane.b32.xlu0 %v9934, 18
        %v11537 = vpop.permute.xlu0 %11536
        %11538 = vrot.lane.b32.xlu0 %v10032, 18
        %v11539 = vpop.permute.xlu0 %11538
        %11540 = vrot.lane.b32.xlu0 %v10130, 18
        %v11541 = vpop.permute.xlu0 %11540
        %11542 = vrot.lane.b32.xlu0 %v10228, 18
        %v11543 = vpop.permute.xlu0 %11542
        %11544 = vrot.lane.b32.xlu0 %v10326, 18
        %v11545 = vpop.permute.xlu0 %11544
        %11546 = vrot.lane.b32.xlu0 %v10424, 18
        %v11547 = vpop.permute.xlu0 %11546
        %11612 = vrot.lane.b32.xlu0 %v7370, 20
        %v11613 = vpop.permute.xlu0 %11612
        %11614 = vrot.lane.b32.xlu0 %v7468, 20
        %v11615 = vpop.permute.xlu0 %11614
        %11616 = vrot.lane.b32.xlu0 %v7566, 20
        %v11617 = vpop.permute.xlu0 %11616
        %11618 = vrot.lane.b32.xlu0 %v7664, 20
        %v11619 = vpop.permute.xlu0 %11618
        %11620 = vrot.lane.b32.xlu0 %v7762, 20
        %v11621 = vpop.permute.xlu0 %11620
        %11622 = vrot.lane.b32.xlu0 %v7860, 20
        %v11623 = vpop.permute.xlu0 %11622
        %11624 = vrot.lane.b32.xlu0 %v7958, 20
        %v11625 = vpop.permute.xlu0 %11624
        %11626 = vrot.lane.b32.xlu0 %v8056, 20
        %v11627 = vpop.permute.xlu0 %11626
        %11628 = vrot.lane.b32.xlu0 %v8154, 20
        %v11629 = vpop.permute.xlu0 %11628
        %11630 = vrot.lane.b32.xlu0 %v8252, 20
        %v11631 = vpop.permute.xlu0 %11630
        %11632 = vrot.lane.b32.xlu0 %v8350, 20
        %v11633 = vpop.permute.xlu0 %11632
        %11634 = vrot.lane.b32.xlu0 %v8448, 20
        %v11635 = vpop.permute.xlu0 %11634
        %11636 = vrot.lane.b32.xlu0 %v8546, 20
        %v11637 = vpop.permute.xlu0 %11636
        %11638 = vrot.lane.b32.xlu0 %v8644, 20
        %v11639 = vpop.permute.xlu0 %11638
        %11640 = vrot.lane.b32.xlu0 %v8742, 20
        %v11641 = vpop.permute.xlu0 %11640
        %11642 = vrot.lane.b32.xlu0 %v8840, 20
        %v11643 = vpop.permute.xlu0 %11642
        %11644 = vrot.lane.b32.xlu0 %v8938, 20
        %v11645 = vpop.permute.xlu0 %11644
        %11646 = vrot.lane.b32.xlu0 %v9036, 20
        %v11647 = vpop.permute.xlu0 %11646
        %11648 = vrot.lane.b32.xlu0 %v9134, 20
        %v11649 = vpop.permute.xlu0 %11648
        %11650 = vrot.lane.b32.xlu0 %v9232, 20
        %v11651 = vpop.permute.xlu0 %11650
        %11652 = vrot.lane.b32.xlu0 %v9330, 20
        %v11653 = vpop.permute.xlu0 %11652
        %11654 = vrot.lane.b32.xlu0 %v9428, 20
        %v11655 = vpop.permute.xlu0 %11654
        %11656 = vrot.lane.b32.xlu0 %v9526, 20
        %v11657 = vpop.permute.xlu0 %11656
        %11658 = vrot.lane.b32.xlu0 %v9624, 20
        %v11659 = vpop.permute.xlu0 %11658
        %11660 = vrot.lane.b32.xlu0 %v9722, 20
        %v11661 = vpop.permute.xlu0 %11660
        %11662 = vrot.lane.b32.xlu0 %v9820, 20
        %v11663 = vpop.permute.xlu0 %11662
        %11664 = vrot.lane.b32.xlu0 %v9918, 20
        %v11665 = vpop.permute.xlu0 %11664
        %11666 = vrot.lane.b32.xlu0 %v10016, 20
        %v11667 = vpop.permute.xlu0 %11666
        %11668 = vrot.lane.b32.xlu0 %v10114, 20
        %v11669 = vpop.permute.xlu0 %11668
        %11670 = vrot.lane.b32.xlu0 %v10212, 20
        %v11671 = vpop.permute.xlu0 %11670
        %11672 = vrot.lane.b32.xlu0 %v10310, 20
        %v11673 = vpop.permute.xlu0 %11672
        %11674 = vrot.lane.b32.xlu0 %v10408, 20
        %v11675 = vpop.permute.xlu0 %11674
        %11740 = vrot.lane.b32.xlu0 %v7387, 22
        %v11741 = vpop.permute.xlu0 %11740
        %11742 = vrot.lane.b32.xlu0 %v7485, 22
        %v11743 = vpop.permute.xlu0 %11742
        %11744 = vrot.lane.b32.xlu0 %v7583, 22
        %v11745 = vpop.permute.xlu0 %11744
        %11746 = vrot.lane.b32.xlu0 %v7681, 22
        %v11747 = vpop.permute.xlu0 %11746
        %11748 = vrot.lane.b32.xlu0 %v7779, 22
        %v11749 = vpop.permute.xlu0 %11748
        %11750 = vrot.lane.b32.xlu0 %v7877, 22
        %v11751 = vpop.permute.xlu0 %11750
        %11752 = vrot.lane.b32.xlu0 %v7975, 22
        %v11753 = vpop.permute.xlu0 %11752
        %11754 = vrot.lane.b32.xlu0 %v8073, 22
        %v11755 = vpop.permute.xlu0 %11754
        %11756 = vrot.lane.b32.xlu0 %v8171, 22
        %v11757 = vpop.permute.xlu0 %11756
        %11758 = vrot.lane.b32.xlu0 %v8269, 22
        %v11759 = vpop.permute.xlu0 %11758
        %11760 = vrot.lane.b32.xlu0 %v8367, 22
        %v11761 = vpop.permute.xlu0 %11760
        %11762 = vrot.lane.b32.xlu0 %v8465, 22
        %v11763 = vpop.permute.xlu0 %11762
        %11764 = vrot.lane.b32.xlu0 %v8563, 22
        %v11765 = vpop.permute.xlu0 %11764
        %11766 = vrot.lane.b32.xlu0 %v8661, 22
        %v11767 = vpop.permute.xlu0 %11766
        %11768 = vrot.lane.b32.xlu0 %v8759, 22
        %v11769 = vpop.permute.xlu0 %11768
        %11770 = vrot.lane.b32.xlu0 %v8857, 22
        %v11771 = vpop.permute.xlu0 %11770
        %11772 = vrot.lane.b32.xlu0 %v8955, 22
        %v11773 = vpop.permute.xlu0 %11772
        %11774 = vrot.lane.b32.xlu0 %v9053, 22
        %v11775 = vpop.permute.xlu0 %11774
        %11776 = vrot.lane.b32.xlu0 %v9151, 22
        %v11777 = vpop.permute.xlu0 %11776
        %11778 = vrot.lane.b32.xlu0 %v9249, 22
        %v11779 = vpop.permute.xlu0 %11778
        %11780 = vrot.lane.b32.xlu0 %v9347, 22
        %v11781 = vpop.permute.xlu0 %11780
        %11782 = vrot.lane.b32.xlu0 %v9445, 22
        %v11783 = vpop.permute.xlu0 %11782
        %11784 = vrot.lane.b32.xlu0 %v9543, 22
        %v11785 = vpop.permute.xlu0 %11784
        %11786 = vrot.lane.b32.xlu0 %v9641, 22
        %v11787 = vpop.permute.xlu0 %11786
        %11788 = vrot.lane.b32.xlu0 %v9739, 22
        %v11789 = vpop.permute.xlu0 %11788
        %11790 = vrot.lane.b32.xlu0 %v9837, 22
        %v11791 = vpop.permute.xlu0 %11790
        %11792 = vrot.lane.b32.xlu0 %v9935, 22
        %v11793 = vpop.permute.xlu0 %11792
        %11794 = vrot.lane.b32.xlu0 %v10033, 22
        %v11795 = vpop.permute.xlu0 %11794
        %11796 = vrot.lane.b32.xlu0 %v10131, 22
        %v11797 = vpop.permute.xlu0 %11796
        %11798 = vrot.lane.b32.xlu0 %v10229, 22
        %v11799 = vpop.permute.xlu0 %11798
        %11800 = vrot.lane.b32.xlu0 %v10327, 22
        %v11801 = vpop.permute.xlu0 %11800
        %11802 = vrot.lane.b32.xlu0 %v10425, 22
        %v11803 = vpop.permute.xlu0 %11802
        %11868 = vrot.lane.b32.xlu0 %v7378, 24
        %v11869 = vpop.permute.xlu0 %11868
        %11870 = vrot.lane.b32.xlu0 %v7476, 24
        %v11871 = vpop.permute.xlu0 %11870
        %11872 = vrot.lane.b32.xlu0 %v7574, 24
        %v11873 = vpop.permute.xlu0 %11872
        %11874 = vrot.lane.b32.xlu0 %v7672, 24
        %v11875 = vpop.permute.xlu0 %11874
        %11876 = vrot.lane.b32.xlu0 %v7770, 24
        %v11877 = vpop.permute.xlu0 %11876
        %11878 = vrot.lane.b32.xlu0 %v7868, 24
        %v11879 = vpop.permute.xlu0 %11878
        %11880 = vrot.lane.b32.xlu0 %v7966, 24
        %v11881 = vpop.permute.xlu0 %11880
        %11882 = vrot.lane.b32.xlu0 %v8064, 24
        %v11883 = vpop.permute.xlu0 %11882
        %11884 = vrot.lane.b32.xlu0 %v8162, 24
        %v11885 = vpop.permute.xlu0 %11884
        %11886 = vrot.lane.b32.xlu0 %v8260, 24
        %v11887 = vpop.permute.xlu0 %11886
        %11888 = vrot.lane.b32.xlu0 %v8358, 24
        %v11889 = vpop.permute.xlu0 %11888
        %11890 = vrot.lane.b32.xlu0 %v8456, 24
        %v11891 = vpop.permute.xlu0 %11890
        %11892 = vrot.lane.b32.xlu0 %v8554, 24
        %v11893 = vpop.permute.xlu0 %11892
        %11894 = vrot.lane.b32.xlu0 %v8652, 24
        %v11895 = vpop.permute.xlu0 %11894
        %11896 = vrot.lane.b32.xlu0 %v8750, 24
        %v11897 = vpop.permute.xlu0 %11896
        %11898 = vrot.lane.b32.xlu0 %v8848, 24
        %v11899 = vpop.permute.xlu0 %11898
        %11900 = vrot.lane.b32.xlu0 %v8946, 24
        %v11901 = vpop.permute.xlu0 %11900
        %11902 = vrot.lane.b32.xlu0 %v9044, 24
        %v11903 = vpop.permute.xlu0 %11902
        %11904 = vrot.lane.b32.xlu0 %v9142, 24
        %v11905 = vpop.permute.xlu0 %11904
        %11906 = vrot.lane.b32.xlu0 %v9240, 24
        %v11907 = vpop.permute.xlu0 %11906
        %11908 = vrot.lane.b32.xlu0 %v9338, 24
        %v11909 = vpop.permute.xlu0 %11908
        %11910 = vrot.lane.b32.xlu0 %v9436, 24
        %v11911 = vpop.permute.xlu0 %11910
        %11912 = vrot.lane.b32.xlu0 %v9534, 24
        %v11913 = vpop.permute.xlu0 %11912
        %11914 = vrot.lane.b32.xlu0 %v9632, 24
        %v11915 = vpop.permute.xlu0 %11914
        %11916 = vrot.lane.b32.xlu0 %v9730, 24
        %v11917 = vpop.permute.xlu0 %11916
        %11918 = vrot.lane.b32.xlu0 %v9828, 24
        %v11919 = vpop.permute.xlu0 %11918
        %11920 = vrot.lane.b32.xlu0 %v9926, 24
        %v11921 = vpop.permute.xlu0 %11920
        %11922 = vrot.lane.b32.xlu0 %v10024, 24
        %v11923 = vpop.permute.xlu0 %11922
        %11924 = vrot.lane.b32.xlu0 %v10122, 24
        %v11925 = vpop.permute.xlu0 %11924
        %11926 = vrot.lane.b32.xlu0 %v10220, 24
        %v11927 = vpop.permute.xlu0 %11926
        %11928 = vrot.lane.b32.xlu0 %v10318, 24
        %v11929 = vpop.permute.xlu0 %11928
        %11930 = vrot.lane.b32.xlu0 %v10416, 24
        %v11931 = vpop.permute.xlu0 %11930
        %11996 = vrot.lane.b32.xlu0 %v7388, 26
        %v11997 = vpop.permute.xlu0 %11996
        %11998 = vrot.lane.b32.xlu0 %v7486, 26
        %v11999 = vpop.permute.xlu0 %11998
        %12000 = vrot.lane.b32.xlu0 %v7584, 26
        %v12001 = vpop.permute.xlu0 %12000
        %12002 = vrot.lane.b32.xlu0 %v7682, 26
        %v12003 = vpop.permute.xlu0 %12002
        %12004 = vrot.lane.b32.xlu0 %v7780, 26
        %v12005 = vpop.permute.xlu0 %12004
        %12006 = vrot.lane.b32.xlu0 %v7878, 26
        %v12007 = vpop.permute.xlu0 %12006
        %12008 = vrot.lane.b32.xlu0 %v7976, 26
        %v12009 = vpop.permute.xlu0 %12008
        %12010 = vrot.lane.b32.xlu0 %v8074, 26
        %v12011 = vpop.permute.xlu0 %12010
        %12012 = vrot.lane.b32.xlu0 %v8172, 26
        %v12013 = vpop.permute.xlu0 %12012
        %12014 = vrot.lane.b32.xlu0 %v8270, 26
        %v12015 = vpop.permute.xlu0 %12014
        %12016 = vrot.lane.b32.xlu0 %v8368, 26
        %v12017 = vpop.permute.xlu0 %12016
        %12018 = vrot.lane.b32.xlu0 %v8466, 26
        %v12019 = vpop.permute.xlu0 %12018
        %12020 = vrot.lane.b32.xlu0 %v8564, 26
        %v12021 = vpop.permute.xlu0 %12020
        %12022 = vrot.lane.b32.xlu0 %v8662, 26
        %v12023 = vpop.permute.xlu0 %12022
        %12024 = vrot.lane.b32.xlu0 %v8760, 26
        %v12025 = vpop.permute.xlu0 %12024
        %12026 = vrot.lane.b32.xlu0 %v8858, 26
        %v12027 = vpop.permute.xlu0 %12026
        %12028 = vrot.lane.b32.xlu0 %v8956, 26
        %v12029 = vpop.permute.xlu0 %12028
        %12030 = vrot.lane.b32.xlu0 %v9054, 26
        %v12031 = vpop.permute.xlu0 %12030
        %12032 = vrot.lane.b32.xlu0 %v9152, 26
        %v12033 = vpop.permute.xlu0 %12032
        %12034 = vrot.lane.b32.xlu0 %v9250, 26
        %v12035 = vpop.permute.xlu0 %12034
        %12036 = vrot.lane.b32.xlu0 %v9348, 26
        %v12037 = vpop.permute.xlu0 %12036
        %12038 = vrot.lane.b32.xlu0 %v9446, 26
        %v12039 = vpop.permute.xlu0 %12038
        %12040 = vrot.lane.b32.xlu0 %v9544, 26
        %v12041 = vpop.permute.xlu0 %12040
        %12042 = vrot.lane.b32.xlu0 %v9642, 26
        %v12043 = vpop.permute.xlu0 %12042
        %12044 = vrot.lane.b32.xlu0 %v9740, 26
        %v12045 = vpop.permute.xlu0 %12044
        %12046 = vrot.lane.b32.xlu0 %v9838, 26
        %v12047 = vpop.permute.xlu0 %12046
        %12048 = vrot.lane.b32.xlu0 %v9936, 26
        %v12049 = vpop.permute.xlu0 %12048
        %12050 = vrot.lane.b32.xlu0 %v10034, 26
        %v12051 = vpop.permute.xlu0 %12050
        %12052 = vrot.lane.b32.xlu0 %v10132, 26
        %v12053 = vpop.permute.xlu0 %12052
        %12054 = vrot.lane.b32.xlu0 %v10230, 26
        %v12055 = vpop.permute.xlu0 %12054
        %12056 = vrot.lane.b32.xlu0 %v10328, 26
        %v12057 = vpop.permute.xlu0 %12056
        %12058 = vrot.lane.b32.xlu0 %v10426, 26
        %v12059 = vpop.permute.xlu0 %12058
        %12124 = vrot.lane.b32.xlu0 %v7385, 28
        %v12125 = vpop.permute.xlu0 %12124
        %12126 = vrot.lane.b32.xlu0 %v7483, 28
        %v12127 = vpop.permute.xlu0 %12126
        %12128 = vrot.lane.b32.xlu0 %v7581, 28
        %v12129 = vpop.permute.xlu0 %12128
        %12130 = vrot.lane.b32.xlu0 %v7679, 28
        %v12131 = vpop.permute.xlu0 %12130
        %12132 = vrot.lane.b32.xlu0 %v7777, 28
        %v12133 = vpop.permute.xlu0 %12132
        %12134 = vrot.lane.b32.xlu0 %v7875, 28
        %v12135 = vpop.permute.xlu0 %12134
        %12136 = vrot.lane.b32.xlu0 %v7973, 28
        %v12137 = vpop.permute.xlu0 %12136
        %12138 = vrot.lane.b32.xlu0 %v8071, 28
        %v12139 = vpop.permute.xlu0 %12138
        %12140 = vrot.lane.b32.xlu0 %v8169, 28
        %v12141 = vpop.permute.xlu0 %12140
        %12142 = vrot.lane.b32.xlu0 %v8267, 28
        %v12143 = vpop.permute.xlu0 %12142
        %12144 = vrot.lane.b32.xlu0 %v8365, 28
        %v12145 = vpop.permute.xlu0 %12144
        %12146 = vrot.lane.b32.xlu0 %v8463, 28
        %v12147 = vpop.permute.xlu0 %12146
        %12148 = vrot.lane.b32.xlu0 %v8561, 28
        %v12149 = vpop.permute.xlu0 %12148
        %12150 = vrot.lane.b32.xlu0 %v8659, 28
        %v12151 = vpop.permute.xlu0 %12150
        %12152 = vrot.lane.b32.xlu0 %v8757, 28
        %v12153 = vpop.permute.xlu0 %12152
        %12154 = vrot.lane.b32.xlu0 %v8855, 28
        %v12155 = vpop.permute.xlu0 %12154
        %12156 = vrot.lane.b32.xlu0 %v8953, 28
        %v12157 = vpop.permute.xlu0 %12156
        %12158 = vrot.lane.b32.xlu0 %v9051, 28
        %v12159 = vpop.permute.xlu0 %12158
        %12160 = vrot.lane.b32.xlu0 %v9149, 28
        %v12161 = vpop.permute.xlu0 %12160
        %12162 = vrot.lane.b32.xlu0 %v9247, 28
        %v12163 = vpop.permute.xlu0 %12162
        %12164 = vrot.lane.b32.xlu0 %v9345, 28
        %v12165 = vpop.permute.xlu0 %12164
        %12166 = vrot.lane.b32.xlu0 %v9443, 28
        %v12167 = vpop.permute.xlu0 %12166
        %12168 = vrot.lane.b32.xlu0 %v9541, 28
        %v12169 = vpop.permute.xlu0 %12168
        %12170 = vrot.lane.b32.xlu0 %v9639, 28
        %v12171 = vpop.permute.xlu0 %12170
        %12172 = vrot.lane.b32.xlu0 %v9737, 28
        %v12173 = vpop.permute.xlu0 %12172
        %12174 = vrot.lane.b32.xlu0 %v9835, 28
        %v12175 = vpop.permute.xlu0 %12174
        %12176 = vrot.lane.b32.xlu0 %v9933, 28
        %v12177 = vpop.permute.xlu0 %12176
        %12178 = vrot.lane.b32.xlu0 %v10031, 28
        %v12179 = vpop.permute.xlu0 %12178
        %12180 = vrot.lane.b32.xlu0 %v10129, 28
        %v12181 = vpop.permute.xlu0 %12180
        %12182 = vrot.lane.b32.xlu0 %v10227, 28
        %v12183 = vpop.permute.xlu0 %12182
        %12184 = vrot.lane.b32.xlu0 %v10325, 28
        %v12185 = vpop.permute.xlu0 %12184
        %12186 = vrot.lane.b32.xlu0 %v10423, 28
        %v12187 = vpop.permute.xlu0 %12186
        %12252 = vrot.lane.b32.xlu0 %v7389, 30
        %v12253 = vpop.permute.xlu0 %12252
        %12254 = vrot.lane.b32.xlu0 %v7487, 30
        %v12255 = vpop.permute.xlu0 %12254
        %12256 = vrot.lane.b32.xlu0 %v7585, 30
        %v12257 = vpop.permute.xlu0 %12256
        %12258 = vrot.lane.b32.xlu0 %v7683, 30
        %v12259 = vpop.permute.xlu0 %12258
        %12260 = vrot.lane.b32.xlu0 %v7781, 30
        %v12261 = vpop.permute.xlu0 %12260
        %12262 = vrot.lane.b32.xlu0 %v7879, 30
        %v12263 = vpop.permute.xlu0 %12262
        %12264 = vrot.lane.b32.xlu0 %v7977, 30
        %v12265 = vpop.permute.xlu0 %12264
        %12266 = vrot.lane.b32.xlu0 %v8075, 30
        %v12267 = vpop.permute.xlu0 %12266
        %12268 = vrot.lane.b32.xlu0 %v8173, 30
        %v12269 = vpop.permute.xlu0 %12268
        %12270 = vrot.lane.b32.xlu0 %v8271, 30
        %v12271 = vpop.permute.xlu0 %12270
        %12272 = vrot.lane.b32.xlu0 %v8369, 30
        %v12273 = vpop.permute.xlu0 %12272
        %12274 = vrot.lane.b32.xlu0 %v8467, 30
        %v12275 = vpop.permute.xlu0 %12274
        %12276 = vrot.lane.b32.xlu0 %v8565, 30
        %v12277 = vpop.permute.xlu0 %12276
        %12278 = vrot.lane.b32.xlu0 %v8663, 30
        %v12279 = vpop.permute.xlu0 %12278
        %12280 = vrot.lane.b32.xlu0 %v8761, 30
        %v12281 = vpop.permute.xlu0 %12280
        %12282 = vrot.lane.b32.xlu0 %v8859, 30
        %v12283 = vpop.permute.xlu0 %12282
        %12284 = vrot.lane.b32.xlu0 %v8957, 30
        %v12285 = vpop.permute.xlu0 %12284
        %12286 = vrot.lane.b32.xlu0 %v9055, 30
        %v12287 = vpop.permute.xlu0 %12286
        %12288 = vrot.lane.b32.xlu0 %v9153, 30
        %v12289 = vpop.permute.xlu0 %12288
        %12290 = vrot.lane.b32.xlu0 %v9251, 30
        %v12291 = vpop.permute.xlu0 %12290
        %12292 = vrot.lane.b32.xlu0 %v9349, 30
        %v12293 = vpop.permute.xlu0 %12292
        %12294 = vrot.lane.b32.xlu0 %v9447, 30
        %v12295 = vpop.permute.xlu0 %12294
        %12296 = vrot.lane.b32.xlu0 %v9545, 30
        %v12297 = vpop.permute.xlu0 %12296
        %12298 = vrot.lane.b32.xlu0 %v9643, 30
        %v12299 = vpop.permute.xlu0 %12298
        %12300 = vrot.lane.b32.xlu0 %v9741, 30
        %v12301 = vpop.permute.xlu0 %12300
        %12302 = vrot.lane.b32.xlu0 %v9839, 30
        %v12303 = vpop.permute.xlu0 %12302
        %12304 = vrot.lane.b32.xlu0 %v9937, 30
        %v12305 = vpop.permute.xlu0 %12304
        %12306 = vrot.lane.b32.xlu0 %v10035, 30
        %v12307 = vpop.permute.xlu0 %12306
        %12308 = vrot.lane.b32.xlu0 %v10133, 30
        %v12309 = vpop.permute.xlu0 %12308
        %12310 = vrot.lane.b32.xlu0 %v10231, 30
        %v12311 = vpop.permute.xlu0 %12310
        %12312 = vrot.lane.b32.xlu0 %v10329, 30
        %v12313 = vpop.permute.xlu0 %12312
        %12314 = vrot.lane.b32.xlu0 %v10427, 30
        %v12315 = vpop.permute.xlu0 %12314
        %v12348 = vsel %vm5996, %v7314, %v10461
        %v12349 = vsel %vm5996, %v7412, %v10463
        %v12350 = vsel %vm5996, %v7510, %v10465
        %v12351 = vsel %vm5996, %v7608, %v10467
        %v12352 = vsel %vm5996, %v7706, %v10469
        %v12353 = vsel %vm5996, %v7804, %v10471
        %v12354 = vsel %vm5996, %v7902, %v10473
        %v12355 = vsel %vm5996, %v8000, %v10475
        %v12356 = vsel %vm5996, %v8098, %v10477
        %v12357 = vsel %vm5996, %v8196, %v10479
        %v12358 = vsel %vm5996, %v8294, %v10481
        %v12359 = vsel %vm5996, %v8392, %v10483
        %v12360 = vsel %vm5996, %v8490, %v10485
        %v12361 = vsel %vm5996, %v8588, %v10487
        %v12362 = vsel %vm5996, %v8686, %v10489
        %v12363 = vsel %vm5996, %v8784, %v10491
        %v12364 = vsel %vm5996, %v8882, %v10493
        %v12365 = vsel %vm5996, %v8980, %v10495
        %v12366 = vsel %vm5996, %v9078, %v10497
        %v12367 = vsel %vm5996, %v9176, %v10499
        %v12368 = vsel %vm5996, %v9274, %v10501
        %v12369 = vsel %vm5996, %v9372, %v10503
        %v12370 = vsel %vm5996, %v9470, %v10505
        %v12371 = vsel %vm5996, %v9568, %v10507
        %v12372 = vsel %vm5996, %v9666, %v10509
        %v12373 = vsel %vm5996, %v9764, %v10511
        %v12374 = vsel %vm5996, %v9862, %v10513
        %v12375 = vsel %vm5996, %v9960, %v10515
        %v12376 = vsel %vm5996, %v10058, %v10517
        %v12377 = vsel %vm5996, %v10156, %v10519
        %v12378 = vsel %vm5996, %v10254, %v10521
        %v12379 = vsel %vm5996, %v10352, %v10523
        %v12380 = vsel %vm6029, %v12348, %v10589
        %v12381 = vsel %vm6029, %v12349, %v10591
        %v12382 = vsel %vm6029, %v12350, %v10593
        %v12383 = vsel %vm6029, %v12351, %v10595
        %v12384 = vsel %vm6029, %v12352, %v10597
        %v12385 = vsel %vm6029, %v12353, %v10599
        %v12386 = vsel %vm6029, %v12354, %v10601
        %v12387 = vsel %vm6029, %v12355, %v10603
        %v12388 = vsel %vm6029, %v12356, %v10605
        %v12389 = vsel %vm6029, %v12357, %v10607
        %v12390 = vsel %vm6029, %v12358, %v10609
        %v12391 = vsel %vm6029, %v12359, %v10611
        %v12392 = vsel %vm6029, %v12360, %v10613
        %v12393 = vsel %vm6029, %v12361, %v10615
        %v12394 = vsel %vm6029, %v12362, %v10617
        %v12395 = vsel %vm6029, %v12363, %v10619
        %v12396 = vsel %vm6029, %v12364, %v10621
        %v12397 = vsel %vm6029, %v12365, %v10623
        %v12398 = vsel %vm6029, %v12366, %v10625
        %v12399 = vsel %vm6029, %v12367, %v10627
        %v12400 = vsel %vm6029, %v12368, %v10629
        %v12401 = vsel %vm6029, %v12369, %v10631
        %v12402 = vsel %vm6029, %v12370, %v10633
        %v12403 = vsel %vm6029, %v12371, %v10635
        %v12404 = vsel %vm6029, %v12372, %v10637
        %v12405 = vsel %vm6029, %v12373, %v10639
        %v12406 = vsel %vm6029, %v12374, %v10641
        %v12407 = vsel %vm6029, %v12375, %v10643
        %v12408 = vsel %vm6029, %v12376, %v10645
        %v12409 = vsel %vm6029, %v12377, %v10647
        %v12410 = vsel %vm6029, %v12378, %v10649
        %v12411 = vsel %vm6029, %v12379, %v10651
        %v12412 = vsel %vm6062, %v12380, %v10717
        %v12413 = vsel %vm6062, %v12381, %v10719
        %v12414 = vsel %vm6062, %v12382, %v10721
        %v12415 = vsel %vm6062, %v12383, %v10723
        %v12416 = vsel %vm6062, %v12384, %v10725
        %v12417 = vsel %vm6062, %v12385, %v10727
        %v12418 = vsel %vm6062, %v12386, %v10729
        %v12419 = vsel %vm6062, %v12387, %v10731
        %v12420 = vsel %vm6062, %v12388, %v10733
        %v12421 = vsel %vm6062, %v12389, %v10735
        %v12422 = vsel %vm6062, %v12390, %v10737
        %v12423 = vsel %vm6062, %v12391, %v10739
        %v12424 = vsel %vm6062, %v12392, %v10741
        %v12425 = vsel %vm6062, %v12393, %v10743
        %v12426 = vsel %vm6062, %v12394, %v10745
        %v12427 = vsel %vm6062, %v12395, %v10747
        %v12428 = vsel %vm6062, %v12396, %v10749
        %v12429 = vsel %vm6062, %v12397, %v10751
        %v12430 = vsel %vm6062, %v12398, %v10753
        %v12431 = vsel %vm6062, %v12399, %v10755
        %v12432 = vsel %vm6062, %v12400, %v10757
        %v12433 = vsel %vm6062, %v12401, %v10759
        %v12434 = vsel %vm6062, %v12402, %v10761
        %v12435 = vsel %vm6062, %v12403, %v10763
        %v12436 = vsel %vm6062, %v12404, %v10765
        %v12437 = vsel %vm6062, %v12405, %v10767
        %v12438 = vsel %vm6062, %v12406, %v10769
        %v12439 = vsel %vm6062, %v12407, %v10771
        %v12440 = vsel %vm6062, %v12408, %v10773
        %v12441 = vsel %vm6062, %v12409, %v10775
        %v12442 = vsel %vm6062, %v12410, %v10777
        %v12443 = vsel %vm6062, %v12411, %v10779
        %v12444 = vsel %vm6095, %v12412, %v10845
        %v12445 = vsel %vm6095, %v12413, %v10847
        %v12446 = vsel %vm6095, %v12414, %v10849
        %v12447 = vsel %vm6095, %v12415, %v10851
        %v12448 = vsel %vm6095, %v12416, %v10853
        %v12449 = vsel %vm6095, %v12417, %v10855
        %v12450 = vsel %vm6095, %v12418, %v10857
        %v12451 = vsel %vm6095, %v12419, %v10859
        %v12452 = vsel %vm6095, %v12420, %v10861
        %v12453 = vsel %vm6095, %v12421, %v10863
        %v12454 = vsel %vm6095, %v12422, %v10865
        %v12455 = vsel %vm6095, %v12423, %v10867
        %v12456 = vsel %vm6095, %v12424, %v10869
        %v12457 = vsel %vm6095, %v12425, %v10871
        %v12458 = vsel %vm6095, %v12426, %v10873
        %v12459 = vsel %vm6095, %v12427, %v10875
        %v12460 = vsel %vm6095, %v12428, %v10877
        %v12461 = vsel %vm6095, %v12429, %v10879
        %v12462 = vsel %vm6095, %v12430, %v10881
        %v12463 = vsel %vm6095, %v12431, %v10883
        %v12464 = vsel %vm6095, %v12432, %v10885
        %v12465 = vsel %vm6095, %v12433, %v10887
        %v12466 = vsel %vm6095, %v12434, %v10889
        %v12467 = vsel %vm6095, %v12435, %v10891
        %v12468 = vsel %vm6095, %v12436, %v10893
        %v12469 = vsel %vm6095, %v12437, %v10895
        %v12470 = vsel %vm6095, %v12438, %v10897
        %v12471 = vsel %vm6095, %v12439, %v10899
        %v12472 = vsel %vm6095, %v12440, %v10901
        %v12473 = vsel %vm6095, %v12441, %v10903
        %v12474 = vsel %vm6095, %v12442, %v10905
        %v12475 = vsel %vm6095, %v12443, %v10907
        %v12476 = vsel %vm6128, %v12444, %v10973
        %v12477 = vsel %vm6128, %v12445, %v10975
        %v12478 = vsel %vm6128, %v12446, %v10977
        %v12479 = vsel %vm6128, %v12447, %v10979
        %v12480 = vsel %vm6128, %v12448, %v10981
        %v12481 = vsel %vm6128, %v12449, %v10983
        %v12482 = vsel %vm6128, %v12450, %v10985
        %v12483 = vsel %vm6128, %v12451, %v10987
        %v12484 = vsel %vm6128, %v12452, %v10989
        %v12485 = vsel %vm6128, %v12453, %v10991
        %v12486 = vsel %vm6128, %v12454, %v10993
        %v12487 = vsel %vm6128, %v12455, %v10995
        %v12488 = vsel %vm6128, %v12456, %v10997
        %v12489 = vsel %vm6128, %v12457, %v10999
        %v12490 = vsel %vm6128, %v12458, %v11001
        %v12491 = vsel %vm6128, %v12459, %v11003
        %v12492 = vsel %vm6128, %v12460, %v11005
        %v12493 = vsel %vm6128, %v12461, %v11007
        %v12494 = vsel %vm6128, %v12462, %v11009
        %v12495 = vsel %vm6128, %v12463, %v11011
        %v12496 = vsel %vm6128, %v12464, %v11013
        %v12497 = vsel %vm6128, %v12465, %v11015
        %v12498 = vsel %vm6128, %v12466, %v11017
        %v12499 = vsel %vm6128, %v12467, %v11019
        %v12500 = vsel %vm6128, %v12468, %v11021
        %v12501 = vsel %vm6128, %v12469, %v11023
        %v12502 = vsel %vm6128, %v12470, %v11025
        %v12503 = vsel %vm6128, %v12471, %v11027
        %v12504 = vsel %vm6128, %v12472, %v11029
        %v12505 = vsel %vm6128, %v12473, %v11031
        %v12506 = vsel %vm6128, %v12474, %v11033
        %v12507 = vsel %vm6128, %v12475, %v11035
        %v12508 = vsel %vm6161, %v12476, %v11101
        %v12509 = vsel %vm6161, %v12477, %v11103
        %v12510 = vsel %vm6161, %v12478, %v11105
        %v12511 = vsel %vm6161, %v12479, %v11107
        %v12512 = vsel %vm6161, %v12480, %v11109
        %v12513 = vsel %vm6161, %v12481, %v11111
        %v12514 = vsel %vm6161, %v12482, %v11113
        %v12515 = vsel %vm6161, %v12483, %v11115
        %v12516 = vsel %vm6161, %v12484, %v11117
        %v12517 = vsel %vm6161, %v12485, %v11119
        %v12518 = vsel %vm6161, %v12486, %v11121
        %v12519 = vsel %vm6161, %v12487, %v11123
        %v12520 = vsel %vm6161, %v12488, %v11125
        %v12521 = vsel %vm6161, %v12489, %v11127
        %v12522 = vsel %vm6161, %v12490, %v11129
        %v12523 = vsel %vm6161, %v12491, %v11131
        %v12524 = vsel %vm6161, %v12492, %v11133
        %v12525 = vsel %vm6161, %v12493, %v11135
        %v12526 = vsel %vm6161, %v12494, %v11137
        %v12527 = vsel %vm6161, %v12495, %v11139
        %v12528 = vsel %vm6161, %v12496, %v11141
        %v12529 = vsel %vm6161, %v12497, %v11143
        %v12530 = vsel %vm6161, %v12498, %v11145
        %v12531 = vsel %vm6161, %v12499, %v11147
        %v12532 = vsel %vm6161, %v12500, %v11149
        %v12533 = vsel %vm6161, %v12501, %v11151
        %v12534 = vsel %vm6161, %v12502, %v11153
        %v12535 = vsel %vm6161, %v12503, %v11155
        %v12536 = vsel %vm6161, %v12504, %v11157
        %v12537 = vsel %vm6161, %v12505, %v11159
        %v12538 = vsel %vm6161, %v12506, %v11161
        %v12539 = vsel %vm6161, %v12507, %v11163
        %v12540 = vsel %vm6194, %v12508, %v11229
        %v12541 = vsel %vm6194, %v12509, %v11231
        %v12542 = vsel %vm6194, %v12510, %v11233
        %v12543 = vsel %vm6194, %v12511, %v11235
        %v12544 = vsel %vm6194, %v12512, %v11237
        %v12545 = vsel %vm6194, %v12513, %v11239
        %v12546 = vsel %vm6194, %v12514, %v11241
        %v12547 = vsel %vm6194, %v12515, %v11243
        %v12548 = vsel %vm6194, %v12516, %v11245
        %v12549 = vsel %vm6194, %v12517, %v11247
        %v12550 = vsel %vm6194, %v12518, %v11249
        %v12551 = vsel %vm6194, %v12519, %v11251
        %v12552 = vsel %vm6194, %v12520, %v11253
        %v12553 = vsel %vm6194, %v12521, %v11255
        %v12554 = vsel %vm6194, %v12522, %v11257
        %v12555 = vsel %vm6194, %v12523, %v11259
        %v12556 = vsel %vm6194, %v12524, %v11261
        %v12557 = vsel %vm6194, %v12525, %v11263
        %v12558 = vsel %vm6194, %v12526, %v11265
        %v12559 = vsel %vm6194, %v12527, %v11267
        %v12560 = vsel %vm6194, %v12528, %v11269
        %v12561 = vsel %vm6194, %v12529, %v11271
        %v12562 = vsel %vm6194, %v12530, %v11273
        %v12563 = vsel %vm6194, %v12531, %v11275
        %v12564 = vsel %vm6194, %v12532, %v11277
        %v12565 = vsel %vm6194, %v12533, %v11279
        %v12566 = vsel %vm6194, %v12534, %v11281
        %v12567 = vsel %vm6194, %v12535, %v11283
        %v12568 = vsel %vm6194, %v12536, %v11285
        %v12569 = vsel %vm6194, %v12537, %v11287
        %v12570 = vsel %vm6194, %v12538, %v11289
        %v12571 = vsel %vm6194, %v12539, %v11291
        %v12572 = vsel %vm6227, %v12540, %v11357
        %v12573 = vsel %vm6227, %v12541, %v11359
        %v12574 = vsel %vm6227, %v12542, %v11361
        %v12575 = vsel %vm6227, %v12543, %v11363
        %v12576 = vsel %vm6227, %v12544, %v11365
        %v12577 = vsel %vm6227, %v12545, %v11367
        %v12578 = vsel %vm6227, %v12546, %v11369
        %v12579 = vsel %vm6227, %v12547, %v11371
        %v12580 = vsel %vm6227, %v12548, %v11373
        %v12581 = vsel %vm6227, %v12549, %v11375
        %v12582 = vsel %vm6227, %v12550, %v11377
        %v12583 = vsel %vm6227, %v12551, %v11379
        %v12584 = vsel %vm6227, %v12552, %v11381
        %v12585 = vsel %vm6227, %v12553, %v11383
        %v12586 = vsel %vm6227, %v12554, %v11385
        %v12587 = vsel %vm6227, %v12555, %v11387
        %v12588 = vsel %vm6227, %v12556, %v11389
        %v12589 = vsel %vm6227, %v12557, %v11391
        %v12590 = vsel %vm6227, %v12558, %v11393
        %v12591 = vsel %vm6227, %v12559, %v11395
        %v12592 = vsel %vm6227, %v12560, %v11397
        %v12593 = vsel %vm6227, %v12561, %v11399
        %v12594 = vsel %vm6227, %v12562, %v11401
        %v12595 = vsel %vm6227, %v12563, %v11403
        %v12596 = vsel %vm6227, %v12564, %v11405
        %v12597 = vsel %vm6227, %v12565, %v11407
        %v12598 = vsel %vm6227, %v12566, %v11409
        %v12599 = vsel %vm6227, %v12567, %v11411
        %v12600 = vsel %vm6227, %v12568, %v11413
        %v12601 = vsel %vm6227, %v12569, %v11415
        %v12602 = vsel %vm6227, %v12570, %v11417
        %v12603 = vsel %vm6227, %v12571, %v11419
        %v12604 = vsel %vm6260, %v12572, %v11485
        %v12605 = vsel %vm6260, %v12573, %v11487
        %v12606 = vsel %vm6260, %v12574, %v11489
        %v12607 = vsel %vm6260, %v12575, %v11491
        %v12608 = vsel %vm6260, %v12576, %v11493
        %v12609 = vsel %vm6260, %v12577, %v11495
        %v12610 = vsel %vm6260, %v12578, %v11497
        %v12611 = vsel %vm6260, %v12579, %v11499
        %v12612 = vsel %vm6260, %v12580, %v11501
        %v12613 = vsel %vm6260, %v12581, %v11503
        %v12614 = vsel %vm6260, %v12582, %v11505
        %v12615 = vsel %vm6260, %v12583, %v11507
        %v12616 = vsel %vm6260, %v12584, %v11509
        %v12617 = vsel %vm6260, %v12585, %v11511
        %v12618 = vsel %vm6260, %v12586, %v11513
        %v12619 = vsel %vm6260, %v12587, %v11515
        %v12620 = vsel %vm6260, %v12588, %v11517
        %v12621 = vsel %vm6260, %v12589, %v11519
        %v12622 = vsel %vm6260, %v12590, %v11521
        %v12623 = vsel %vm6260, %v12591, %v11523
        %v12624 = vsel %vm6260, %v12592, %v11525
        %v12625 = vsel %vm6260, %v12593, %v11527
        %v12626 = vsel %vm6260, %v12594, %v11529
        %v12627 = vsel %vm6260, %v12595, %v11531
        %v12628 = vsel %vm6260, %v12596, %v11533
        %v12629 = vsel %vm6260, %v12597, %v11535
        %v12630 = vsel %vm6260, %v12598, %v11537
        %v12631 = vsel %vm6260, %v12599, %v11539
        %v12632 = vsel %vm6260, %v12600, %v11541
        %v12633 = vsel %vm6260, %v12601, %v11543
        %v12634 = vsel %vm6260, %v12602, %v11545
        %v12635 = vsel %vm6260, %v12603, %v11547
        %v12636 = vsel %vm6293, %v12604, %v11613
        %v12637 = vsel %vm6293, %v12605, %v11615
        %v12638 = vsel %vm6293, %v12606, %v11617
        %v12639 = vsel %vm6293, %v12607, %v11619
        %v12640 = vsel %vm6293, %v12608, %v11621
        %v12641 = vsel %vm6293, %v12609, %v11623
        %v12642 = vsel %vm6293, %v12610, %v11625
        %v12643 = vsel %vm6293, %v12611, %v11627
        %v12644 = vsel %vm6293, %v12612, %v11629
        %v12645 = vsel %vm6293, %v12613, %v11631
        %v12646 = vsel %vm6293, %v12614, %v11633
        %v12647 = vsel %vm6293, %v12615, %v11635
        %v12648 = vsel %vm6293, %v12616, %v11637
        %v12649 = vsel %vm6293, %v12617, %v11639
        %v12650 = vsel %vm6293, %v12618, %v11641
        %v12651 = vsel %vm6293, %v12619, %v11643
        %v12652 = vsel %vm6293, %v12620, %v11645
        %v12653 = vsel %vm6293, %v12621, %v11647
        %v12654 = vsel %vm6293, %v12622, %v11649
        %v12655 = vsel %vm6293, %v12623, %v11651
        %v12656 = vsel %vm6293, %v12624, %v11653
        %v12657 = vsel %vm6293, %v12625, %v11655
        %v12658 = vsel %vm6293, %v12626, %v11657
        %v12659 = vsel %vm6293, %v12627, %v11659
        %v12660 = vsel %vm6293, %v12628, %v11661
        %v12661 = vsel %vm6293, %v12629, %v11663
        %v12662 = vsel %vm6293, %v12630, %v11665
        %v12663 = vsel %vm6293, %v12631, %v11667
        %v12664 = vsel %vm6293, %v12632, %v11669
        %v12665 = vsel %vm6293, %v12633, %v11671
        %v12666 = vsel %vm6293, %v12634, %v11673
        %v12667 = vsel %vm6293, %v12635, %v11675
        %v12668 = vsel %vm6326, %v12636, %v11741
        %v12669 = vsel %vm6326, %v12637, %v11743
        %v12670 = vsel %vm6326, %v12638, %v11745
        %v12671 = vsel %vm6326, %v12639, %v11747
        %v12672 = vsel %vm6326, %v12640, %v11749
        %v12673 = vsel %vm6326, %v12641, %v11751
        %v12674 = vsel %vm6326, %v12642, %v11753
        %v12675 = vsel %vm6326, %v12643, %v11755
        %v12676 = vsel %vm6326, %v12644, %v11757
        %v12677 = vsel %vm6326, %v12645, %v11759
        %v12678 = vsel %vm6326, %v12646, %v11761
        %v12679 = vsel %vm6326, %v12647, %v11763
        %v12680 = vsel %vm6326, %v12648, %v11765
        %v12681 = vsel %vm6326, %v12649, %v11767
        %v12682 = vsel %vm6326, %v12650, %v11769
        %v12683 = vsel %vm6326, %v12651, %v11771
        %v12684 = vsel %vm6326, %v12652, %v11773
        %v12685 = vsel %vm6326, %v12653, %v11775
        %v12686 = vsel %vm6326, %v12654, %v11777
        %v12687 = vsel %vm6326, %v12655, %v11779
        %v12688 = vsel %vm6326, %v12656, %v11781
        %v12689 = vsel %vm6326, %v12657, %v11783
        %v12690 = vsel %vm6326, %v12658, %v11785
        %v12691 = vsel %vm6326, %v12659, %v11787
        %v12692 = vsel %vm6326, %v12660, %v11789
        %v12693 = vsel %vm6326, %v12661, %v11791
        %v12694 = vsel %vm6326, %v12662, %v11793
        %v12695 = vsel %vm6326, %v12663, %v11795
        %v12696 = vsel %vm6326, %v12664, %v11797
        %v12697 = vsel %vm6326, %v12665, %v11799
        %v12698 = vsel %vm6326, %v12666, %v11801
        %v12699 = vsel %vm6326, %v12667, %v11803
        %v12700 = vsel %vm6359, %v12668, %v11869
        %v12701 = vsel %vm6359, %v12669, %v11871
        %v12702 = vsel %vm6359, %v12670, %v11873
        %v12703 = vsel %vm6359, %v12671, %v11875
        %v12704 = vsel %vm6359, %v12672, %v11877
        %v12705 = vsel %vm6359, %v12673, %v11879
        %v12706 = vsel %vm6359, %v12674, %v11881
        %v12707 = vsel %vm6359, %v12675, %v11883
        %v12708 = vsel %vm6359, %v12676, %v11885
        %v12709 = vsel %vm6359, %v12677, %v11887
        %v12710 = vsel %vm6359, %v12678, %v11889
        %v12711 = vsel %vm6359, %v12679, %v11891
        %v12712 = vsel %vm6359, %v12680, %v11893
        %v12713 = vsel %vm6359, %v12681, %v11895
        %v12714 = vsel %vm6359, %v12682, %v11897
        %v12715 = vsel %vm6359, %v12683, %v11899
        %v12716 = vsel %vm6359, %v12684, %v11901
        %v12717 = vsel %vm6359, %v12685, %v11903
        %v12718 = vsel %vm6359, %v12686, %v11905
        %v12719 = vsel %vm6359, %v12687, %v11907
        %v12720 = vsel %vm6359, %v12688, %v11909
        %v12721 = vsel %vm6359, %v12689, %v11911
        %v12722 = vsel %vm6359, %v12690, %v11913
        %v12723 = vsel %vm6359, %v12691, %v11915
        %v12724 = vsel %vm6359, %v12692, %v11917
        %v12725 = vsel %vm6359, %v12693, %v11919
        %v12726 = vsel %vm6359, %v12694, %v11921
        %v12727 = vsel %vm6359, %v12695, %v11923
        %v12728 = vsel %vm6359, %v12696, %v11925
        %v12729 = vsel %vm6359, %v12697, %v11927
        %v12730 = vsel %vm6359, %v12698, %v11929
        %v12731 = vsel %vm6359, %v12699, %v11931
        %v12732 = vsel %vm6392, %v12700, %v11997
        %v12733 = vsel %vm6392, %v12701, %v11999
        %v12734 = vsel %vm6392, %v12702, %v12001
        %v12735 = vsel %vm6392, %v12703, %v12003
        %v12736 = vsel %vm6392, %v12704, %v12005
        %v12737 = vsel %vm6392, %v12705, %v12007
        %v12738 = vsel %vm6392, %v12706, %v12009
        %v12739 = vsel %vm6392, %v12707, %v12011
        %v12740 = vsel %vm6392, %v12708, %v12013
        %v12741 = vsel %vm6392, %v12709, %v12015
        %v12742 = vsel %vm6392, %v12710, %v12017
        %v12743 = vsel %vm6392, %v12711, %v12019
        %v12744 = vsel %vm6392, %v12712, %v12021
        %v12745 = vsel %vm6392, %v12713, %v12023
        %v12746 = vsel %vm6392, %v12714, %v12025
        %v12747 = vsel %vm6392, %v12715, %v12027
        %v12748 = vsel %vm6392, %v12716, %v12029
        %v12749 = vsel %vm6392, %v12717, %v12031
        %v12750 = vsel %vm6392, %v12718, %v12033
        %v12751 = vsel %vm6392, %v12719, %v12035
        %v12752 = vsel %vm6392, %v12720, %v12037
        %v12753 = vsel %vm6392, %v12721, %v12039
        %v12754 = vsel %vm6392, %v12722, %v12041
        %v12755 = vsel %vm6392, %v12723, %v12043
        %v12756 = vsel %vm6392, %v12724, %v12045
        %v12757 = vsel %vm6392, %v12725, %v12047
        %v12758 = vsel %vm6392, %v12726, %v12049
        %v12759 = vsel %vm6392, %v12727, %v12051
        %v12760 = vsel %vm6392, %v12728, %v12053
        %v12761 = vsel %vm6392, %v12729, %v12055
        %v12762 = vsel %vm6392, %v12730, %v12057
        %v12763 = vsel %vm6392, %v12731, %v12059
        %v12764 = vsel %vm6425, %v12732, %v12125
        %v12765 = vsel %vm6425, %v12733, %v12127
        %v12766 = vsel %vm6425, %v12734, %v12129
        %v12767 = vsel %vm6425, %v12735, %v12131
        %v12768 = vsel %vm6425, %v12736, %v12133
        %v12769 = vsel %vm6425, %v12737, %v12135
        %v12770 = vsel %vm6425, %v12738, %v12137
        %v12771 = vsel %vm6425, %v12739, %v12139
        %v12772 = vsel %vm6425, %v12740, %v12141
        %v12773 = vsel %vm6425, %v12741, %v12143
        %v12774 = vsel %vm6425, %v12742, %v12145
        %v12775 = vsel %vm6425, %v12743, %v12147
        %v12776 = vsel %vm6425, %v12744, %v12149
        %v12777 = vsel %vm6425, %v12745, %v12151
        %v12778 = vsel %vm6425, %v12746, %v12153
        %v12779 = vsel %vm6425, %v12747, %v12155
        %v12780 = vsel %vm6425, %v12748, %v12157
        %v12781 = vsel %vm6425, %v12749, %v12159
        %v12782 = vsel %vm6425, %v12750, %v12161
        %v12783 = vsel %vm6425, %v12751, %v12163
        %v12784 = vsel %vm6425, %v12752, %v12165
        %v12785 = vsel %vm6425, %v12753, %v12167
        %v12786 = vsel %vm6425, %v12754, %v12169
        %v12787 = vsel %vm6425, %v12755, %v12171
        %v12788 = vsel %vm6425, %v12756, %v12173
        %v12789 = vsel %vm6425, %v12757, %v12175
        %v12790 = vsel %vm6425, %v12758, %v12177
        %v12791 = vsel %vm6425, %v12759, %v12179
        %v12792 = vsel %vm6425, %v12760, %v12181
        %v12793 = vsel %vm6425, %v12761, %v12183
        %v12794 = vsel %vm6425, %v12762, %v12185
        %v12795 = vsel %vm6425, %v12763, %v12187
        %v12796 = vsel %vm6458, %v12764, %v12253
        %v12797 = vsel %vm6458, %v12765, %v12255
        %v12798 = vsel %vm6458, %v12766, %v12257
        %v12799 = vsel %vm6458, %v12767, %v12259
        %v12800 = vsel %vm6458, %v12768, %v12261
        %v12801 = vsel %vm6458, %v12769, %v12263
        %v12802 = vsel %vm6458, %v12770, %v12265
        %v12803 = vsel %vm6458, %v12771, %v12267
        %v12804 = vsel %vm6458, %v12772, %v12269
        %v12805 = vsel %vm6458, %v12773, %v12271
        %v12806 = vsel %vm6458, %v12774, %v12273
        %v12807 = vsel %vm6458, %v12775, %v12275
        %v12808 = vsel %vm6458, %v12776, %v12277
        %v12809 = vsel %vm6458, %v12777, %v12279
        %v12810 = vsel %vm6458, %v12778, %v12281
        %v12811 = vsel %vm6458, %v12779, %v12283
        %v12812 = vsel %vm6458, %v12780, %v12285
        %v12813 = vsel %vm6458, %v12781, %v12287
        %v12814 = vsel %vm6458, %v12782, %v12289
        %v12815 = vsel %vm6458, %v12783, %v12291
        %v12816 = vsel %vm6458, %v12784, %v12293
        %v12817 = vsel %vm6458, %v12785, %v12295
        %v12818 = vsel %vm6458, %v12786, %v12297
        %v12819 = vsel %vm6458, %v12787, %v12299
        %v12820 = vsel %vm6458, %v12788, %v12301
        %v12821 = vsel %vm6458, %v12789, %v12303
        %v12822 = vsel %vm6458, %v12790, %v12305
        %v12823 = vsel %vm6458, %v12791, %v12307
        %v12824 = vsel %vm6458, %v12792, %v12309
        %v12825 = vsel %vm6458, %v12793, %v12311
        %v12826 = vsel %vm6458, %v12794, %v12313
        %v12827 = vsel %vm6458, %v12795, %v12315
        %12828 = vst.msk [vmem:[%s152 + $0x1] sm:$0x1] %vm6491, %v12796
        %12829 = vst.msk [vmem:[%s152 + $0x3] sm:$0x1] %vm6491, %v12797
        %12830 = vst.msk [vmem:[%s152 + $0x5] sm:$0x1] %vm6491, %v12798
        %12831 = vst.msk [vmem:[%s152 + $0x7] sm:$0x1] %vm6491, %v12799
        %12832 = vst.msk [vmem:[%s152 + $0x9] sm:$0x1] %vm6491, %v12800
        %12833 = vst.msk [vmem:[%s152 + $0xb] sm:$0x1] %vm6491, %v12801
        %12834 = vst.msk [vmem:[%s152 + $0xd] sm:$0x1] %vm6491, %v12802
        %12835 = vst.msk [vmem:[%s152 + $0xf] sm:$0x1] %vm6491, %v12803
        %12836 = vst.msk [vmem:[%s152 + $0x11] sm:$0x1] %vm6491, %v12804
        %12837 = vst.msk [vmem:[%s152 + $0x13] sm:$0x1] %vm6491, %v12805
        %12838 = vst.msk [vmem:[%s152 + $0x15] sm:$0x1] %vm6491, %v12806
        %12839 = vst.msk [vmem:[%s152 + $0x17] sm:$0x1] %vm6491, %v12807
        %12840 = vst.msk [vmem:[%s152 + $0x19] sm:$0x1] %vm6491, %v12808
        %12841 = vst.msk [vmem:[%s152 + $0x1b] sm:$0x1] %vm6491, %v12809
        %12842 = vst.msk [vmem:[%s152 + $0x1d] sm:$0x1] %vm6491, %v12810
        %12843 = vst.msk [vmem:[%s152 + $0x1f] sm:$0x1] %vm6491, %v12811
        %12844 = vst.msk [vmem:[%s152 + $0x21] sm:$0x1] %vm6491, %v12812
        %12845 = vst.msk [vmem:[%s152 + $0x23] sm:$0x1] %vm6491, %v12813
        %12846 = vst.msk [vmem:[%s152 + $0x25] sm:$0x1] %vm6491, %v12814
        %12847 = vst.msk [vmem:[%s152 + $0x27] sm:$0x1] %vm6491, %v12815
        %12848 = vst.msk [vmem:[%s152 + $0x29] sm:$0x1] %vm6491, %v12816
        %12849 = vst.msk [vmem:[%s152 + $0x2b] sm:$0x1] %vm6491, %v12817
        %12850 = vst.msk [vmem:[%s152 + $0x2d] sm:$0x1] %vm6491, %v12818
        %12851 = vst.msk [vmem:[%s152 + $0x2f] sm:$0x1] %vm6491, %v12819
        %12852 = vst.msk [vmem:[%s152 + $0x31] sm:$0x1] %vm6491, %v12820
        %12853 = vst.msk [vmem:[%s152 + $0x33] sm:$0x1] %vm6491, %v12821
        %12854 = vst.msk [vmem:[%s152 + $0x35] sm:$0x1] %vm6491, %v12822
        %12855 = vst.msk [vmem:[%s152 + $0x37] sm:$0x1] %vm6491, %v12823
        %12856 = vst.msk [vmem:[%s152 + $0x39] sm:$0x1] %vm6491, %v12824
        %12857 = vst.msk [vmem:[%s152 + $0x3b] sm:$0x1] %vm6491, %v12825
        %12858 = vst.msk [vmem:[%s152 + $0x3d] sm:$0x1] %vm6491, %v12826
        %12859 = vst.msk [vmem:[%s152 + $0x3f] sm:$0x1] %vm6491, %v12827
        %s12860 = sand.u32 %s68, 1
        %s12861 = scalar_lea.sflag [#allocation4], %s12860
        %s12862 = sand.u32 %s68, 1
        %s12863 = smul.addr %s12862, 64
        %s12864 = scalar_lea.vmem [#allocation5], %s12863
        // Predicated region
        $region29: #{tpu_custom_call.1} parent=23 // pred_check
          %p12865 = pneg %p78
        $region30: #{tpu_custom_call.1} parent=23 // pred_check_branch
          %12867 = sbr.rel (%p12865) target = $region32
        $region31: #{tpu_custom_call.1} parent=23 // pred_region
          %s12868 = smul.u32 16, %s23
          %s12870 = ssub.s32 1024, 1024
          %12871 = vsyncadd %s12861, %s12870
          %s12872 = smul.addr %s22, 32
          %s12873 = sadd.s32 %s12868, %s12872
          %s12874 = smul.addr %s12873, 32
          %s12875 = scalar_lea.hbm %s1, %s12874
          %s12876 = sshll.u32 %s12864, 4
          %s12877 = int_to_ptr.vmem [resolvable:$true] %s12876
          %12882 = dma.vmem_to_hbm [thread:$0]  %s12877, 1024, %s12875, %s12861, 32, 32, 2
        $region32: #{tpu_custom_call.1} parent=23 // pred_fallthru
          _
      $region24: #{tpu_custom_call.1} parent=5 // pred_fallthru
        _
      %p12883 = scmp.le.s32.totalorder 2, %s13
      // Predicated region
      $region33: #{tpu_custom_call.1} parent=5 // pred_check
        %p12884 = pneg %p12883
      $region34: #{tpu_custom_call.1} parent=5 // pred_check_branch
        %12886 = sbr.rel (%p12884) target = $region36
      $region35: #{tpu_custom_call.1} parent=5 // pred_region
        %s12887 = ssub.s32 %s13, 2
        // Predicated region
        $region37: #{tpu_custom_call.1} parent=35 // pred_check
          %p12888 = pneg %p84
        $region38: #{tpu_custom_call.1} parent=35 // pred_check_branch
          %12890 = sbr.rel (%p12888) target = $region40
        $region39: #{tpu_custom_call.1} parent=35 // pred_region
          %s12891 = sand.u32 %s69, 1
          %s12892 = scalar_lea.sflag [#allocation4], %s12891
          %s12893 = sand.u32 %s69, 1
          %s12894 = smul.addr %s12893, 64
          %s12895 = scalar_lea.vmem [#allocation5], %s12894
          %12896 = dma.done %s12892, 1024
        $region40: #{tpu_custom_call.1} parent=35 // pred_fallthru
          _
      $region36: #{tpu_custom_call.1} parent=5 // pred_fallthru
        _
    $region6: #{tpu_custom_call.1} parent=1 // loop_footer
      %s17 = sadd.s32 1, %s13
    $region7: #{tpu_custom_call.1} parent=1 // loop_footer_branch
      %12 = sbr.rel target = $region3
    $region8: #{tpu_custom_call.1} parent=1 // loop_exit
      _
    %12897 = vsyncpa [#allocation3], 1
    %s12898 = scalar_lea.sflag [#allocation3], 1
    %12899 = vsyncpa %s12898, 1
    %12900 = vsyncpa [#allocation4], 1
    %s12901 = scalar_lea.sflag [#allocation4], 1
    %12902 = vsyncpa %s12901, 1

</llo_original>
